<compile_context>
chip_gen: v6e
topology: v6e:2x2x1
jax: 0.10.0
libtpu: 0.0.40
codegen_flags: <defaults>
</compile_context>

<pallas_src>
import functools

import jax
import jax.numpy as jnp
from jax import lax
from jax.experimental import pallas as pl
from jax.experimental.pallas import tpu as pltpu

_LANES = 128
_SUBLANES = 8
_MAX_BLOCK_ROWS = 4096           # (4096, 128) f32 = 2 MiB per stream per pipeline buffer
_BYPASS_ELEMENTS = 512 * 1024    # below this a fused jnp expression beats a pallas launch


def _round_up(x, m):
    return ((x + m - 1) // m) * m


def _partial_sum(x):
    """(block_rows, 128) f32 -> (8, 128) partial sum via pure vreg adds.

    4 interleaved (8,128) accumulators -> 4 independent add chains that fill the
    VALU slots; requires block_rows % 32 == 0 (enforced by the wrapper)."""
    slabs = x.shape[0] // _SUBLANES
    y = x.reshape(slabs // 4, 4, _SUBLANES, _LANES).sum(axis=0)
    return (y[0] + y[1]) + (y[2] + y[3])


def _mae_sum_kernel(*refs, block_rows, rows, blocks_per_shard, needs_mask,
                    has_valid, sum_valid):
    """Accumulate per-shard [sum(|gt-pred|*valid)[, sum(valid)]] into a resident slab."""
    if has_valid:
        pred_ref, gt_ref, valid_ref, out_ref = refs
    else:
        pred_ref, gt_ref, out_ref = refs

    shard = pl.program_id(0)
    step = pl.program_id(1)

    @pl.when(step == 0)
    def _():
        out_ref[...] = jnp.zeros_like(out_ref)

    pred = pred_ref[...].astype(jnp.float32)
    gt = gt_ref[...].astype(jnp.float32)
    masked = jnp.abs(gt - pred)
    if has_valid:
        valid = valid_ref[...].astype(jnp.float32)
        masked = masked * valid

    if needs_mask:  # static python bool: only emitted when the grid overshoots `rows`
        row0 = (shard * blocks_per_shard + step) * block_rows
        row = row0 + lax.broadcasted_iota(jnp.int32, masked.shape, 0)
        keep = row < rows
        masked = jnp.where(keep, masked, 0.0)
        if has_valid and sum_valid:
            valid = jnp.where(keep, valid, 0.0)

    out_ref[0, 0] += _partial_sum(masked)
    if has_valid and sum_valid:
        out_ref[0, 1] += _partial_sum(valid)


def _launch_reduction(streams, *, rows, block_rows, has_valid, sum_valid):
    """Run the streaming reduction; returns (abs_sum, valid_sum_or_None)."""
    n_blocks = -(-rows // block_rows)
    n_shards = 2 if n_blocks >= 2 else 1            # v7x dual-TC split; sequential on 1-TC
    blocks_per_shard = -(-n_blocks // n_shards)
    needs_mask = (n_shards * blocks_per_shard * block_rows) != rows
    needs_clamp = (n_shards * blocks_per_shard) != n_blocks
    n_channels = 2 if (has_valid and sum_valid) else 1

    def in_map(s, i):
        blk = s * blocks_per_shard + i
        if needs_clamp:
            # Odd block count split over 2 shards: the duplicate block re-reads the
            # last real block and is fully zeroed by the in-kernel row mask.
            blk = jnp.minimum(blk, n_blocks - 1)
        return (blk, 0)

    in_spec = pl.BlockSpec((block_rows, _LANES), in_map)
    out_spec = pl.BlockSpec((1, n_channels, _SUBLANES, _LANES),
                            lambda s, i: (s, 0, 0, 0))

    # Explicit scoped-VMEM budget: double-buffered input blocks + headroom for the
    # elementwise temporaries.  Well under v7x's 64 MiB physical VMEM.
    block_bytes = sum(block_rows * _LANES * x.dtype.itemsize for x in streams)
    vmem_limit = int(min(56 << 20, 2 * block_bytes + (24 << 20)))

    kernel = functools.partial(
        _mae_sum_kernel, block_rows=block_rows, rows=rows,
        blocks_per_shard=blocks_per_shard, needs_mask=needs_mask,
        has_valid=has_valid, sum_valid=sum_valid)

    acc = pl.pallas_call(
        kernel,
        out_shape=jax.ShapeDtypeStruct(
            (n_shards, n_channels, _SUBLANES, _LANES), jnp.float32),
        grid_spec=pltpu.PrefetchScalarGridSpec(
            num_scalar_prefetch=0,
            grid=(n_shards, blocks_per_shard),
            in_specs=[in_spec] * len(streams),
            out_specs=out_spec,
        ),
        compiler_params=pltpu.CompilerParams(
            dimension_semantics=("parallel", "arbitrary"),
            vmem_limit_bytes=vmem_limit,
        ),
    )(*streams)

    abs_sum = jnp.sum(acc[:, 0])
    valid_sum = jnp.sum(acc[:, 1]) if n_channels == 2 else None
    return abs_sum, valid_sum


def _reference(pred, gt, valid=None):
    """Pure-jnp mirror of the torch module (f32 accumulation). Also the small-input path."""
    p = pred.astype(jnp.float32)
    g = gt.astype(jnp.float32)
    v = jnp.ones_like(p) if valid is None else valid.astype(jnp.float32)
    dimension = pred.shape[-1]
    loss = jnp.sum(jnp.abs(g - p) * v)          # validity broadcasts in the multiply
    count = jnp.sum(v)                          # as-given (non-broadcast) shape
    return loss / (dimension * jnp.maximum(jnp.float32(1.0), count))


def keypoints_mae_loss(keypoints_pred, keypoints_gt, keypoints_binary_validity=None,
                       *, max_block_rows=_MAX_BLOCK_ROWS,
                       min_kernel_elements=_BYPASS_ELEMENTS):
    pred = keypoints_pred
    gt = keypoints_gt
    valid = keypoints_binary_validity
    dimension = pred.shape[-1]
    n = pred.size

    # Small-input bypass: typical keypoint losses are launch-overhead dominated.
    if n < max(min_kernel_elements, _LANES):
        return _reference(pred, gt, valid)

    assert max_block_rows >= 32 and max_block_rows % 32 == 0

    body_n = (n // _LANES) * _LANES          # lane-aligned body handled by the kernel
    tail_n = n - body_n                      # < 128 elements, reduced in the wrapper
    rows = body_n // _LANES

    pred_flat = pred.reshape(-1)             # free bitcast
    gt_flat = gt.reshape(-1)

    has_valid = valid is not None
    same_shape = has_valid and tuple(valid.shape) == tuple(pred.shape)
    sum_valid = same_shape   # only then does the kernel's valid sum equal the as-given sum

    valid_flat = None
    if has_valid:
        if same_shape:
            valid_stream = valid
            if jnp.issubdtype(valid_stream.dtype, jnp.bool_):
                valid_stream = valid_stream.astype(jnp.bfloat16)
        else:
            # torch broadcasts validity only inside |gt - pred| * valid.  Binary 0/1
            # masks are exact in bf16, which halves the materialized stream's bytes.
            valid_stream = jnp.broadcast_to(valid.astype(jnp.bfloat16), pred.shape)
        valid_flat = valid_stream.reshape(-1)

    def body2d(flat):
        if tail_n:
            # TODO(synk): this slice still materializes one body copy when n % 128 != 0.
            flat = lax.slice(flat, (0,), (body_n,))
        return flat.reshape(rows, _LANES)

    streams = [body2d(pred_flat), body2d(gt_flat)]
    if has_valid:
        streams.append(body2d(valid_flat))

    block_rows = min(max_block_rows, _round_up(rows, 32))
    abs_sum, body_valid_sum = _launch_reduction(
        streams, rows=rows, block_rows=block_rows,
        has_valid=has_valid, sum_valid=sum_valid)

    # Denominator follows torch: validity summed at its ORIGINAL shape (f32 accumulation).
    if not has_valid:
        valid_count = jnp.float32(n)
    elif sum_valid:
        valid_count = body_valid_sum
    else:
        valid_count = jnp.sum(valid, dtype=jnp.float32)

    if tail_n:
        p_t = lax.slice(pred_flat, (body_n,), (n,)).astype(jnp.float32)
        g_t = lax.slice(gt_flat, (body_n,), (n,)).astype(jnp.float32)
        tail_diff = jnp.abs(g_t - p_t)
        if has_valid:
            v_t = lax.slice(valid_flat, (body_n,), (n,)).astype(jnp.float32)
            abs_sum = abs_sum + jnp.sum(tail_diff * v_t)
            if sum_valid:
                valid_count = valid_count + jnp.sum(v_t)
        else:
            abs_sum = abs_sum + jnp.sum(tail_diff)

    denom = dimension * jnp.maximum(jnp.float32(1.0), valid_count)
    return abs_sum / denom


if __name__ == "__main__":
    keys = jax.random.split(jax.random.PRNGKey(0), 8)
    D = 3
    cases = []

    # Typical keypoint tensors: (B, J, 3) -> small-input bypass path.
    B, J = 2, 17
    pred_s = jax.random.normal(keys[0], (B, J, D), dtype=jnp.float32)
    gt_s = jax.random.normal(keys[1], (B, J, D), dtype=jnp.float32)
    valid_bj1 = (jax.random.uniform(keys[2], (B, J, 1)) > 0.2).astype(jnp.float32)
    valid_bjd = (jax.random.uniform(keys[3], (B, J, D)) > 0.2).astype(jnp.float32)
    cases += [
        (pred_s, gt_s, valid_bj1, {}),
        (pred_s, gt_s, valid_bjd, {}),
        (pred_s, gt_s, None, {}),
    ]

    # Medium input, default config: 1024*344*3 = 1,056,768 elems -> 8256 lane rows,
    # 3 blocks of 4096 rows split over 2 shards (ragged block + clamped duplicate).
    Bm, Jm = 1024, 344
    pred_m = jax.random.normal(keys[4], (Bm, Jm, D), dtype=jnp.float32)
    gt_m = pred_m + 0.1 * jax.random.normal(keys[5], (Bm, Jm, D), dtype=jnp.float32)
    valid_m1 = (jax.random.uniform(keys[6], (Bm, Jm, 1)) > 0.1).astype(jnp.float32)
    valid_mf = (jax.random.uniform(keys[7], (Bm, Jm, D)) > 0.1).astype(jnp.float32)
    cases += [
        (pred_m, gt_m, valid_m1, {}),   # broadcast bf16 mask, as-given denominator
        (pred_m, gt_m, valid_mf, {}),   # same-shape: valid sum accumulated in-kernel
        (pred_m, gt_m, None, {}),       # 2-stream specialisation
    ]

    # Misaligned tail + small-block override: exercises the wrapper tail reduction,
    # the clamped duplicate block and the ragged row mask with tiny data.
    Bo, Jo = 123, 45                    # 16,605 elems = 129 lane rows + 93-elem tail
    pred_o = jax.random.normal(keys[0], (Bo, Jo, D), dtype=jnp.float32)
    gt_o = jax.random.normal(keys[1], (Bo, Jo, D), dtype=jnp.float32)
    valid_o = (jax.random.uniform(keys[2], (Bo, Jo, 1)) > 0.3).astype(jnp.float32)
    small_cfg = dict(max_block_rows=32, min_kernel_elements=0)
    cases += [
        (pred_o, gt_o, valid_o, small_cfg),
        (pred_o, gt_o, None, small_cfg),
    ]

    for p, g, v, cfg in cases:
        got = jax.block_until_ready(keypoints_mae_loss(p, g, v, **cfg))
        want = jax.block_until_ready(_reference(p, g, v))
        assert jnp.allclose(got, want, rtol=1e-4, atol=1e-6), \
            (p.shape, None if v is None else v.shape, got, want)

    print("KERNEL_OK")
</pallas_src>

<mosaic_0001>
module attributes {stable_mosaic.version = 11 : i64} {
  func.func @_mae_sum_kernel(%arg0: i32, %arg1: i32, %arg2: memref<4096x128xf32, #tpu.memory_space<vmem>>, %arg3: memref<4096x128xf32, #tpu.memory_space<vmem>>, %arg4: memref<4096x128xbf16, #tpu.memory_space<vmem>>, %arg5: memref<1x1x8x128xf32, #tpu.memory_space<vmem>>) attributes {dimension_semantics = [#tpu.dimension_semantics<parallel>, #tpu.dimension_semantics<arbitrary>], iteration_bounds = array<i64: 2, 2>, scalar_prefetch = 0 : i64, scratch_operands = 0 : i64, tpu.core_type = #tpu.core_type<tc>, window_params = [{transform_indices = @transform_0, window_bounds = array<i64: 4096, 128>}, {transform_indices = @transform_1, window_bounds = array<i64: 4096, 128>}, {transform_indices = @transform_2, window_bounds = array<i64: 4096, 128>}, {transform_indices = @transform_3, window_bounds = array<i64: 1, 1, 8, 128>}]} {
    %c0_i32 = arith.constant 0 : i32
    %0 = arith.cmpi eq, %arg1, %c0_i32 : i32
    %1 = arith.extui %0 : i1 to i32
    %c0_i32_0 = arith.constant 0 : i32
    %2 = arith.cmpi ne, %1, %c0_i32_0 : i32
    scf.if %2 {
      %cst_15 = arith.constant 0.000000e+00 : f32
      %39 = vector.broadcast %cst_15 : f32 to vector<1x1x8x128xf32>
      %c0_16 = arith.constant 0 : index
      %c0_17 = arith.constant 0 : index
      %c0_18 = arith.constant 0 : index
      %c0_19 = arith.constant 0 : index
      %40 = vector.load %arg5[%c0_16, %c0_17, %c0_18, %c0_19] : memref<1x1x8x128xf32, #tpu.memory_space<vmem>>, vector<1x1x8x128xf32>
      tpu.vector_store %arg5[%c0_16, %c0_17, %c0_18, %c0_19], %39 {strides = array<i32>} : memref<1x1x8x128xf32, #tpu.memory_space<vmem>>, vector<1x1x8x128xf32>,
    } else {
    }
    %c0 = arith.constant 0 : index
    %c0_1 = arith.constant 0 : index
    %3 = vector.load %arg2[%c0, %c0_1] : memref<4096x128xf32, #tpu.memory_space<vmem>>, vector<4096x128xf32>
    %c0_2 = arith.constant 0 : index
    %c0_3 = arith.constant 0 : index
    %4 = vector.load %arg3[%c0_2, %c0_3] : memref<4096x128xf32, #tpu.memory_space<vmem>>, vector<4096x128xf32>
    %5 = arith.subf %4, %3 : vector<4096x128xf32>
    %6 = math.absf %5 : vector<4096x128xf32>
    %c0_4 = arith.constant 0 : index
    %c0_5 = arith.constant 0 : index
    %7 = vector.load %arg4[%c0_4, %c0_5] : memref<4096x128xbf16, #tpu.memory_space<vmem>>, vector<4096x128xbf16>
    %8 = arith.extf %7 : vector<4096x128xbf16> to vector<4096x128xf32>
    %9 = arith.mulf %6, %8 : vector<4096x128xf32>
    %c2_i32 = arith.constant 2 : i32
    %10 = arith.muli %arg0, %c2_i32 : i32
    %11 = arith.addi %10, %arg1 : i32
    %c4096_i32 = arith.constant 4096 : i32
    %12 = arith.muli %11, %c4096_i32 : i32
    %13 = tpu.iota {dimensions = array<i32: 0>} : vector<4096x128xi32>
    %14 = vector.broadcast %12 : i32 to vector<4096x128xi32>
    %15 = arith.addi %14, %13 : vector<4096x128xi32>
    %c8256_i32 = arith.constant 8256 : i32
    %16 = vector.broadcast %c8256_i32 : i32 to vector<4096x128xi32>
    %17 = arith.cmpi slt, %15, %16 : vector<4096x128xi32>
    %cst = arith.constant 0.000000e+00 : f32
    %18 = vector.broadcast %cst : f32 to vector<4096x128xf32>
    %19 = arith.select %17, %9, %18 : vector<4096x128xi1>, vector<4096x128xf32>
    %c0_6 = arith.constant 0 : index
    %c0_7 = arith.constant 0 : index
    %c0_8 = arith.constant 0 : index
    %c0_9 = arith.constant 0 : index
    %20 = vector.load %arg5[%c0_6, %c0_7, %c0_8, %c0_9] : memref<1x1x8x128xf32, #tpu.memory_space<vmem>>, vector<1x1x8x128xf32>
    %21 = vector.shape_cast %20 : vector<1x1x8x128xf32> to vector<8x128xf32>
    %22 = vector.shape_cast %19 : vector<4096x128xf32> to vector<128x4x8x128xf32>
    %cst_10 = arith.constant dense<0.000000e+00> : vector<4x8x128xf32>
    %23 = vector.multi_reduction <add>, %22, %cst_10 [0] : vector<128x4x8x128xf32> to vector<4x8x128xf32>
    %24 = vector.extract_strided_slice %23 {offsets = [0, 0, 0], sizes = [1, 8, 128], strides = [1, 1, 1]} : vector<4x8x128xf32> to vector<1x8x128xf32>
    %25 = vector.shape_cast %24 : vector<1x8x128xf32> to vector<8x128xf32>
    %26 = vector.extract_strided_slice %23 {offsets = [1, 0, 0], sizes = [1, 8, 128], strides = [1, 1, 1]} : vector<4x8x128xf32> to vector<1x8x128xf32>
    %27 = vector.shape_cast %26 : vector<1x8x128xf32> to vector<8x128xf32>
    %28 = arith.addf %25, %27 : vector<8x128xf32>
    %29 = vector.extract_strided_slice %23 {offsets = [2, 0, 0], sizes = [1, 8, 128], strides = [1, 1, 1]} : vector<4x8x128xf32> to vector<1x8x128xf32>
    %30 = vector.shape_cast %29 : vector<1x8x128xf32> to vector<8x128xf32>
    %31 = vector.extract_strided_slice %23 {offsets = [3, 0, 0], sizes = [1, 8, 128], strides = [1, 1, 1]} : vector<4x8x128xf32> to vector<1x8x128xf32>
    %32 = vector.shape_cast %31 : vector<1x8x128xf32> to vector<8x128xf32>
    %33 = arith.addf %30, %32 : vector<8x128xf32>
    %34 = arith.addf %28, %33 : vector<8x128xf32>
    %35 = arith.addf %21, %34 : vector<8x128xf32>
    %c0_11 = arith.constant 0 : index
    %c0_12 = arith.constant 0 : index
    %c0_13 = arith.constant 0 : index
    %c0_14 = arith.constant 0 : index
    %36 = vector.load %arg5[%c0_11, %c0_12, %c0_13, %c0_14] : memref<1x1x8x128xf32, #tpu.memory_space<vmem>>, vector<1x1x8x128xf32>
    %37 = vector.shape_cast %36 : vector<1x1x8x128xf32> to vector<8x128xf32>
    %38 = vector.shape_cast %35 : vector<8x128xf32> to vector<1x1x8x128xf32>
    tpu.vector_store %arg5[%c0_11, %c0_12, %c0_13, %c0_14], %38 {strides = array<i32>} : memref<1x1x8x128xf32, #tpu.memory_space<vmem>>, vector<1x1x8x128xf32>,
    return
  }
  func.func @transform_0(%arg0: i32, %arg1: i32) -> (i32, i32) {
    %c2_i32 = arith.constant 2 : i32
    %0 = arith.muli %arg0, %c2_i32 : i32
    %1 = arith.addi %0, %arg1 : i32
    %c2_i32_0 = arith.constant 2 : i32
    %2 = arith.minsi %1, %c2_i32_0 : i32
    %c0_i32 = arith.constant 0 : i32
    %c0_i32_1 = arith.constant 0 : i32
    return %2, %c0_i32 : i32, i32
  }
  func.func @transform_1(%arg0: i32, %arg1: i32) -> (i32, i32) {
    %c2_i32 = arith.constant 2 : i32
    %0 = arith.muli %arg0, %c2_i32 : i32
    %1 = arith.addi %0, %arg1 : i32
    %c2_i32_0 = arith.constant 2 : i32
    %2 = arith.minsi %1, %c2_i32_0 : i32
    %c0_i32 = arith.constant 0 : i32
    %c0_i32_1 = arith.constant 0 : i32
    return %2, %c0_i32 : i32, i32
  }
  func.func @transform_2(%arg0: i32, %arg1: i32) -> (i32, i32) {
    %c2_i32 = arith.constant 2 : i32
    %0 = arith.muli %arg0, %c2_i32 : i32
    %1 = arith.addi %0, %arg1 : i32
    %c2_i32_0 = arith.constant 2 : i32
    %2 = arith.minsi %1, %c2_i32_0 : i32
    %c0_i32 = arith.constant 0 : i32
    %c0_i32_1 = arith.constant 0 : i32
    return %2, %c0_i32 : i32, i32
  }
  func.func @transform_3(%arg0: i32, %arg1: i32) -> (i32, i32, i32, i32) {
    %c0_i32 = arith.constant 0 : i32
    %c0_i32_0 = arith.constant 0 : i32
    %c0_i32_1 = arith.constant 0 : i32
    %c0_i32_2 = arith.constant 0 : i32
    return %arg0, %c0_i32, %c0_i32_0, %c0_i32_1 : i32, i32, i32, i32
  }
}

</mosaic_0001>

<llo_original>
// kernel: tpu_custom_call.1
$region0: #{tpu_custom_call.1}
  #allocation0 [shape = 'u32[]', space=smem, size = 0x4, offset = 0x4, fixed_abs, tag = 'smem constant byte address 0x4 - core index']
  #allocation1 [shape = 'u32[144,128]{1,0:T(1,128)}', space=vmem, size = 0x12000, scoped, tag = 'internal scratch']
  %s0 = inlined_call_operand.hbm [shape: f32[8256,128], index: 0, kind: input, shape index: {}]
  %s1 = inlined_call_operand.hbm [shape: f32[8256,128], index: 1, kind: input, shape index: {}]
  %s2 = inlined_call_operand.hbm [shape: bf16[8256,128], index: 2, kind: input, shape index: {}]
  %s3 = inlined_call_operand.hbm [shape: f32[2,1,8,128], index: 3, kind: output, shape index: {}]
  %s4 = sld [smem:[#allocation0]]
  $region61: #{tpu_custom_call.1} parent=0
    _
  %s6 = ssub.s32 1, %s4
  %s7 = scalar_select 0, %s6, %s4
  $region1: #{tpu_custom_call.1} parent=0
    #allocation2 [shape = 'u8[4194304]{0}', space=vmem, size = 0x400000, scoped, tag = 'input window, operand 0']
    #allocation3 [shape = 's32[2]{0}', space=sflag, size = 0x8, scoped, tag = 'scoped memory for tpu_custom_call.1']
    #allocation4 [shape = 's32[2]{0}', space=sflag, size = 0x8, scoped, tag = 'scoped memory for tpu_custom_call.1']
    #allocation5 [shape = 'u8[4194304]{0}', space=vmem, size = 0x400000, scoped, tag = 'input window, operand 1']
    #allocation6 [shape = 's32[2]{0}', space=sflag, size = 0x8, scoped, tag = 'scoped memory for tpu_custom_call.1']
    #allocation7 [shape = 'u8[2097152]{0}', space=vmem, size = 0x200000, scoped, tag = 'input window, operand 2']
    #allocation8 [shape = 'u8[8192]{0}', space=vmem, size = 0x2000, scoped, tag = 'output window, operand 0']
    %8 = vsyncpa [#allocation3], 0
    %s9 = scalar_lea.sflag [#allocation3], 1
    %10 = vsyncpa %s9, 0
    %11 = vsyncpa [#allocation6], 0
    %s12 = scalar_lea.sflag [#allocation6], 1
    %13 = vsyncpa %s12, 0
    %14 = vsyncpa [#allocation4], 0
    %s15 = scalar_lea.sflag [#allocation4], 1
    %16 = vsyncpa %s15, 0
    loop: start=0, step=1, limit=6
    $region2: #{tpu_custom_call.1} parent=1 // loop_pre_header
      _
    $region3: #{tpu_custom_call.1} parent=1 // loop_header
      %s18 = sphi 0, %s22
      %p19 = scmp.ge.s32.totalorder %s18, 6
      %s25 = sphi 0, %s37
      %s26 = sphi 0, %s33
      %s27 = sphi 0, %s25
      %s28 = sphi 0, %s26
      %s29 = sphi 0, %s27
      %s30 = sphi 0, %s28
      %s48 = sphi 0, %s50
      %s51 = sphi 0, %s48
      %s52 = sphi 0, %s51
      %s68 = sphi 0, %s52
      %s82 = sphi 0, %s84
      %s85 = sphi 0, %s82
      %s86 = sphi 0, %s85
      %s102 = sphi 0, %s86
      %s116 = sphi 0, %s118
      %s119 = sphi 0, %s116
      %s120 = sphi 0, %s119
      %s136 = sphi 0, %s120
      %s142 = sphi 0, %s144
      %s145 = sphi 0, %s142
      %s146 = sphi 0, %s145
      %s162 = sphi 0, %s146
    $region4: #{tpu_custom_call.1} parent=1 // loop_header_branch
      %21 = sbr.rel (%p19) target = $region8
    $region5: #{tpu_custom_call.1} parent=1 // loop_body
      %s23 = ssub.s32 %s18, 1
      %s24 = ssub.s32 %s18, 2
      %s31 = sadd.s32 1, %s26
      %p32 = scmp.ge.s32.totalorder %s31, 2
      %s33 = scalar_select %p32, 0, %s31
      %s34 = sadd.s32 1, %s25
      %s35 = scalar_select %p32, %s34, %s25
      %p36 = scmp.ge.s32.totalorder %s35, 2
      %s37 = scalar_select %p36, 0, %s35
      %s38 = smul.u32 %s25, 2
      %s39 = sadd.s32 %s38, %s26
      %p40 = scmp.lt.s32.totalorder %s39, 2
      %s41 = scalar_select %p40, %s39, 2
      %s42 = smul.u32 %s37, 2
      %s43 = sadd.s32 %s42, %s33
      %p44 = scmp.lt.s32.totalorder %s43, 2
      %s45 = scalar_select %p44, %s43, 2
      %s46 = ssub.s32 %s41, %s45
      %p47 = scmp.eq.s32.totalorder %s46, 0
      %s49 = sadd.s32 %s48, 1
      %s50 = scalar_select %p47, %s48, %s49
      %p53 = pneg %p47
      %p54 = scmp.eq.s32.totalorder %s18, 3
      %p55 = por %p53, %p54
      %p56 = scmp.ne.s32.totalorder %s48, %s51
      %p57 = scmp.eq.s32.totalorder %s18, 0
      %p58 = por %p56, %p57
      %p59 = scmp.ne.s32.totalorder %s48, %s51
      %p60 = scmp.eq.s32.totalorder %s23, 3
      %p61 = por %p59, %p60
      %p62 = scmp.ne.s32.totalorder %s51, %s52
      %p63 = scmp.eq.s32.totalorder %s23, 0
      %p64 = por %p62, %p63
      %p65 = scmp.ne.s32.totalorder %s51, %s52
      %p66 = scmp.eq.s32.totalorder %s24, 3
      %p67 = por %p65, %p66
      %p69 = scmp.ne.s32.totalorder %s52, %s68
      %p70 = scmp.eq.s32.totalorder %s24, 0
      %p71 = por %p69, %p70
      %s72 = smul.u32 %s25, 2
      %s73 = sadd.s32 %s72, %s26
      %p74 = scmp.lt.s32.totalorder %s73, 2
      %s75 = scalar_select %p74, %s73, 2
      %s76 = smul.u32 %s37, 2
      %s77 = sadd.s32 %s76, %s33
      %p78 = scmp.lt.s32.totalorder %s77, 2
      %s79 = scalar_select %p78, %s77, 2
      %s80 = ssub.s32 %s75, %s79
      %p81 = scmp.eq.s32.totalorder %s80, 0
      %s83 = sadd.s32 %s82, 1
      %s84 = scalar_select %p81, %s82, %s83
      %p87 = pneg %p81
      %p88 = scmp.eq.s32.totalorder %s18, 3
      %p89 = por %p87, %p88
      %p90 = scmp.ne.s32.totalorder %s82, %s85
      %p91 = scmp.eq.s32.totalorder %s18, 0
      %p92 = por %p90, %p91
      %p93 = scmp.ne.s32.totalorder %s82, %s85
      %p94 = scmp.eq.s32.totalorder %s23, 3
      %p95 = por %p93, %p94
      %p96 = scmp.ne.s32.totalorder %s85, %s86
      %p97 = scmp.eq.s32.totalorder %s23, 0
      %p98 = por %p96, %p97
      %p99 = scmp.ne.s32.totalorder %s85, %s86
      %p100 = scmp.eq.s32.totalorder %s24, 3
      %p101 = por %p99, %p100
      %p103 = scmp.ne.s32.totalorder %s86, %s102
      %p104 = scmp.eq.s32.totalorder %s24, 0
      %p105 = por %p103, %p104
      %s106 = smul.u32 %s25, 2
      %s107 = sadd.s32 %s106, %s26
      %p108 = scmp.lt.s32.totalorder %s107, 2
      %s109 = scalar_select %p108, %s107, 2
      %s110 = smul.u32 %s37, 2
      %s111 = sadd.s32 %s110, %s33
      %p112 = scmp.lt.s32.totalorder %s111, 2
      %s113 = scalar_select %p112, %s111, 2
      %s114 = ssub.s32 %s109, %s113
      %p115 = scmp.eq.s32.totalorder %s114, 0
      %s117 = sadd.s32 %s116, 1
      %s118 = scalar_select %p115, %s116, %s117
      %p121 = pneg %p115
      %p122 = scmp.eq.s32.totalorder %s18, 3
      %p123 = por %p121, %p122
      %p124 = scmp.ne.s32.totalorder %s116, %s119
      %p125 = scmp.eq.s32.totalorder %s18, 0
      %p126 = por %p124, %p125
      %p127 = scmp.ne.s32.totalorder %s116, %s119
      %p128 = scmp.eq.s32.totalorder %s23, 3
      %p129 = por %p127, %p128
      %p130 = scmp.ne.s32.totalorder %s119, %s120
      %p131 = scmp.eq.s32.totalorder %s23, 0
      %p132 = por %p130, %p131
      %p133 = scmp.ne.s32.totalorder %s119, %s120
      %p134 = scmp.eq.s32.totalorder %s24, 3
      %p135 = por %p133, %p134
      %p137 = scmp.ne.s32.totalorder %s120, %s136
      %p138 = scmp.eq.s32.totalorder %s24, 0
      %p139 = por %p137, %p138
      %s140 = ssub.s32 %s25, %s37
      %p141 = scmp.eq.s32.totalorder %s140, 0
      %s143 = sadd.s32 %s142, 1
      %s144 = scalar_select %p141, %s142, %s143
      %p147 = pneg %p141
      %p148 = scmp.eq.s32.totalorder %s18, 3
      %p149 = por %p147, %p148
      %p150 = scmp.ne.s32.totalorder %s142, %s145
      %p151 = scmp.eq.s32.totalorder %s18, 0
      %p152 = por %p150, %p151
      %p153 = scmp.ne.s32.totalorder %s142, %s145
      %p154 = scmp.eq.s32.totalorder %s23, 3
      %p155 = por %p153, %p154
      %p156 = scmp.ne.s32.totalorder %s145, %s146
      %p157 = scmp.eq.s32.totalorder %s23, 0
      %p158 = por %p156, %p157
      %p159 = scmp.ne.s32.totalorder %s145, %s146
      %p160 = scmp.eq.s32.totalorder %s24, 3
      %p161 = por %p159, %p160
      %p163 = scmp.ne.s32.totalorder %s146, %s162
      %p164 = scmp.eq.s32.totalorder %s24, 0
      %p165 = por %p163, %p164
      %p166 = scmp.le.s32.totalorder 1, %s18
      %p167 = scmp.lt.s32.totalorder %s18, 5
      %p168 = pnand %p166, %p167
      %p169 = pneg %p168
      // Predicated region
      $region9: #{tpu_custom_call.1} parent=5 // pred_check
        _
      $region10: #{tpu_custom_call.1} parent=5 // pred_check_branch
        %171 = sbr.rel (%p168) target = $region12
      $region11: #{tpu_custom_call.1} parent=5 // pred_region
        %s172 = ssub.s32 %s18, 1
      $region12: #{tpu_custom_call.1} parent=5 // pred_fallthru
        _
      %p173 = scmp.lt.s32.totalorder %s18, 4
      // Predicated region
      $region13: #{tpu_custom_call.1} parent=5 // pred_check
        %p174 = pneg %p173
      $region14: #{tpu_custom_call.1} parent=5 // pred_check_branch
        %176 = sbr.rel (%p174) target = $region16
      $region15: #{tpu_custom_call.1} parent=5 // pred_region
        // Predicated region
        $region17: #{tpu_custom_call.1} parent=15 // pred_check
          %p177 = pneg %p58
        $region18: #{tpu_custom_call.1} parent=15 // pred_check_branch
          %179 = sbr.rel (%p177) target = $region20
        $region19: #{tpu_custom_call.1} parent=15 // pred_region
          %s180 = sand.u32 %s48, 1
          %s181 = scalar_lea.sflag [#allocation3], %s180
          %s182 = sand.u32 %s48, 1
          %s183 = smul.addr %s182, 4096
          %s184 = scalar_lea.vmem [#allocation2], %s183
          %s185 = smul.u32 %s25, 2
          %s186 = sadd.s32 %s185, %s26
          %p187 = scmp.lt.s32.totalorder %s186, 2
          %s188 = scalar_select %p187, %s186, 2
          %s189 = smul.u32 512, %s188
          %s190 = ssub.s32 1032, %s189
          %p191 = scmp.lt.s32.totalorder %s190, 512
          %s192 = scalar_select %p191, %s190, 512
          %s193 = smul.u32 128, %s192
          %s195 = ssub.s32 65536, %s193
          %196 = vsyncadd %s181, %s195
          %p197 = scmp.ne.s32.totalorder 0, %s193
          %s198 = smul.addr %s189, 128
          %s199 = scalar_lea.hbm %s0, %s198
          %s200 = smul.u32 8, %s192
          %s201 = sshll.u32 %s184, 4
          %s202 = int_to_ptr.vmem [resolvable:$true] %s201
          %s203 = sshll.u32 %s200, 4
          %207 = dma.hbm_to_vmem [thread:$0]  (%p197), %s199, %s203, %s202, %s181, 128, 128, 8
        $region20: #{tpu_custom_call.1} parent=15 // pred_fallthru
          _
        // Predicated region
        $region21: #{tpu_custom_call.1} parent=15 // pred_check
          %p208 = pneg %p92
        $region22: #{tpu_custom_call.1} parent=15 // pred_check_branch
          %210 = sbr.rel (%p208) target = $region24
        $region23: #{tpu_custom_call.1} parent=15 // pred_region
          %s211 = sand.u32 %s18, 1
          %s212 = scalar_lea.sflag [#allocation6], %s211
          %s213 = sand.u32 %s82, 1
          %s214 = smul.addr %s213, 4096
          %s215 = scalar_lea.vmem [#allocation5], %s214
          %s216 = smul.u32 %s25, 2
          %s217 = sadd.s32 %s216, %s26
          %p218 = scmp.lt.s32.totalorder %s217, 2
          %s219 = scalar_select %p218, %s217, 2
          %s220 = smul.u32 512, %s219
          %s221 = ssub.s32 1032, %s220
          %p222 = scmp.lt.s32.totalorder %s221, 512
          %s223 = scalar_select %p222, %s221, 512
          %s224 = smul.u32 128, %s223
          %s226 = ssub.s32 65536, %s224
          %227 = vsyncadd %s212, %s226
          %p228 = scmp.ne.s32.totalorder 0, %s224
          %s229 = smul.addr %s220, 128
          %s230 = scalar_lea.hbm %s1, %s229
          %s231 = smul.u32 8, %s223
          %s232 = sshll.u32 %s215, 4
          %s233 = int_to_ptr.vmem [resolvable:$true] %s232
          %s234 = sshll.u32 %s231, 4
          %238 = dma.hbm_to_vmem [thread:$0]  (%p228), %s230, %s234, %s233, %s212, 128, 128, 8
        $region24: #{tpu_custom_call.1} parent=15 // pred_fallthru
          _
        // Predicated region
        $region25: #{tpu_custom_call.1} parent=15 // pred_check
          %p239 = pneg %p126
        $region26: #{tpu_custom_call.1} parent=15 // pred_check_branch
          %241 = sbr.rel (%p239) target = $region28
        $region27: #{tpu_custom_call.1} parent=15 // pred_region
          %s242 = sand.u32 %s18, 1
          %s243 = scalar_lea.sflag [#allocation6], %s242
          %s244 = sand.u32 %s116, 1
          %s245 = smul.addr %s244, 2048
          %s246 = scalar_lea.vmem [#allocation7], %s245
          %s247 = smul.u32 %s25, 2
          %s248 = sadd.s32 %s247, %s26
          %p249 = scmp.lt.s32.totalorder %s248, 2
          %s250 = scalar_select %p249, %s248, 2
          %s251 = smul.u32 512, %s250
          %s252 = ssub.s32 1032, %s251
          %p253 = scmp.lt.s32.totalorder %s252, 512
          %s254 = scalar_select %p253, %s252, 512
          %s255 = smul.u32 64, %s254
          %s257 = ssub.s32 32768, %s255
          %258 = vsyncadd %s243, %s257
          %p259 = scmp.ne.s32.totalorder 0, %s255
          %s260 = smul.addr %s251, 64
          %s261 = scalar_lea.hbm %s2, %s260
          %s262 = smul.u32 4, %s254
          %s263 = sshll.u32 %s246, 4
          %s264 = int_to_ptr.vmem [resolvable:$true] %s263
          %s265 = sshll.u32 %s262, 4
          %269 = dma.hbm_to_vmem [thread:$0]  (%p259), %s261, %s265, %s264, %s243, 64, 64, 4
        $region28: #{tpu_custom_call.1} parent=15 // pred_fallthru
          _
      $region16: #{tpu_custom_call.1} parent=5 // pred_fallthru
        _
      %p270 = scmp.le.s32.totalorder 1, %s18
      %p271 = scmp.lt.s32.totalorder %s18, 5
      %p272 = pnand %p270, %p271
      %p273 = pneg %p272
      // Predicated region
      $region29: #{tpu_custom_call.1} parent=5 // pred_check
        _
      $region30: #{tpu_custom_call.1} parent=5 // pred_check_branch
        %275 = sbr.rel (%p272) target = $region32
      $region31: #{tpu_custom_call.1} parent=5 // pred_region
        %s276 = ssub.s32 %s18, 1
        %s277 = sand.u32 %s51, 1
        %s278 = scalar_lea.sflag [#allocation3], %s277
        %s279 = sand.u32 %s51, 1
        %s280 = smul.addr %s279, 4096
        %s281 = scalar_lea.vmem [#allocation2], %s280
        // Predicated region
        $region33: #{tpu_custom_call.1} parent=31 // pred_check
          %p282 = pneg %p64
        $region34: #{tpu_custom_call.1} parent=31 // pred_check_branch
          %284 = sbr.rel (%p282) target = $region36
        $region35: #{tpu_custom_call.1} parent=31 // pred_region
          %285 = dma.done %s278, 65536
        $region36: #{tpu_custom_call.1} parent=31 // pred_fallthru
          _
        %s286 = sand.u32 %s23, 1
        %s287 = scalar_lea.sflag [#allocation6], %s286
        %s288 = sand.u32 %s85, 1
        %s289 = smul.addr %s288, 4096
        %s290 = scalar_lea.vmem [#allocation5], %s289
        // Predicated region
        $region37: #{tpu_custom_call.1} parent=31 // pred_check
          %p291 = pneg %p98
        $region38: #{tpu_custom_call.1} parent=31 // pred_check_branch
          %293 = sbr.rel (%p291) target = $region40
        $region39: #{tpu_custom_call.1} parent=31 // pred_region
          %294 = dma.done %s287, 65536
        $region40: #{tpu_custom_call.1} parent=31 // pred_fallthru
          _
        %s295 = sand.u32 %s23, 1
        %s296 = scalar_lea.sflag [#allocation6], %s295
        %s297 = sand.u32 %s119, 1
        %s298 = smul.addr %s297, 2048
        %s299 = scalar_lea.vmem [#allocation7], %s298
        // Predicated region
        $region41: #{tpu_custom_call.1} parent=31 // pred_check
          %p300 = pneg %p132
        $region42: #{tpu_custom_call.1} parent=31 // pred_check_branch
          %302 = sbr.rel (%p300) target = $region44
        $region43: #{tpu_custom_call.1} parent=31 // pred_region
          %303 = dma.done %s296, 32768
        $region44: #{tpu_custom_call.1} parent=31 // pred_fallthru
          _
        %s304 = sand.u32 %s51, 1
        %s305 = scalar_lea.sflag [#allocation3], %s304
        %s306 = sand.u32 %s51, 1
        %s307 = smul.addr %s306, 4096
        %s308 = scalar_lea.vmem [#allocation2], %s307
        %p309 = pneg %p64
        %p310 = pneg %p61
        %s311 = sand.u32 %s23, 1
        %s312 = scalar_lea.sflag [#allocation6], %s311
        %s313 = sand.u32 %s85, 1
        %s314 = smul.addr %s313, 4096
        %s315 = scalar_lea.vmem [#allocation5], %s314
        %p316 = pneg %p98
        %p317 = pneg %p95
        %s318 = sand.u32 %s23, 1
        %s319 = scalar_lea.sflag [#allocation6], %s318
        %s320 = sand.u32 %s119, 1
        %s321 = smul.addr %s320, 2048
        %s322 = scalar_lea.vmem [#allocation7], %s321
        %p323 = pneg %p132
        %p324 = pneg %p129
        %p325 = pneg %p158
        %p326 = pneg %p155
        %s327 = sand.u32 %s145, 1
        %s328 = scalar_lea.sflag [#allocation4], %s327
        %s329 = sand.u32 %s145, 1
        %s330 = smul.addr %s329, 8
        %s331 = scalar_lea.vmem [#allocation8], %s330
        %s332 = smul.u32 %s27, 2
        %s333 = sadd.s32 %s332, %s28
        %p334 = scmp.lt.s32.totalorder %s333, 2
        %s335 = scalar_select %p334, %s333, 2
        %s336 = smul.u32 512, %s335
        %s337 = ssub.s32 1032, %s336
        %p338 = scmp.lt.s32.totalorder %s337, 512
        %s339 = scalar_select %p338, %s337, 512
        %s340 = smul.u32 128, %s339
        %s341 = smul.u32 %s27, 2
        %s342 = sadd.s32 %s341, %s28
        %p343 = scmp.lt.s32.totalorder %s342, 2
        %s344 = scalar_select %p343, %s342, 2
        %s345 = smul.u32 512, %s344
        %s346 = ssub.s32 1032, %s345
        %p347 = scmp.lt.s32.totalorder %s346, 512
        %s348 = scalar_select %p347, %s346, 512
        %s349 = smul.u32 128, %s348
        %s350 = smul.u32 %s27, 2
        %s351 = sadd.s32 %s350, %s28
        %p352 = scmp.lt.s32.totalorder %s351, 2
        %s353 = scalar_select %p352, %s351, 2
        %s354 = smul.u32 512, %s353
        %s355 = ssub.s32 1032, %s354
        %p356 = scmp.lt.s32.totalorder %s355, 512
        %s357 = scalar_select %p356, %s355, 512
        %s358 = smul.u32 64, %s357
        %p359 = scmp.eq.s32.totalorder %s28, 0
        // Predicated region
        $region45: #{tpu_custom_call.1} parent=31 // pred_check
          %p360 = pneg %p359
        $region46: #{tpu_custom_call.1} parent=31 // pred_check_branch
          %362 = sbr.rel (%p360) target = $region48
        $region47: #{tpu_custom_call.1} parent=31 // pred_region
          %363 = vst [vmem:[%s331] sm:$0xff] 0.0
        $region48: #{tpu_custom_call.1} parent=31 // pred_fallthru
          _
        %v364 = vld [vmem:[%s281] sm:$0xff]
        %v365 = vld [vmem:[%s281 + $0x8] sm:$0xff]
        %v366 = vld [vmem:[%s281 + $0x10] sm:$0xff]
        %v367 = vld [vmem:[%s281 + $0x18] sm:$0xff]
        %v368 = vld [vmem:[%s281 + $0x20] sm:$0xff]
        %v369 = vld [vmem:[%s281 + $0x28] sm:$0xff]
        %v370 = vld [vmem:[%s281 + $0x30] sm:$0xff]
        %v371 = vld [vmem:[%s281 + $0x38] sm:$0xff]
        %v372 = vld [vmem:[%s281 + $0x40] sm:$0xff]
        %v373 = vld [vmem:[%s281 + $0x48] sm:$0xff]
        %v374 = vld [vmem:[%s281 + $0x50] sm:$0xff]
        %v375 = vld [vmem:[%s281 + $0x58] sm:$0xff]
        %v376 = vld [vmem:[%s281 + $0x60] sm:$0xff]
        %v377 = vld [vmem:[%s281 + $0x68] sm:$0xff]
        %v378 = vld [vmem:[%s281 + $0x70] sm:$0xff]
        %v379 = vld [vmem:[%s281 + $0x78] sm:$0xff]
        %v380 = vld [vmem:[%s281 + $0x80] sm:$0xff]
        %v381 = vld [vmem:[%s281 + $0x88] sm:$0xff]
        %v382 = vld [vmem:[%s281 + $0x90] sm:$0xff]
        %v383 = vld [vmem:[%s281 + $0x98] sm:$0xff]
        %v384 = vld [vmem:[%s281 + $0xa0] sm:$0xff]
        %v385 = vld [vmem:[%s281 + $0xa8] sm:$0xff]
        %v386 = vld [vmem:[%s281 + $0xb0] sm:$0xff]
        %v387 = vld [vmem:[%s281 + $0xb8] sm:$0xff]
        %v388 = vld [vmem:[%s281 + $0xc0] sm:$0xff]
        %v389 = vld [vmem:[%s281 + $0xc8] sm:$0xff]
        %v390 = vld [vmem:[%s281 + $0xd0] sm:$0xff]
        %v391 = vld [vmem:[%s281 + $0xd8] sm:$0xff]
        %v392 = vld [vmem:[%s281 + $0xe0] sm:$0xff]
        %v393 = vld [vmem:[%s281 + $0xe8] sm:$0xff]
        %v394 = vld [vmem:[%s281 + $0xf0] sm:$0xff]
        %v395 = vld [vmem:[%s281 + $0xf8] sm:$0xff]
        %v396 = vld [vmem:[%s281 + $0x100] sm:$0xff]
        %v397 = vld [vmem:[%s281 + $0x108] sm:$0xff]
        %v398 = vld [vmem:[%s281 + $0x110] sm:$0xff]
        %v399 = vld [vmem:[%s281 + $0x118] sm:$0xff]
        %v400 = vld [vmem:[%s281 + $0x120] sm:$0xff]
        %v401 = vld [vmem:[%s281 + $0x128] sm:$0xff]
        %v402 = vld [vmem:[%s281 + $0x130] sm:$0xff]
        %v403 = vld [vmem:[%s281 + $0x138] sm:$0xff]
        %v404 = vld [vmem:[%s281 + $0x140] sm:$0xff]
        %v405 = vld [vmem:[%s281 + $0x148] sm:$0xff]
        %v406 = vld [vmem:[%s281 + $0x150] sm:$0xff]
        %v407 = vld [vmem:[%s281 + $0x158] sm:$0xff]
        %v408 = vld [vmem:[%s281 + $0x160] sm:$0xff]
        %v409 = vld [vmem:[%s281 + $0x168] sm:$0xff]
        %v410 = vld [vmem:[%s281 + $0x170] sm:$0xff]
        %v411 = vld [vmem:[%s281 + $0x178] sm:$0xff]
        %v412 = vld [vmem:[%s281 + $0x180] sm:$0xff]
        %v413 = vld [vmem:[%s281 + $0x188] sm:$0xff]
        %v414 = vld [vmem:[%s281 + $0x190] sm:$0xff]
        %v415 = vld [vmem:[%s281 + $0x198] sm:$0xff]
        %v416 = vld [vmem:[%s281 + $0x1a0] sm:$0xff]
        %v417 = vld [vmem:[%s281 + $0x1a8] sm:$0xff]
        %v418 = vld [vmem:[%s281 + $0x1b0] sm:$0xff]
        %v419 = vld [vmem:[%s281 + $0x1b8] sm:$0xff]
        %v420 = vld [vmem:[%s281 + $0x1c0] sm:$0xff]
        %v421 = vld [vmem:[%s281 + $0x1c8] sm:$0xff]
        %v422 = vld [vmem:[%s281 + $0x1d0] sm:$0xff]
        %v423 = vld [vmem:[%s281 + $0x1d8] sm:$0xff]
        %v424 = vld [vmem:[%s281 + $0x1e0] sm:$0xff]
        %v425 = vld [vmem:[%s281 + $0x1e8] sm:$0xff]
        %v426 = vld [vmem:[%s281 + $0x1f0] sm:$0xff]
        %v427 = vld [vmem:[%s281 + $0x1f8] sm:$0xff]
        %v428 = vld [vmem:[%s281 + $0x200] sm:$0xff]
        %v429 = vld [vmem:[%s281 + $0x208] sm:$0xff]
        %v430 = vld [vmem:[%s281 + $0x210] sm:$0xff]
        %v431 = vld [vmem:[%s281 + $0x218] sm:$0xff]
        %v432 = vld [vmem:[%s281 + $0x220] sm:$0xff]
        %v433 = vld [vmem:[%s281 + $0x228] sm:$0xff]
        %v434 = vld [vmem:[%s281 + $0x230] sm:$0xff]
        %v435 = vld [vmem:[%s281 + $0x238] sm:$0xff]
        %v436 = vld [vmem:[%s281 + $0x240] sm:$0xff]
        %v437 = vld [vmem:[%s281 + $0x248] sm:$0xff]
        %v438 = vld [vmem:[%s281 + $0x250] sm:$0xff]
        %v439 = vld [vmem:[%s281 + $0x258] sm:$0xff]
        %v440 = vld [vmem:[%s281 + $0x260] sm:$0xff]
        %v441 = vld [vmem:[%s281 + $0x268] sm:$0xff]
        %v442 = vld [vmem:[%s281 + $0x270] sm:$0xff]
        %v443 = vld [vmem:[%s281 + $0x278] sm:$0xff]
        %v444 = vld [vmem:[%s281 + $0x280] sm:$0xff]
        %v445 = vld [vmem:[%s281 + $0x288] sm:$0xff]
        %v446 = vld [vmem:[%s281 + $0x290] sm:$0xff]
        %v447 = vld [vmem:[%s281 + $0x298] sm:$0xff]
        %v448 = vld [vmem:[%s281 + $0x2a0] sm:$0xff]
        %v449 = vld [vmem:[%s281 + $0x2a8] sm:$0xff]
        %v450 = vld [vmem:[%s281 + $0x2b0] sm:$0xff]
        %v451 = vld [vmem:[%s281 + $0x2b8] sm:$0xff]
        %v452 = vld [vmem:[%s281 + $0x2c0] sm:$0xff]
        %v453 = vld [vmem:[%s281 + $0x2c8] sm:$0xff]
        %v454 = vld [vmem:[%s281 + $0x2d0] sm:$0xff]
        %v455 = vld [vmem:[%s281 + $0x2d8] sm:$0xff]
        %v456 = vld [vmem:[%s281 + $0x2e0] sm:$0xff]
        %v457 = vld [vmem:[%s281 + $0x2e8] sm:$0xff]
        %v458 = vld [vmem:[%s281 + $0x2f0] sm:$0xff]
        %v459 = vld [vmem:[%s281 + $0x2f8] sm:$0xff]
        %v460 = vld [vmem:[%s281 + $0x300] sm:$0xff]
        %v461 = vld [vmem:[%s281 + $0x308] sm:$0xff]
        %v462 = vld [vmem:[%s281 + $0x310] sm:$0xff]
        %v463 = vld [vmem:[%s281 + $0x318] sm:$0xff]
        %v464 = vld [vmem:[%s281 + $0x320] sm:$0xff]
        %v465 = vld [vmem:[%s281 + $0x328] sm:$0xff]
        %v466 = vld [vmem:[%s281 + $0x330] sm:$0xff]
        %v467 = vld [vmem:[%s281 + $0x338] sm:$0xff]
        %v468 = vld [vmem:[%s281 + $0x340] sm:$0xff]
        %v469 = vld [vmem:[%s281 + $0x348] sm:$0xff]
        %v470 = vld [vmem:[%s281 + $0x350] sm:$0xff]
        %v471 = vld [vmem:[%s281 + $0x358] sm:$0xff]
        %v472 = vld [vmem:[%s281 + $0x360] sm:$0xff]
        %v473 = vld [vmem:[%s281 + $0x368] sm:$0xff]
        %v474 = vld [vmem:[%s281 + $0x370] sm:$0xff]
        %v475 = vld [vmem:[%s281 + $0x378] sm:$0xff]
        %v476 = vld [vmem:[%s281 + $0x380] sm:$0xff]
        %v477 = vld [vmem:[%s281 + $0x388] sm:$0xff]
        %v478 = vld [vmem:[%s281 + $0x390] sm:$0xff]
        %v479 = vld [vmem:[%s281 + $0x398] sm:$0xff]
        %v480 = vld [vmem:[%s281 + $0x3a0] sm:$0xff]
        %v481 = vld [vmem:[%s281 + $0x3a8] sm:$0xff]
        %v482 = vld [vmem:[%s281 + $0x3b0] sm:$0xff]
        %v483 = vld [vmem:[%s281 + $0x3b8] sm:$0xff]
        %v484 = vld [vmem:[%s281 + $0x3c0] sm:$0xff]
        %v485 = vld [vmem:[%s281 + $0x3c8] sm:$0xff]
        %v486 = vld [vmem:[%s281 + $0x3d0] sm:$0xff]
        %v487 = vld [vmem:[%s281 + $0x3d8] sm:$0xff]
        %v488 = vld [vmem:[%s281 + $0x3e0] sm:$0xff]
        %v489 = vld [vmem:[%s281 + $0x3e8] sm:$0xff]
        %v490 = vld [vmem:[%s281 + $0x3f0] sm:$0xff]
        %v491 = vld [vmem:[%s281 + $0x3f8] sm:$0xff]
        %v492 = vld [vmem:[%s281 + $0x400] sm:$0xff]
        %v493 = vld [vmem:[%s281 + $0x408] sm:$0xff]
        %v494 = vld [vmem:[%s281 + $0x410] sm:$0xff]
        %v495 = vld [vmem:[%s281 + $0x418] sm:$0xff]
        %v496 = vld [vmem:[%s281 + $0x420] sm:$0xff]
        %v497 = vld [vmem:[%s281 + $0x428] sm:$0xff]
        %v498 = vld [vmem:[%s281 + $0x430] sm:$0xff]
        %v499 = vld [vmem:[%s281 + $0x438] sm:$0xff]
        %v500 = vld [vmem:[%s281 + $0x440] sm:$0xff]
        %v501 = vld [vmem:[%s281 + $0x448] sm:$0xff]
        %v502 = vld [vmem:[%s281 + $0x450] sm:$0xff]
        %v503 = vld [vmem:[%s281 + $0x458] sm:$0xff]
        %v504 = vld [vmem:[%s281 + $0x460] sm:$0xff]
        %v505 = vld [vmem:[%s281 + $0x468] sm:$0xff]
        %v506 = vld [vmem:[%s281 + $0x470] sm:$0xff]
        %v507 = vld [vmem:[%s281 + $0x478] sm:$0xff]
        %v508 = vld [vmem:[%s281 + $0x480] sm:$0xff]
        %v509 = vld [vmem:[%s281 + $0x488] sm:$0xff]
        %v510 = vld [vmem:[%s281 + $0x490] sm:$0xff]
        %v511 = vld [vmem:[%s281 + $0x498] sm:$0xff]
        %v512 = vld [vmem:[%s281 + $0x4a0] sm:$0xff]
        %v513 = vld [vmem:[%s281 + $0x4a8] sm:$0xff]
        %v514 = vld [vmem:[%s281 + $0x4b0] sm:$0xff]
        %v515 = vld [vmem:[%s281 + $0x4b8] sm:$0xff]
        %v516 = vld [vmem:[%s281 + $0x4c0] sm:$0xff]
        %v517 = vld [vmem:[%s281 + $0x4c8] sm:$0xff]
        %v518 = vld [vmem:[%s281 + $0x4d0] sm:$0xff]
        %v519 = vld [vmem:[%s281 + $0x4d8] sm:$0xff]
        %v520 = vld [vmem:[%s281 + $0x4e0] sm:$0xff]
        %v521 = vld [vmem:[%s281 + $0x4e8] sm:$0xff]
        %v522 = vld [vmem:[%s281 + $0x4f0] sm:$0xff]
        %v523 = vld [vmem:[%s281 + $0x4f8] sm:$0xff]
        %v524 = vld [vmem:[%s281 + $0x500] sm:$0xff]
        %v525 = vld [vmem:[%s281 + $0x508] sm:$0xff]
        %v526 = vld [vmem:[%s281 + $0x510] sm:$0xff]
        %v527 = vld [vmem:[%s281 + $0x518] sm:$0xff]
        %v528 = vld [vmem:[%s281 + $0x520] sm:$0xff]
        %v529 = vld [vmem:[%s281 + $0x528] sm:$0xff]
        %v530 = vld [vmem:[%s281 + $0x530] sm:$0xff]
        %v531 = vld [vmem:[%s281 + $0x538] sm:$0xff]
        %v532 = vld [vmem:[%s281 + $0x540] sm:$0xff]
        %v533 = vld [vmem:[%s281 + $0x548] sm:$0xff]
        %v534 = vld [vmem:[%s281 + $0x550] sm:$0xff]
        %v535 = vld [vmem:[%s281 + $0x558] sm:$0xff]
        %v536 = vld [vmem:[%s281 + $0x560] sm:$0xff]
        %v537 = vld [vmem:[%s281 + $0x568] sm:$0xff]
        %v538 = vld [vmem:[%s281 + $0x570] sm:$0xff]
        %v539 = vld [vmem:[%s281 + $0x578] sm:$0xff]
        %v540 = vld [vmem:[%s281 + $0x580] sm:$0xff]
        %v541 = vld [vmem:[%s281 + $0x588] sm:$0xff]
        %v542 = vld [vmem:[%s281 + $0x590] sm:$0xff]
        %v543 = vld [vmem:[%s281 + $0x598] sm:$0xff]
        %v544 = vld [vmem:[%s281 + $0x5a0] sm:$0xff]
        %v545 = vld [vmem:[%s281 + $0x5a8] sm:$0xff]
        %v546 = vld [vmem:[%s281 + $0x5b0] sm:$0xff]
        %v547 = vld [vmem:[%s281 + $0x5b8] sm:$0xff]
        %v548 = vld [vmem:[%s281 + $0x5c0] sm:$0xff]
        %v549 = vld [vmem:[%s281 + $0x5c8] sm:$0xff]
        %v550 = vld [vmem:[%s281 + $0x5d0] sm:$0xff]
        %v551 = vld [vmem:[%s281 + $0x5d8] sm:$0xff]
        %v552 = vld [vmem:[%s281 + $0x5e0] sm:$0xff]
        %v553 = vld [vmem:[%s281 + $0x5e8] sm:$0xff]
        %v554 = vld [vmem:[%s281 + $0x5f0] sm:$0xff]
        %v555 = vld [vmem:[%s281 + $0x5f8] sm:$0xff]
        %v556 = vld [vmem:[%s281 + $0x600] sm:$0xff]
        %v557 = vld [vmem:[%s281 + $0x608] sm:$0xff]
        %v558 = vld [vmem:[%s281 + $0x610] sm:$0xff]
        %v559 = vld [vmem:[%s281 + $0x618] sm:$0xff]
        %v560 = vld [vmem:[%s281 + $0x620] sm:$0xff]
        %v561 = vld [vmem:[%s281 + $0x628] sm:$0xff]
        %v562 = vld [vmem:[%s281 + $0x630] sm:$0xff]
        %v563 = vld [vmem:[%s281 + $0x638] sm:$0xff]
        %v564 = vld [vmem:[%s281 + $0x640] sm:$0xff]
        %v565 = vld [vmem:[%s281 + $0x648] sm:$0xff]
        %v566 = vld [vmem:[%s281 + $0x650] sm:$0xff]
        %v567 = vld [vmem:[%s281 + $0x658] sm:$0xff]
        %v568 = vld [vmem:[%s281 + $0x660] sm:$0xff]
        %v569 = vld [vmem:[%s281 + $0x668] sm:$0xff]
        %v570 = vld [vmem:[%s281 + $0x670] sm:$0xff]
        %v571 = vld [vmem:[%s281 + $0x678] sm:$0xff]
        %v572 = vld [vmem:[%s281 + $0x680] sm:$0xff]
        %v573 = vld [vmem:[%s281 + $0x688] sm:$0xff]
        %v574 = vld [vmem:[%s281 + $0x690] sm:$0xff]
        %v575 = vld [vmem:[%s281 + $0x698] sm:$0xff]
        %v576 = vld [vmem:[%s281 + $0x6a0] sm:$0xff]
        %v577 = vld [vmem:[%s281 + $0x6a8] sm:$0xff]
        %v578 = vld [vmem:[%s281 + $0x6b0] sm:$0xff]
        %v579 = vld [vmem:[%s281 + $0x6b8] sm:$0xff]
        %v580 = vld [vmem:[%s281 + $0x6c0] sm:$0xff]
        %v581 = vld [vmem:[%s281 + $0x6c8] sm:$0xff]
        %v582 = vld [vmem:[%s281 + $0x6d0] sm:$0xff]
        %v583 = vld [vmem:[%s281 + $0x6d8] sm:$0xff]
        %v584 = vld [vmem:[%s281 + $0x6e0] sm:$0xff]
        %v585 = vld [vmem:[%s281 + $0x6e8] sm:$0xff]
        %v586 = vld [vmem:[%s281 + $0x6f0] sm:$0xff]
        %v587 = vld [vmem:[%s281 + $0x6f8] sm:$0xff]
        %v588 = vld [vmem:[%s281 + $0x700] sm:$0xff]
        %v589 = vld [vmem:[%s281 + $0x708] sm:$0xff]
        %v590 = vld [vmem:[%s281 + $0x710] sm:$0xff]
        %v591 = vld [vmem:[%s281 + $0x718] sm:$0xff]
        %v592 = vld [vmem:[%s281 + $0x720] sm:$0xff]
        %v593 = vld [vmem:[%s281 + $0x728] sm:$0xff]
        %v594 = vld [vmem:[%s281 + $0x730] sm:$0xff]
        %v595 = vld [vmem:[%s281 + $0x738] sm:$0xff]
        %v596 = vld [vmem:[%s281 + $0x740] sm:$0xff]
        %v597 = vld [vmem:[%s281 + $0x748] sm:$0xff]
        %v598 = vld [vmem:[%s281 + $0x750] sm:$0xff]
        %v599 = vld [vmem:[%s281 + $0x758] sm:$0xff]
        %v600 = vld [vmem:[%s281 + $0x760] sm:$0xff]
        %v601 = vld [vmem:[%s281 + $0x768] sm:$0xff]
        %v602 = vld [vmem:[%s281 + $0x770] sm:$0xff]
        %v603 = vld [vmem:[%s281 + $0x778] sm:$0xff]
        %v604 = vld [vmem:[%s281 + $0x780] sm:$0xff]
        %v605 = vld [vmem:[%s281 + $0x788] sm:$0xff]
        %v606 = vld [vmem:[%s281 + $0x790] sm:$0xff]
        %v607 = vld [vmem:[%s281 + $0x798] sm:$0xff]
        %v608 = vld [vmem:[%s281 + $0x7a0] sm:$0xff]
        %v609 = vld [vmem:[%s281 + $0x7a8] sm:$0xff]
        %v610 = vld [vmem:[%s281 + $0x7b0] sm:$0xff]
        %v611 = vld [vmem:[%s281 + $0x7b8] sm:$0xff]
        %v612 = vld [vmem:[%s281 + $0x7c0] sm:$0xff]
        %v613 = vld [vmem:[%s281 + $0x7c8] sm:$0xff]
        %v614 = vld [vmem:[%s281 + $0x7d0] sm:$0xff]
        %v615 = vld [vmem:[%s281 + $0x7d8] sm:$0xff]
        %v616 = vld [vmem:[%s281 + $0x7e0] sm:$0xff]
        %v617 = vld [vmem:[%s281 + $0x7e8] sm:$0xff]
        %v618 = vld [vmem:[%s281 + $0x7f0] sm:$0xff]
        %v619 = vld [vmem:[%s281 + $0x7f8] sm:$0xff]
        %v620 = vld [vmem:[%s281 + $0x800] sm:$0xff]
        %v621 = vld [vmem:[%s281 + $0x808] sm:$0xff]
        %v622 = vld [vmem:[%s281 + $0x810] sm:$0xff]
        %v623 = vld [vmem:[%s281 + $0x818] sm:$0xff]
        %v624 = vld [vmem:[%s281 + $0x820] sm:$0xff]
        %v625 = vld [vmem:[%s281 + $0x828] sm:$0xff]
        %v626 = vld [vmem:[%s281 + $0x830] sm:$0xff]
        %v627 = vld [vmem:[%s281 + $0x838] sm:$0xff]
        %v628 = vld [vmem:[%s281 + $0x840] sm:$0xff]
        %v629 = vld [vmem:[%s281 + $0x848] sm:$0xff]
        %v630 = vld [vmem:[%s281 + $0x850] sm:$0xff]
        %v631 = vld [vmem:[%s281 + $0x858] sm:$0xff]
        %v632 = vld [vmem:[%s281 + $0x860] sm:$0xff]
        %v633 = vld [vmem:[%s281 + $0x868] sm:$0xff]
        %v634 = vld [vmem:[%s281 + $0x870] sm:$0xff]
        %v635 = vld [vmem:[%s281 + $0x878] sm:$0xff]
        %v636 = vld [vmem:[%s281 + $0x880] sm:$0xff]
        %v637 = vld [vmem:[%s281 + $0x888] sm:$0xff]
        %v638 = vld [vmem:[%s281 + $0x890] sm:$0xff]
        %v639 = vld [vmem:[%s281 + $0x898] sm:$0xff]
        %v640 = vld [vmem:[%s281 + $0x8a0] sm:$0xff]
        %v641 = vld [vmem:[%s281 + $0x8a8] sm:$0xff]
        %v642 = vld [vmem:[%s281 + $0x8b0] sm:$0xff]
        %v643 = vld [vmem:[%s281 + $0x8b8] sm:$0xff]
        %v644 = vld [vmem:[%s281 + $0x8c0] sm:$0xff]
        %v645 = vld [vmem:[%s281 + $0x8c8] sm:$0xff]
        %v646 = vld [vmem:[%s281 + $0x8d0] sm:$0xff]
        %v647 = vld [vmem:[%s281 + $0x8d8] sm:$0xff]
        %v648 = vld [vmem:[%s281 + $0x8e0] sm:$0xff]
        %v649 = vld [vmem:[%s281 + $0x8e8] sm:$0xff]
        %v650 = vld [vmem:[%s281 + $0x8f0] sm:$0xff]
        %v651 = vld [vmem:[%s281 + $0x8f8] sm:$0xff]
        %v652 = vld [vmem:[%s281 + $0x900] sm:$0xff]
        %v653 = vld [vmem:[%s281 + $0x908] sm:$0xff]
        %v654 = vld [vmem:[%s281 + $0x910] sm:$0xff]
        %v655 = vld [vmem:[%s281 + $0x918] sm:$0xff]
        %v656 = vld [vmem:[%s281 + $0x920] sm:$0xff]
        %v657 = vld [vmem:[%s281 + $0x928] sm:$0xff]
        %v658 = vld [vmem:[%s281 + $0x930] sm:$0xff]
        %v659 = vld [vmem:[%s281 + $0x938] sm:$0xff]
        %v660 = vld [vmem:[%s281 + $0x940] sm:$0xff]
        %v661 = vld [vmem:[%s281 + $0x948] sm:$0xff]
        %v662 = vld [vmem:[%s281 + $0x950] sm:$0xff]
        %v663 = vld [vmem:[%s281 + $0x958] sm:$0xff]
        %v664 = vld [vmem:[%s281 + $0x960] sm:$0xff]
        %v665 = vld [vmem:[%s281 + $0x968] sm:$0xff]
        %v666 = vld [vmem:[%s281 + $0x970] sm:$0xff]
        %v667 = vld [vmem:[%s281 + $0x978] sm:$0xff]
        %v668 = vld [vmem:[%s281 + $0x980] sm:$0xff]
        %v669 = vld [vmem:[%s281 + $0x988] sm:$0xff]
        %v670 = vld [vmem:[%s281 + $0x990] sm:$0xff]
        %v671 = vld [vmem:[%s281 + $0x998] sm:$0xff]
        %v672 = vld [vmem:[%s281 + $0x9a0] sm:$0xff]
        %v673 = vld [vmem:[%s281 + $0x9a8] sm:$0xff]
        %v674 = vld [vmem:[%s281 + $0x9b0] sm:$0xff]
        %v675 = vld [vmem:[%s281 + $0x9b8] sm:$0xff]
        %v676 = vld [vmem:[%s281 + $0x9c0] sm:$0xff]
        %v677 = vld [vmem:[%s281 + $0x9c8] sm:$0xff]
        %v678 = vld [vmem:[%s281 + $0x9d0] sm:$0xff]
        %v679 = vld [vmem:[%s281 + $0x9d8] sm:$0xff]
        %v680 = vld [vmem:[%s281 + $0x9e0] sm:$0xff]
        %v681 = vld [vmem:[%s281 + $0x9e8] sm:$0xff]
        %v682 = vld [vmem:[%s281 + $0x9f0] sm:$0xff]
        %v683 = vld [vmem:[%s281 + $0x9f8] sm:$0xff]
        %v684 = vld [vmem:[%s281 + $0xa00] sm:$0xff]
        %v685 = vld [vmem:[%s281 + $0xa08] sm:$0xff]
        %v686 = vld [vmem:[%s281 + $0xa10] sm:$0xff]
        %v687 = vld [vmem:[%s281 + $0xa18] sm:$0xff]
        %v688 = vld [vmem:[%s281 + $0xa20] sm:$0xff]
        %v689 = vld [vmem:[%s281 + $0xa28] sm:$0xff]
        %v690 = vld [vmem:[%s281 + $0xa30] sm:$0xff]
        %v691 = vld [vmem:[%s281 + $0xa38] sm:$0xff]
        %v692 = vld [vmem:[%s281 + $0xa40] sm:$0xff]
        %v693 = vld [vmem:[%s281 + $0xa48] sm:$0xff]
        %v694 = vld [vmem:[%s281 + $0xa50] sm:$0xff]
        %v695 = vld [vmem:[%s281 + $0xa58] sm:$0xff]
        %v696 = vld [vmem:[%s281 + $0xa60] sm:$0xff]
        %v697 = vld [vmem:[%s281 + $0xa68] sm:$0xff]
        %v698 = vld [vmem:[%s281 + $0xa70] sm:$0xff]
        %v699 = vld [vmem:[%s281 + $0xa78] sm:$0xff]
        %v700 = vld [vmem:[%s281 + $0xa80] sm:$0xff]
        %v701 = vld [vmem:[%s281 + $0xa88] sm:$0xff]
        %v702 = vld [vmem:[%s281 + $0xa90] sm:$0xff]
        %v703 = vld [vmem:[%s281 + $0xa98] sm:$0xff]
        %v704 = vld [vmem:[%s281 + $0xaa0] sm:$0xff]
        %v705 = vld [vmem:[%s281 + $0xaa8] sm:$0xff]
        %v706 = vld [vmem:[%s281 + $0xab0] sm:$0xff]
        %v707 = vld [vmem:[%s281 + $0xab8] sm:$0xff]
        %v708 = vld [vmem:[%s281 + $0xac0] sm:$0xff]
        %v709 = vld [vmem:[%s281 + $0xac8] sm:$0xff]
        %v710 = vld [vmem:[%s281 + $0xad0] sm:$0xff]
        %v711 = vld [vmem:[%s281 + $0xad8] sm:$0xff]
        %v712 = vld [vmem:[%s281 + $0xae0] sm:$0xff]
        %v713 = vld [vmem:[%s281 + $0xae8] sm:$0xff]
        %v714 = vld [vmem:[%s281 + $0xaf0] sm:$0xff]
        %v715 = vld [vmem:[%s281 + $0xaf8] sm:$0xff]
        %v716 = vld [vmem:[%s281 + $0xb00] sm:$0xff]
        %v717 = vld [vmem:[%s281 + $0xb08] sm:$0xff]
        %v718 = vld [vmem:[%s281 + $0xb10] sm:$0xff]
        %v719 = vld [vmem:[%s281 + $0xb18] sm:$0xff]
        %v720 = vld [vmem:[%s281 + $0xb20] sm:$0xff]
        %v721 = vld [vmem:[%s281 + $0xb28] sm:$0xff]
        %v722 = vld [vmem:[%s281 + $0xb30] sm:$0xff]
        %v723 = vld [vmem:[%s281 + $0xb38] sm:$0xff]
        %v724 = vld [vmem:[%s281 + $0xb40] sm:$0xff]
        %v725 = vld [vmem:[%s281 + $0xb48] sm:$0xff]
        %v726 = vld [vmem:[%s281 + $0xb50] sm:$0xff]
        %v727 = vld [vmem:[%s281 + $0xb58] sm:$0xff]
        %v728 = vld [vmem:[%s281 + $0xb60] sm:$0xff]
        %v729 = vld [vmem:[%s281 + $0xb68] sm:$0xff]
        %v730 = vld [vmem:[%s281 + $0xb70] sm:$0xff]
        %v731 = vld [vmem:[%s281 + $0xb78] sm:$0xff]
        %v732 = vld [vmem:[%s281 + $0xb80] sm:$0xff]
        %v733 = vld [vmem:[%s281 + $0xb88] sm:$0xff]
        %v734 = vld [vmem:[%s281 + $0xb90] sm:$0xff]
        %v735 = vld [vmem:[%s281 + $0xb98] sm:$0xff]
        %v736 = vld [vmem:[%s281 + $0xba0] sm:$0xff]
        %v737 = vld [vmem:[%s281 + $0xba8] sm:$0xff]
        %v738 = vld [vmem:[%s281 + $0xbb0] sm:$0xff]
        %v739 = vld [vmem:[%s281 + $0xbb8] sm:$0xff]
        %v740 = vld [vmem:[%s281 + $0xbc0] sm:$0xff]
        %v741 = vld [vmem:[%s281 + $0xbc8] sm:$0xff]
        %v742 = vld [vmem:[%s281 + $0xbd0] sm:$0xff]
        %v743 = vld [vmem:[%s281 + $0xbd8] sm:$0xff]
        %v744 = vld [vmem:[%s281 + $0xbe0] sm:$0xff]
        %v745 = vld [vmem:[%s281 + $0xbe8] sm:$0xff]
        %v746 = vld [vmem:[%s281 + $0xbf0] sm:$0xff]
        %v747 = vld [vmem:[%s281 + $0xbf8] sm:$0xff]
        %v748 = vld [vmem:[%s281 + $0xc00] sm:$0xff]
        %v749 = vld [vmem:[%s281 + $0xc08] sm:$0xff]
        %v750 = vld [vmem:[%s281 + $0xc10] sm:$0xff]
        %v751 = vld [vmem:[%s281 + $0xc18] sm:$0xff]
        %v752 = vld [vmem:[%s281 + $0xc20] sm:$0xff]
        %v753 = vld [vmem:[%s281 + $0xc28] sm:$0xff]
        %v754 = vld [vmem:[%s281 + $0xc30] sm:$0xff]
        %v755 = vld [vmem:[%s281 + $0xc38] sm:$0xff]
        %v756 = vld [vmem:[%s281 + $0xc40] sm:$0xff]
        %v757 = vld [vmem:[%s281 + $0xc48] sm:$0xff]
        %v758 = vld [vmem:[%s281 + $0xc50] sm:$0xff]
        %v759 = vld [vmem:[%s281 + $0xc58] sm:$0xff]
        %v760 = vld [vmem:[%s281 + $0xc60] sm:$0xff]
        %v761 = vld [vmem:[%s281 + $0xc68] sm:$0xff]
        %v762 = vld [vmem:[%s281 + $0xc70] sm:$0xff]
        %v763 = vld [vmem:[%s281 + $0xc78] sm:$0xff]
        %v764 = vld [vmem:[%s281 + $0xc80] sm:$0xff]
        %v765 = vld [vmem:[%s281 + $0xc88] sm:$0xff]
        %v766 = vld [vmem:[%s281 + $0xc90] sm:$0xff]
        %v767 = vld [vmem:[%s281 + $0xc98] sm:$0xff]
        %v768 = vld [vmem:[%s281 + $0xca0] sm:$0xff]
        %v769 = vld [vmem:[%s281 + $0xca8] sm:$0xff]
        %v770 = vld [vmem:[%s281 + $0xcb0] sm:$0xff]
        %v771 = vld [vmem:[%s281 + $0xcb8] sm:$0xff]
        %v772 = vld [vmem:[%s281 + $0xcc0] sm:$0xff]
        %v773 = vld [vmem:[%s281 + $0xcc8] sm:$0xff]
        %v774 = vld [vmem:[%s281 + $0xcd0] sm:$0xff]
        %v775 = vld [vmem:[%s281 + $0xcd8] sm:$0xff]
        %v776 = vld [vmem:[%s281 + $0xce0] sm:$0xff]
        %v777 = vld [vmem:[%s281 + $0xce8] sm:$0xff]
        %v778 = vld [vmem:[%s281 + $0xcf0] sm:$0xff]
        %v779 = vld [vmem:[%s281 + $0xcf8] sm:$0xff]
        %v780 = vld [vmem:[%s281 + $0xd00] sm:$0xff]
        %v781 = vld [vmem:[%s281 + $0xd08] sm:$0xff]
        %v782 = vld [vmem:[%s281 + $0xd10] sm:$0xff]
        %v783 = vld [vmem:[%s281 + $0xd18] sm:$0xff]
        %v784 = vld [vmem:[%s281 + $0xd20] sm:$0xff]
        %v785 = vld [vmem:[%s281 + $0xd28] sm:$0xff]
        %v786 = vld [vmem:[%s281 + $0xd30] sm:$0xff]
        %v787 = vld [vmem:[%s281 + $0xd38] sm:$0xff]
        %v788 = vld [vmem:[%s281 + $0xd40] sm:$0xff]
        %v789 = vld [vmem:[%s281 + $0xd48] sm:$0xff]
        %v790 = vld [vmem:[%s281 + $0xd50] sm:$0xff]
        %v791 = vld [vmem:[%s281 + $0xd58] sm:$0xff]
        %v792 = vld [vmem:[%s281 + $0xd60] sm:$0xff]
        %v793 = vld [vmem:[%s281 + $0xd68] sm:$0xff]
        %v794 = vld [vmem:[%s281 + $0xd70] sm:$0xff]
        %v795 = vld [vmem:[%s281 + $0xd78] sm:$0xff]
        %v796 = vld [vmem:[%s281 + $0xd80] sm:$0xff]
        %v797 = vld [vmem:[%s281 + $0xd88] sm:$0xff]
        %v798 = vld [vmem:[%s281 + $0xd90] sm:$0xff]
        %v799 = vld [vmem:[%s281 + $0xd98] sm:$0xff]
        %v800 = vld [vmem:[%s281 + $0xda0] sm:$0xff]
        %v801 = vld [vmem:[%s281 + $0xda8] sm:$0xff]
        %v802 = vld [vmem:[%s281 + $0xdb0] sm:$0xff]
        %v803 = vld [vmem:[%s281 + $0xdb8] sm:$0xff]
        %v804 = vld [vmem:[%s281 + $0xdc0] sm:$0xff]
        %v805 = vld [vmem:[%s281 + $0xdc8] sm:$0xff]
        %v806 = vld [vmem:[%s281 + $0xdd0] sm:$0xff]
        %v807 = vld [vmem:[%s281 + $0xdd8] sm:$0xff]
        %v808 = vld [vmem:[%s281 + $0xde0] sm:$0xff]
        %v809 = vld [vmem:[%s281 + $0xde8] sm:$0xff]
        %v810 = vld [vmem:[%s281 + $0xdf0] sm:$0xff]
        %v811 = vld [vmem:[%s281 + $0xdf8] sm:$0xff]
        %v812 = vld [vmem:[%s281 + $0xe00] sm:$0xff]
        %v813 = vld [vmem:[%s281 + $0xe08] sm:$0xff]
        %v814 = vld [vmem:[%s281 + $0xe10] sm:$0xff]
        %v815 = vld [vmem:[%s281 + $0xe18] sm:$0xff]
        %v816 = vld [vmem:[%s281 + $0xe20] sm:$0xff]
        %v817 = vld [vmem:[%s281 + $0xe28] sm:$0xff]
        %v818 = vld [vmem:[%s281 + $0xe30] sm:$0xff]
        %v819 = vld [vmem:[%s281 + $0xe38] sm:$0xff]
        %v820 = vld [vmem:[%s281 + $0xe40] sm:$0xff]
        %v821 = vld [vmem:[%s281 + $0xe48] sm:$0xff]
        %v822 = vld [vmem:[%s281 + $0xe50] sm:$0xff]
        %v823 = vld [vmem:[%s281 + $0xe58] sm:$0xff]
        %v824 = vld [vmem:[%s281 + $0xe60] sm:$0xff]
        %v825 = vld [vmem:[%s281 + $0xe68] sm:$0xff]
        %v826 = vld [vmem:[%s281 + $0xe70] sm:$0xff]
        %v827 = vld [vmem:[%s281 + $0xe78] sm:$0xff]
        %v828 = vld [vmem:[%s281 + $0xe80] sm:$0xff]
        %v829 = vld [vmem:[%s281 + $0xe88] sm:$0xff]
        %v830 = vld [vmem:[%s281 + $0xe90] sm:$0xff]
        %v831 = vld [vmem:[%s281 + $0xe98] sm:$0xff]
        %v832 = vld [vmem:[%s281 + $0xea0] sm:$0xff]
        %v833 = vld [vmem:[%s281 + $0xea8] sm:$0xff]
        %v834 = vld [vmem:[%s281 + $0xeb0] sm:$0xff]
        %v835 = vld [vmem:[%s281 + $0xeb8] sm:$0xff]
        %v836 = vld [vmem:[%s281 + $0xec0] sm:$0xff]
        %v837 = vld [vmem:[%s281 + $0xec8] sm:$0xff]
        %v838 = vld [vmem:[%s281 + $0xed0] sm:$0xff]
        %v839 = vld [vmem:[%s281 + $0xed8] sm:$0xff]
        %v840 = vld [vmem:[%s281 + $0xee0] sm:$0xff]
        %v841 = vld [vmem:[%s281 + $0xee8] sm:$0xff]
        %v842 = vld [vmem:[%s281 + $0xef0] sm:$0xff]
        %v843 = vld [vmem:[%s281 + $0xef8] sm:$0xff]
        %v844 = vld [vmem:[%s281 + $0xf00] sm:$0xff]
        %v845 = vld [vmem:[%s281 + $0xf08] sm:$0xff]
        %v846 = vld [vmem:[%s281 + $0xf10] sm:$0xff]
        %v847 = vld [vmem:[%s281 + $0xf18] sm:$0xff]
        %v848 = vld [vmem:[%s281 + $0xf20] sm:$0xff]
        %v849 = vld [vmem:[%s281 + $0xf28] sm:$0xff]
        %v850 = vld [vmem:[%s281 + $0xf30] sm:$0xff]
        %v851 = vld [vmem:[%s281 + $0xf38] sm:$0xff]
        %v852 = vld [vmem:[%s281 + $0xf40] sm:$0xff]
        %v853 = vld [vmem:[%s281 + $0xf48] sm:$0xff]
        %v854 = vld [vmem:[%s281 + $0xf50] sm:$0xff]
        %v855 = vld [vmem:[%s281 + $0xf58] sm:$0xff]
        %v856 = vld [vmem:[%s281 + $0xf60] sm:$0xff]
        %v857 = vld [vmem:[%s281 + $0xf68] sm:$0xff]
        %v858 = vld [vmem:[%s281 + $0xf70] sm:$0xff]
        %v859 = vld [vmem:[%s281 + $0xf78] sm:$0xff]
        %v860 = vld [vmem:[%s281 + $0xf80] sm:$0xff]
        %v861 = vld [vmem:[%s281 + $0xf88] sm:$0xff]
        %v862 = vld [vmem:[%s281 + $0xf90] sm:$0xff]
        %v863 = vld [vmem:[%s281 + $0xf98] sm:$0xff]
        %v864 = vld [vmem:[%s281 + $0xfa0] sm:$0xff]
        %v865 = vld [vmem:[%s281 + $0xfa8] sm:$0xff]
        %v866 = vld [vmem:[%s281 + $0xfb0] sm:$0xff]
        %v867 = vld [vmem:[%s281 + $0xfb8] sm:$0xff]
        %v868 = vld [vmem:[%s281 + $0xfc0] sm:$0xff]
        %v869 = vld [vmem:[%s281 + $0xfc8] sm:$0xff]
        %v870 = vld [vmem:[%s281 + $0xfd0] sm:$0xff]
        %v871 = vld [vmem:[%s281 + $0xfd8] sm:$0xff]
        %v872 = vld [vmem:[%s281 + $0xfe0] sm:$0xff]
        %v873 = vld [vmem:[%s281 + $0xfe8] sm:$0xff]
        %v874 = vld [vmem:[%s281 + $0xff0] sm:$0xff]
        %v875 = vld [vmem:[%s281 + $0xff8] sm:$0xff]
        %v876 = vld [vmem:[%s290] sm:$0xff]
        %v877 = vld [vmem:[%s290 + $0x8] sm:$0xff]
        %v878 = vld [vmem:[%s290 + $0x10] sm:$0xff]
        %v879 = vld [vmem:[%s290 + $0x18] sm:$0xff]
        %v880 = vld [vmem:[%s290 + $0x20] sm:$0xff]
        %v881 = vld [vmem:[%s290 + $0x28] sm:$0xff]
        %v882 = vld [vmem:[%s290 + $0x30] sm:$0xff]
        %v883 = vld [vmem:[%s290 + $0x38] sm:$0xff]
        %v884 = vld [vmem:[%s290 + $0x40] sm:$0xff]
        %v885 = vld [vmem:[%s290 + $0x48] sm:$0xff]
        %v886 = vld [vmem:[%s290 + $0x50] sm:$0xff]
        %v887 = vld [vmem:[%s290 + $0x58] sm:$0xff]
        %v888 = vld [vmem:[%s290 + $0x60] sm:$0xff]
        %v889 = vld [vmem:[%s290 + $0x68] sm:$0xff]
        %v890 = vld [vmem:[%s290 + $0x70] sm:$0xff]
        %v891 = vld [vmem:[%s290 + $0x78] sm:$0xff]
        %v892 = vld [vmem:[%s290 + $0x80] sm:$0xff]
        %v893 = vld [vmem:[%s290 + $0x88] sm:$0xff]
        %v894 = vld [vmem:[%s290 + $0x90] sm:$0xff]
        %v895 = vld [vmem:[%s290 + $0x98] sm:$0xff]
        %v896 = vld [vmem:[%s290 + $0xa0] sm:$0xff]
        %v897 = vld [vmem:[%s290 + $0xa8] sm:$0xff]
        %v898 = vld [vmem:[%s290 + $0xb0] sm:$0xff]
        %v899 = vld [vmem:[%s290 + $0xb8] sm:$0xff]
        %v900 = vld [vmem:[%s290 + $0xc0] sm:$0xff]
        %v901 = vld [vmem:[%s290 + $0xc8] sm:$0xff]
        %v902 = vld [vmem:[%s290 + $0xd0] sm:$0xff]
        %v903 = vld [vmem:[%s290 + $0xd8] sm:$0xff]
        %v904 = vld [vmem:[%s290 + $0xe0] sm:$0xff]
        %v905 = vld [vmem:[%s290 + $0xe8] sm:$0xff]
        %v906 = vld [vmem:[%s290 + $0xf0] sm:$0xff]
        %v907 = vld [vmem:[%s290 + $0xf8] sm:$0xff]
        %v908 = vld [vmem:[%s290 + $0x100] sm:$0xff]
        %v909 = vld [vmem:[%s290 + $0x108] sm:$0xff]
        %v910 = vld [vmem:[%s290 + $0x110] sm:$0xff]
        %v911 = vld [vmem:[%s290 + $0x118] sm:$0xff]
        %v912 = vld [vmem:[%s290 + $0x120] sm:$0xff]
        %v913 = vld [vmem:[%s290 + $0x128] sm:$0xff]
        %v914 = vld [vmem:[%s290 + $0x130] sm:$0xff]
        %v915 = vld [vmem:[%s290 + $0x138] sm:$0xff]
        %v916 = vld [vmem:[%s290 + $0x140] sm:$0xff]
        %v917 = vld [vmem:[%s290 + $0x148] sm:$0xff]
        %v918 = vld [vmem:[%s290 + $0x150] sm:$0xff]
        %v919 = vld [vmem:[%s290 + $0x158] sm:$0xff]
        %v920 = vld [vmem:[%s290 + $0x160] sm:$0xff]
        %v921 = vld [vmem:[%s290 + $0x168] sm:$0xff]
        %v922 = vld [vmem:[%s290 + $0x170] sm:$0xff]
        %v923 = vld [vmem:[%s290 + $0x178] sm:$0xff]
        %v924 = vld [vmem:[%s290 + $0x180] sm:$0xff]
        %v925 = vld [vmem:[%s290 + $0x188] sm:$0xff]
        %v926 = vld [vmem:[%s290 + $0x190] sm:$0xff]
        %v927 = vld [vmem:[%s290 + $0x198] sm:$0xff]
        %v928 = vld [vmem:[%s290 + $0x1a0] sm:$0xff]
        %v929 = vld [vmem:[%s290 + $0x1a8] sm:$0xff]
        %v930 = vld [vmem:[%s290 + $0x1b0] sm:$0xff]
        %v931 = vld [vmem:[%s290 + $0x1b8] sm:$0xff]
        %v932 = vld [vmem:[%s290 + $0x1c0] sm:$0xff]
        %v933 = vld [vmem:[%s290 + $0x1c8] sm:$0xff]
        %v934 = vld [vmem:[%s290 + $0x1d0] sm:$0xff]
        %v935 = vld [vmem:[%s290 + $0x1d8] sm:$0xff]
        %v936 = vld [vmem:[%s290 + $0x1e0] sm:$0xff]
        %v937 = vld [vmem:[%s290 + $0x1e8] sm:$0xff]
        %v938 = vld [vmem:[%s290 + $0x1f0] sm:$0xff]
        %v939 = vld [vmem:[%s290 + $0x1f8] sm:$0xff]
        %v940 = vld [vmem:[%s290 + $0x200] sm:$0xff]
        %v941 = vld [vmem:[%s290 + $0x208] sm:$0xff]
        %v942 = vld [vmem:[%s290 + $0x210] sm:$0xff]
        %v943 = vld [vmem:[%s290 + $0x218] sm:$0xff]
        %v944 = vld [vmem:[%s290 + $0x220] sm:$0xff]
        %v945 = vld [vmem:[%s290 + $0x228] sm:$0xff]
        %v946 = vld [vmem:[%s290 + $0x230] sm:$0xff]
        %v947 = vld [vmem:[%s290 + $0x238] sm:$0xff]
        %v948 = vld [vmem:[%s290 + $0x240] sm:$0xff]
        %v949 = vld [vmem:[%s290 + $0x248] sm:$0xff]
        %v950 = vld [vmem:[%s290 + $0x250] sm:$0xff]
        %v951 = vld [vmem:[%s290 + $0x258] sm:$0xff]
        %v952 = vld [vmem:[%s290 + $0x260] sm:$0xff]
        %v953 = vld [vmem:[%s290 + $0x268] sm:$0xff]
        %v954 = vld [vmem:[%s290 + $0x270] sm:$0xff]
        %v955 = vld [vmem:[%s290 + $0x278] sm:$0xff]
        %v956 = vld [vmem:[%s290 + $0x280] sm:$0xff]
        %v957 = vld [vmem:[%s290 + $0x288] sm:$0xff]
        %v958 = vld [vmem:[%s290 + $0x290] sm:$0xff]
        %v959 = vld [vmem:[%s290 + $0x298] sm:$0xff]
        %v960 = vld [vmem:[%s290 + $0x2a0] sm:$0xff]
        %v961 = vld [vmem:[%s290 + $0x2a8] sm:$0xff]
        %v962 = vld [vmem:[%s290 + $0x2b0] sm:$0xff]
        %v963 = vld [vmem:[%s290 + $0x2b8] sm:$0xff]
        %v964 = vld [vmem:[%s290 + $0x2c0] sm:$0xff]
        %v965 = vld [vmem:[%s290 + $0x2c8] sm:$0xff]
        %v966 = vld [vmem:[%s290 + $0x2d0] sm:$0xff]
        %v967 = vld [vmem:[%s290 + $0x2d8] sm:$0xff]
        %v968 = vld [vmem:[%s290 + $0x2e0] sm:$0xff]
        %v969 = vld [vmem:[%s290 + $0x2e8] sm:$0xff]
        %v970 = vld [vmem:[%s290 + $0x2f0] sm:$0xff]
        %v971 = vld [vmem:[%s290 + $0x2f8] sm:$0xff]
        %v972 = vld [vmem:[%s290 + $0x300] sm:$0xff]
        %v973 = vld [vmem:[%s290 + $0x308] sm:$0xff]
        %v974 = vld [vmem:[%s290 + $0x310] sm:$0xff]
        %v975 = vld [vmem:[%s290 + $0x318] sm:$0xff]
        %v976 = vld [vmem:[%s290 + $0x320] sm:$0xff]
        %v977 = vld [vmem:[%s290 + $0x328] sm:$0xff]
        %v978 = vld [vmem:[%s290 + $0x330] sm:$0xff]
        %v979 = vld [vmem:[%s290 + $0x338] sm:$0xff]
        %v980 = vld [vmem:[%s290 + $0x340] sm:$0xff]
        %v981 = vld [vmem:[%s290 + $0x348] sm:$0xff]
        %v982 = vld [vmem:[%s290 + $0x350] sm:$0xff]
        %v983 = vld [vmem:[%s290 + $0x358] sm:$0xff]
        %v984 = vld [vmem:[%s290 + $0x360] sm:$0xff]
        %v985 = vld [vmem:[%s290 + $0x368] sm:$0xff]
        %v986 = vld [vmem:[%s290 + $0x370] sm:$0xff]
        %v987 = vld [vmem:[%s290 + $0x378] sm:$0xff]
        %v988 = vld [vmem:[%s290 + $0x380] sm:$0xff]
        %v989 = vld [vmem:[%s290 + $0x388] sm:$0xff]
        %v990 = vld [vmem:[%s290 + $0x390] sm:$0xff]
        %v991 = vld [vmem:[%s290 + $0x398] sm:$0xff]
        %v992 = vld [vmem:[%s290 + $0x3a0] sm:$0xff]
        %v993 = vld [vmem:[%s290 + $0x3a8] sm:$0xff]
        %v994 = vld [vmem:[%s290 + $0x3b0] sm:$0xff]
        %v995 = vld [vmem:[%s290 + $0x3b8] sm:$0xff]
        %v996 = vld [vmem:[%s290 + $0x3c0] sm:$0xff]
        %v997 = vld [vmem:[%s290 + $0x3c8] sm:$0xff]
        %v998 = vld [vmem:[%s290 + $0x3d0] sm:$0xff]
        %v999 = vld [vmem:[%s290 + $0x3d8] sm:$0xff]
        %v1000 = vld [vmem:[%s290 + $0x3e0] sm:$0xff]
        %v1001 = vld [vmem:[%s290 + $0x3e8] sm:$0xff]
        %v1002 = vld [vmem:[%s290 + $0x3f0] sm:$0xff]
        %v1003 = vld [vmem:[%s290 + $0x3f8] sm:$0xff]
        %v1004 = vld [vmem:[%s290 + $0x400] sm:$0xff]
        %v1005 = vld [vmem:[%s290 + $0x408] sm:$0xff]
        %v1006 = vld [vmem:[%s290 + $0x410] sm:$0xff]
        %v1007 = vld [vmem:[%s290 + $0x418] sm:$0xff]
        %v1008 = vld [vmem:[%s290 + $0x420] sm:$0xff]
        %v1009 = vld [vmem:[%s290 + $0x428] sm:$0xff]
        %v1010 = vld [vmem:[%s290 + $0x430] sm:$0xff]
        %v1011 = vld [vmem:[%s290 + $0x438] sm:$0xff]
        %v1012 = vld [vmem:[%s290 + $0x440] sm:$0xff]
        %v1013 = vld [vmem:[%s290 + $0x448] sm:$0xff]
        %v1014 = vld [vmem:[%s290 + $0x450] sm:$0xff]
        %v1015 = vld [vmem:[%s290 + $0x458] sm:$0xff]
        %v1016 = vld [vmem:[%s290 + $0x460] sm:$0xff]
        %v1017 = vld [vmem:[%s290 + $0x468] sm:$0xff]
        %v1018 = vld [vmem:[%s290 + $0x470] sm:$0xff]
        %v1019 = vld [vmem:[%s290 + $0x478] sm:$0xff]
        %v1020 = vld [vmem:[%s290 + $0x480] sm:$0xff]
        %v1021 = vld [vmem:[%s290 + $0x488] sm:$0xff]
        %v1022 = vld [vmem:[%s290 + $0x490] sm:$0xff]
        %v1023 = vld [vmem:[%s290 + $0x498] sm:$0xff]
        %v1024 = vld [vmem:[%s290 + $0x4a0] sm:$0xff]
        %v1025 = vld [vmem:[%s290 + $0x4a8] sm:$0xff]
        %v1026 = vld [vmem:[%s290 + $0x4b0] sm:$0xff]
        %v1027 = vld [vmem:[%s290 + $0x4b8] sm:$0xff]
        %v1028 = vld [vmem:[%s290 + $0x4c0] sm:$0xff]
        %v1029 = vld [vmem:[%s290 + $0x4c8] sm:$0xff]
        %v1030 = vld [vmem:[%s290 + $0x4d0] sm:$0xff]
        %v1031 = vld [vmem:[%s290 + $0x4d8] sm:$0xff]
        %v1032 = vld [vmem:[%s290 + $0x4e0] sm:$0xff]
        %v1033 = vld [vmem:[%s290 + $0x4e8] sm:$0xff]
        %v1034 = vld [vmem:[%s290 + $0x4f0] sm:$0xff]
        %v1035 = vld [vmem:[%s290 + $0x4f8] sm:$0xff]
        %v1036 = vld [vmem:[%s290 + $0x500] sm:$0xff]
        %v1037 = vld [vmem:[%s290 + $0x508] sm:$0xff]
        %v1038 = vld [vmem:[%s290 + $0x510] sm:$0xff]
        %v1039 = vld [vmem:[%s290 + $0x518] sm:$0xff]
        %v1040 = vld [vmem:[%s290 + $0x520] sm:$0xff]
        %v1041 = vld [vmem:[%s290 + $0x528] sm:$0xff]
        %v1042 = vld [vmem:[%s290 + $0x530] sm:$0xff]
        %v1043 = vld [vmem:[%s290 + $0x538] sm:$0xff]
        %v1044 = vld [vmem:[%s290 + $0x540] sm:$0xff]
        %v1045 = vld [vmem:[%s290 + $0x548] sm:$0xff]
        %v1046 = vld [vmem:[%s290 + $0x550] sm:$0xff]
        %v1047 = vld [vmem:[%s290 + $0x558] sm:$0xff]
        %v1048 = vld [vmem:[%s290 + $0x560] sm:$0xff]
        %v1049 = vld [vmem:[%s290 + $0x568] sm:$0xff]
        %v1050 = vld [vmem:[%s290 + $0x570] sm:$0xff]
        %v1051 = vld [vmem:[%s290 + $0x578] sm:$0xff]
        %v1052 = vld [vmem:[%s290 + $0x580] sm:$0xff]
        %v1053 = vld [vmem:[%s290 + $0x588] sm:$0xff]
        %v1054 = vld [vmem:[%s290 + $0x590] sm:$0xff]
        %v1055 = vld [vmem:[%s290 + $0x598] sm:$0xff]
        %v1056 = vld [vmem:[%s290 + $0x5a0] sm:$0xff]
        %v1057 = vld [vmem:[%s290 + $0x5a8] sm:$0xff]
        %v1058 = vld [vmem:[%s290 + $0x5b0] sm:$0xff]
        %v1059 = vld [vmem:[%s290 + $0x5b8] sm:$0xff]
        %v1060 = vld [vmem:[%s290 + $0x5c0] sm:$0xff]
        %v1061 = vld [vmem:[%s290 + $0x5c8] sm:$0xff]
        %v1062 = vld [vmem:[%s290 + $0x5d0] sm:$0xff]
        %v1063 = vld [vmem:[%s290 + $0x5d8] sm:$0xff]
        %v1064 = vld [vmem:[%s290 + $0x5e0] sm:$0xff]
        %v1065 = vld [vmem:[%s290 + $0x5e8] sm:$0xff]
        %v1066 = vld [vmem:[%s290 + $0x5f0] sm:$0xff]
        %v1067 = vld [vmem:[%s290 + $0x5f8] sm:$0xff]
        %v1068 = vld [vmem:[%s290 + $0x600] sm:$0xff]
        %v1069 = vld [vmem:[%s290 + $0x608] sm:$0xff]
        %v1070 = vld [vmem:[%s290 + $0x610] sm:$0xff]
        %v1071 = vld [vmem:[%s290 + $0x618] sm:$0xff]
        %v1072 = vld [vmem:[%s290 + $0x620] sm:$0xff]
        %v1073 = vld [vmem:[%s290 + $0x628] sm:$0xff]
        %v1074 = vld [vmem:[%s290 + $0x630] sm:$0xff]
        %v1075 = vld [vmem:[%s290 + $0x638] sm:$0xff]
        %v1076 = vld [vmem:[%s290 + $0x640] sm:$0xff]
        %v1077 = vld [vmem:[%s290 + $0x648] sm:$0xff]
        %v1078 = vld [vmem:[%s290 + $0x650] sm:$0xff]
        %v1079 = vld [vmem:[%s290 + $0x658] sm:$0xff]
        %v1080 = vld [vmem:[%s290 + $0x660] sm:$0xff]
        %v1081 = vld [vmem:[%s290 + $0x668] sm:$0xff]
        %v1082 = vld [vmem:[%s290 + $0x670] sm:$0xff]
        %v1083 = vld [vmem:[%s290 + $0x678] sm:$0xff]
        %v1084 = vld [vmem:[%s290 + $0x680] sm:$0xff]
        %v1085 = vld [vmem:[%s290 + $0x688] sm:$0xff]
        %v1086 = vld [vmem:[%s290 + $0x690] sm:$0xff]
        %v1087 = vld [vmem:[%s290 + $0x698] sm:$0xff]
        %v1088 = vld [vmem:[%s290 + $0x6a0] sm:$0xff]
        %v1089 = vld [vmem:[%s290 + $0x6a8] sm:$0xff]
        %v1090 = vld [vmem:[%s290 + $0x6b0] sm:$0xff]
        %v1091 = vld [vmem:[%s290 + $0x6b8] sm:$0xff]
        %v1092 = vld [vmem:[%s290 + $0x6c0] sm:$0xff]
        %v1093 = vld [vmem:[%s290 + $0x6c8] sm:$0xff]
        %v1094 = vld [vmem:[%s290 + $0x6d0] sm:$0xff]
        %v1095 = vld [vmem:[%s290 + $0x6d8] sm:$0xff]
        %v1096 = vld [vmem:[%s290 + $0x6e0] sm:$0xff]
        %v1097 = vld [vmem:[%s290 + $0x6e8] sm:$0xff]
        %v1098 = vld [vmem:[%s290 + $0x6f0] sm:$0xff]
        %v1099 = vld [vmem:[%s290 + $0x6f8] sm:$0xff]
        %v1100 = vld [vmem:[%s290 + $0x700] sm:$0xff]
        %v1101 = vld [vmem:[%s290 + $0x708] sm:$0xff]
        %v1102 = vld [vmem:[%s290 + $0x710] sm:$0xff]
        %v1103 = vld [vmem:[%s290 + $0x718] sm:$0xff]
        %v1104 = vld [vmem:[%s290 + $0x720] sm:$0xff]
        %v1105 = vld [vmem:[%s290 + $0x728] sm:$0xff]
        %v1106 = vld [vmem:[%s290 + $0x730] sm:$0xff]
        %v1107 = vld [vmem:[%s290 + $0x738] sm:$0xff]
        %v1108 = vld [vmem:[%s290 + $0x740] sm:$0xff]
        %v1109 = vld [vmem:[%s290 + $0x748] sm:$0xff]
        %v1110 = vld [vmem:[%s290 + $0x750] sm:$0xff]
        %v1111 = vld [vmem:[%s290 + $0x758] sm:$0xff]
        %v1112 = vld [vmem:[%s290 + $0x760] sm:$0xff]
        %v1113 = vld [vmem:[%s290 + $0x768] sm:$0xff]
        %v1114 = vld [vmem:[%s290 + $0x770] sm:$0xff]
        %v1115 = vld [vmem:[%s290 + $0x778] sm:$0xff]
        %v1116 = vld [vmem:[%s290 + $0x780] sm:$0xff]
        %v1117 = vld [vmem:[%s290 + $0x788] sm:$0xff]
        %v1118 = vld [vmem:[%s290 + $0x790] sm:$0xff]
        %v1119 = vld [vmem:[%s290 + $0x798] sm:$0xff]
        %v1120 = vld [vmem:[%s290 + $0x7a0] sm:$0xff]
        %v1121 = vld [vmem:[%s290 + $0x7a8] sm:$0xff]
        %v1122 = vld [vmem:[%s290 + $0x7b0] sm:$0xff]
        %v1123 = vld [vmem:[%s290 + $0x7b8] sm:$0xff]
        %v1124 = vld [vmem:[%s290 + $0x7c0] sm:$0xff]
        %v1125 = vld [vmem:[%s290 + $0x7c8] sm:$0xff]
        %v1126 = vld [vmem:[%s290 + $0x7d0] sm:$0xff]
        %v1127 = vld [vmem:[%s290 + $0x7d8] sm:$0xff]
        %v1128 = vld [vmem:[%s290 + $0x7e0] sm:$0xff]
        %v1129 = vld [vmem:[%s290 + $0x7e8] sm:$0xff]
        %v1130 = vld [vmem:[%s290 + $0x7f0] sm:$0xff]
        %v1131 = vld [vmem:[%s290 + $0x7f8] sm:$0xff]
        %v1132 = vld [vmem:[%s290 + $0x800] sm:$0xff]
        %v1133 = vld [vmem:[%s290 + $0x808] sm:$0xff]
        %v1134 = vld [vmem:[%s290 + $0x810] sm:$0xff]
        %v1135 = vld [vmem:[%s290 + $0x818] sm:$0xff]
        %v1136 = vld [vmem:[%s290 + $0x820] sm:$0xff]
        %v1137 = vld [vmem:[%s290 + $0x828] sm:$0xff]
        %v1138 = vld [vmem:[%s290 + $0x830] sm:$0xff]
        %v1139 = vld [vmem:[%s290 + $0x838] sm:$0xff]
        %v1140 = vld [vmem:[%s290 + $0x840] sm:$0xff]
        %v1141 = vld [vmem:[%s290 + $0x848] sm:$0xff]
        %v1142 = vld [vmem:[%s290 + $0x850] sm:$0xff]
        %v1143 = vld [vmem:[%s290 + $0x858] sm:$0xff]
        %v1144 = vld [vmem:[%s290 + $0x860] sm:$0xff]
        %v1145 = vld [vmem:[%s290 + $0x868] sm:$0xff]
        %v1146 = vld [vmem:[%s290 + $0x870] sm:$0xff]
        %v1147 = vld [vmem:[%s290 + $0x878] sm:$0xff]
        %v1148 = vld [vmem:[%s290 + $0x880] sm:$0xff]
        %v1149 = vld [vmem:[%s290 + $0x888] sm:$0xff]
        %v1150 = vld [vmem:[%s290 + $0x890] sm:$0xff]
        %v1151 = vld [vmem:[%s290 + $0x898] sm:$0xff]
        %v1152 = vld [vmem:[%s290 + $0x8a0] sm:$0xff]
        %v1153 = vld [vmem:[%s290 + $0x8a8] sm:$0xff]
        %v1154 = vld [vmem:[%s290 + $0x8b0] sm:$0xff]
        %v1155 = vld [vmem:[%s290 + $0x8b8] sm:$0xff]
        %v1156 = vld [vmem:[%s290 + $0x8c0] sm:$0xff]
        %v1157 = vld [vmem:[%s290 + $0x8c8] sm:$0xff]
        %v1158 = vld [vmem:[%s290 + $0x8d0] sm:$0xff]
        %v1159 = vld [vmem:[%s290 + $0x8d8] sm:$0xff]
        %v1160 = vld [vmem:[%s290 + $0x8e0] sm:$0xff]
        %v1161 = vld [vmem:[%s290 + $0x8e8] sm:$0xff]
        %v1162 = vld [vmem:[%s290 + $0x8f0] sm:$0xff]
        %v1163 = vld [vmem:[%s290 + $0x8f8] sm:$0xff]
        %v1164 = vld [vmem:[%s290 + $0x900] sm:$0xff]
        %v1165 = vld [vmem:[%s290 + $0x908] sm:$0xff]
        %v1166 = vld [vmem:[%s290 + $0x910] sm:$0xff]
        %v1167 = vld [vmem:[%s290 + $0x918] sm:$0xff]
        %v1168 = vld [vmem:[%s290 + $0x920] sm:$0xff]
        %v1169 = vld [vmem:[%s290 + $0x928] sm:$0xff]
        %v1170 = vld [vmem:[%s290 + $0x930] sm:$0xff]
        %v1171 = vld [vmem:[%s290 + $0x938] sm:$0xff]
        %v1172 = vld [vmem:[%s290 + $0x940] sm:$0xff]
        %v1173 = vld [vmem:[%s290 + $0x948] sm:$0xff]
        %v1174 = vld [vmem:[%s290 + $0x950] sm:$0xff]
        %v1175 = vld [vmem:[%s290 + $0x958] sm:$0xff]
        %v1176 = vld [vmem:[%s290 + $0x960] sm:$0xff]
        %v1177 = vld [vmem:[%s290 + $0x968] sm:$0xff]
        %v1178 = vld [vmem:[%s290 + $0x970] sm:$0xff]
        %v1179 = vld [vmem:[%s290 + $0x978] sm:$0xff]
        %v1180 = vld [vmem:[%s290 + $0x980] sm:$0xff]
        %v1181 = vld [vmem:[%s290 + $0x988] sm:$0xff]
        %v1182 = vld [vmem:[%s290 + $0x990] sm:$0xff]
        %v1183 = vld [vmem:[%s290 + $0x998] sm:$0xff]
        %v1184 = vld [vmem:[%s290 + $0x9a0] sm:$0xff]
        %v1185 = vld [vmem:[%s290 + $0x9a8] sm:$0xff]
        %v1186 = vld [vmem:[%s290 + $0x9b0] sm:$0xff]
        %v1187 = vld [vmem:[%s290 + $0x9b8] sm:$0xff]
        %v1188 = vld [vmem:[%s290 + $0x9c0] sm:$0xff]
        %v1189 = vld [vmem:[%s290 + $0x9c8] sm:$0xff]
        %v1190 = vld [vmem:[%s290 + $0x9d0] sm:$0xff]
        %v1191 = vld [vmem:[%s290 + $0x9d8] sm:$0xff]
        %v1192 = vld [vmem:[%s290 + $0x9e0] sm:$0xff]
        %v1193 = vld [vmem:[%s290 + $0x9e8] sm:$0xff]
        %v1194 = vld [vmem:[%s290 + $0x9f0] sm:$0xff]
        %v1195 = vld [vmem:[%s290 + $0x9f8] sm:$0xff]
        %v1196 = vld [vmem:[%s290 + $0xa00] sm:$0xff]
        %v1197 = vld [vmem:[%s290 + $0xa08] sm:$0xff]
        %v1198 = vld [vmem:[%s290 + $0xa10] sm:$0xff]
        %v1199 = vld [vmem:[%s290 + $0xa18] sm:$0xff]
        %v1200 = vld [vmem:[%s290 + $0xa20] sm:$0xff]
        %v1201 = vld [vmem:[%s290 + $0xa28] sm:$0xff]
        %v1202 = vld [vmem:[%s290 + $0xa30] sm:$0xff]
        %v1203 = vld [vmem:[%s290 + $0xa38] sm:$0xff]
        %v1204 = vld [vmem:[%s290 + $0xa40] sm:$0xff]
        %v1205 = vld [vmem:[%s290 + $0xa48] sm:$0xff]
        %v1206 = vld [vmem:[%s290 + $0xa50] sm:$0xff]
        %v1207 = vld [vmem:[%s290 + $0xa58] sm:$0xff]
        %v1208 = vld [vmem:[%s290 + $0xa60] sm:$0xff]
        %v1209 = vld [vmem:[%s290 + $0xa68] sm:$0xff]
        %v1210 = vld [vmem:[%s290 + $0xa70] sm:$0xff]
        %v1211 = vld [vmem:[%s290 + $0xa78] sm:$0xff]
        %v1212 = vld [vmem:[%s290 + $0xa80] sm:$0xff]
        %v1213 = vld [vmem:[%s290 + $0xa88] sm:$0xff]
        %v1214 = vld [vmem:[%s290 + $0xa90] sm:$0xff]
        %v1215 = vld [vmem:[%s290 + $0xa98] sm:$0xff]
        %v1216 = vld [vmem:[%s290 + $0xaa0] sm:$0xff]
        %v1217 = vld [vmem:[%s290 + $0xaa8] sm:$0xff]
        %v1218 = vld [vmem:[%s290 + $0xab0] sm:$0xff]
        %v1219 = vld [vmem:[%s290 + $0xab8] sm:$0xff]
        %v1220 = vld [vmem:[%s290 + $0xac0] sm:$0xff]
        %v1221 = vld [vmem:[%s290 + $0xac8] sm:$0xff]
        %v1222 = vld [vmem:[%s290 + $0xad0] sm:$0xff]
        %v1223 = vld [vmem:[%s290 + $0xad8] sm:$0xff]
        %v1224 = vld [vmem:[%s290 + $0xae0] sm:$0xff]
        %v1225 = vld [vmem:[%s290 + $0xae8] sm:$0xff]
        %v1226 = vld [vmem:[%s290 + $0xaf0] sm:$0xff]
        %v1227 = vld [vmem:[%s290 + $0xaf8] sm:$0xff]
        %v1228 = vld [vmem:[%s290 + $0xb00] sm:$0xff]
        %v1229 = vld [vmem:[%s290 + $0xb08] sm:$0xff]
        %v1230 = vld [vmem:[%s290 + $0xb10] sm:$0xff]
        %v1231 = vld [vmem:[%s290 + $0xb18] sm:$0xff]
        %v1232 = vld [vmem:[%s290 + $0xb20] sm:$0xff]
        %v1233 = vld [vmem:[%s290 + $0xb28] sm:$0xff]
        %v1234 = vld [vmem:[%s290 + $0xb30] sm:$0xff]
        %v1235 = vld [vmem:[%s290 + $0xb38] sm:$0xff]
        %v1236 = vld [vmem:[%s290 + $0xb40] sm:$0xff]
        %v1237 = vld [vmem:[%s290 + $0xb48] sm:$0xff]
        %v1238 = vld [vmem:[%s290 + $0xb50] sm:$0xff]
        %v1239 = vld [vmem:[%s290 + $0xb58] sm:$0xff]
        %v1240 = vld [vmem:[%s290 + $0xb60] sm:$0xff]
        %v1241 = vld [vmem:[%s290 + $0xb68] sm:$0xff]
        %v1242 = vld [vmem:[%s290 + $0xb70] sm:$0xff]
        %v1243 = vld [vmem:[%s290 + $0xb78] sm:$0xff]
        %v1244 = vld [vmem:[%s290 + $0xb80] sm:$0xff]
        %v1245 = vld [vmem:[%s290 + $0xb88] sm:$0xff]
        %v1246 = vld [vmem:[%s290 + $0xb90] sm:$0xff]
        %v1247 = vld [vmem:[%s290 + $0xb98] sm:$0xff]
        %v1248 = vld [vmem:[%s290 + $0xba0] sm:$0xff]
        %v1249 = vld [vmem:[%s290 + $0xba8] sm:$0xff]
        %v1250 = vld [vmem:[%s290 + $0xbb0] sm:$0xff]
        %v1251 = vld [vmem:[%s290 + $0xbb8] sm:$0xff]
        %v1252 = vld [vmem:[%s290 + $0xbc0] sm:$0xff]
        %v1253 = vld [vmem:[%s290 + $0xbc8] sm:$0xff]
        %v1254 = vld [vmem:[%s290 + $0xbd0] sm:$0xff]
        %v1255 = vld [vmem:[%s290 + $0xbd8] sm:$0xff]
        %v1256 = vld [vmem:[%s290 + $0xbe0] sm:$0xff]
        %v1257 = vld [vmem:[%s290 + $0xbe8] sm:$0xff]
        %v1258 = vld [vmem:[%s290 + $0xbf0] sm:$0xff]
        %v1259 = vld [vmem:[%s290 + $0xbf8] sm:$0xff]
        %v1260 = vld [vmem:[%s290 + $0xc00] sm:$0xff]
        %v1261 = vld [vmem:[%s290 + $0xc08] sm:$0xff]
        %v1262 = vld [vmem:[%s290 + $0xc10] sm:$0xff]
        %v1263 = vld [vmem:[%s290 + $0xc18] sm:$0xff]
        %v1264 = vld [vmem:[%s290 + $0xc20] sm:$0xff]
        %v1265 = vld [vmem:[%s290 + $0xc28] sm:$0xff]
        %v1266 = vld [vmem:[%s290 + $0xc30] sm:$0xff]
        %v1267 = vld [vmem:[%s290 + $0xc38] sm:$0xff]
        %v1268 = vld [vmem:[%s290 + $0xc40] sm:$0xff]
        %v1269 = vld [vmem:[%s290 + $0xc48] sm:$0xff]
        %v1270 = vld [vmem:[%s290 + $0xc50] sm:$0xff]
        %v1271 = vld [vmem:[%s290 + $0xc58] sm:$0xff]
        %v1272 = vld [vmem:[%s290 + $0xc60] sm:$0xff]
        %v1273 = vld [vmem:[%s290 + $0xc68] sm:$0xff]
        %v1274 = vld [vmem:[%s290 + $0xc70] sm:$0xff]
        %v1275 = vld [vmem:[%s290 + $0xc78] sm:$0xff]
        %v1276 = vld [vmem:[%s290 + $0xc80] sm:$0xff]
        %v1277 = vld [vmem:[%s290 + $0xc88] sm:$0xff]
        %v1278 = vld [vmem:[%s290 + $0xc90] sm:$0xff]
        %v1279 = vld [vmem:[%s290 + $0xc98] sm:$0xff]
        %v1280 = vld [vmem:[%s290 + $0xca0] sm:$0xff]
        %v1281 = vld [vmem:[%s290 + $0xca8] sm:$0xff]
        %v1282 = vld [vmem:[%s290 + $0xcb0] sm:$0xff]
        %v1283 = vld [vmem:[%s290 + $0xcb8] sm:$0xff]
        %v1284 = vld [vmem:[%s290 + $0xcc0] sm:$0xff]
        %v1285 = vld [vmem:[%s290 + $0xcc8] sm:$0xff]
        %v1286 = vld [vmem:[%s290 + $0xcd0] sm:$0xff]
        %v1287 = vld [vmem:[%s290 + $0xcd8] sm:$0xff]
        %v1288 = vld [vmem:[%s290 + $0xce0] sm:$0xff]
        %v1289 = vld [vmem:[%s290 + $0xce8] sm:$0xff]
        %v1290 = vld [vmem:[%s290 + $0xcf0] sm:$0xff]
        %v1291 = vld [vmem:[%s290 + $0xcf8] sm:$0xff]
        %v1292 = vld [vmem:[%s290 + $0xd00] sm:$0xff]
        %v1293 = vld [vmem:[%s290 + $0xd08] sm:$0xff]
        %v1294 = vld [vmem:[%s290 + $0xd10] sm:$0xff]
        %v1295 = vld [vmem:[%s290 + $0xd18] sm:$0xff]
        %v1296 = vld [vmem:[%s290 + $0xd20] sm:$0xff]
        %v1297 = vld [vmem:[%s290 + $0xd28] sm:$0xff]
        %v1298 = vld [vmem:[%s290 + $0xd30] sm:$0xff]
        %v1299 = vld [vmem:[%s290 + $0xd38] sm:$0xff]
        %v1300 = vld [vmem:[%s290 + $0xd40] sm:$0xff]
        %v1301 = vld [vmem:[%s290 + $0xd48] sm:$0xff]
        %v1302 = vld [vmem:[%s290 + $0xd50] sm:$0xff]
        %v1303 = vld [vmem:[%s290 + $0xd58] sm:$0xff]
        %v1304 = vld [vmem:[%s290 + $0xd60] sm:$0xff]
        %v1305 = vld [vmem:[%s290 + $0xd68] sm:$0xff]
        %v1306 = vld [vmem:[%s290 + $0xd70] sm:$0xff]
        %v1307 = vld [vmem:[%s290 + $0xd78] sm:$0xff]
        %v1308 = vld [vmem:[%s290 + $0xd80] sm:$0xff]
        %v1309 = vld [vmem:[%s290 + $0xd88] sm:$0xff]
        %v1310 = vld [vmem:[%s290 + $0xd90] sm:$0xff]
        %v1311 = vld [vmem:[%s290 + $0xd98] sm:$0xff]
        %v1312 = vld [vmem:[%s290 + $0xda0] sm:$0xff]
        %v1313 = vld [vmem:[%s290 + $0xda8] sm:$0xff]
        %v1314 = vld [vmem:[%s290 + $0xdb0] sm:$0xff]
        %v1315 = vld [vmem:[%s290 + $0xdb8] sm:$0xff]
        %v1316 = vld [vmem:[%s290 + $0xdc0] sm:$0xff]
        %v1317 = vld [vmem:[%s290 + $0xdc8] sm:$0xff]
        %v1318 = vld [vmem:[%s290 + $0xdd0] sm:$0xff]
        %v1319 = vld [vmem:[%s290 + $0xdd8] sm:$0xff]
        %v1320 = vld [vmem:[%s290 + $0xde0] sm:$0xff]
        %v1321 = vld [vmem:[%s290 + $0xde8] sm:$0xff]
        %v1322 = vld [vmem:[%s290 + $0xdf0] sm:$0xff]
        %v1323 = vld [vmem:[%s290 + $0xdf8] sm:$0xff]
        %v1324 = vld [vmem:[%s290 + $0xe00] sm:$0xff]
        %v1325 = vld [vmem:[%s290 + $0xe08] sm:$0xff]
        %v1326 = vld [vmem:[%s290 + $0xe10] sm:$0xff]
        %v1327 = vld [vmem:[%s290 + $0xe18] sm:$0xff]
        %v1328 = vld [vmem:[%s290 + $0xe20] sm:$0xff]
        %v1329 = vld [vmem:[%s290 + $0xe28] sm:$0xff]
        %v1330 = vld [vmem:[%s290 + $0xe30] sm:$0xff]
        %v1331 = vld [vmem:[%s290 + $0xe38] sm:$0xff]
        %v1332 = vld [vmem:[%s290 + $0xe40] sm:$0xff]
        %v1333 = vld [vmem:[%s290 + $0xe48] sm:$0xff]
        %v1334 = vld [vmem:[%s290 + $0xe50] sm:$0xff]
        %v1335 = vld [vmem:[%s290 + $0xe58] sm:$0xff]
        %v1336 = vld [vmem:[%s290 + $0xe60] sm:$0xff]
        %v1337 = vld [vmem:[%s290 + $0xe68] sm:$0xff]
        %v1338 = vld [vmem:[%s290 + $0xe70] sm:$0xff]
        %v1339 = vld [vmem:[%s290 + $0xe78] sm:$0xff]
        %v1340 = vld [vmem:[%s290 + $0xe80] sm:$0xff]
        %v1341 = vld [vmem:[%s290 + $0xe88] sm:$0xff]
        %v1342 = vld [vmem:[%s290 + $0xe90] sm:$0xff]
        %v1343 = vld [vmem:[%s290 + $0xe98] sm:$0xff]
        %v1344 = vld [vmem:[%s290 + $0xea0] sm:$0xff]
        %v1345 = vld [vmem:[%s290 + $0xea8] sm:$0xff]
        %v1346 = vld [vmem:[%s290 + $0xeb0] sm:$0xff]
        %v1347 = vld [vmem:[%s290 + $0xeb8] sm:$0xff]
        %v1348 = vld [vmem:[%s290 + $0xec0] sm:$0xff]
        %v1349 = vld [vmem:[%s290 + $0xec8] sm:$0xff]
        %v1350 = vld [vmem:[%s290 + $0xed0] sm:$0xff]
        %v1351 = vld [vmem:[%s290 + $0xed8] sm:$0xff]
        %v1352 = vld [vmem:[%s290 + $0xee0] sm:$0xff]
        %v1353 = vld [vmem:[%s290 + $0xee8] sm:$0xff]
        %v1354 = vld [vmem:[%s290 + $0xef0] sm:$0xff]
        %v1355 = vld [vmem:[%s290 + $0xef8] sm:$0xff]
        %v1356 = vld [vmem:[%s290 + $0xf00] sm:$0xff]
        %v1357 = vld [vmem:[%s290 + $0xf08] sm:$0xff]
        %v1358 = vld [vmem:[%s290 + $0xf10] sm:$0xff]
        %v1359 = vld [vmem:[%s290 + $0xf18] sm:$0xff]
        %v1360 = vld [vmem:[%s290 + $0xf20] sm:$0xff]
        %v1361 = vld [vmem:[%s290 + $0xf28] sm:$0xff]
        %v1362 = vld [vmem:[%s290 + $0xf30] sm:$0xff]
        %v1363 = vld [vmem:[%s290 + $0xf38] sm:$0xff]
        %v1364 = vld [vmem:[%s290 + $0xf40] sm:$0xff]
        %v1365 = vld [vmem:[%s290 + $0xf48] sm:$0xff]
        %v1366 = vld [vmem:[%s290 + $0xf50] sm:$0xff]
        %v1367 = vld [vmem:[%s290 + $0xf58] sm:$0xff]
        %v1368 = vld [vmem:[%s290 + $0xf60] sm:$0xff]
        %v1369 = vld [vmem:[%s290 + $0xf68] sm:$0xff]
        %v1370 = vld [vmem:[%s290 + $0xf70] sm:$0xff]
        %v1371 = vld [vmem:[%s290 + $0xf78] sm:$0xff]
        %v1372 = vld [vmem:[%s290 + $0xf80] sm:$0xff]
        %v1373 = vld [vmem:[%s290 + $0xf88] sm:$0xff]
        %v1374 = vld [vmem:[%s290 + $0xf90] sm:$0xff]
        %v1375 = vld [vmem:[%s290 + $0xf98] sm:$0xff]
        %v1376 = vld [vmem:[%s290 + $0xfa0] sm:$0xff]
        %v1377 = vld [vmem:[%s290 + $0xfa8] sm:$0xff]
        %v1378 = vld [vmem:[%s290 + $0xfb0] sm:$0xff]
        %v1379 = vld [vmem:[%s290 + $0xfb8] sm:$0xff]
        %v1380 = vld [vmem:[%s290 + $0xfc0] sm:$0xff]
        %v1381 = vld [vmem:[%s290 + $0xfc8] sm:$0xff]
        %v1382 = vld [vmem:[%s290 + $0xfd0] sm:$0xff]
        %v1383 = vld [vmem:[%s290 + $0xfd8] sm:$0xff]
        %v1384 = vld [vmem:[%s290 + $0xfe0] sm:$0xff]
        %v1385 = vld [vmem:[%s290 + $0xfe8] sm:$0xff]
        %v1386 = vld [vmem:[%s290 + $0xff0] sm:$0xff]
        %v1387 = vld [vmem:[%s290 + $0xff8] sm:$0xff]
        %v1388 = vsub.f32 %v876, %v364
        %v1389 = vsub.f32 %v877, %v365
        %v1390 = vsub.f32 %v878, %v366
        %v1391 = vsub.f32 %v879, %v367
        %v1392 = vsub.f32 %v880, %v368
        %v1393 = vsub.f32 %v881, %v369
        %v1394 = vsub.f32 %v882, %v370
        %v1395 = vsub.f32 %v883, %v371
        %v1396 = vsub.f32 %v884, %v372
        %v1397 = vsub.f32 %v885, %v373
        %v1398 = vsub.f32 %v886, %v374
        %v1399 = vsub.f32 %v887, %v375
        %v1400 = vsub.f32 %v888, %v376
        %v1401 = vsub.f32 %v889, %v377
        %v1402 = vsub.f32 %v890, %v378
        %v1403 = vsub.f32 %v891, %v379
        %v1404 = vsub.f32 %v892, %v380
        %v1405 = vsub.f32 %v893, %v381
        %v1406 = vsub.f32 %v894, %v382
        %v1407 = vsub.f32 %v895, %v383
        %v1408 = vsub.f32 %v896, %v384
        %v1409 = vsub.f32 %v897, %v385
        %v1410 = vsub.f32 %v898, %v386
        %v1411 = vsub.f32 %v899, %v387
        %v1412 = vsub.f32 %v900, %v388
        %v1413 = vsub.f32 %v901, %v389
        %v1414 = vsub.f32 %v902, %v390
        %v1415 = vsub.f32 %v903, %v391
        %v1416 = vsub.f32 %v904, %v392
        %v1417 = vsub.f32 %v905, %v393
        %v1418 = vsub.f32 %v906, %v394
        %v1419 = vsub.f32 %v907, %v395
        %v1420 = vsub.f32 %v908, %v396
        %v1421 = vsub.f32 %v909, %v397
        %v1422 = vsub.f32 %v910, %v398
        %v1423 = vsub.f32 %v911, %v399
        %v1424 = vsub.f32 %v912, %v400
        %v1425 = vsub.f32 %v913, %v401
        %v1426 = vsub.f32 %v914, %v402
        %v1427 = vsub.f32 %v915, %v403
        %v1428 = vsub.f32 %v916, %v404
        %v1429 = vsub.f32 %v917, %v405
        %v1430 = vsub.f32 %v918, %v406
        %v1431 = vsub.f32 %v919, %v407
        %v1432 = vsub.f32 %v920, %v408
        %v1433 = vsub.f32 %v921, %v409
        %v1434 = vsub.f32 %v922, %v410
        %v1435 = vsub.f32 %v923, %v411
        %v1436 = vsub.f32 %v924, %v412
        %v1437 = vsub.f32 %v925, %v413
        %v1438 = vsub.f32 %v926, %v414
        %v1439 = vsub.f32 %v927, %v415
        %v1440 = vsub.f32 %v928, %v416
        %v1441 = vsub.f32 %v929, %v417
        %v1442 = vsub.f32 %v930, %v418
        %v1443 = vsub.f32 %v931, %v419
        %v1444 = vsub.f32 %v932, %v420
        %v1445 = vsub.f32 %v933, %v421
        %v1446 = vsub.f32 %v934, %v422
        %v1447 = vsub.f32 %v935, %v423
        %v1448 = vsub.f32 %v936, %v424
        %v1449 = vsub.f32 %v937, %v425
        %v1450 = vsub.f32 %v938, %v426
        %v1451 = vsub.f32 %v939, %v427
        %v1452 = vsub.f32 %v940, %v428
        %v1453 = vsub.f32 %v941, %v429
        %v1454 = vsub.f32 %v942, %v430
        %v1455 = vsub.f32 %v943, %v431
        %v1456 = vsub.f32 %v944, %v432
        %v1457 = vsub.f32 %v945, %v433
        %v1458 = vsub.f32 %v946, %v434
        %v1459 = vsub.f32 %v947, %v435
        %v1460 = vsub.f32 %v948, %v436
        %v1461 = vsub.f32 %v949, %v437
        %v1462 = vsub.f32 %v950, %v438
        %v1463 = vsub.f32 %v951, %v439
        %v1464 = vsub.f32 %v952, %v440
        %v1465 = vsub.f32 %v953, %v441
        %v1466 = vsub.f32 %v954, %v442
        %v1467 = vsub.f32 %v955, %v443
        %v1468 = vsub.f32 %v956, %v444
        %v1469 = vsub.f32 %v957, %v445
        %v1470 = vsub.f32 %v958, %v446
        %v1471 = vsub.f32 %v959, %v447
        %v1472 = vsub.f32 %v960, %v448
        %v1473 = vsub.f32 %v961, %v449
        %v1474 = vsub.f32 %v962, %v450
        %v1475 = vsub.f32 %v963, %v451
        %v1476 = vsub.f32 %v964, %v452
        %v1477 = vsub.f32 %v965, %v453
        %v1478 = vsub.f32 %v966, %v454
        %v1479 = vsub.f32 %v967, %v455
        %v1480 = vsub.f32 %v968, %v456
        %v1481 = vsub.f32 %v969, %v457
        %v1482 = vsub.f32 %v970, %v458
        %v1483 = vsub.f32 %v971, %v459
        %v1484 = vsub.f32 %v972, %v460
        %v1485 = vsub.f32 %v973, %v461
        %v1486 = vsub.f32 %v974, %v462
        %v1487 = vsub.f32 %v975, %v463
        %v1488 = vsub.f32 %v976, %v464
        %v1489 = vsub.f32 %v977, %v465
        %v1490 = vsub.f32 %v978, %v466
        %v1491 = vsub.f32 %v979, %v467
        %v1492 = vsub.f32 %v980, %v468
        %v1493 = vsub.f32 %v981, %v469
        %v1494 = vsub.f32 %v982, %v470
        %v1495 = vsub.f32 %v983, %v471
        %v1496 = vsub.f32 %v984, %v472
        %v1497 = vsub.f32 %v985, %v473
        %v1498 = vsub.f32 %v986, %v474
        %v1499 = vsub.f32 %v987, %v475
        %v1500 = vsub.f32 %v988, %v476
        %v1501 = vsub.f32 %v989, %v477
        %v1502 = vsub.f32 %v990, %v478
        %v1503 = vsub.f32 %v991, %v479
        %v1504 = vsub.f32 %v992, %v480
        %v1505 = vsub.f32 %v993, %v481
        %v1506 = vsub.f32 %v994, %v482
        %v1507 = vsub.f32 %v995, %v483
        %v1508 = vsub.f32 %v996, %v484
        %v1509 = vsub.f32 %v997, %v485
        %v1510 = vsub.f32 %v998, %v486
        %v1511 = vsub.f32 %v999, %v487
        %v1512 = vsub.f32 %v1000, %v488
        %v1513 = vsub.f32 %v1001, %v489
        %v1514 = vsub.f32 %v1002, %v490
        %v1515 = vsub.f32 %v1003, %v491
        %v1516 = vsub.f32 %v1004, %v492
        %v1517 = vsub.f32 %v1005, %v493
        %v1518 = vsub.f32 %v1006, %v494
        %v1519 = vsub.f32 %v1007, %v495
        %v1520 = vsub.f32 %v1008, %v496
        %v1521 = vsub.f32 %v1009, %v497
        %v1522 = vsub.f32 %v1010, %v498
        %v1523 = vsub.f32 %v1011, %v499
        %v1524 = vsub.f32 %v1012, %v500
        %v1525 = vsub.f32 %v1013, %v501
        %v1526 = vsub.f32 %v1014, %v502
        %v1527 = vsub.f32 %v1015, %v503
        %v1528 = vsub.f32 %v1016, %v504
        %v1529 = vsub.f32 %v1017, %v505
        %v1530 = vsub.f32 %v1018, %v506
        %v1531 = vsub.f32 %v1019, %v507
        %v1532 = vsub.f32 %v1020, %v508
        %v1533 = vsub.f32 %v1021, %v509
        %v1534 = vsub.f32 %v1022, %v510
        %v1535 = vsub.f32 %v1023, %v511
        %v1536 = vsub.f32 %v1024, %v512
        %v1537 = vsub.f32 %v1025, %v513
        %v1538 = vsub.f32 %v1026, %v514
        %v1539 = vsub.f32 %v1027, %v515
        %v1540 = vsub.f32 %v1028, %v516
        %v1541 = vsub.f32 %v1029, %v517
        %v1542 = vsub.f32 %v1030, %v518
        %v1543 = vsub.f32 %v1031, %v519
        %v1544 = vsub.f32 %v1032, %v520
        %v1545 = vsub.f32 %v1033, %v521
        %v1546 = vsub.f32 %v1034, %v522
        %v1547 = vsub.f32 %v1035, %v523
        %v1548 = vsub.f32 %v1036, %v524
        %v1549 = vsub.f32 %v1037, %v525
        %v1550 = vsub.f32 %v1038, %v526
        %v1551 = vsub.f32 %v1039, %v527
        %v1552 = vsub.f32 %v1040, %v528
        %v1553 = vsub.f32 %v1041, %v529
        %v1554 = vsub.f32 %v1042, %v530
        %v1555 = vsub.f32 %v1043, %v531
        %v1556 = vsub.f32 %v1044, %v532
        %v1557 = vsub.f32 %v1045, %v533
        %v1558 = vsub.f32 %v1046, %v534
        %v1559 = vsub.f32 %v1047, %v535
        %v1560 = vsub.f32 %v1048, %v536
        %v1561 = vsub.f32 %v1049, %v537
        %v1562 = vsub.f32 %v1050, %v538
        %v1563 = vsub.f32 %v1051, %v539
        %v1564 = vsub.f32 %v1052, %v540
        %v1565 = vsub.f32 %v1053, %v541
        %v1566 = vsub.f32 %v1054, %v542
        %v1567 = vsub.f32 %v1055, %v543
        %v1568 = vsub.f32 %v1056, %v544
        %v1569 = vsub.f32 %v1057, %v545
        %v1570 = vsub.f32 %v1058, %v546
        %v1571 = vsub.f32 %v1059, %v547
        %v1572 = vsub.f32 %v1060, %v548
        %v1573 = vsub.f32 %v1061, %v549
        %v1574 = vsub.f32 %v1062, %v550
        %v1575 = vsub.f32 %v1063, %v551
        %v1576 = vsub.f32 %v1064, %v552
        %v1577 = vsub.f32 %v1065, %v553
        %v1578 = vsub.f32 %v1066, %v554
        %v1579 = vsub.f32 %v1067, %v555
        %v1580 = vsub.f32 %v1068, %v556
        %v1581 = vsub.f32 %v1069, %v557
        %v1582 = vsub.f32 %v1070, %v558
        %v1583 = vsub.f32 %v1071, %v559
        %v1584 = vsub.f32 %v1072, %v560
        %v1585 = vsub.f32 %v1073, %v561
        %v1586 = vsub.f32 %v1074, %v562
        %v1587 = vsub.f32 %v1075, %v563
        %v1588 = vsub.f32 %v1076, %v564
        %v1589 = vsub.f32 %v1077, %v565
        %v1590 = vsub.f32 %v1078, %v566
        %v1591 = vsub.f32 %v1079, %v567
        %v1592 = vsub.f32 %v1080, %v568
        %v1593 = vsub.f32 %v1081, %v569
        %v1594 = vsub.f32 %v1082, %v570
        %v1595 = vsub.f32 %v1083, %v571
        %v1596 = vsub.f32 %v1084, %v572
        %v1597 = vsub.f32 %v1085, %v573
        %v1598 = vsub.f32 %v1086, %v574
        %v1599 = vsub.f32 %v1087, %v575
        %v1600 = vsub.f32 %v1088, %v576
        %v1601 = vsub.f32 %v1089, %v577
        %v1602 = vsub.f32 %v1090, %v578
        %v1603 = vsub.f32 %v1091, %v579
        %v1604 = vsub.f32 %v1092, %v580
        %v1605 = vsub.f32 %v1093, %v581
        %v1606 = vsub.f32 %v1094, %v582
        %v1607 = vsub.f32 %v1095, %v583
        %v1608 = vsub.f32 %v1096, %v584
        %v1609 = vsub.f32 %v1097, %v585
        %v1610 = vsub.f32 %v1098, %v586
        %v1611 = vsub.f32 %v1099, %v587
        %v1612 = vsub.f32 %v1100, %v588
        %v1613 = vsub.f32 %v1101, %v589
        %v1614 = vsub.f32 %v1102, %v590
        %v1615 = vsub.f32 %v1103, %v591
        %v1616 = vsub.f32 %v1104, %v592
        %v1617 = vsub.f32 %v1105, %v593
        %v1618 = vsub.f32 %v1106, %v594
        %v1619 = vsub.f32 %v1107, %v595
        %v1620 = vsub.f32 %v1108, %v596
        %v1621 = vsub.f32 %v1109, %v597
        %v1622 = vsub.f32 %v1110, %v598
        %v1623 = vsub.f32 %v1111, %v599
        %v1624 = vsub.f32 %v1112, %v600
        %v1625 = vsub.f32 %v1113, %v601
        %v1626 = vsub.f32 %v1114, %v602
        %v1627 = vsub.f32 %v1115, %v603
        %v1628 = vsub.f32 %v1116, %v604
        %v1629 = vsub.f32 %v1117, %v605
        %v1630 = vsub.f32 %v1118, %v606
        %v1631 = vsub.f32 %v1119, %v607
        %v1632 = vsub.f32 %v1120, %v608
        %v1633 = vsub.f32 %v1121, %v609
        %v1634 = vsub.f32 %v1122, %v610
        %v1635 = vsub.f32 %v1123, %v611
        %v1636 = vsub.f32 %v1124, %v612
        %v1637 = vsub.f32 %v1125, %v613
        %v1638 = vsub.f32 %v1126, %v614
        %v1639 = vsub.f32 %v1127, %v615
        %v1640 = vsub.f32 %v1128, %v616
        %v1641 = vsub.f32 %v1129, %v617
        %v1642 = vsub.f32 %v1130, %v618
        %v1643 = vsub.f32 %v1131, %v619
        %v1644 = vsub.f32 %v1132, %v620
        %v1645 = vsub.f32 %v1133, %v621
        %v1646 = vsub.f32 %v1134, %v622
        %v1647 = vsub.f32 %v1135, %v623
        %v1648 = vsub.f32 %v1136, %v624
        %v1649 = vsub.f32 %v1137, %v625
        %v1650 = vsub.f32 %v1138, %v626
        %v1651 = vsub.f32 %v1139, %v627
        %v1652 = vsub.f32 %v1140, %v628
        %v1653 = vsub.f32 %v1141, %v629
        %v1654 = vsub.f32 %v1142, %v630
        %v1655 = vsub.f32 %v1143, %v631
        %v1656 = vsub.f32 %v1144, %v632
        %v1657 = vsub.f32 %v1145, %v633
        %v1658 = vsub.f32 %v1146, %v634
        %v1659 = vsub.f32 %v1147, %v635
        %v1660 = vsub.f32 %v1148, %v636
        %v1661 = vsub.f32 %v1149, %v637
        %v1662 = vsub.f32 %v1150, %v638
        %v1663 = vsub.f32 %v1151, %v639
        %v1664 = vsub.f32 %v1152, %v640
        %v1665 = vsub.f32 %v1153, %v641
        %v1666 = vsub.f32 %v1154, %v642
        %v1667 = vsub.f32 %v1155, %v643
        %v1668 = vsub.f32 %v1156, %v644
        %v1669 = vsub.f32 %v1157, %v645
        %v1670 = vsub.f32 %v1158, %v646
        %v1671 = vsub.f32 %v1159, %v647
        %v1672 = vsub.f32 %v1160, %v648
        %v1673 = vsub.f32 %v1161, %v649
        %v1674 = vsub.f32 %v1162, %v650
        %v1675 = vsub.f32 %v1163, %v651
        %v1676 = vsub.f32 %v1164, %v652
        %v1677 = vsub.f32 %v1165, %v653
        %v1678 = vsub.f32 %v1166, %v654
        %v1679 = vsub.f32 %v1167, %v655
        %v1680 = vsub.f32 %v1168, %v656
        %v1681 = vsub.f32 %v1169, %v657
        %v1682 = vsub.f32 %v1170, %v658
        %v1683 = vsub.f32 %v1171, %v659
        %v1684 = vsub.f32 %v1172, %v660
        %v1685 = vsub.f32 %v1173, %v661
        %v1686 = vsub.f32 %v1174, %v662
        %v1687 = vsub.f32 %v1175, %v663
        %v1688 = vsub.f32 %v1176, %v664
        %v1689 = vsub.f32 %v1177, %v665
        %v1690 = vsub.f32 %v1178, %v666
        %v1691 = vsub.f32 %v1179, %v667
        %v1692 = vsub.f32 %v1180, %v668
        %v1693 = vsub.f32 %v1181, %v669
        %v1694 = vsub.f32 %v1182, %v670
        %v1695 = vsub.f32 %v1183, %v671
        %v1696 = vsub.f32 %v1184, %v672
        %v1697 = vsub.f32 %v1185, %v673
        %v1698 = vsub.f32 %v1186, %v674
        %v1699 = vsub.f32 %v1187, %v675
        %v1700 = vsub.f32 %v1188, %v676
        %v1701 = vsub.f32 %v1189, %v677
        %v1702 = vsub.f32 %v1190, %v678
        %v1703 = vsub.f32 %v1191, %v679
        %v1704 = vsub.f32 %v1192, %v680
        %v1705 = vsub.f32 %v1193, %v681
        %v1706 = vsub.f32 %v1194, %v682
        %v1707 = vsub.f32 %v1195, %v683
        %v1708 = vsub.f32 %v1196, %v684
        %v1709 = vsub.f32 %v1197, %v685
        %v1710 = vsub.f32 %v1198, %v686
        %v1711 = vsub.f32 %v1199, %v687
        %v1712 = vsub.f32 %v1200, %v688
        %v1713 = vsub.f32 %v1201, %v689
        %v1714 = vsub.f32 %v1202, %v690
        %v1715 = vsub.f32 %v1203, %v691
        %v1716 = vsub.f32 %v1204, %v692
        %v1717 = vsub.f32 %v1205, %v693
        %v1718 = vsub.f32 %v1206, %v694
        %v1719 = vsub.f32 %v1207, %v695
        %v1720 = vsub.f32 %v1208, %v696
        %v1721 = vsub.f32 %v1209, %v697
        %v1722 = vsub.f32 %v1210, %v698
        %v1723 = vsub.f32 %v1211, %v699
        %v1724 = vsub.f32 %v1212, %v700
        %v1725 = vsub.f32 %v1213, %v701
        %v1726 = vsub.f32 %v1214, %v702
        %v1727 = vsub.f32 %v1215, %v703
        %v1728 = vsub.f32 %v1216, %v704
        %v1729 = vsub.f32 %v1217, %v705
        %v1730 = vsub.f32 %v1218, %v706
        %v1731 = vsub.f32 %v1219, %v707
        %v1732 = vsub.f32 %v1220, %v708
        %v1733 = vsub.f32 %v1221, %v709
        %v1734 = vsub.f32 %v1222, %v710
        %v1735 = vsub.f32 %v1223, %v711
        %v1736 = vsub.f32 %v1224, %v712
        %v1737 = vsub.f32 %v1225, %v713
        %v1738 = vsub.f32 %v1226, %v714
        %v1739 = vsub.f32 %v1227, %v715
        %v1740 = vsub.f32 %v1228, %v716
        %v1741 = vsub.f32 %v1229, %v717
        %v1742 = vsub.f32 %v1230, %v718
        %v1743 = vsub.f32 %v1231, %v719
        %v1744 = vsub.f32 %v1232, %v720
        %v1745 = vsub.f32 %v1233, %v721
        %v1746 = vsub.f32 %v1234, %v722
        %v1747 = vsub.f32 %v1235, %v723
        %v1748 = vsub.f32 %v1236, %v724
        %v1749 = vsub.f32 %v1237, %v725
        %v1750 = vsub.f32 %v1238, %v726
        %v1751 = vsub.f32 %v1239, %v727
        %v1752 = vsub.f32 %v1240, %v728
        %v1753 = vsub.f32 %v1241, %v729
        %v1754 = vsub.f32 %v1242, %v730
        %v1755 = vsub.f32 %v1243, %v731
        %v1756 = vsub.f32 %v1244, %v732
        %v1757 = vsub.f32 %v1245, %v733
        %v1758 = vsub.f32 %v1246, %v734
        %v1759 = vsub.f32 %v1247, %v735
        %v1760 = vsub.f32 %v1248, %v736
        %v1761 = vsub.f32 %v1249, %v737
        %v1762 = vsub.f32 %v1250, %v738
        %v1763 = vsub.f32 %v1251, %v739
        %v1764 = vsub.f32 %v1252, %v740
        %v1765 = vsub.f32 %v1253, %v741
        %v1766 = vsub.f32 %v1254, %v742
        %v1767 = vsub.f32 %v1255, %v743
        %v1768 = vsub.f32 %v1256, %v744
        %v1769 = vsub.f32 %v1257, %v745
        %v1770 = vsub.f32 %v1258, %v746
        %v1771 = vsub.f32 %v1259, %v747
        %v1772 = vsub.f32 %v1260, %v748
        %v1773 = vsub.f32 %v1261, %v749
        %v1774 = vsub.f32 %v1262, %v750
        %v1775 = vsub.f32 %v1263, %v751
        %v1776 = vsub.f32 %v1264, %v752
        %v1777 = vsub.f32 %v1265, %v753
        %v1778 = vsub.f32 %v1266, %v754
        %v1779 = vsub.f32 %v1267, %v755
        %v1780 = vsub.f32 %v1268, %v756
        %v1781 = vsub.f32 %v1269, %v757
        %v1782 = vsub.f32 %v1270, %v758
        %v1783 = vsub.f32 %v1271, %v759
        %v1784 = vsub.f32 %v1272, %v760
        %v1785 = vsub.f32 %v1273, %v761
        %v1786 = vsub.f32 %v1274, %v762
        %v1787 = vsub.f32 %v1275, %v763
        %v1788 = vsub.f32 %v1276, %v764
        %v1789 = vsub.f32 %v1277, %v765
        %v1790 = vsub.f32 %v1278, %v766
        %v1791 = vsub.f32 %v1279, %v767
        %v1792 = vsub.f32 %v1280, %v768
        %v1793 = vsub.f32 %v1281, %v769
        %v1794 = vsub.f32 %v1282, %v770
        %v1795 = vsub.f32 %v1283, %v771
        %v1796 = vsub.f32 %v1284, %v772
        %v1797 = vsub.f32 %v1285, %v773
        %v1798 = vsub.f32 %v1286, %v774
        %v1799 = vsub.f32 %v1287, %v775
        %v1800 = vsub.f32 %v1288, %v776
        %v1801 = vsub.f32 %v1289, %v777
        %v1802 = vsub.f32 %v1290, %v778
        %v1803 = vsub.f32 %v1291, %v779
        %v1804 = vsub.f32 %v1292, %v780
        %v1805 = vsub.f32 %v1293, %v781
        %v1806 = vsub.f32 %v1294, %v782
        %v1807 = vsub.f32 %v1295, %v783
        %v1808 = vsub.f32 %v1296, %v784
        %v1809 = vsub.f32 %v1297, %v785
        %v1810 = vsub.f32 %v1298, %v786
        %v1811 = vsub.f32 %v1299, %v787
        %v1812 = vsub.f32 %v1300, %v788
        %v1813 = vsub.f32 %v1301, %v789
        %v1814 = vsub.f32 %v1302, %v790
        %v1815 = vsub.f32 %v1303, %v791
        %v1816 = vsub.f32 %v1304, %v792
        %v1817 = vsub.f32 %v1305, %v793
        %v1818 = vsub.f32 %v1306, %v794
        %v1819 = vsub.f32 %v1307, %v795
        %v1820 = vsub.f32 %v1308, %v796
        %v1821 = vsub.f32 %v1309, %v797
        %v1822 = vsub.f32 %v1310, %v798
        %v1823 = vsub.f32 %v1311, %v799
        %v1824 = vsub.f32 %v1312, %v800
        %v1825 = vsub.f32 %v1313, %v801
        %v1826 = vsub.f32 %v1314, %v802
        %v1827 = vsub.f32 %v1315, %v803
        %v1828 = vsub.f32 %v1316, %v804
        %v1829 = vsub.f32 %v1317, %v805
        %v1830 = vsub.f32 %v1318, %v806
        %v1831 = vsub.f32 %v1319, %v807
        %v1832 = vsub.f32 %v1320, %v808
        %v1833 = vsub.f32 %v1321, %v809
        %v1834 = vsub.f32 %v1322, %v810
        %v1835 = vsub.f32 %v1323, %v811
        %v1836 = vsub.f32 %v1324, %v812
        %v1837 = vsub.f32 %v1325, %v813
        %v1838 = vsub.f32 %v1326, %v814
        %v1839 = vsub.f32 %v1327, %v815
        %v1840 = vsub.f32 %v1328, %v816
        %v1841 = vsub.f32 %v1329, %v817
        %v1842 = vsub.f32 %v1330, %v818
        %v1843 = vsub.f32 %v1331, %v819
        %v1844 = vsub.f32 %v1332, %v820
        %v1845 = vsub.f32 %v1333, %v821
        %v1846 = vsub.f32 %v1334, %v822
        %v1847 = vsub.f32 %v1335, %v823
        %v1848 = vsub.f32 %v1336, %v824
        %v1849 = vsub.f32 %v1337, %v825
        %v1850 = vsub.f32 %v1338, %v826
        %v1851 = vsub.f32 %v1339, %v827
        %v1852 = vsub.f32 %v1340, %v828
        %v1853 = vsub.f32 %v1341, %v829
        %v1854 = vsub.f32 %v1342, %v830
        %v1855 = vsub.f32 %v1343, %v831
        %v1856 = vsub.f32 %v1344, %v832
        %v1857 = vsub.f32 %v1345, %v833
        %v1858 = vsub.f32 %v1346, %v834
        %v1859 = vsub.f32 %v1347, %v835
        %v1860 = vsub.f32 %v1348, %v836
        %v1861 = vsub.f32 %v1349, %v837
        %v1862 = vsub.f32 %v1350, %v838
        %v1863 = vsub.f32 %v1351, %v839
        %v1864 = vsub.f32 %v1352, %v840
        %v1865 = vsub.f32 %v1353, %v841
        %v1866 = vsub.f32 %v1354, %v842
        %v1867 = vsub.f32 %v1355, %v843
        %v1868 = vsub.f32 %v1356, %v844
        %v1869 = vsub.f32 %v1357, %v845
        %v1870 = vsub.f32 %v1358, %v846
        %v1871 = vsub.f32 %v1359, %v847
        %v1872 = vsub.f32 %v1360, %v848
        %v1873 = vsub.f32 %v1361, %v849
        %v1874 = vsub.f32 %v1362, %v850
        %v1875 = vsub.f32 %v1363, %v851
        %v1876 = vsub.f32 %v1364, %v852
        %v1877 = vsub.f32 %v1365, %v853
        %v1878 = vsub.f32 %v1366, %v854
        %v1879 = vsub.f32 %v1367, %v855
        %v1880 = vsub.f32 %v1368, %v856
        %v1881 = vsub.f32 %v1369, %v857
        %v1882 = vsub.f32 %v1370, %v858
        %v1883 = vsub.f32 %v1371, %v859
        %v1884 = vsub.f32 %v1372, %v860
        %v1885 = vsub.f32 %v1373, %v861
        %v1886 = vsub.f32 %v1374, %v862
        %v1887 = vsub.f32 %v1375, %v863
        %v1888 = vsub.f32 %v1376, %v864
        %v1889 = vsub.f32 %v1377, %v865
        %v1890 = vsub.f32 %v1378, %v866
        %v1891 = vsub.f32 %v1379, %v867
        %v1892 = vsub.f32 %v1380, %v868
        %v1893 = vsub.f32 %v1381, %v869
        %v1894 = vsub.f32 %v1382, %v870
        %v1895 = vsub.f32 %v1383, %v871
        %v1896 = vsub.f32 %v1384, %v872
        %v1897 = vsub.f32 %v1385, %v873
        %v1898 = vsub.f32 %v1386, %v874
        %v1899 = vsub.f32 %v1387, %v875
        %v1900 = vand.u32 2147483647, %v1388
        %v1901 = vand.u32 2147483647, %v1389
        %v1902 = vand.u32 2147483647, %v1390
        %v1903 = vand.u32 2147483647, %v1391
        %v1904 = vand.u32 2147483647, %v1392
        %v1905 = vand.u32 2147483647, %v1393
        %v1906 = vand.u32 2147483647, %v1394
        %v1907 = vand.u32 2147483647, %v1395
        %v1908 = vand.u32 2147483647, %v1396
        %v1909 = vand.u32 2147483647, %v1397
        %v1910 = vand.u32 2147483647, %v1398
        %v1911 = vand.u32 2147483647, %v1399
        %v1912 = vand.u32 2147483647, %v1400
        %v1913 = vand.u32 2147483647, %v1401
        %v1914 = vand.u32 2147483647, %v1402
        %v1915 = vand.u32 2147483647, %v1403
        %v1916 = vand.u32 2147483647, %v1404
        %v1917 = vand.u32 2147483647, %v1405
        %v1918 = vand.u32 2147483647, %v1406
        %v1919 = vand.u32 2147483647, %v1407
        %v1920 = vand.u32 2147483647, %v1408
        %v1921 = vand.u32 2147483647, %v1409
        %v1922 = vand.u32 2147483647, %v1410
        %v1923 = vand.u32 2147483647, %v1411
        %v1924 = vand.u32 2147483647, %v1412
        %v1925 = vand.u32 2147483647, %v1413
        %v1926 = vand.u32 2147483647, %v1414
        %v1927 = vand.u32 2147483647, %v1415
        %v1928 = vand.u32 2147483647, %v1416
        %v1929 = vand.u32 2147483647, %v1417
        %v1930 = vand.u32 2147483647, %v1418
        %v1931 = vand.u32 2147483647, %v1419
        %v1932 = vand.u32 2147483647, %v1420
        %v1933 = vand.u32 2147483647, %v1421
        %v1934 = vand.u32 2147483647, %v1422
        %v1935 = vand.u32 2147483647, %v1423
        %v1936 = vand.u32 2147483647, %v1424
        %v1937 = vand.u32 2147483647, %v1425
        %v1938 = vand.u32 2147483647, %v1426
        %v1939 = vand.u32 2147483647, %v1427
        %v1940 = vand.u32 2147483647, %v1428
        %v1941 = vand.u32 2147483647, %v1429
        %v1942 = vand.u32 2147483647, %v1430
        %v1943 = vand.u32 2147483647, %v1431
        %v1944 = vand.u32 2147483647, %v1432
        %v1945 = vand.u32 2147483647, %v1433
        %v1946 = vand.u32 2147483647, %v1434
        %v1947 = vand.u32 2147483647, %v1435
        %v1948 = vand.u32 2147483647, %v1436
        %v1949 = vand.u32 2147483647, %v1437
        %v1950 = vand.u32 2147483647, %v1438
        %v1951 = vand.u32 2147483647, %v1439
        %v1952 = vand.u32 2147483647, %v1440
        %v1953 = vand.u32 2147483647, %v1441
        %v1954 = vand.u32 2147483647, %v1442
        %v1955 = vand.u32 2147483647, %v1443
        %v1956 = vand.u32 2147483647, %v1444
        %v1957 = vand.u32 2147483647, %v1445
        %v1958 = vand.u32 2147483647, %v1446
        %v1959 = vand.u32 2147483647, %v1447
        %v1960 = vand.u32 2147483647, %v1448
        %v1961 = vand.u32 2147483647, %v1449
        %v1962 = vand.u32 2147483647, %v1450
        %v1963 = vand.u32 2147483647, %v1451
        %v1964 = vand.u32 2147483647, %v1452
        %v1965 = vand.u32 2147483647, %v1453
        %v1966 = vand.u32 2147483647, %v1454
        %v1967 = vand.u32 2147483647, %v1455
        %v1968 = vand.u32 2147483647, %v1456
        %v1969 = vand.u32 2147483647, %v1457
        %v1970 = vand.u32 2147483647, %v1458
        %v1971 = vand.u32 2147483647, %v1459
        %v1972 = vand.u32 2147483647, %v1460
        %v1973 = vand.u32 2147483647, %v1461
        %v1974 = vand.u32 2147483647, %v1462
        %v1975 = vand.u32 2147483647, %v1463
        %v1976 = vand.u32 2147483647, %v1464
        %v1977 = vand.u32 2147483647, %v1465
        %v1978 = vand.u32 2147483647, %v1466
        %v1979 = vand.u32 2147483647, %v1467
        %v1980 = vand.u32 2147483647, %v1468
        %v1981 = vand.u32 2147483647, %v1469
        %v1982 = vand.u32 2147483647, %v1470
        %v1983 = vand.u32 2147483647, %v1471
        %v1984 = vand.u32 2147483647, %v1472
        %v1985 = vand.u32 2147483647, %v1473
        %v1986 = vand.u32 2147483647, %v1474
        %v1987 = vand.u32 2147483647, %v1475
        %v1988 = vand.u32 2147483647, %v1476
        %v1989 = vand.u32 2147483647, %v1477
        %v1990 = vand.u32 2147483647, %v1478
        %v1991 = vand.u32 2147483647, %v1479
        %v1992 = vand.u32 2147483647, %v1480
        %v1993 = vand.u32 2147483647, %v1481
        %v1994 = vand.u32 2147483647, %v1482
        %v1995 = vand.u32 2147483647, %v1483
        %v1996 = vand.u32 2147483647, %v1484
        %v1997 = vand.u32 2147483647, %v1485
        %v1998 = vand.u32 2147483647, %v1486
        %v1999 = vand.u32 2147483647, %v1487
        %v2000 = vand.u32 2147483647, %v1488
        %v2001 = vand.u32 2147483647, %v1489
        %v2002 = vand.u32 2147483647, %v1490
        %v2003 = vand.u32 2147483647, %v1491
        %v2004 = vand.u32 2147483647, %v1492
        %v2005 = vand.u32 2147483647, %v1493
        %v2006 = vand.u32 2147483647, %v1494
        %v2007 = vand.u32 2147483647, %v1495
        %v2008 = vand.u32 2147483647, %v1496
        %v2009 = vand.u32 2147483647, %v1497
        %v2010 = vand.u32 2147483647, %v1498
        %v2011 = vand.u32 2147483647, %v1499
        %v2012 = vand.u32 2147483647, %v1500
        %v2013 = vand.u32 2147483647, %v1501
        %v2014 = vand.u32 2147483647, %v1502
        %v2015 = vand.u32 2147483647, %v1503
        %v2016 = vand.u32 2147483647, %v1504
        %v2017 = vand.u32 2147483647, %v1505
        %v2018 = vand.u32 2147483647, %v1506
        %v2019 = vand.u32 2147483647, %v1507
        %v2020 = vand.u32 2147483647, %v1508
        %v2021 = vand.u32 2147483647, %v1509
        %v2022 = vand.u32 2147483647, %v1510
        %v2023 = vand.u32 2147483647, %v1511
        %v2024 = vand.u32 2147483647, %v1512
        %v2025 = vand.u32 2147483647, %v1513
        %v2026 = vand.u32 2147483647, %v1514
        %v2027 = vand.u32 2147483647, %v1515
        %v2028 = vand.u32 2147483647, %v1516
        %v2029 = vand.u32 2147483647, %v1517
        %v2030 = vand.u32 2147483647, %v1518
        %v2031 = vand.u32 2147483647, %v1519
        %v2032 = vand.u32 2147483647, %v1520
        %v2033 = vand.u32 2147483647, %v1521
        %v2034 = vand.u32 2147483647, %v1522
        %v2035 = vand.u32 2147483647, %v1523
        %v2036 = vand.u32 2147483647, %v1524
        %v2037 = vand.u32 2147483647, %v1525
        %v2038 = vand.u32 2147483647, %v1526
        %v2039 = vand.u32 2147483647, %v1527
        %v2040 = vand.u32 2147483647, %v1528
        %v2041 = vand.u32 2147483647, %v1529
        %v2042 = vand.u32 2147483647, %v1530
        %v2043 = vand.u32 2147483647, %v1531
        %v2044 = vand.u32 2147483647, %v1532
        %v2045 = vand.u32 2147483647, %v1533
        %v2046 = vand.u32 2147483647, %v1534
        %v2047 = vand.u32 2147483647, %v1535
        %v2048 = vand.u32 2147483647, %v1536
        %v2049 = vand.u32 2147483647, %v1537
        %v2050 = vand.u32 2147483647, %v1538
        %v2051 = vand.u32 2147483647, %v1539
        %v2052 = vand.u32 2147483647, %v1540
        %v2053 = vand.u32 2147483647, %v1541
        %v2054 = vand.u32 2147483647, %v1542
        %v2055 = vand.u32 2147483647, %v1543
        %v2056 = vand.u32 2147483647, %v1544
        %v2057 = vand.u32 2147483647, %v1545
        %v2058 = vand.u32 2147483647, %v1546
        %v2059 = vand.u32 2147483647, %v1547
        %v2060 = vand.u32 2147483647, %v1548
        %v2061 = vand.u32 2147483647, %v1549
        %v2062 = vand.u32 2147483647, %v1550
        %v2063 = vand.u32 2147483647, %v1551
        %v2064 = vand.u32 2147483647, %v1552
        %v2065 = vand.u32 2147483647, %v1553
        %v2066 = vand.u32 2147483647, %v1554
        %v2067 = vand.u32 2147483647, %v1555
        %v2068 = vand.u32 2147483647, %v1556
        %v2069 = vand.u32 2147483647, %v1557
        %v2070 = vand.u32 2147483647, %v1558
        %v2071 = vand.u32 2147483647, %v1559
        %v2072 = vand.u32 2147483647, %v1560
        %v2073 = vand.u32 2147483647, %v1561
        %v2074 = vand.u32 2147483647, %v1562
        %v2075 = vand.u32 2147483647, %v1563
        %v2076 = vand.u32 2147483647, %v1564
        %v2077 = vand.u32 2147483647, %v1565
        %v2078 = vand.u32 2147483647, %v1566
        %v2079 = vand.u32 2147483647, %v1567
        %v2080 = vand.u32 2147483647, %v1568
        %v2081 = vand.u32 2147483647, %v1569
        %v2082 = vand.u32 2147483647, %v1570
        %v2083 = vand.u32 2147483647, %v1571
        %v2084 = vand.u32 2147483647, %v1572
        %v2085 = vand.u32 2147483647, %v1573
        %v2086 = vand.u32 2147483647, %v1574
        %v2087 = vand.u32 2147483647, %v1575
        %v2088 = vand.u32 2147483647, %v1576
        %v2089 = vand.u32 2147483647, %v1577
        %v2090 = vand.u32 2147483647, %v1578
        %v2091 = vand.u32 2147483647, %v1579
        %v2092 = vand.u32 2147483647, %v1580
        %v2093 = vand.u32 2147483647, %v1581
        %v2094 = vand.u32 2147483647, %v1582
        %v2095 = vand.u32 2147483647, %v1583
        %v2096 = vand.u32 2147483647, %v1584
        %v2097 = vand.u32 2147483647, %v1585
        %v2098 = vand.u32 2147483647, %v1586
        %v2099 = vand.u32 2147483647, %v1587
        %v2100 = vand.u32 2147483647, %v1588
        %v2101 = vand.u32 2147483647, %v1589
        %v2102 = vand.u32 2147483647, %v1590
        %v2103 = vand.u32 2147483647, %v1591
        %v2104 = vand.u32 2147483647, %v1592
        %v2105 = vand.u32 2147483647, %v1593
        %v2106 = vand.u32 2147483647, %v1594
        %v2107 = vand.u32 2147483647, %v1595
        %v2108 = vand.u32 2147483647, %v1596
        %v2109 = vand.u32 2147483647, %v1597
        %v2110 = vand.u32 2147483647, %v1598
        %v2111 = vand.u32 2147483647, %v1599
        %v2112 = vand.u32 2147483647, %v1600
        %v2113 = vand.u32 2147483647, %v1601
        %v2114 = vand.u32 2147483647, %v1602
        %v2115 = vand.u32 2147483647, %v1603
        %v2116 = vand.u32 2147483647, %v1604
        %v2117 = vand.u32 2147483647, %v1605
        %v2118 = vand.u32 2147483647, %v1606
        %v2119 = vand.u32 2147483647, %v1607
        %v2120 = vand.u32 2147483647, %v1608
        %v2121 = vand.u32 2147483647, %v1609
        %v2122 = vand.u32 2147483647, %v1610
        %v2123 = vand.u32 2147483647, %v1611
        %v2124 = vand.u32 2147483647, %v1612
        %v2125 = vand.u32 2147483647, %v1613
        %v2126 = vand.u32 2147483647, %v1614
        %v2127 = vand.u32 2147483647, %v1615
        %v2128 = vand.u32 2147483647, %v1616
        %v2129 = vand.u32 2147483647, %v1617
        %v2130 = vand.u32 2147483647, %v1618
        %v2131 = vand.u32 2147483647, %v1619
        %v2132 = vand.u32 2147483647, %v1620
        %v2133 = vand.u32 2147483647, %v1621
        %v2134 = vand.u32 2147483647, %v1622
        %v2135 = vand.u32 2147483647, %v1623
        %v2136 = vand.u32 2147483647, %v1624
        %v2137 = vand.u32 2147483647, %v1625
        %v2138 = vand.u32 2147483647, %v1626
        %v2139 = vand.u32 2147483647, %v1627
        %v2140 = vand.u32 2147483647, %v1628
        %v2141 = vand.u32 2147483647, %v1629
        %v2142 = vand.u32 2147483647, %v1630
        %v2143 = vand.u32 2147483647, %v1631
        %v2144 = vand.u32 2147483647, %v1632
        %v2145 = vand.u32 2147483647, %v1633
        %v2146 = vand.u32 2147483647, %v1634
        %v2147 = vand.u32 2147483647, %v1635
        %v2148 = vand.u32 2147483647, %v1636
        %v2149 = vand.u32 2147483647, %v1637
        %v2150 = vand.u32 2147483647, %v1638
        %v2151 = vand.u32 2147483647, %v1639
        %v2152 = vand.u32 2147483647, %v1640
        %v2153 = vand.u32 2147483647, %v1641
        %v2154 = vand.u32 2147483647, %v1642
        %v2155 = vand.u32 2147483647, %v1643
        %v2156 = vand.u32 2147483647, %v1644
        %v2157 = vand.u32 2147483647, %v1645
        %v2158 = vand.u32 2147483647, %v1646
        %v2159 = vand.u32 2147483647, %v1647
        %v2160 = vand.u32 2147483647, %v1648
        %v2161 = vand.u32 2147483647, %v1649
        %v2162 = vand.u32 2147483647, %v1650
        %v2163 = vand.u32 2147483647, %v1651
        %v2164 = vand.u32 2147483647, %v1652
        %v2165 = vand.u32 2147483647, %v1653
        %v2166 = vand.u32 2147483647, %v1654
        %v2167 = vand.u32 2147483647, %v1655
        %v2168 = vand.u32 2147483647, %v1656
        %v2169 = vand.u32 2147483647, %v1657
        %v2170 = vand.u32 2147483647, %v1658
        %v2171 = vand.u32 2147483647, %v1659
        %v2172 = vand.u32 2147483647, %v1660
        %v2173 = vand.u32 2147483647, %v1661
        %v2174 = vand.u32 2147483647, %v1662
        %v2175 = vand.u32 2147483647, %v1663
        %v2176 = vand.u32 2147483647, %v1664
        %v2177 = vand.u32 2147483647, %v1665
        %v2178 = vand.u32 2147483647, %v1666
        %v2179 = vand.u32 2147483647, %v1667
        %v2180 = vand.u32 2147483647, %v1668
        %v2181 = vand.u32 2147483647, %v1669
        %v2182 = vand.u32 2147483647, %v1670
        %v2183 = vand.u32 2147483647, %v1671
        %v2184 = vand.u32 2147483647, %v1672
        %v2185 = vand.u32 2147483647, %v1673
        %v2186 = vand.u32 2147483647, %v1674
        %v2187 = vand.u32 2147483647, %v1675
        %v2188 = vand.u32 2147483647, %v1676
        %v2189 = vand.u32 2147483647, %v1677
        %v2190 = vand.u32 2147483647, %v1678
        %v2191 = vand.u32 2147483647, %v1679
        %v2192 = vand.u32 2147483647, %v1680
        %v2193 = vand.u32 2147483647, %v1681
        %v2194 = vand.u32 2147483647, %v1682
        %v2195 = vand.u32 2147483647, %v1683
        %v2196 = vand.u32 2147483647, %v1684
        %v2197 = vand.u32 2147483647, %v1685
        %v2198 = vand.u32 2147483647, %v1686
        %v2199 = vand.u32 2147483647, %v1687
        %v2200 = vand.u32 2147483647, %v1688
        %v2201 = vand.u32 2147483647, %v1689
        %v2202 = vand.u32 2147483647, %v1690
        %v2203 = vand.u32 2147483647, %v1691
        %v2204 = vand.u32 2147483647, %v1692
        %v2205 = vand.u32 2147483647, %v1693
        %v2206 = vand.u32 2147483647, %v1694
        %v2207 = vand.u32 2147483647, %v1695
        %v2208 = vand.u32 2147483647, %v1696
        %v2209 = vand.u32 2147483647, %v1697
        %v2210 = vand.u32 2147483647, %v1698
        %v2211 = vand.u32 2147483647, %v1699
        %v2212 = vand.u32 2147483647, %v1700
        %v2213 = vand.u32 2147483647, %v1701
        %v2214 = vand.u32 2147483647, %v1702
        %v2215 = vand.u32 2147483647, %v1703
        %v2216 = vand.u32 2147483647, %v1704
        %v2217 = vand.u32 2147483647, %v1705
        %v2218 = vand.u32 2147483647, %v1706
        %v2219 = vand.u32 2147483647, %v1707
        %v2220 = vand.u32 2147483647, %v1708
        %v2221 = vand.u32 2147483647, %v1709
        %v2222 = vand.u32 2147483647, %v1710
        %v2223 = vand.u32 2147483647, %v1711
        %v2224 = vand.u32 2147483647, %v1712
        %v2225 = vand.u32 2147483647, %v1713
        %v2226 = vand.u32 2147483647, %v1714
        %v2227 = vand.u32 2147483647, %v1715
        %v2228 = vand.u32 2147483647, %v1716
        %v2229 = vand.u32 2147483647, %v1717
        %v2230 = vand.u32 2147483647, %v1718
        %v2231 = vand.u32 2147483647, %v1719
        %v2232 = vand.u32 2147483647, %v1720
        %v2233 = vand.u32 2147483647, %v1721
        %v2234 = vand.u32 2147483647, %v1722
        %v2235 = vand.u32 2147483647, %v1723
        %v2236 = vand.u32 2147483647, %v1724
        %v2237 = vand.u32 2147483647, %v1725
        %v2238 = vand.u32 2147483647, %v1726
        %v2239 = vand.u32 2147483647, %v1727
        %v2240 = vand.u32 2147483647, %v1728
        %v2241 = vand.u32 2147483647, %v1729
        %v2242 = vand.u32 2147483647, %v1730
        %v2243 = vand.u32 2147483647, %v1731
        %v2244 = vand.u32 2147483647, %v1732
        %v2245 = vand.u32 2147483647, %v1733
        %v2246 = vand.u32 2147483647, %v1734
        %v2247 = vand.u32 2147483647, %v1735
        %v2248 = vand.u32 2147483647, %v1736
        %v2249 = vand.u32 2147483647, %v1737
        %v2250 = vand.u32 2147483647, %v1738
        %v2251 = vand.u32 2147483647, %v1739
        %v2252 = vand.u32 2147483647, %v1740
        %v2253 = vand.u32 2147483647, %v1741
        %v2254 = vand.u32 2147483647, %v1742
        %v2255 = vand.u32 2147483647, %v1743
        %v2256 = vand.u32 2147483647, %v1744
        %v2257 = vand.u32 2147483647, %v1745
        %v2258 = vand.u32 2147483647, %v1746
        %v2259 = vand.u32 2147483647, %v1747
        %v2260 = vand.u32 2147483647, %v1748
        %v2261 = vand.u32 2147483647, %v1749
        %v2262 = vand.u32 2147483647, %v1750
        %v2263 = vand.u32 2147483647, %v1751
        %v2264 = vand.u32 2147483647, %v1752
        %v2265 = vand.u32 2147483647, %v1753
        %v2266 = vand.u32 2147483647, %v1754
        %v2267 = vand.u32 2147483647, %v1755
        %v2268 = vand.u32 2147483647, %v1756
        %v2269 = vand.u32 2147483647, %v1757
        %v2270 = vand.u32 2147483647, %v1758
        %v2271 = vand.u32 2147483647, %v1759
        %v2272 = vand.u32 2147483647, %v1760
        %v2273 = vand.u32 2147483647, %v1761
        %v2274 = vand.u32 2147483647, %v1762
        %v2275 = vand.u32 2147483647, %v1763
        %v2276 = vand.u32 2147483647, %v1764
        %v2277 = vand.u32 2147483647, %v1765
        %v2278 = vand.u32 2147483647, %v1766
        %v2279 = vand.u32 2147483647, %v1767
        %v2280 = vand.u32 2147483647, %v1768
        %v2281 = vand.u32 2147483647, %v1769
        %v2282 = vand.u32 2147483647, %v1770
        %v2283 = vand.u32 2147483647, %v1771
        %v2284 = vand.u32 2147483647, %v1772
        %v2285 = vand.u32 2147483647, %v1773
        %v2286 = vand.u32 2147483647, %v1774
        %v2287 = vand.u32 2147483647, %v1775
        %v2288 = vand.u32 2147483647, %v1776
        %v2289 = vand.u32 2147483647, %v1777
        %v2290 = vand.u32 2147483647, %v1778
        %v2291 = vand.u32 2147483647, %v1779
        %v2292 = vand.u32 2147483647, %v1780
        %v2293 = vand.u32 2147483647, %v1781
        %v2294 = vand.u32 2147483647, %v1782
        %v2295 = vand.u32 2147483647, %v1783
        %v2296 = vand.u32 2147483647, %v1784
        %v2297 = vand.u32 2147483647, %v1785
        %v2298 = vand.u32 2147483647, %v1786
        %v2299 = vand.u32 2147483647, %v1787
        %v2300 = vand.u32 2147483647, %v1788
        %v2301 = vand.u32 2147483647, %v1789
        %v2302 = vand.u32 2147483647, %v1790
        %v2303 = vand.u32 2147483647, %v1791
        %v2304 = vand.u32 2147483647, %v1792
        %v2305 = vand.u32 2147483647, %v1793
        %v2306 = vand.u32 2147483647, %v1794
        %v2307 = vand.u32 2147483647, %v1795
        %v2308 = vand.u32 2147483647, %v1796
        %v2309 = vand.u32 2147483647, %v1797
        %v2310 = vand.u32 2147483647, %v1798
        %v2311 = vand.u32 2147483647, %v1799
        %v2312 = vand.u32 2147483647, %v1800
        %v2313 = vand.u32 2147483647, %v1801
        %v2314 = vand.u32 2147483647, %v1802
        %v2315 = vand.u32 2147483647, %v1803
        %v2316 = vand.u32 2147483647, %v1804
        %v2317 = vand.u32 2147483647, %v1805
        %v2318 = vand.u32 2147483647, %v1806
        %v2319 = vand.u32 2147483647, %v1807
        %v2320 = vand.u32 2147483647, %v1808
        %v2321 = vand.u32 2147483647, %v1809
        %v2322 = vand.u32 2147483647, %v1810
        %v2323 = vand.u32 2147483647, %v1811
        %v2324 = vand.u32 2147483647, %v1812
        %v2325 = vand.u32 2147483647, %v1813
        %v2326 = vand.u32 2147483647, %v1814
        %v2327 = vand.u32 2147483647, %v1815
        %v2328 = vand.u32 2147483647, %v1816
        %v2329 = vand.u32 2147483647, %v1817
        %v2330 = vand.u32 2147483647, %v1818
        %v2331 = vand.u32 2147483647, %v1819
        %v2332 = vand.u32 2147483647, %v1820
        %v2333 = vand.u32 2147483647, %v1821
        %v2334 = vand.u32 2147483647, %v1822
        %v2335 = vand.u32 2147483647, %v1823
        %v2336 = vand.u32 2147483647, %v1824
        %v2337 = vand.u32 2147483647, %v1825
        %v2338 = vand.u32 2147483647, %v1826
        %v2339 = vand.u32 2147483647, %v1827
        %v2340 = vand.u32 2147483647, %v1828
        %v2341 = vand.u32 2147483647, %v1829
        %v2342 = vand.u32 2147483647, %v1830
        %v2343 = vand.u32 2147483647, %v1831
        %v2344 = vand.u32 2147483647, %v1832
        %v2345 = vand.u32 2147483647, %v1833
        %v2346 = vand.u32 2147483647, %v1834
        %v2347 = vand.u32 2147483647, %v1835
        %v2348 = vand.u32 2147483647, %v1836
        %v2349 = vand.u32 2147483647, %v1837
        %v2350 = vand.u32 2147483647, %v1838
        %v2351 = vand.u32 2147483647, %v1839
        %v2352 = vand.u32 2147483647, %v1840
        %v2353 = vand.u32 2147483647, %v1841
        %v2354 = vand.u32 2147483647, %v1842
        %v2355 = vand.u32 2147483647, %v1843
        %v2356 = vand.u32 2147483647, %v1844
        %v2357 = vand.u32 2147483647, %v1845
        %v2358 = vand.u32 2147483647, %v1846
        %v2359 = vand.u32 2147483647, %v1847
        %v2360 = vand.u32 2147483647, %v1848
        %v2361 = vand.u32 2147483647, %v1849
        %v2362 = vand.u32 2147483647, %v1850
        %v2363 = vand.u32 2147483647, %v1851
        %v2364 = vand.u32 2147483647, %v1852
        %v2365 = vand.u32 2147483647, %v1853
        %v2366 = vand.u32 2147483647, %v1854
        %v2367 = vand.u32 2147483647, %v1855
        %v2368 = vand.u32 2147483647, %v1856
        %v2369 = vand.u32 2147483647, %v1857
        %v2370 = vand.u32 2147483647, %v1858
        %v2371 = vand.u32 2147483647, %v1859
        %v2372 = vand.u32 2147483647, %v1860
        %v2373 = vand.u32 2147483647, %v1861
        %v2374 = vand.u32 2147483647, %v1862
        %v2375 = vand.u32 2147483647, %v1863
        %v2376 = vand.u32 2147483647, %v1864
        %v2377 = vand.u32 2147483647, %v1865
        %v2378 = vand.u32 2147483647, %v1866
        %v2379 = vand.u32 2147483647, %v1867
        %v2380 = vand.u32 2147483647, %v1868
        %v2381 = vand.u32 2147483647, %v1869
        %v2382 = vand.u32 2147483647, %v1870
        %v2383 = vand.u32 2147483647, %v1871
        %v2384 = vand.u32 2147483647, %v1872
        %v2385 = vand.u32 2147483647, %v1873
        %v2386 = vand.u32 2147483647, %v1874
        %v2387 = vand.u32 2147483647, %v1875
        %v2388 = vand.u32 2147483647, %v1876
        %v2389 = vand.u32 2147483647, %v1877
        %v2390 = vand.u32 2147483647, %v1878
        %v2391 = vand.u32 2147483647, %v1879
        %v2392 = vand.u32 2147483647, %v1880
        %v2393 = vand.u32 2147483647, %v1881
        %v2394 = vand.u32 2147483647, %v1882
        %v2395 = vand.u32 2147483647, %v1883
        %v2396 = vand.u32 2147483647, %v1884
        %v2397 = vand.u32 2147483647, %v1885
        %v2398 = vand.u32 2147483647, %v1886
        %v2399 = vand.u32 2147483647, %v1887
        %v2400 = vand.u32 2147483647, %v1888
        %v2401 = vand.u32 2147483647, %v1889
        %v2402 = vand.u32 2147483647, %v1890
        %v2403 = vand.u32 2147483647, %v1891
        %v2404 = vand.u32 2147483647, %v1892
        %v2405 = vand.u32 2147483647, %v1893
        %v2406 = vand.u32 2147483647, %v1894
        %v2407 = vand.u32 2147483647, %v1895
        %v2408 = vand.u32 2147483647, %v1896
        %v2409 = vand.u32 2147483647, %v1897
        %v2410 = vand.u32 2147483647, %v1898
        %v2411 = vand.u32 2147483647, %v1899
        %v2412 = vld [vmem:[%s299] sm:$0xf]
        %v2413 = vld [vmem:[%s299 + $0x4] sm:$0xf]
        %v2414 = vld [vmem:[%s299 + $0x8] sm:$0xf]
        %v2415 = vld [vmem:[%s299 + $0xc] sm:$0xf]
        %v2416 = vld [vmem:[%s299 + $0x10] sm:$0xf]
        %v2417 = vld [vmem:[%s299 + $0x14] sm:$0xf]
        %v2418 = vld [vmem:[%s299 + $0x18] sm:$0xf]
        %v2419 = vld [vmem:[%s299 + $0x1c] sm:$0xf]
        %v2420 = vld [vmem:[%s299 + $0x20] sm:$0xf]
        %v2421 = vld [vmem:[%s299 + $0x24] sm:$0xf]
        %v2422 = vld [vmem:[%s299 + $0x28] sm:$0xf]
        %v2423 = vld [vmem:[%s299 + $0x2c] sm:$0xf]
        %v2424 = vld [vmem:[%s299 + $0x30] sm:$0xf]
        %v2425 = vld [vmem:[%s299 + $0x34] sm:$0xf]
        %v2426 = vld [vmem:[%s299 + $0x38] sm:$0xf]
        %v2427 = vld [vmem:[%s299 + $0x3c] sm:$0xf]
        %v2428 = vld [vmem:[%s299 + $0x40] sm:$0xf]
        %v2429 = vld [vmem:[%s299 + $0x44] sm:$0xf]
        %v2430 = vld [vmem:[%s299 + $0x48] sm:$0xf]
        %v2431 = vld [vmem:[%s299 + $0x4c] sm:$0xf]
        %v2432 = vld [vmem:[%s299 + $0x50] sm:$0xf]
        %v2433 = vld [vmem:[%s299 + $0x54] sm:$0xf]
        %v2434 = vld [vmem:[%s299 + $0x58] sm:$0xf]
        %v2435 = vld [vmem:[%s299 + $0x5c] sm:$0xf]
        %v2436 = vld [vmem:[%s299 + $0x60] sm:$0xf]
        %v2437 = vld [vmem:[%s299 + $0x64] sm:$0xf]
        %v2438 = vld [vmem:[%s299 + $0x68] sm:$0xf]
        %v2439 = vld [vmem:[%s299 + $0x6c] sm:$0xf]
        %v2440 = vld [vmem:[%s299 + $0x70] sm:$0xf]
        %v2441 = vld [vmem:[%s299 + $0x74] sm:$0xf]
        %v2442 = vld [vmem:[%s299 + $0x78] sm:$0xf]
        %v2443 = vld [vmem:[%s299 + $0x7c] sm:$0xf]
        %v2444 = vld [vmem:[%s299 + $0x80] sm:$0xf]
        %v2445 = vld [vmem:[%s299 + $0x84] sm:$0xf]
        %v2446 = vld [vmem:[%s299 + $0x88] sm:$0xf]
        %v2447 = vld [vmem:[%s299 + $0x8c] sm:$0xf]
        %v2448 = vld [vmem:[%s299 + $0x90] sm:$0xf]
        %v2449 = vld [vmem:[%s299 + $0x94] sm:$0xf]
        %v2450 = vld [vmem:[%s299 + $0x98] sm:$0xf]
        %v2451 = vld [vmem:[%s299 + $0x9c] sm:$0xf]
        %v2452 = vld [vmem:[%s299 + $0xa0] sm:$0xf]
        %v2453 = vld [vmem:[%s299 + $0xa4] sm:$0xf]
        %v2454 = vld [vmem:[%s299 + $0xa8] sm:$0xf]
        %v2455 = vld [vmem:[%s299 + $0xac] sm:$0xf]
        %v2456 = vld [vmem:[%s299 + $0xb0] sm:$0xf]
        %v2457 = vld [vmem:[%s299 + $0xb4] sm:$0xf]
        %v2458 = vld [vmem:[%s299 + $0xb8] sm:$0xf]
        %v2459 = vld [vmem:[%s299 + $0xbc] sm:$0xf]
        %v2460 = vld [vmem:[%s299 + $0xc0] sm:$0xf]
        %v2461 = vld [vmem:[%s299 + $0xc4] sm:$0xf]
        %v2462 = vld [vmem:[%s299 + $0xc8] sm:$0xf]
        %v2463 = vld [vmem:[%s299 + $0xcc] sm:$0xf]
        %v2464 = vld [vmem:[%s299 + $0xd0] sm:$0xf]
        %v2465 = vld [vmem:[%s299 + $0xd4] sm:$0xf]
        %v2466 = vld [vmem:[%s299 + $0xd8] sm:$0xf]
        %v2467 = vld [vmem:[%s299 + $0xdc] sm:$0xf]
        %v2468 = vld [vmem:[%s299 + $0xe0] sm:$0xf]
        %v2469 = vld [vmem:[%s299 + $0xe4] sm:$0xf]
        %v2470 = vld [vmem:[%s299 + $0xe8] sm:$0xf]
        %v2471 = vld [vmem:[%s299 + $0xec] sm:$0xf]
        %v2472 = vld [vmem:[%s299 + $0xf0] sm:$0xf]
        %v2473 = vld [vmem:[%s299 + $0xf4] sm:$0xf]
        %v2474 = vld [vmem:[%s299 + $0xf8] sm:$0xf]
        %v2475 = vld [vmem:[%s299 + $0xfc] sm:$0xf]
        %v2476 = vld [vmem:[%s299 + $0x100] sm:$0xf]
        %v2477 = vld [vmem:[%s299 + $0x104] sm:$0xf]
        %v2478 = vld [vmem:[%s299 + $0x108] sm:$0xf]
        %v2479 = vld [vmem:[%s299 + $0x10c] sm:$0xf]
        %v2480 = vld [vmem:[%s299 + $0x110] sm:$0xf]
        %v2481 = vld [vmem:[%s299 + $0x114] sm:$0xf]
        %v2482 = vld [vmem:[%s299 + $0x118] sm:$0xf]
        %v2483 = vld [vmem:[%s299 + $0x11c] sm:$0xf]
        %v2484 = vld [vmem:[%s299 + $0x120] sm:$0xf]
        %v2485 = vld [vmem:[%s299 + $0x124] sm:$0xf]
        %v2486 = vld [vmem:[%s299 + $0x128] sm:$0xf]
        %v2487 = vld [vmem:[%s299 + $0x12c] sm:$0xf]
        %v2488 = vld [vmem:[%s299 + $0x130] sm:$0xf]
        %v2489 = vld [vmem:[%s299 + $0x134] sm:$0xf]
        %v2490 = vld [vmem:[%s299 + $0x138] sm:$0xf]
        %v2491 = vld [vmem:[%s299 + $0x13c] sm:$0xf]
        %v2492 = vld [vmem:[%s299 + $0x140] sm:$0xf]
        %v2493 = vld [vmem:[%s299 + $0x144] sm:$0xf]
        %v2494 = vld [vmem:[%s299 + $0x148] sm:$0xf]
        %v2495 = vld [vmem:[%s299 + $0x14c] sm:$0xf]
        %v2496 = vld [vmem:[%s299 + $0x150] sm:$0xf]
        %v2497 = vld [vmem:[%s299 + $0x154] sm:$0xf]
        %v2498 = vld [vmem:[%s299 + $0x158] sm:$0xf]
        %v2499 = vld [vmem:[%s299 + $0x15c] sm:$0xf]
        %v2500 = vld [vmem:[%s299 + $0x160] sm:$0xf]
        %v2501 = vld [vmem:[%s299 + $0x164] sm:$0xf]
        %v2502 = vld [vmem:[%s299 + $0x168] sm:$0xf]
        %v2503 = vld [vmem:[%s299 + $0x16c] sm:$0xf]
        %v2504 = vld [vmem:[%s299 + $0x170] sm:$0xf]
        %v2505 = vld [vmem:[%s299 + $0x174] sm:$0xf]
        %v2506 = vld [vmem:[%s299 + $0x178] sm:$0xf]
        %v2507 = vld [vmem:[%s299 + $0x17c] sm:$0xf]
        %v2508 = vld [vmem:[%s299 + $0x180] sm:$0xf]
        %v2509 = vld [vmem:[%s299 + $0x184] sm:$0xf]
        %v2510 = vld [vmem:[%s299 + $0x188] sm:$0xf]
        %v2511 = vld [vmem:[%s299 + $0x18c] sm:$0xf]
        %v2512 = vld [vmem:[%s299 + $0x190] sm:$0xf]
        %v2513 = vld [vmem:[%s299 + $0x194] sm:$0xf]
        %v2514 = vld [vmem:[%s299 + $0x198] sm:$0xf]
        %v2515 = vld [vmem:[%s299 + $0x19c] sm:$0xf]
        %v2516 = vld [vmem:[%s299 + $0x1a0] sm:$0xf]
        %v2517 = vld [vmem:[%s299 + $0x1a4] sm:$0xf]
        %v2518 = vld [vmem:[%s299 + $0x1a8] sm:$0xf]
        %v2519 = vld [vmem:[%s299 + $0x1ac] sm:$0xf]
        %v2520 = vld [vmem:[%s299 + $0x1b0] sm:$0xf]
        %v2521 = vld [vmem:[%s299 + $0x1b4] sm:$0xf]
        %v2522 = vld [vmem:[%s299 + $0x1b8] sm:$0xf]
        %v2523 = vld [vmem:[%s299 + $0x1bc] sm:$0xf]
        %v2524 = vld [vmem:[%s299 + $0x1c0] sm:$0xf]
        %v2525 = vld [vmem:[%s299 + $0x1c4] sm:$0xf]
        %v2526 = vld [vmem:[%s299 + $0x1c8] sm:$0xf]
        %v2527 = vld [vmem:[%s299 + $0x1cc] sm:$0xf]
        %v2528 = vld [vmem:[%s299 + $0x1d0] sm:$0xf]
        %v2529 = vld [vmem:[%s299 + $0x1d4] sm:$0xf]
        %v2530 = vld [vmem:[%s299 + $0x1d8] sm:$0xf]
        %v2531 = vld [vmem:[%s299 + $0x1dc] sm:$0xf]
        %v2532 = vld [vmem:[%s299 + $0x1e0] sm:$0xf]
        %v2533 = vld [vmem:[%s299 + $0x1e4] sm:$0xf]
        %v2534 = vld [vmem:[%s299 + $0x1e8] sm:$0xf]
        %v2535 = vld [vmem:[%s299 + $0x1ec] sm:$0xf]
        %v2536 = vld [vmem:[%s299 + $0x1f0] sm:$0xf]
        %v2537 = vld [vmem:[%s299 + $0x1f4] sm:$0xf]
        %v2538 = vld [vmem:[%s299 + $0x1f8] sm:$0xf]
        %v2539 = vld [vmem:[%s299 + $0x1fc] sm:$0xf]
        %v2540 = vld [vmem:[%s299 + $0x200] sm:$0xf]
        %v2541 = vld [vmem:[%s299 + $0x204] sm:$0xf]
        %v2542 = vld [vmem:[%s299 + $0x208] sm:$0xf]
        %v2543 = vld [vmem:[%s299 + $0x20c] sm:$0xf]
        %v2544 = vld [vmem:[%s299 + $0x210] sm:$0xf]
        %v2545 = vld [vmem:[%s299 + $0x214] sm:$0xf]
        %v2546 = vld [vmem:[%s299 + $0x218] sm:$0xf]
        %v2547 = vld [vmem:[%s299 + $0x21c] sm:$0xf]
        %v2548 = vld [vmem:[%s299 + $0x220] sm:$0xf]
        %v2549 = vld [vmem:[%s299 + $0x224] sm:$0xf]
        %v2550 = vld [vmem:[%s299 + $0x228] sm:$0xf]
        %v2551 = vld [vmem:[%s299 + $0x22c] sm:$0xf]
        %v2552 = vld [vmem:[%s299 + $0x230] sm:$0xf]
        %v2553 = vld [vmem:[%s299 + $0x234] sm:$0xf]
        %v2554 = vld [vmem:[%s299 + $0x238] sm:$0xf]
        %v2555 = vld [vmem:[%s299 + $0x23c] sm:$0xf]
        %v2556 = vld [vmem:[%s299 + $0x240] sm:$0xf]
        %v2557 = vld [vmem:[%s299 + $0x244] sm:$0xf]
        %v2558 = vld [vmem:[%s299 + $0x248] sm:$0xf]
        %v2559 = vld [vmem:[%s299 + $0x24c] sm:$0xf]
        %v2560 = vld [vmem:[%s299 + $0x250] sm:$0xf]
        %v2561 = vld [vmem:[%s299 + $0x254] sm:$0xf]
        %v2562 = vld [vmem:[%s299 + $0x258] sm:$0xf]
        %v2563 = vld [vmem:[%s299 + $0x25c] sm:$0xf]
        %v2564 = vld [vmem:[%s299 + $0x260] sm:$0xf]
        %v2565 = vld [vmem:[%s299 + $0x264] sm:$0xf]
        %v2566 = vld [vmem:[%s299 + $0x268] sm:$0xf]
        %v2567 = vld [vmem:[%s299 + $0x26c] sm:$0xf]
        %v2568 = vld [vmem:[%s299 + $0x270] sm:$0xf]
        %v2569 = vld [vmem:[%s299 + $0x274] sm:$0xf]
        %v2570 = vld [vmem:[%s299 + $0x278] sm:$0xf]
        %v2571 = vld [vmem:[%s299 + $0x27c] sm:$0xf]
        %v2572 = vld [vmem:[%s299 + $0x280] sm:$0xf]
        %v2573 = vld [vmem:[%s299 + $0x284] sm:$0xf]
        %v2574 = vld [vmem:[%s299 + $0x288] sm:$0xf]
        %v2575 = vld [vmem:[%s299 + $0x28c] sm:$0xf]
        %v2576 = vld [vmem:[%s299 + $0x290] sm:$0xf]
        %v2577 = vld [vmem:[%s299 + $0x294] sm:$0xf]
        %v2578 = vld [vmem:[%s299 + $0x298] sm:$0xf]
        %v2579 = vld [vmem:[%s299 + $0x29c] sm:$0xf]
        %v2580 = vld [vmem:[%s299 + $0x2a0] sm:$0xf]
        %v2581 = vld [vmem:[%s299 + $0x2a4] sm:$0xf]
        %v2582 = vld [vmem:[%s299 + $0x2a8] sm:$0xf]
        %v2583 = vld [vmem:[%s299 + $0x2ac] sm:$0xf]
        %v2584 = vld [vmem:[%s299 + $0x2b0] sm:$0xf]
        %v2585 = vld [vmem:[%s299 + $0x2b4] sm:$0xf]
        %v2586 = vld [vmem:[%s299 + $0x2b8] sm:$0xf]
        %v2587 = vld [vmem:[%s299 + $0x2bc] sm:$0xf]
        %v2588 = vld [vmem:[%s299 + $0x2c0] sm:$0xf]
        %v2589 = vld [vmem:[%s299 + $0x2c4] sm:$0xf]
        %v2590 = vld [vmem:[%s299 + $0x2c8] sm:$0xf]
        %v2591 = vld [vmem:[%s299 + $0x2cc] sm:$0xf]
        %v2592 = vld [vmem:[%s299 + $0x2d0] sm:$0xf]
        %v2593 = vld [vmem:[%s299 + $0x2d4] sm:$0xf]
        %v2594 = vld [vmem:[%s299 + $0x2d8] sm:$0xf]
        %v2595 = vld [vmem:[%s299 + $0x2dc] sm:$0xf]
        %v2596 = vld [vmem:[%s299 + $0x2e0] sm:$0xf]
        %v2597 = vld [vmem:[%s299 + $0x2e4] sm:$0xf]
        %v2598 = vld [vmem:[%s299 + $0x2e8] sm:$0xf]
        %v2599 = vld [vmem:[%s299 + $0x2ec] sm:$0xf]
        %v2600 = vld [vmem:[%s299 + $0x2f0] sm:$0xf]
        %v2601 = vld [vmem:[%s299 + $0x2f4] sm:$0xf]
        %v2602 = vld [vmem:[%s299 + $0x2f8] sm:$0xf]
        %v2603 = vld [vmem:[%s299 + $0x2fc] sm:$0xf]
        %v2604 = vld [vmem:[%s299 + $0x300] sm:$0xf]
        %v2605 = vld [vmem:[%s299 + $0x304] sm:$0xf]
        %v2606 = vld [vmem:[%s299 + $0x308] sm:$0xf]
        %v2607 = vld [vmem:[%s299 + $0x30c] sm:$0xf]
        %v2608 = vld [vmem:[%s299 + $0x310] sm:$0xf]
        %v2609 = vld [vmem:[%s299 + $0x314] sm:$0xf]
        %v2610 = vld [vmem:[%s299 + $0x318] sm:$0xf]
        %v2611 = vld [vmem:[%s299 + $0x31c] sm:$0xf]
        %v2612 = vld [vmem:[%s299 + $0x320] sm:$0xf]
        %v2613 = vld [vmem:[%s299 + $0x324] sm:$0xf]
        %v2614 = vld [vmem:[%s299 + $0x328] sm:$0xf]
        %v2615 = vld [vmem:[%s299 + $0x32c] sm:$0xf]
        %v2616 = vld [vmem:[%s299 + $0x330] sm:$0xf]
        %v2617 = vld [vmem:[%s299 + $0x334] sm:$0xf]
        %v2618 = vld [vmem:[%s299 + $0x338] sm:$0xf]
        %v2619 = vld [vmem:[%s299 + $0x33c] sm:$0xf]
        %v2620 = vld [vmem:[%s299 + $0x340] sm:$0xf]
        %v2621 = vld [vmem:[%s299 + $0x344] sm:$0xf]
        %v2622 = vld [vmem:[%s299 + $0x348] sm:$0xf]
        %v2623 = vld [vmem:[%s299 + $0x34c] sm:$0xf]
        %v2624 = vld [vmem:[%s299 + $0x350] sm:$0xf]
        %v2625 = vld [vmem:[%s299 + $0x354] sm:$0xf]
        %v2626 = vld [vmem:[%s299 + $0x358] sm:$0xf]
        %v2627 = vld [vmem:[%s299 + $0x35c] sm:$0xf]
        %v2628 = vld [vmem:[%s299 + $0x360] sm:$0xf]
        %v2629 = vld [vmem:[%s299 + $0x364] sm:$0xf]
        %v2630 = vld [vmem:[%s299 + $0x368] sm:$0xf]
        %v2631 = vld [vmem:[%s299 + $0x36c] sm:$0xf]
        %v2632 = vld [vmem:[%s299 + $0x370] sm:$0xf]
        %v2633 = vld [vmem:[%s299 + $0x374] sm:$0xf]
        %v2634 = vld [vmem:[%s299 + $0x378] sm:$0xf]
        %v2635 = vld [vmem:[%s299 + $0x37c] sm:$0xf]
        %v2636 = vld [vmem:[%s299 + $0x380] sm:$0xf]
        %v2637 = vld [vmem:[%s299 + $0x384] sm:$0xf]
        %v2638 = vld [vmem:[%s299 + $0x388] sm:$0xf]
        %v2639 = vld [vmem:[%s299 + $0x38c] sm:$0xf]
        %v2640 = vld [vmem:[%s299 + $0x390] sm:$0xf]
        %v2641 = vld [vmem:[%s299 + $0x394] sm:$0xf]
        %v2642 = vld [vmem:[%s299 + $0x398] sm:$0xf]
        %v2643 = vld [vmem:[%s299 + $0x39c] sm:$0xf]
        %v2644 = vld [vmem:[%s299 + $0x3a0] sm:$0xf]
        %v2645 = vld [vmem:[%s299 + $0x3a4] sm:$0xf]
        %v2646 = vld [vmem:[%s299 + $0x3a8] sm:$0xf]
        %v2647 = vld [vmem:[%s299 + $0x3ac] sm:$0xf]
        %v2648 = vld [vmem:[%s299 + $0x3b0] sm:$0xf]
        %v2649 = vld [vmem:[%s299 + $0x3b4] sm:$0xf]
        %v2650 = vld [vmem:[%s299 + $0x3b8] sm:$0xf]
        %v2651 = vld [vmem:[%s299 + $0x3bc] sm:$0xf]
        %v2652 = vld [vmem:[%s299 + $0x3c0] sm:$0xf]
        %v2653 = vld [vmem:[%s299 + $0x3c4] sm:$0xf]
        %v2654 = vld [vmem:[%s299 + $0x3c8] sm:$0xf]
        %v2655 = vld [vmem:[%s299 + $0x3cc] sm:$0xf]
        %v2656 = vld [vmem:[%s299 + $0x3d0] sm:$0xf]
        %v2657 = vld [vmem:[%s299 + $0x3d4] sm:$0xf]
        %v2658 = vld [vmem:[%s299 + $0x3d8] sm:$0xf]
        %v2659 = vld [vmem:[%s299 + $0x3dc] sm:$0xf]
        %v2660 = vld [vmem:[%s299 + $0x3e0] sm:$0xf]
        %v2661 = vld [vmem:[%s299 + $0x3e4] sm:$0xf]
        %v2662 = vld [vmem:[%s299 + $0x3e8] sm:$0xf]
        %v2663 = vld [vmem:[%s299 + $0x3ec] sm:$0xf]
        %v2664 = vld [vmem:[%s299 + $0x3f0] sm:$0xf]
        %v2665 = vld [vmem:[%s299 + $0x3f4] sm:$0xf]
        %v2666 = vld [vmem:[%s299 + $0x3f8] sm:$0xf]
        %v2667 = vld [vmem:[%s299 + $0x3fc] sm:$0xf]
        %v2668 = vld [vmem:[%s299 + $0x400] sm:$0xf]
        %v2669 = vld [vmem:[%s299 + $0x404] sm:$0xf]
        %v2670 = vld [vmem:[%s299 + $0x408] sm:$0xf]
        %v2671 = vld [vmem:[%s299 + $0x40c] sm:$0xf]
        %v2672 = vld [vmem:[%s299 + $0x410] sm:$0xf]
        %v2673 = vld [vmem:[%s299 + $0x414] sm:$0xf]
        %v2674 = vld [vmem:[%s299 + $0x418] sm:$0xf]
        %v2675 = vld [vmem:[%s299 + $0x41c] sm:$0xf]
        %v2676 = vld [vmem:[%s299 + $0x420] sm:$0xf]
        %v2677 = vld [vmem:[%s299 + $0x424] sm:$0xf]
        %v2678 = vld [vmem:[%s299 + $0x428] sm:$0xf]
        %v2679 = vld [vmem:[%s299 + $0x42c] sm:$0xf]
        %v2680 = vld [vmem:[%s299 + $0x430] sm:$0xf]
        %v2681 = vld [vmem:[%s299 + $0x434] sm:$0xf]
        %v2682 = vld [vmem:[%s299 + $0x438] sm:$0xf]
        %v2683 = vld [vmem:[%s299 + $0x43c] sm:$0xf]
        %v2684 = vld [vmem:[%s299 + $0x440] sm:$0xf]
        %v2685 = vld [vmem:[%s299 + $0x444] sm:$0xf]
        %v2686 = vld [vmem:[%s299 + $0x448] sm:$0xf]
        %v2687 = vld [vmem:[%s299 + $0x44c] sm:$0xf]
        %v2688 = vld [vmem:[%s299 + $0x450] sm:$0xf]
        %v2689 = vld [vmem:[%s299 + $0x454] sm:$0xf]
        %v2690 = vld [vmem:[%s299 + $0x458] sm:$0xf]
        %v2691 = vld [vmem:[%s299 + $0x45c] sm:$0xf]
        %v2692 = vld [vmem:[%s299 + $0x460] sm:$0xf]
        %v2693 = vld [vmem:[%s299 + $0x464] sm:$0xf]
        %v2694 = vld [vmem:[%s299 + $0x468] sm:$0xf]
        %v2695 = vld [vmem:[%s299 + $0x46c] sm:$0xf]
        %v2696 = vld [vmem:[%s299 + $0x470] sm:$0xf]
        %v2697 = vld [vmem:[%s299 + $0x474] sm:$0xf]
        %v2698 = vld [vmem:[%s299 + $0x478] sm:$0xf]
        %v2699 = vld [vmem:[%s299 + $0x47c] sm:$0xf]
        %v2700 = vld [vmem:[%s299 + $0x480] sm:$0xf]
        %v2701 = vld [vmem:[%s299 + $0x484] sm:$0xf]
        %v2702 = vld [vmem:[%s299 + $0x488] sm:$0xf]
        %v2703 = vld [vmem:[%s299 + $0x48c] sm:$0xf]
        %v2704 = vld [vmem:[%s299 + $0x490] sm:$0xf]
        %v2705 = vld [vmem:[%s299 + $0x494] sm:$0xf]
        %v2706 = vld [vmem:[%s299 + $0x498] sm:$0xf]
        %v2707 = vld [vmem:[%s299 + $0x49c] sm:$0xf]
        %v2708 = vld [vmem:[%s299 + $0x4a0] sm:$0xf]
        %v2709 = vld [vmem:[%s299 + $0x4a4] sm:$0xf]
        %v2710 = vld [vmem:[%s299 + $0x4a8] sm:$0xf]
        %v2711 = vld [vmem:[%s299 + $0x4ac] sm:$0xf]
        %v2712 = vld [vmem:[%s299 + $0x4b0] sm:$0xf]
        %v2713 = vld [vmem:[%s299 + $0x4b4] sm:$0xf]
        %v2714 = vld [vmem:[%s299 + $0x4b8] sm:$0xf]
        %v2715 = vld [vmem:[%s299 + $0x4bc] sm:$0xf]
        %v2716 = vld [vmem:[%s299 + $0x4c0] sm:$0xf]
        %v2717 = vld [vmem:[%s299 + $0x4c4] sm:$0xf]
        %v2718 = vld [vmem:[%s299 + $0x4c8] sm:$0xf]
        %v2719 = vld [vmem:[%s299 + $0x4cc] sm:$0xf]
        %v2720 = vld [vmem:[%s299 + $0x4d0] sm:$0xf]
        %v2721 = vld [vmem:[%s299 + $0x4d4] sm:$0xf]
        %v2722 = vld [vmem:[%s299 + $0x4d8] sm:$0xf]
        %v2723 = vld [vmem:[%s299 + $0x4dc] sm:$0xf]
        %v2724 = vld [vmem:[%s299 + $0x4e0] sm:$0xf]
        %v2725 = vld [vmem:[%s299 + $0x4e4] sm:$0xf]
        %v2726 = vld [vmem:[%s299 + $0x4e8] sm:$0xf]
        %v2727 = vld [vmem:[%s299 + $0x4ec] sm:$0xf]
        %v2728 = vld [vmem:[%s299 + $0x4f0] sm:$0xf]
        %v2729 = vld [vmem:[%s299 + $0x4f4] sm:$0xf]
        %v2730 = vld [vmem:[%s299 + $0x4f8] sm:$0xf]
        %v2731 = vld [vmem:[%s299 + $0x4fc] sm:$0xf]
        %v2732 = vld [vmem:[%s299 + $0x500] sm:$0xf]
        %v2733 = vld [vmem:[%s299 + $0x504] sm:$0xf]
        %v2734 = vld [vmem:[%s299 + $0x508] sm:$0xf]
        %v2735 = vld [vmem:[%s299 + $0x50c] sm:$0xf]
        %v2736 = vld [vmem:[%s299 + $0x510] sm:$0xf]
        %v2737 = vld [vmem:[%s299 + $0x514] sm:$0xf]
        %v2738 = vld [vmem:[%s299 + $0x518] sm:$0xf]
        %v2739 = vld [vmem:[%s299 + $0x51c] sm:$0xf]
        %v2740 = vld [vmem:[%s299 + $0x520] sm:$0xf]
        %v2741 = vld [vmem:[%s299 + $0x524] sm:$0xf]
        %v2742 = vld [vmem:[%s299 + $0x528] sm:$0xf]
        %v2743 = vld [vmem:[%s299 + $0x52c] sm:$0xf]
        %v2744 = vld [vmem:[%s299 + $0x530] sm:$0xf]
        %v2745 = vld [vmem:[%s299 + $0x534] sm:$0xf]
        %v2746 = vld [vmem:[%s299 + $0x538] sm:$0xf]
        %v2747 = vld [vmem:[%s299 + $0x53c] sm:$0xf]
        %v2748 = vld [vmem:[%s299 + $0x540] sm:$0xf]
        %v2749 = vld [vmem:[%s299 + $0x544] sm:$0xf]
        %v2750 = vld [vmem:[%s299 + $0x548] sm:$0xf]
        %v2751 = vld [vmem:[%s299 + $0x54c] sm:$0xf]
        %v2752 = vld [vmem:[%s299 + $0x550] sm:$0xf]
        %v2753 = vld [vmem:[%s299 + $0x554] sm:$0xf]
        %v2754 = vld [vmem:[%s299 + $0x558] sm:$0xf]
        %v2755 = vld [vmem:[%s299 + $0x55c] sm:$0xf]
        %v2756 = vld [vmem:[%s299 + $0x560] sm:$0xf]
        %v2757 = vld [vmem:[%s299 + $0x564] sm:$0xf]
        %v2758 = vld [vmem:[%s299 + $0x568] sm:$0xf]
        %v2759 = vld [vmem:[%s299 + $0x56c] sm:$0xf]
        %v2760 = vld [vmem:[%s299 + $0x570] sm:$0xf]
        %v2761 = vld [vmem:[%s299 + $0x574] sm:$0xf]
        %v2762 = vld [vmem:[%s299 + $0x578] sm:$0xf]
        %v2763 = vld [vmem:[%s299 + $0x57c] sm:$0xf]
        %v2764 = vld [vmem:[%s299 + $0x580] sm:$0xf]
        %v2765 = vld [vmem:[%s299 + $0x584] sm:$0xf]
        %v2766 = vld [vmem:[%s299 + $0x588] sm:$0xf]
        %v2767 = vld [vmem:[%s299 + $0x58c] sm:$0xf]
        %v2768 = vld [vmem:[%s299 + $0x590] sm:$0xf]
        %v2769 = vld [vmem:[%s299 + $0x594] sm:$0xf]
        %v2770 = vld [vmem:[%s299 + $0x598] sm:$0xf]
        %v2771 = vld [vmem:[%s299 + $0x59c] sm:$0xf]
        %v2772 = vld [vmem:[%s299 + $0x5a0] sm:$0xf]
        %v2773 = vld [vmem:[%s299 + $0x5a4] sm:$0xf]
        %v2774 = vld [vmem:[%s299 + $0x5a8] sm:$0xf]
        %v2775 = vld [vmem:[%s299 + $0x5ac] sm:$0xf]
        %v2776 = vld [vmem:[%s299 + $0x5b0] sm:$0xf]
        %v2777 = vld [vmem:[%s299 + $0x5b4] sm:$0xf]
        %v2778 = vld [vmem:[%s299 + $0x5b8] sm:$0xf]
        %v2779 = vld [vmem:[%s299 + $0x5bc] sm:$0xf]
        %v2780 = vld [vmem:[%s299 + $0x5c0] sm:$0xf]
        %v2781 = vld [vmem:[%s299 + $0x5c4] sm:$0xf]
        %v2782 = vld [vmem:[%s299 + $0x5c8] sm:$0xf]
        %v2783 = vld [vmem:[%s299 + $0x5cc] sm:$0xf]
        %v2784 = vld [vmem:[%s299 + $0x5d0] sm:$0xf]
        %v2785 = vld [vmem:[%s299 + $0x5d4] sm:$0xf]
        %v2786 = vld [vmem:[%s299 + $0x5d8] sm:$0xf]
        %v2787 = vld [vmem:[%s299 + $0x5dc] sm:$0xf]
        %v2788 = vld [vmem:[%s299 + $0x5e0] sm:$0xf]
        %v2789 = vld [vmem:[%s299 + $0x5e4] sm:$0xf]
        %v2790 = vld [vmem:[%s299 + $0x5e8] sm:$0xf]
        %v2791 = vld [vmem:[%s299 + $0x5ec] sm:$0xf]
        %v2792 = vld [vmem:[%s299 + $0x5f0] sm:$0xf]
        %v2793 = vld [vmem:[%s299 + $0x5f4] sm:$0xf]
        %v2794 = vld [vmem:[%s299 + $0x5f8] sm:$0xf]
        %v2795 = vld [vmem:[%s299 + $0x5fc] sm:$0xf]
        %v2796 = vld [vmem:[%s299 + $0x600] sm:$0xf]
        %v2797 = vld [vmem:[%s299 + $0x604] sm:$0xf]
        %v2798 = vld [vmem:[%s299 + $0x608] sm:$0xf]
        %v2799 = vld [vmem:[%s299 + $0x60c] sm:$0xf]
        %v2800 = vld [vmem:[%s299 + $0x610] sm:$0xf]
        %v2801 = vld [vmem:[%s299 + $0x614] sm:$0xf]
        %v2802 = vld [vmem:[%s299 + $0x618] sm:$0xf]
        %v2803 = vld [vmem:[%s299 + $0x61c] sm:$0xf]
        %v2804 = vld [vmem:[%s299 + $0x620] sm:$0xf]
        %v2805 = vld [vmem:[%s299 + $0x624] sm:$0xf]
        %v2806 = vld [vmem:[%s299 + $0x628] sm:$0xf]
        %v2807 = vld [vmem:[%s299 + $0x62c] sm:$0xf]
        %v2808 = vld [vmem:[%s299 + $0x630] sm:$0xf]
        %v2809 = vld [vmem:[%s299 + $0x634] sm:$0xf]
        %v2810 = vld [vmem:[%s299 + $0x638] sm:$0xf]
        %v2811 = vld [vmem:[%s299 + $0x63c] sm:$0xf]
        %v2812 = vld [vmem:[%s299 + $0x640] sm:$0xf]
        %v2813 = vld [vmem:[%s299 + $0x644] sm:$0xf]
        %v2814 = vld [vmem:[%s299 + $0x648] sm:$0xf]
        %v2815 = vld [vmem:[%s299 + $0x64c] sm:$0xf]
        %v2816 = vld [vmem:[%s299 + $0x650] sm:$0xf]
        %v2817 = vld [vmem:[%s299 + $0x654] sm:$0xf]
        %v2818 = vld [vmem:[%s299 + $0x658] sm:$0xf]
        %v2819 = vld [vmem:[%s299 + $0x65c] sm:$0xf]
        %v2820 = vld [vmem:[%s299 + $0x660] sm:$0xf]
        %v2821 = vld [vmem:[%s299 + $0x664] sm:$0xf]
        %v2822 = vld [vmem:[%s299 + $0x668] sm:$0xf]
        %v2823 = vld [vmem:[%s299 + $0x66c] sm:$0xf]
        %v2824 = vld [vmem:[%s299 + $0x670] sm:$0xf]
        %v2825 = vld [vmem:[%s299 + $0x674] sm:$0xf]
        %v2826 = vld [vmem:[%s299 + $0x678] sm:$0xf]
        %v2827 = vld [vmem:[%s299 + $0x67c] sm:$0xf]
        %v2828 = vld [vmem:[%s299 + $0x680] sm:$0xf]
        %v2829 = vld [vmem:[%s299 + $0x684] sm:$0xf]
        %v2830 = vld [vmem:[%s299 + $0x688] sm:$0xf]
        %v2831 = vld [vmem:[%s299 + $0x68c] sm:$0xf]
        %v2832 = vld [vmem:[%s299 + $0x690] sm:$0xf]
        %v2833 = vld [vmem:[%s299 + $0x694] sm:$0xf]
        %v2834 = vld [vmem:[%s299 + $0x698] sm:$0xf]
        %v2835 = vld [vmem:[%s299 + $0x69c] sm:$0xf]
        %v2836 = vld [vmem:[%s299 + $0x6a0] sm:$0xf]
        %v2837 = vld [vmem:[%s299 + $0x6a4] sm:$0xf]
        %v2838 = vld [vmem:[%s299 + $0x6a8] sm:$0xf]
        %v2839 = vld [vmem:[%s299 + $0x6ac] sm:$0xf]
        %v2840 = vld [vmem:[%s299 + $0x6b0] sm:$0xf]
        %v2841 = vld [vmem:[%s299 + $0x6b4] sm:$0xf]
        %v2842 = vld [vmem:[%s299 + $0x6b8] sm:$0xf]
        %v2843 = vld [vmem:[%s299 + $0x6bc] sm:$0xf]
        %v2844 = vld [vmem:[%s299 + $0x6c0] sm:$0xf]
        %v2845 = vld [vmem:[%s299 + $0x6c4] sm:$0xf]
        %v2846 = vld [vmem:[%s299 + $0x6c8] sm:$0xf]
        %v2847 = vld [vmem:[%s299 + $0x6cc] sm:$0xf]
        %v2848 = vld [vmem:[%s299 + $0x6d0] sm:$0xf]
        %v2849 = vld [vmem:[%s299 + $0x6d4] sm:$0xf]
        %v2850 = vld [vmem:[%s299 + $0x6d8] sm:$0xf]
        %v2851 = vld [vmem:[%s299 + $0x6dc] sm:$0xf]
        %v2852 = vld [vmem:[%s299 + $0x6e0] sm:$0xf]
        %v2853 = vld [vmem:[%s299 + $0x6e4] sm:$0xf]
        %v2854 = vld [vmem:[%s299 + $0x6e8] sm:$0xf]
        %v2855 = vld [vmem:[%s299 + $0x6ec] sm:$0xf]
        %v2856 = vld [vmem:[%s299 + $0x6f0] sm:$0xf]
        %v2857 = vld [vmem:[%s299 + $0x6f4] sm:$0xf]
        %v2858 = vld [vmem:[%s299 + $0x6f8] sm:$0xf]
        %v2859 = vld [vmem:[%s299 + $0x6fc] sm:$0xf]
        %v2860 = vld [vmem:[%s299 + $0x700] sm:$0xf]
        %v2861 = vld [vmem:[%s299 + $0x704] sm:$0xf]
        %v2862 = vld [vmem:[%s299 + $0x708] sm:$0xf]
        %v2863 = vld [vmem:[%s299 + $0x70c] sm:$0xf]
        %v2864 = vld [vmem:[%s299 + $0x710] sm:$0xf]
        %v2865 = vld [vmem:[%s299 + $0x714] sm:$0xf]
        %v2866 = vld [vmem:[%s299 + $0x718] sm:$0xf]
        %v2867 = vld [vmem:[%s299 + $0x71c] sm:$0xf]
        %v2868 = vld [vmem:[%s299 + $0x720] sm:$0xf]
        %v2869 = vld [vmem:[%s299 + $0x724] sm:$0xf]
        %v2870 = vld [vmem:[%s299 + $0x728] sm:$0xf]
        %v2871 = vld [vmem:[%s299 + $0x72c] sm:$0xf]
        %v2872 = vld [vmem:[%s299 + $0x730] sm:$0xf]
        %v2873 = vld [vmem:[%s299 + $0x734] sm:$0xf]
        %v2874 = vld [vmem:[%s299 + $0x738] sm:$0xf]
        %v2875 = vld [vmem:[%s299 + $0x73c] sm:$0xf]
        %v2876 = vld [vmem:[%s299 + $0x740] sm:$0xf]
        %v2877 = vld [vmem:[%s299 + $0x744] sm:$0xf]
        %v2878 = vld [vmem:[%s299 + $0x748] sm:$0xf]
        %v2879 = vld [vmem:[%s299 + $0x74c] sm:$0xf]
        %v2880 = vld [vmem:[%s299 + $0x750] sm:$0xf]
        %v2881 = vld [vmem:[%s299 + $0x754] sm:$0xf]
        %v2882 = vld [vmem:[%s299 + $0x758] sm:$0xf]
        %v2883 = vld [vmem:[%s299 + $0x75c] sm:$0xf]
        %v2884 = vld [vmem:[%s299 + $0x760] sm:$0xf]
        %v2885 = vld [vmem:[%s299 + $0x764] sm:$0xf]
        %v2886 = vld [vmem:[%s299 + $0x768] sm:$0xf]
        %v2887 = vld [vmem:[%s299 + $0x76c] sm:$0xf]
        %v2888 = vld [vmem:[%s299 + $0x770] sm:$0xf]
        %v2889 = vld [vmem:[%s299 + $0x774] sm:$0xf]
        %v2890 = vld [vmem:[%s299 + $0x778] sm:$0xf]
        %v2891 = vld [vmem:[%s299 + $0x77c] sm:$0xf]
        %v2892 = vld [vmem:[%s299 + $0x780] sm:$0xf]
        %v2893 = vld [vmem:[%s299 + $0x784] sm:$0xf]
        %v2894 = vld [vmem:[%s299 + $0x788] sm:$0xf]
        %v2895 = vld [vmem:[%s299 + $0x78c] sm:$0xf]
        %v2896 = vld [vmem:[%s299 + $0x790] sm:$0xf]
        %v2897 = vld [vmem:[%s299 + $0x794] sm:$0xf]
        %v2898 = vld [vmem:[%s299 + $0x798] sm:$0xf]
        %v2899 = vld [vmem:[%s299 + $0x79c] sm:$0xf]
        %v2900 = vld [vmem:[%s299 + $0x7a0] sm:$0xf]
        %v2901 = vld [vmem:[%s299 + $0x7a4] sm:$0xf]
        %v2902 = vld [vmem:[%s299 + $0x7a8] sm:$0xf]
        %v2903 = vld [vmem:[%s299 + $0x7ac] sm:$0xf]
        %v2904 = vld [vmem:[%s299 + $0x7b0] sm:$0xf]
        %v2905 = vld [vmem:[%s299 + $0x7b4] sm:$0xf]
        %v2906 = vld [vmem:[%s299 + $0x7b8] sm:$0xf]
        %v2907 = vld [vmem:[%s299 + $0x7bc] sm:$0xf]
        %v2908 = vld [vmem:[%s299 + $0x7c0] sm:$0xf]
        %v2909 = vld [vmem:[%s299 + $0x7c4] sm:$0xf]
        %v2910 = vld [vmem:[%s299 + $0x7c8] sm:$0xf]
        %v2911 = vld [vmem:[%s299 + $0x7cc] sm:$0xf]
        %v2912 = vld [vmem:[%s299 + $0x7d0] sm:$0xf]
        %v2913 = vld [vmem:[%s299 + $0x7d4] sm:$0xf]
        %v2914 = vld [vmem:[%s299 + $0x7d8] sm:$0xf]
        %v2915 = vld [vmem:[%s299 + $0x7dc] sm:$0xf]
        %v2916 = vld [vmem:[%s299 + $0x7e0] sm:$0xf]
        %v2917 = vld [vmem:[%s299 + $0x7e4] sm:$0xf]
        %v2918 = vld [vmem:[%s299 + $0x7e8] sm:$0xf]
        %v2919 = vld [vmem:[%s299 + $0x7ec] sm:$0xf]
        %v2920 = vld [vmem:[%s299 + $0x7f0] sm:$0xf]
        %v2921 = vld [vmem:[%s299 + $0x7f4] sm:$0xf]
        %v2922 = vld [vmem:[%s299 + $0x7f8] sm:$0xf]
        %v2923 = vld [vmem:[%s299 + $0x7fc] sm:$0xf]
        %v2924 = vunpack.c.l.bf16 %v2412
        %v2925 = vunpack.c.l.bf16 %v2413
        %v2926 = vunpack.c.l.bf16 %v2414
        %v2927 = vunpack.c.l.bf16 %v2415
        %v2928 = vunpack.c.l.bf16 %v2416
        %v2929 = vunpack.c.l.bf16 %v2417
        %v2930 = vunpack.c.l.bf16 %v2418
        %v2931 = vunpack.c.l.bf16 %v2419
        %v2932 = vunpack.c.l.bf16 %v2420
        %v2933 = vunpack.c.l.bf16 %v2421
        %v2934 = vunpack.c.l.bf16 %v2422
        %v2935 = vunpack.c.l.bf16 %v2423
        %v2936 = vunpack.c.l.bf16 %v2424
        %v2937 = vunpack.c.l.bf16 %v2425
        %v2938 = vunpack.c.l.bf16 %v2426
        %v2939 = vunpack.c.l.bf16 %v2427
        %v2940 = vunpack.c.l.bf16 %v2428
        %v2941 = vunpack.c.l.bf16 %v2429
        %v2942 = vunpack.c.l.bf16 %v2430
        %v2943 = vunpack.c.l.bf16 %v2431
        %v2944 = vunpack.c.l.bf16 %v2432
        %v2945 = vunpack.c.l.bf16 %v2433
        %v2946 = vunpack.c.l.bf16 %v2434
        %v2947 = vunpack.c.l.bf16 %v2435
        %v2948 = vunpack.c.l.bf16 %v2436
        %v2949 = vunpack.c.l.bf16 %v2437
        %v2950 = vunpack.c.l.bf16 %v2438
        %v2951 = vunpack.c.l.bf16 %v2439
        %v2952 = vunpack.c.l.bf16 %v2440
        %v2953 = vunpack.c.l.bf16 %v2441
        %v2954 = vunpack.c.l.bf16 %v2442
        %v2955 = vunpack.c.l.bf16 %v2443
        %v2956 = vunpack.c.l.bf16 %v2444
        %v2957 = vunpack.c.l.bf16 %v2445
        %v2958 = vunpack.c.l.bf16 %v2446
        %v2959 = vunpack.c.l.bf16 %v2447
        %v2960 = vunpack.c.l.bf16 %v2448
        %v2961 = vunpack.c.l.bf16 %v2449
        %v2962 = vunpack.c.l.bf16 %v2450
        %v2963 = vunpack.c.l.bf16 %v2451
        %v2964 = vunpack.c.l.bf16 %v2452
        %v2965 = vunpack.c.l.bf16 %v2453
        %v2966 = vunpack.c.l.bf16 %v2454
        %v2967 = vunpack.c.l.bf16 %v2455
        %v2968 = vunpack.c.l.bf16 %v2456
        %v2969 = vunpack.c.l.bf16 %v2457
        %v2970 = vunpack.c.l.bf16 %v2458
        %v2971 = vunpack.c.l.bf16 %v2459
        %v2972 = vunpack.c.l.bf16 %v2460
        %v2973 = vunpack.c.l.bf16 %v2461
        %v2974 = vunpack.c.l.bf16 %v2462
        %v2975 = vunpack.c.l.bf16 %v2463
        %v2976 = vunpack.c.l.bf16 %v2464
        %v2977 = vunpack.c.l.bf16 %v2465
        %v2978 = vunpack.c.l.bf16 %v2466
        %v2979 = vunpack.c.l.bf16 %v2467
        %v2980 = vunpack.c.l.bf16 %v2468
        %v2981 = vunpack.c.l.bf16 %v2469
        %v2982 = vunpack.c.l.bf16 %v2470
        %v2983 = vunpack.c.l.bf16 %v2471
        %v2984 = vunpack.c.l.bf16 %v2472
        %v2985 = vunpack.c.l.bf16 %v2473
        %v2986 = vunpack.c.l.bf16 %v2474
        %v2987 = vunpack.c.l.bf16 %v2475
        %v2988 = vunpack.c.l.bf16 %v2476
        %v2989 = vunpack.c.l.bf16 %v2477
        %v2990 = vunpack.c.l.bf16 %v2478
        %v2991 = vunpack.c.l.bf16 %v2479
        %v2992 = vunpack.c.l.bf16 %v2480
        %v2993 = vunpack.c.l.bf16 %v2481
        %v2994 = vunpack.c.l.bf16 %v2482
        %v2995 = vunpack.c.l.bf16 %v2483
        %v2996 = vunpack.c.l.bf16 %v2484
        %v2997 = vunpack.c.l.bf16 %v2485
        %v2998 = vunpack.c.l.bf16 %v2486
        %v2999 = vunpack.c.l.bf16 %v2487
        %v3000 = vunpack.c.l.bf16 %v2488
        %v3001 = vunpack.c.l.bf16 %v2489
        %v3002 = vunpack.c.l.bf16 %v2490
        %v3003 = vunpack.c.l.bf16 %v2491
        %v3004 = vunpack.c.l.bf16 %v2492
        %v3005 = vunpack.c.l.bf16 %v2493
        %v3006 = vunpack.c.l.bf16 %v2494
        %v3007 = vunpack.c.l.bf16 %v2495
        %v3008 = vunpack.c.l.bf16 %v2496
        %v3009 = vunpack.c.l.bf16 %v2497
        %v3010 = vunpack.c.l.bf16 %v2498
        %v3011 = vunpack.c.l.bf16 %v2499
        %v3012 = vunpack.c.l.bf16 %v2500
        %v3013 = vunpack.c.l.bf16 %v2501
        %v3014 = vunpack.c.l.bf16 %v2502
        %v3015 = vunpack.c.l.bf16 %v2503
        %v3016 = vunpack.c.l.bf16 %v2504
        %v3017 = vunpack.c.l.bf16 %v2505
        %v3018 = vunpack.c.l.bf16 %v2506
        %v3019 = vunpack.c.l.bf16 %v2507
        %v3020 = vunpack.c.l.bf16 %v2508
        %v3021 = vunpack.c.l.bf16 %v2509
        %v3022 = vunpack.c.l.bf16 %v2510
        %v3023 = vunpack.c.l.bf16 %v2511
        %v3024 = vunpack.c.l.bf16 %v2512
        %v3025 = vunpack.c.l.bf16 %v2513
        %v3026 = vunpack.c.l.bf16 %v2514
        %v3027 = vunpack.c.l.bf16 %v2515
        %v3028 = vunpack.c.l.bf16 %v2516
        %v3029 = vunpack.c.l.bf16 %v2517
        %v3030 = vunpack.c.l.bf16 %v2518
        %v3031 = vunpack.c.l.bf16 %v2519
        %v3032 = vunpack.c.l.bf16 %v2520
        %v3033 = vunpack.c.l.bf16 %v2521
        %v3034 = vunpack.c.l.bf16 %v2522
        %v3035 = vunpack.c.l.bf16 %v2523
        %v3036 = vunpack.c.l.bf16 %v2524
        %v3037 = vunpack.c.l.bf16 %v2525
        %v3038 = vunpack.c.l.bf16 %v2526
        %v3039 = vunpack.c.l.bf16 %v2527
        %v3040 = vunpack.c.l.bf16 %v2528
        %v3041 = vunpack.c.l.bf16 %v2529
        %v3042 = vunpack.c.l.bf16 %v2530
        %v3043 = vunpack.c.l.bf16 %v2531
        %v3044 = vunpack.c.l.bf16 %v2532
        %v3045 = vunpack.c.l.bf16 %v2533
        %v3046 = vunpack.c.l.bf16 %v2534
        %v3047 = vunpack.c.l.bf16 %v2535
        %v3048 = vunpack.c.l.bf16 %v2536
        %v3049 = vunpack.c.l.bf16 %v2537
        %v3050 = vunpack.c.l.bf16 %v2538
        %v3051 = vunpack.c.l.bf16 %v2539
        %v3052 = vunpack.c.l.bf16 %v2540
        %v3053 = vunpack.c.l.bf16 %v2541
        %v3054 = vunpack.c.l.bf16 %v2542
        %v3055 = vunpack.c.l.bf16 %v2543
        %v3056 = vunpack.c.l.bf16 %v2544
        %v3057 = vunpack.c.l.bf16 %v2545
        %v3058 = vunpack.c.l.bf16 %v2546
        %v3059 = vunpack.c.l.bf16 %v2547
        %v3060 = vunpack.c.l.bf16 %v2548
        %v3061 = vunpack.c.l.bf16 %v2549
        %v3062 = vunpack.c.l.bf16 %v2550
        %v3063 = vunpack.c.l.bf16 %v2551
        %v3064 = vunpack.c.l.bf16 %v2552
        %v3065 = vunpack.c.l.bf16 %v2553
        %v3066 = vunpack.c.l.bf16 %v2554
        %v3067 = vunpack.c.l.bf16 %v2555
        %v3068 = vunpack.c.l.bf16 %v2556
        %v3069 = vunpack.c.l.bf16 %v2557
        %v3070 = vunpack.c.l.bf16 %v2558
        %v3071 = vunpack.c.l.bf16 %v2559
        %v3072 = vunpack.c.l.bf16 %v2560
        %v3073 = vunpack.c.l.bf16 %v2561
        %v3074 = vunpack.c.l.bf16 %v2562
        %v3075 = vunpack.c.l.bf16 %v2563
        %v3076 = vunpack.c.l.bf16 %v2564
        %v3077 = vunpack.c.l.bf16 %v2565
        %v3078 = vunpack.c.l.bf16 %v2566
        %v3079 = vunpack.c.l.bf16 %v2567
        %v3080 = vunpack.c.l.bf16 %v2568
        %v3081 = vunpack.c.l.bf16 %v2569
        %v3082 = vunpack.c.l.bf16 %v2570
        %v3083 = vunpack.c.l.bf16 %v2571
        %v3084 = vunpack.c.l.bf16 %v2572
        %v3085 = vunpack.c.l.bf16 %v2573
        %v3086 = vunpack.c.l.bf16 %v2574
        %v3087 = vunpack.c.l.bf16 %v2575
        %v3088 = vunpack.c.l.bf16 %v2576
        %v3089 = vunpack.c.l.bf16 %v2577
        %v3090 = vunpack.c.l.bf16 %v2578
        %v3091 = vunpack.c.l.bf16 %v2579
        %v3092 = vunpack.c.l.bf16 %v2580
        %v3093 = vunpack.c.l.bf16 %v2581
        %v3094 = vunpack.c.l.bf16 %v2582
        %v3095 = vunpack.c.l.bf16 %v2583
        %v3096 = vunpack.c.l.bf16 %v2584
        %v3097 = vunpack.c.l.bf16 %v2585
        %v3098 = vunpack.c.l.bf16 %v2586
        %v3099 = vunpack.c.l.bf16 %v2587
        %v3100 = vunpack.c.l.bf16 %v2588
        %v3101 = vunpack.c.l.bf16 %v2589
        %v3102 = vunpack.c.l.bf16 %v2590
        %v3103 = vunpack.c.l.bf16 %v2591
        %v3104 = vunpack.c.l.bf16 %v2592
        %v3105 = vunpack.c.l.bf16 %v2593
        %v3106 = vunpack.c.l.bf16 %v2594
        %v3107 = vunpack.c.l.bf16 %v2595
        %v3108 = vunpack.c.l.bf16 %v2596
        %v3109 = vunpack.c.l.bf16 %v2597
        %v3110 = vunpack.c.l.bf16 %v2598
        %v3111 = vunpack.c.l.bf16 %v2599
        %v3112 = vunpack.c.l.bf16 %v2600
        %v3113 = vunpack.c.l.bf16 %v2601
        %v3114 = vunpack.c.l.bf16 %v2602
        %v3115 = vunpack.c.l.bf16 %v2603
        %v3116 = vunpack.c.l.bf16 %v2604
        %v3117 = vunpack.c.l.bf16 %v2605
        %v3118 = vunpack.c.l.bf16 %v2606
        %v3119 = vunpack.c.l.bf16 %v2607
        %v3120 = vunpack.c.l.bf16 %v2608
        %v3121 = vunpack.c.l.bf16 %v2609
        %v3122 = vunpack.c.l.bf16 %v2610
        %v3123 = vunpack.c.l.bf16 %v2611
        %v3124 = vunpack.c.l.bf16 %v2612
        %v3125 = vunpack.c.l.bf16 %v2613
        %v3126 = vunpack.c.l.bf16 %v2614
        %v3127 = vunpack.c.l.bf16 %v2615
        %v3128 = vunpack.c.l.bf16 %v2616
        %v3129 = vunpack.c.l.bf16 %v2617
        %v3130 = vunpack.c.l.bf16 %v2618
        %v3131 = vunpack.c.l.bf16 %v2619
        %v3132 = vunpack.c.l.bf16 %v2620
        %v3133 = vunpack.c.l.bf16 %v2621
        %v3134 = vunpack.c.l.bf16 %v2622
        %v3135 = vunpack.c.l.bf16 %v2623
        %v3136 = vunpack.c.l.bf16 %v2624
        %v3137 = vunpack.c.l.bf16 %v2625
        %v3138 = vunpack.c.l.bf16 %v2626
        %v3139 = vunpack.c.l.bf16 %v2627
        %v3140 = vunpack.c.l.bf16 %v2628
        %v3141 = vunpack.c.l.bf16 %v2629
        %v3142 = vunpack.c.l.bf16 %v2630
        %v3143 = vunpack.c.l.bf16 %v2631
        %v3144 = vunpack.c.l.bf16 %v2632
        %v3145 = vunpack.c.l.bf16 %v2633
        %v3146 = vunpack.c.l.bf16 %v2634
        %v3147 = vunpack.c.l.bf16 %v2635
        %v3148 = vunpack.c.l.bf16 %v2636
        %v3149 = vunpack.c.l.bf16 %v2637
        %v3150 = vunpack.c.l.bf16 %v2638
        %v3151 = vunpack.c.l.bf16 %v2639
        %v3152 = vunpack.c.l.bf16 %v2640
        %v3153 = vunpack.c.l.bf16 %v2641
        %v3154 = vunpack.c.l.bf16 %v2642
        %v3155 = vunpack.c.l.bf16 %v2643
        %v3156 = vunpack.c.l.bf16 %v2644
        %v3157 = vunpack.c.l.bf16 %v2645
        %v3158 = vunpack.c.l.bf16 %v2646
        %v3159 = vunpack.c.l.bf16 %v2647
        %v3160 = vunpack.c.l.bf16 %v2648
        %v3161 = vunpack.c.l.bf16 %v2649
        %v3162 = vunpack.c.l.bf16 %v2650
        %v3163 = vunpack.c.l.bf16 %v2651
        %v3164 = vunpack.c.l.bf16 %v2652
        %v3165 = vunpack.c.l.bf16 %v2653
        %v3166 = vunpack.c.l.bf16 %v2654
        %v3167 = vunpack.c.l.bf16 %v2655
        %v3168 = vunpack.c.l.bf16 %v2656
        %v3169 = vunpack.c.l.bf16 %v2657
        %v3170 = vunpack.c.l.bf16 %v2658
        %v3171 = vunpack.c.l.bf16 %v2659
        %v3172 = vunpack.c.l.bf16 %v2660
        %v3173 = vunpack.c.l.bf16 %v2661
        %v3174 = vunpack.c.l.bf16 %v2662
        %v3175 = vunpack.c.l.bf16 %v2663
        %v3176 = vunpack.c.l.bf16 %v2664
        %v3177 = vunpack.c.l.bf16 %v2665
        %v3178 = vunpack.c.l.bf16 %v2666
        %v3179 = vunpack.c.l.bf16 %v2667
        %v3180 = vunpack.c.l.bf16 %v2668
        %v3181 = vunpack.c.l.bf16 %v2669
        %v3182 = vunpack.c.l.bf16 %v2670
        %v3183 = vunpack.c.l.bf16 %v2671
        %v3184 = vunpack.c.l.bf16 %v2672
        %v3185 = vunpack.c.l.bf16 %v2673
        %v3186 = vunpack.c.l.bf16 %v2674
        %v3187 = vunpack.c.l.bf16 %v2675
        %v3188 = vunpack.c.l.bf16 %v2676
        %v3189 = vunpack.c.l.bf16 %v2677
        %v3190 = vunpack.c.l.bf16 %v2678
        %v3191 = vunpack.c.l.bf16 %v2679
        %v3192 = vunpack.c.l.bf16 %v2680
        %v3193 = vunpack.c.l.bf16 %v2681
        %v3194 = vunpack.c.l.bf16 %v2682
        %v3195 = vunpack.c.l.bf16 %v2683
        %v3196 = vunpack.c.l.bf16 %v2684
        %v3197 = vunpack.c.l.bf16 %v2685
        %v3198 = vunpack.c.l.bf16 %v2686
        %v3199 = vunpack.c.l.bf16 %v2687
        %v3200 = vunpack.c.l.bf16 %v2688
        %v3201 = vunpack.c.l.bf16 %v2689
        %v3202 = vunpack.c.l.bf16 %v2690
        %v3203 = vunpack.c.l.bf16 %v2691
        %v3204 = vunpack.c.l.bf16 %v2692
        %v3205 = vunpack.c.l.bf16 %v2693
        %v3206 = vunpack.c.l.bf16 %v2694
        %v3207 = vunpack.c.l.bf16 %v2695
        %v3208 = vunpack.c.l.bf16 %v2696
        %v3209 = vunpack.c.l.bf16 %v2697
        %v3210 = vunpack.c.l.bf16 %v2698
        %v3211 = vunpack.c.l.bf16 %v2699
        %v3212 = vunpack.c.l.bf16 %v2700
        %v3213 = vunpack.c.l.bf16 %v2701
        %v3214 = vunpack.c.l.bf16 %v2702
        %v3215 = vunpack.c.l.bf16 %v2703
        %v3216 = vunpack.c.l.bf16 %v2704
        %v3217 = vunpack.c.l.bf16 %v2705
        %v3218 = vunpack.c.l.bf16 %v2706
        %v3219 = vunpack.c.l.bf16 %v2707
        %v3220 = vunpack.c.l.bf16 %v2708
        %v3221 = vunpack.c.l.bf16 %v2709
        %v3222 = vunpack.c.l.bf16 %v2710
        %v3223 = vunpack.c.l.bf16 %v2711
        %v3224 = vunpack.c.l.bf16 %v2712
        %v3225 = vunpack.c.l.bf16 %v2713
        %v3226 = vunpack.c.l.bf16 %v2714
        %v3227 = vunpack.c.l.bf16 %v2715
        %v3228 = vunpack.c.l.bf16 %v2716
        %v3229 = vunpack.c.l.bf16 %v2717
        %v3230 = vunpack.c.l.bf16 %v2718
        %v3231 = vunpack.c.l.bf16 %v2719
        %v3232 = vunpack.c.l.bf16 %v2720
        %v3233 = vunpack.c.l.bf16 %v2721
        %v3234 = vunpack.c.l.bf16 %v2722
        %v3235 = vunpack.c.l.bf16 %v2723
        %v3236 = vunpack.c.l.bf16 %v2724
        %v3237 = vunpack.c.l.bf16 %v2725
        %v3238 = vunpack.c.l.bf16 %v2726
        %v3239 = vunpack.c.l.bf16 %v2727
        %v3240 = vunpack.c.l.bf16 %v2728
        %v3241 = vunpack.c.l.bf16 %v2729
        %v3242 = vunpack.c.l.bf16 %v2730
        %v3243 = vunpack.c.l.bf16 %v2731
        %v3244 = vunpack.c.l.bf16 %v2732
        %v3245 = vunpack.c.l.bf16 %v2733
        %v3246 = vunpack.c.l.bf16 %v2734
        %v3247 = vunpack.c.l.bf16 %v2735
        %v3248 = vunpack.c.l.bf16 %v2736
        %v3249 = vunpack.c.l.bf16 %v2737
        %v3250 = vunpack.c.l.bf16 %v2738
        %v3251 = vunpack.c.l.bf16 %v2739
        %v3252 = vunpack.c.l.bf16 %v2740
        %v3253 = vunpack.c.l.bf16 %v2741
        %v3254 = vunpack.c.l.bf16 %v2742
        %v3255 = vunpack.c.l.bf16 %v2743
        %v3256 = vunpack.c.l.bf16 %v2744
        %v3257 = vunpack.c.l.bf16 %v2745
        %v3258 = vunpack.c.l.bf16 %v2746
        %v3259 = vunpack.c.l.bf16 %v2747
        %v3260 = vunpack.c.l.bf16 %v2748
        %v3261 = vunpack.c.l.bf16 %v2749
        %v3262 = vunpack.c.l.bf16 %v2750
        %v3263 = vunpack.c.l.bf16 %v2751
        %v3264 = vunpack.c.l.bf16 %v2752
        %v3265 = vunpack.c.l.bf16 %v2753
        %v3266 = vunpack.c.l.bf16 %v2754
        %v3267 = vunpack.c.l.bf16 %v2755
        %v3268 = vunpack.c.l.bf16 %v2756
        %v3269 = vunpack.c.l.bf16 %v2757
        %v3270 = vunpack.c.l.bf16 %v2758
        %v3271 = vunpack.c.l.bf16 %v2759
        %v3272 = vunpack.c.l.bf16 %v2760
        %v3273 = vunpack.c.l.bf16 %v2761
        %v3274 = vunpack.c.l.bf16 %v2762
        %v3275 = vunpack.c.l.bf16 %v2763
        %v3276 = vunpack.c.l.bf16 %v2764
        %v3277 = vunpack.c.l.bf16 %v2765
        %v3278 = vunpack.c.l.bf16 %v2766
        %v3279 = vunpack.c.l.bf16 %v2767
        %v3280 = vunpack.c.l.bf16 %v2768
        %v3281 = vunpack.c.l.bf16 %v2769
        %v3282 = vunpack.c.l.bf16 %v2770
        %v3283 = vunpack.c.l.bf16 %v2771
        %v3284 = vunpack.c.l.bf16 %v2772
        %v3285 = vunpack.c.l.bf16 %v2773
        %v3286 = vunpack.c.l.bf16 %v2774
        %v3287 = vunpack.c.l.bf16 %v2775
        %v3288 = vunpack.c.l.bf16 %v2776
        %v3289 = vunpack.c.l.bf16 %v2777
        %v3290 = vunpack.c.l.bf16 %v2778
        %v3291 = vunpack.c.l.bf16 %v2779
        %v3292 = vunpack.c.l.bf16 %v2780
        %v3293 = vunpack.c.l.bf16 %v2781
        %v3294 = vunpack.c.l.bf16 %v2782
        %v3295 = vunpack.c.l.bf16 %v2783
        %v3296 = vunpack.c.l.bf16 %v2784
        %v3297 = vunpack.c.l.bf16 %v2785
        %v3298 = vunpack.c.l.bf16 %v2786
        %v3299 = vunpack.c.l.bf16 %v2787
        %v3300 = vunpack.c.l.bf16 %v2788
        %v3301 = vunpack.c.l.bf16 %v2789
        %v3302 = vunpack.c.l.bf16 %v2790
        %v3303 = vunpack.c.l.bf16 %v2791
        %v3304 = vunpack.c.l.bf16 %v2792
        %v3305 = vunpack.c.l.bf16 %v2793
        %v3306 = vunpack.c.l.bf16 %v2794
        %v3307 = vunpack.c.l.bf16 %v2795
        %v3308 = vunpack.c.l.bf16 %v2796
        %v3309 = vunpack.c.l.bf16 %v2797
        %v3310 = vunpack.c.l.bf16 %v2798
        %v3311 = vunpack.c.l.bf16 %v2799
        %v3312 = vunpack.c.l.bf16 %v2800
        %v3313 = vunpack.c.l.bf16 %v2801
        %v3314 = vunpack.c.l.bf16 %v2802
        %v3315 = vunpack.c.l.bf16 %v2803
        %v3316 = vunpack.c.l.bf16 %v2804
        %v3317 = vunpack.c.l.bf16 %v2805
        %v3318 = vunpack.c.l.bf16 %v2806
        %v3319 = vunpack.c.l.bf16 %v2807
        %v3320 = vunpack.c.l.bf16 %v2808
        %v3321 = vunpack.c.l.bf16 %v2809
        %v3322 = vunpack.c.l.bf16 %v2810
        %v3323 = vunpack.c.l.bf16 %v2811
        %v3324 = vunpack.c.l.bf16 %v2812
        %v3325 = vunpack.c.l.bf16 %v2813
        %v3326 = vunpack.c.l.bf16 %v2814
        %v3327 = vunpack.c.l.bf16 %v2815
        %v3328 = vunpack.c.l.bf16 %v2816
        %v3329 = vunpack.c.l.bf16 %v2817
        %v3330 = vunpack.c.l.bf16 %v2818
        %v3331 = vunpack.c.l.bf16 %v2819
        %v3332 = vunpack.c.l.bf16 %v2820
        %v3333 = vunpack.c.l.bf16 %v2821
        %v3334 = vunpack.c.l.bf16 %v2822
        %v3335 = vunpack.c.l.bf16 %v2823
        %v3336 = vunpack.c.l.bf16 %v2824
        %v3337 = vunpack.c.l.bf16 %v2825
        %v3338 = vunpack.c.l.bf16 %v2826
        %v3339 = vunpack.c.l.bf16 %v2827
        %v3340 = vunpack.c.l.bf16 %v2828
        %v3341 = vunpack.c.l.bf16 %v2829
        %v3342 = vunpack.c.l.bf16 %v2830
        %v3343 = vunpack.c.l.bf16 %v2831
        %v3344 = vunpack.c.l.bf16 %v2832
        %v3345 = vunpack.c.l.bf16 %v2833
        %v3346 = vunpack.c.l.bf16 %v2834
        %v3347 = vunpack.c.l.bf16 %v2835
        %v3348 = vunpack.c.l.bf16 %v2836
        %v3349 = vunpack.c.l.bf16 %v2837
        %v3350 = vunpack.c.l.bf16 %v2838
        %v3351 = vunpack.c.l.bf16 %v2839
        %v3352 = vunpack.c.l.bf16 %v2840
        %v3353 = vunpack.c.l.bf16 %v2841
        %v3354 = vunpack.c.l.bf16 %v2842
        %v3355 = vunpack.c.l.bf16 %v2843
        %v3356 = vunpack.c.l.bf16 %v2844
        %v3357 = vunpack.c.l.bf16 %v2845
        %v3358 = vunpack.c.l.bf16 %v2846
        %v3359 = vunpack.c.l.bf16 %v2847
        %v3360 = vunpack.c.l.bf16 %v2848
        %v3361 = vunpack.c.l.bf16 %v2849
        %v3362 = vunpack.c.l.bf16 %v2850
        %v3363 = vunpack.c.l.bf16 %v2851
        %v3364 = vunpack.c.l.bf16 %v2852
        %v3365 = vunpack.c.l.bf16 %v2853
        %v3366 = vunpack.c.l.bf16 %v2854
        %v3367 = vunpack.c.l.bf16 %v2855
        %v3368 = vunpack.c.l.bf16 %v2856
        %v3369 = vunpack.c.l.bf16 %v2857
        %v3370 = vunpack.c.l.bf16 %v2858
        %v3371 = vunpack.c.l.bf16 %v2859
        %v3372 = vunpack.c.l.bf16 %v2860
        %v3373 = vunpack.c.l.bf16 %v2861
        %v3374 = vunpack.c.l.bf16 %v2862
        %v3375 = vunpack.c.l.bf16 %v2863
        %v3376 = vunpack.c.l.bf16 %v2864
        %v3377 = vunpack.c.l.bf16 %v2865
        %v3378 = vunpack.c.l.bf16 %v2866
        %v3379 = vunpack.c.l.bf16 %v2867
        %v3380 = vunpack.c.l.bf16 %v2868
        %v3381 = vunpack.c.l.bf16 %v2869
        %v3382 = vunpack.c.l.bf16 %v2870
        %v3383 = vunpack.c.l.bf16 %v2871
        %v3384 = vunpack.c.l.bf16 %v2872
        %v3385 = vunpack.c.l.bf16 %v2873
        %v3386 = vunpack.c.l.bf16 %v2874
        %v3387 = vunpack.c.l.bf16 %v2875
        %v3388 = vunpack.c.l.bf16 %v2876
        %v3389 = vunpack.c.l.bf16 %v2877
        %v3390 = vunpack.c.l.bf16 %v2878
        %v3391 = vunpack.c.l.bf16 %v2879
        %v3392 = vunpack.c.l.bf16 %v2880
        %v3393 = vunpack.c.l.bf16 %v2881
        %v3394 = vunpack.c.l.bf16 %v2882
        %v3395 = vunpack.c.l.bf16 %v2883
        %v3396 = vunpack.c.l.bf16 %v2884
        %v3397 = vunpack.c.l.bf16 %v2885
        %v3398 = vunpack.c.l.bf16 %v2886
        %v3399 = vunpack.c.l.bf16 %v2887
        %v3400 = vunpack.c.l.bf16 %v2888
        %v3401 = vunpack.c.l.bf16 %v2889
        %v3402 = vunpack.c.l.bf16 %v2890
        %v3403 = vunpack.c.l.bf16 %v2891
        %v3404 = vunpack.c.l.bf16 %v2892
        %v3405 = vunpack.c.l.bf16 %v2893
        %v3406 = vunpack.c.l.bf16 %v2894
        %v3407 = vunpack.c.l.bf16 %v2895
        %v3408 = vunpack.c.l.bf16 %v2896
        %v3409 = vunpack.c.l.bf16 %v2897
        %v3410 = vunpack.c.l.bf16 %v2898
        %v3411 = vunpack.c.l.bf16 %v2899
        %v3412 = vunpack.c.l.bf16 %v2900
        %v3413 = vunpack.c.l.bf16 %v2901
        %v3414 = vunpack.c.l.bf16 %v2902
        %v3415 = vunpack.c.l.bf16 %v2903
        %v3416 = vunpack.c.l.bf16 %v2904
        %v3417 = vunpack.c.l.bf16 %v2905
        %v3418 = vunpack.c.l.bf16 %v2906
        %v3419 = vunpack.c.l.bf16 %v2907
        %v3420 = vunpack.c.l.bf16 %v2908
        %v3421 = vunpack.c.l.bf16 %v2909
        %v3422 = vunpack.c.l.bf16 %v2910
        %v3423 = vunpack.c.l.bf16 %v2911
        %v3424 = vunpack.c.l.bf16 %v2912
        %v3425 = vunpack.c.l.bf16 %v2913
        %v3426 = vunpack.c.l.bf16 %v2914
        %v3427 = vunpack.c.l.bf16 %v2915
        %v3428 = vunpack.c.l.bf16 %v2916
        %v3429 = vunpack.c.l.bf16 %v2917
        %v3430 = vunpack.c.l.bf16 %v2918
        %v3431 = vunpack.c.l.bf16 %v2919
        %v3432 = vunpack.c.l.bf16 %v2920
        %v3433 = vunpack.c.l.bf16 %v2921
        %v3434 = vunpack.c.l.bf16 %v2922
        %v3435 = vunpack.c.l.bf16 %v2923
        %v3436 = vmul.f32 %v1900, %v2924
        %v3437 = vmul.f32 %v1901, %v2925
        %v3438 = vmul.f32 %v1902, %v2926
        %v3439 = vmul.f32 %v1903, %v2927
        %v3440 = vmul.f32 %v1904, %v2928
        %v3441 = vmul.f32 %v1905, %v2929
        %v3442 = vmul.f32 %v1906, %v2930
        %v3443 = vmul.f32 %v1907, %v2931
        %v3444 = vmul.f32 %v1908, %v2932
        %v3445 = vmul.f32 %v1909, %v2933
        %v3446 = vmul.f32 %v1910, %v2934
        %v3447 = vmul.f32 %v1911, %v2935
        %v3448 = vmul.f32 %v1912, %v2936
        %v3449 = vmul.f32 %v1913, %v2937
        %v3450 = vmul.f32 %v1914, %v2938
        %v3451 = vmul.f32 %v1915, %v2939
        %v3452 = vmul.f32 %v1916, %v2940
        %v3453 = vmul.f32 %v1917, %v2941
        %v3454 = vmul.f32 %v1918, %v2942
        %v3455 = vmul.f32 %v1919, %v2943
        %v3456 = vmul.f32 %v1920, %v2944
        %v3457 = vmul.f32 %v1921, %v2945
        %v3458 = vmul.f32 %v1922, %v2946
        %v3459 = vmul.f32 %v1923, %v2947
        %v3460 = vmul.f32 %v1924, %v2948
        %v3461 = vmul.f32 %v1925, %v2949
        %v3462 = vmul.f32 %v1926, %v2950
        %v3463 = vmul.f32 %v1927, %v2951
        %v3464 = vmul.f32 %v1928, %v2952
        %v3465 = vmul.f32 %v1929, %v2953
        %v3466 = vmul.f32 %v1930, %v2954
        %v3467 = vmul.f32 %v1931, %v2955
        %v3468 = vmul.f32 %v1932, %v2956
        %v3469 = vmul.f32 %v1933, %v2957
        %v3470 = vmul.f32 %v1934, %v2958
        %v3471 = vmul.f32 %v1935, %v2959
        %v3472 = vmul.f32 %v1936, %v2960
        %v3473 = vmul.f32 %v1937, %v2961
        %v3474 = vmul.f32 %v1938, %v2962
        %v3475 = vmul.f32 %v1939, %v2963
        %v3476 = vmul.f32 %v1940, %v2964
        %v3477 = vmul.f32 %v1941, %v2965
        %v3478 = vmul.f32 %v1942, %v2966
        %v3479 = vmul.f32 %v1943, %v2967
        %v3480 = vmul.f32 %v1944, %v2968
        %v3481 = vmul.f32 %v1945, %v2969
        %v3482 = vmul.f32 %v1946, %v2970
        %v3483 = vmul.f32 %v1947, %v2971
        %v3484 = vmul.f32 %v1948, %v2972
        %v3485 = vmul.f32 %v1949, %v2973
        %v3486 = vmul.f32 %v1950, %v2974
        %v3487 = vmul.f32 %v1951, %v2975
        %v3488 = vmul.f32 %v1952, %v2976
        %v3489 = vmul.f32 %v1953, %v2977
        %v3490 = vmul.f32 %v1954, %v2978
        %v3491 = vmul.f32 %v1955, %v2979
        %v3492 = vmul.f32 %v1956, %v2980
        %v3493 = vmul.f32 %v1957, %v2981
        %v3494 = vmul.f32 %v1958, %v2982
        %v3495 = vmul.f32 %v1959, %v2983
        %v3496 = vmul.f32 %v1960, %v2984
        %v3497 = vmul.f32 %v1961, %v2985
        %v3498 = vmul.f32 %v1962, %v2986
        %v3499 = vmul.f32 %v1963, %v2987
        %v3500 = vmul.f32 %v1964, %v2988
        %v3501 = vmul.f32 %v1965, %v2989
        %v3502 = vmul.f32 %v1966, %v2990
        %v3503 = vmul.f32 %v1967, %v2991
        %v3504 = vmul.f32 %v1968, %v2992
        %v3505 = vmul.f32 %v1969, %v2993
        %v3506 = vmul.f32 %v1970, %v2994
        %v3507 = vmul.f32 %v1971, %v2995
        %v3508 = vmul.f32 %v1972, %v2996
        %v3509 = vmul.f32 %v1973, %v2997
        %v3510 = vmul.f32 %v1974, %v2998
        %v3511 = vmul.f32 %v1975, %v2999
        %v3512 = vmul.f32 %v1976, %v3000
        %v3513 = vmul.f32 %v1977, %v3001
        %v3514 = vmul.f32 %v1978, %v3002
        %v3515 = vmul.f32 %v1979, %v3003
        %v3516 = vmul.f32 %v1980, %v3004
        %v3517 = vmul.f32 %v1981, %v3005
        %v3518 = vmul.f32 %v1982, %v3006
        %v3519 = vmul.f32 %v1983, %v3007
        %v3520 = vmul.f32 %v1984, %v3008
        %v3521 = vmul.f32 %v1985, %v3009
        %v3522 = vmul.f32 %v1986, %v3010
        %v3523 = vmul.f32 %v1987, %v3011
        %v3524 = vmul.f32 %v1988, %v3012
        %v3525 = vmul.f32 %v1989, %v3013
        %v3526 = vmul.f32 %v1990, %v3014
        %v3527 = vmul.f32 %v1991, %v3015
        %v3528 = vmul.f32 %v1992, %v3016
        %v3529 = vmul.f32 %v1993, %v3017
        %v3530 = vmul.f32 %v1994, %v3018
        %v3531 = vmul.f32 %v1995, %v3019
        %v3532 = vmul.f32 %v1996, %v3020
        %v3533 = vmul.f32 %v1997, %v3021
        %v3534 = vmul.f32 %v1998, %v3022
        %v3535 = vmul.f32 %v1999, %v3023
        %v3536 = vmul.f32 %v2000, %v3024
        %v3537 = vmul.f32 %v2001, %v3025
        %v3538 = vmul.f32 %v2002, %v3026
        %v3539 = vmul.f32 %v2003, %v3027
        %v3540 = vmul.f32 %v2004, %v3028
        %v3541 = vmul.f32 %v2005, %v3029
        %v3542 = vmul.f32 %v2006, %v3030
        %v3543 = vmul.f32 %v2007, %v3031
        %v3544 = vmul.f32 %v2008, %v3032
        %v3545 = vmul.f32 %v2009, %v3033
        %v3546 = vmul.f32 %v2010, %v3034
        %v3547 = vmul.f32 %v2011, %v3035
        %v3548 = vmul.f32 %v2012, %v3036
        %v3549 = vmul.f32 %v2013, %v3037
        %v3550 = vmul.f32 %v2014, %v3038
        %v3551 = vmul.f32 %v2015, %v3039
        %v3552 = vmul.f32 %v2016, %v3040
        %v3553 = vmul.f32 %v2017, %v3041
        %v3554 = vmul.f32 %v2018, %v3042
        %v3555 = vmul.f32 %v2019, %v3043
        %v3556 = vmul.f32 %v2020, %v3044
        %v3557 = vmul.f32 %v2021, %v3045
        %v3558 = vmul.f32 %v2022, %v3046
        %v3559 = vmul.f32 %v2023, %v3047
        %v3560 = vmul.f32 %v2024, %v3048
        %v3561 = vmul.f32 %v2025, %v3049
        %v3562 = vmul.f32 %v2026, %v3050
        %v3563 = vmul.f32 %v2027, %v3051
        %v3564 = vmul.f32 %v2028, %v3052
        %v3565 = vmul.f32 %v2029, %v3053
        %v3566 = vmul.f32 %v2030, %v3054
        %v3567 = vmul.f32 %v2031, %v3055
        %v3568 = vmul.f32 %v2032, %v3056
        %v3569 = vmul.f32 %v2033, %v3057
        %v3570 = vmul.f32 %v2034, %v3058
        %v3571 = vmul.f32 %v2035, %v3059
        %v3572 = vmul.f32 %v2036, %v3060
        %v3573 = vmul.f32 %v2037, %v3061
        %v3574 = vmul.f32 %v2038, %v3062
        %v3575 = vmul.f32 %v2039, %v3063
        %v3576 = vmul.f32 %v2040, %v3064
        %v3577 = vmul.f32 %v2041, %v3065
        %v3578 = vmul.f32 %v2042, %v3066
        %v3579 = vmul.f32 %v2043, %v3067
        %v3580 = vmul.f32 %v2044, %v3068
        %v3581 = vmul.f32 %v2045, %v3069
        %v3582 = vmul.f32 %v2046, %v3070
        %v3583 = vmul.f32 %v2047, %v3071
        %v3584 = vmul.f32 %v2048, %v3072
        %v3585 = vmul.f32 %v2049, %v3073
        %v3586 = vmul.f32 %v2050, %v3074
        %v3587 = vmul.f32 %v2051, %v3075
        %v3588 = vmul.f32 %v2052, %v3076
        %v3589 = vmul.f32 %v2053, %v3077
        %v3590 = vmul.f32 %v2054, %v3078
        %v3591 = vmul.f32 %v2055, %v3079
        %v3592 = vmul.f32 %v2056, %v3080
        %v3593 = vmul.f32 %v2057, %v3081
        %v3594 = vmul.f32 %v2058, %v3082
        %v3595 = vmul.f32 %v2059, %v3083
        %v3596 = vmul.f32 %v2060, %v3084
        %v3597 = vmul.f32 %v2061, %v3085
        %v3598 = vmul.f32 %v2062, %v3086
        %v3599 = vmul.f32 %v2063, %v3087
        %v3600 = vmul.f32 %v2064, %v3088
        %v3601 = vmul.f32 %v2065, %v3089
        %v3602 = vmul.f32 %v2066, %v3090
        %v3603 = vmul.f32 %v2067, %v3091
        %v3604 = vmul.f32 %v2068, %v3092
        %v3605 = vmul.f32 %v2069, %v3093
        %v3606 = vmul.f32 %v2070, %v3094
        %v3607 = vmul.f32 %v2071, %v3095
        %v3608 = vmul.f32 %v2072, %v3096
        %v3609 = vmul.f32 %v2073, %v3097
        %v3610 = vmul.f32 %v2074, %v3098
        %v3611 = vmul.f32 %v2075, %v3099
        %v3612 = vmul.f32 %v2076, %v3100
        %v3613 = vmul.f32 %v2077, %v3101
        %v3614 = vmul.f32 %v2078, %v3102
        %v3615 = vmul.f32 %v2079, %v3103
        %v3616 = vmul.f32 %v2080, %v3104
        %v3617 = vmul.f32 %v2081, %v3105
        %v3618 = vmul.f32 %v2082, %v3106
        %v3619 = vmul.f32 %v2083, %v3107
        %v3620 = vmul.f32 %v2084, %v3108
        %v3621 = vmul.f32 %v2085, %v3109
        %v3622 = vmul.f32 %v2086, %v3110
        %v3623 = vmul.f32 %v2087, %v3111
        %v3624 = vmul.f32 %v2088, %v3112
        %v3625 = vmul.f32 %v2089, %v3113
        %v3626 = vmul.f32 %v2090, %v3114
        %v3627 = vmul.f32 %v2091, %v3115
        %v3628 = vmul.f32 %v2092, %v3116
        %v3629 = vmul.f32 %v2093, %v3117
        %v3630 = vmul.f32 %v2094, %v3118
        %v3631 = vmul.f32 %v2095, %v3119
        %v3632 = vmul.f32 %v2096, %v3120
        %v3633 = vmul.f32 %v2097, %v3121
        %v3634 = vmul.f32 %v2098, %v3122
        %v3635 = vmul.f32 %v2099, %v3123
        %v3636 = vmul.f32 %v2100, %v3124
        %v3637 = vmul.f32 %v2101, %v3125
        %v3638 = vmul.f32 %v2102, %v3126
        %v3639 = vmul.f32 %v2103, %v3127
        %v3640 = vmul.f32 %v2104, %v3128
        %v3641 = vmul.f32 %v2105, %v3129
        %v3642 = vmul.f32 %v2106, %v3130
        %v3643 = vmul.f32 %v2107, %v3131
        %v3644 = vmul.f32 %v2108, %v3132
        %v3645 = vmul.f32 %v2109, %v3133
        %v3646 = vmul.f32 %v2110, %v3134
        %v3647 = vmul.f32 %v2111, %v3135
        %v3648 = vmul.f32 %v2112, %v3136
        %v3649 = vmul.f32 %v2113, %v3137
        %v3650 = vmul.f32 %v2114, %v3138
        %v3651 = vmul.f32 %v2115, %v3139
        %v3652 = vmul.f32 %v2116, %v3140
        %v3653 = vmul.f32 %v2117, %v3141
        %v3654 = vmul.f32 %v2118, %v3142
        %v3655 = vmul.f32 %v2119, %v3143
        %v3656 = vmul.f32 %v2120, %v3144
        %v3657 = vmul.f32 %v2121, %v3145
        %v3658 = vmul.f32 %v2122, %v3146
        %v3659 = vmul.f32 %v2123, %v3147
        %v3660 = vmul.f32 %v2124, %v3148
        %v3661 = vmul.f32 %v2125, %v3149
        %v3662 = vmul.f32 %v2126, %v3150
        %v3663 = vmul.f32 %v2127, %v3151
        %v3664 = vmul.f32 %v2128, %v3152
        %v3665 = vmul.f32 %v2129, %v3153
        %v3666 = vmul.f32 %v2130, %v3154
        %v3667 = vmul.f32 %v2131, %v3155
        %v3668 = vmul.f32 %v2132, %v3156
        %v3669 = vmul.f32 %v2133, %v3157
        %v3670 = vmul.f32 %v2134, %v3158
        %v3671 = vmul.f32 %v2135, %v3159
        %v3672 = vmul.f32 %v2136, %v3160
        %v3673 = vmul.f32 %v2137, %v3161
        %v3674 = vmul.f32 %v2138, %v3162
        %v3675 = vmul.f32 %v2139, %v3163
        %v3676 = vmul.f32 %v2140, %v3164
        %v3677 = vmul.f32 %v2141, %v3165
        %v3678 = vmul.f32 %v2142, %v3166
        %v3679 = vmul.f32 %v2143, %v3167
        %v3680 = vmul.f32 %v2144, %v3168
        %v3681 = vmul.f32 %v2145, %v3169
        %v3682 = vmul.f32 %v2146, %v3170
        %v3683 = vmul.f32 %v2147, %v3171
        %v3684 = vmul.f32 %v2148, %v3172
        %v3685 = vmul.f32 %v2149, %v3173
        %v3686 = vmul.f32 %v2150, %v3174
        %v3687 = vmul.f32 %v2151, %v3175
        %v3688 = vmul.f32 %v2152, %v3176
        %v3689 = vmul.f32 %v2153, %v3177
        %v3690 = vmul.f32 %v2154, %v3178
        %v3691 = vmul.f32 %v2155, %v3179
        %v3692 = vmul.f32 %v2156, %v3180
        %v3693 = vmul.f32 %v2157, %v3181
        %v3694 = vmul.f32 %v2158, %v3182
        %v3695 = vmul.f32 %v2159, %v3183
        %v3696 = vmul.f32 %v2160, %v3184
        %v3697 = vmul.f32 %v2161, %v3185
        %v3698 = vmul.f32 %v2162, %v3186
        %v3699 = vmul.f32 %v2163, %v3187
        %v3700 = vmul.f32 %v2164, %v3188
        %v3701 = vmul.f32 %v2165, %v3189
        %v3702 = vmul.f32 %v2166, %v3190
        %v3703 = vmul.f32 %v2167, %v3191
        %v3704 = vmul.f32 %v2168, %v3192
        %v3705 = vmul.f32 %v2169, %v3193
        %v3706 = vmul.f32 %v2170, %v3194
        %v3707 = vmul.f32 %v2171, %v3195
        %v3708 = vmul.f32 %v2172, %v3196
        %v3709 = vmul.f32 %v2173, %v3197
        %v3710 = vmul.f32 %v2174, %v3198
        %v3711 = vmul.f32 %v2175, %v3199
        %v3712 = vmul.f32 %v2176, %v3200
        %v3713 = vmul.f32 %v2177, %v3201
        %v3714 = vmul.f32 %v2178, %v3202
        %v3715 = vmul.f32 %v2179, %v3203
        %v3716 = vmul.f32 %v2180, %v3204
        %v3717 = vmul.f32 %v2181, %v3205
        %v3718 = vmul.f32 %v2182, %v3206
        %v3719 = vmul.f32 %v2183, %v3207
        %v3720 = vmul.f32 %v2184, %v3208
        %v3721 = vmul.f32 %v2185, %v3209
        %v3722 = vmul.f32 %v2186, %v3210
        %v3723 = vmul.f32 %v2187, %v3211
        %v3724 = vmul.f32 %v2188, %v3212
        %v3725 = vmul.f32 %v2189, %v3213
        %v3726 = vmul.f32 %v2190, %v3214
        %v3727 = vmul.f32 %v2191, %v3215
        %v3728 = vmul.f32 %v2192, %v3216
        %v3729 = vmul.f32 %v2193, %v3217
        %v3730 = vmul.f32 %v2194, %v3218
        %v3731 = vmul.f32 %v2195, %v3219
        %v3732 = vmul.f32 %v2196, %v3220
        %v3733 = vmul.f32 %v2197, %v3221
        %v3734 = vmul.f32 %v2198, %v3222
        %v3735 = vmul.f32 %v2199, %v3223
        %v3736 = vmul.f32 %v2200, %v3224
        %v3737 = vmul.f32 %v2201, %v3225
        %v3738 = vmul.f32 %v2202, %v3226
        %v3739 = vmul.f32 %v2203, %v3227
        %v3740 = vmul.f32 %v2204, %v3228
        %v3741 = vmul.f32 %v2205, %v3229
        %v3742 = vmul.f32 %v2206, %v3230
        %v3743 = vmul.f32 %v2207, %v3231
        %v3744 = vmul.f32 %v2208, %v3232
        %v3745 = vmul.f32 %v2209, %v3233
        %v3746 = vmul.f32 %v2210, %v3234
        %v3747 = vmul.f32 %v2211, %v3235
        %v3748 = vmul.f32 %v2212, %v3236
        %v3749 = vmul.f32 %v2213, %v3237
        %v3750 = vmul.f32 %v2214, %v3238
        %v3751 = vmul.f32 %v2215, %v3239
        %v3752 = vmul.f32 %v2216, %v3240
        %v3753 = vmul.f32 %v2217, %v3241
        %v3754 = vmul.f32 %v2218, %v3242
        %v3755 = vmul.f32 %v2219, %v3243
        %v3756 = vmul.f32 %v2220, %v3244
        %v3757 = vmul.f32 %v2221, %v3245
        %v3758 = vmul.f32 %v2222, %v3246
        %v3759 = vmul.f32 %v2223, %v3247
        %v3760 = vmul.f32 %v2224, %v3248
        %v3761 = vmul.f32 %v2225, %v3249
        %v3762 = vmul.f32 %v2226, %v3250
        %v3763 = vmul.f32 %v2227, %v3251
        %v3764 = vmul.f32 %v2228, %v3252
        %v3765 = vmul.f32 %v2229, %v3253
        %v3766 = vmul.f32 %v2230, %v3254
        %v3767 = vmul.f32 %v2231, %v3255
        %v3768 = vmul.f32 %v2232, %v3256
        %v3769 = vmul.f32 %v2233, %v3257
        %v3770 = vmul.f32 %v2234, %v3258
        %v3771 = vmul.f32 %v2235, %v3259
        %v3772 = vmul.f32 %v2236, %v3260
        %v3773 = vmul.f32 %v2237, %v3261
        %v3774 = vmul.f32 %v2238, %v3262
        %v3775 = vmul.f32 %v2239, %v3263
        %v3776 = vmul.f32 %v2240, %v3264
        %v3777 = vmul.f32 %v2241, %v3265
        %v3778 = vmul.f32 %v2242, %v3266
        %v3779 = vmul.f32 %v2243, %v3267
        %v3780 = vmul.f32 %v2244, %v3268
        %v3781 = vmul.f32 %v2245, %v3269
        %v3782 = vmul.f32 %v2246, %v3270
        %v3783 = vmul.f32 %v2247, %v3271
        %v3784 = vmul.f32 %v2248, %v3272
        %v3785 = vmul.f32 %v2249, %v3273
        %v3786 = vmul.f32 %v2250, %v3274
        %v3787 = vmul.f32 %v2251, %v3275
        %v3788 = vmul.f32 %v2252, %v3276
        %v3789 = vmul.f32 %v2253, %v3277
        %v3790 = vmul.f32 %v2254, %v3278
        %v3791 = vmul.f32 %v2255, %v3279
        %v3792 = vmul.f32 %v2256, %v3280
        %v3793 = vmul.f32 %v2257, %v3281
        %v3794 = vmul.f32 %v2258, %v3282
        %v3795 = vmul.f32 %v2259, %v3283
        %v3796 = vmul.f32 %v2260, %v3284
        %v3797 = vmul.f32 %v2261, %v3285
        %v3798 = vmul.f32 %v2262, %v3286
        %v3799 = vmul.f32 %v2263, %v3287
        %v3800 = vmul.f32 %v2264, %v3288
        %v3801 = vmul.f32 %v2265, %v3289
        %v3802 = vmul.f32 %v2266, %v3290
        %v3803 = vmul.f32 %v2267, %v3291
        %v3804 = vmul.f32 %v2268, %v3292
        %v3805 = vmul.f32 %v2269, %v3293
        %v3806 = vmul.f32 %v2270, %v3294
        %v3807 = vmul.f32 %v2271, %v3295
        %v3808 = vmul.f32 %v2272, %v3296
        %v3809 = vmul.f32 %v2273, %v3297
        %v3810 = vmul.f32 %v2274, %v3298
        %v3811 = vmul.f32 %v2275, %v3299
        %v3812 = vmul.f32 %v2276, %v3300
        %v3813 = vmul.f32 %v2277, %v3301
        %v3814 = vmul.f32 %v2278, %v3302
        %v3815 = vmul.f32 %v2279, %v3303
        %v3816 = vmul.f32 %v2280, %v3304
        %v3817 = vmul.f32 %v2281, %v3305
        %v3818 = vmul.f32 %v2282, %v3306
        %v3819 = vmul.f32 %v2283, %v3307
        %v3820 = vmul.f32 %v2284, %v3308
        %v3821 = vmul.f32 %v2285, %v3309
        %v3822 = vmul.f32 %v2286, %v3310
        %v3823 = vmul.f32 %v2287, %v3311
        %v3824 = vmul.f32 %v2288, %v3312
        %v3825 = vmul.f32 %v2289, %v3313
        %v3826 = vmul.f32 %v2290, %v3314
        %v3827 = vmul.f32 %v2291, %v3315
        %v3828 = vmul.f32 %v2292, %v3316
        %v3829 = vmul.f32 %v2293, %v3317
        %v3830 = vmul.f32 %v2294, %v3318
        %v3831 = vmul.f32 %v2295, %v3319
        %v3832 = vmul.f32 %v2296, %v3320
        %v3833 = vmul.f32 %v2297, %v3321
        %v3834 = vmul.f32 %v2298, %v3322
        %v3835 = vmul.f32 %v2299, %v3323
        %v3836 = vmul.f32 %v2300, %v3324
        %v3837 = vmul.f32 %v2301, %v3325
        %v3838 = vmul.f32 %v2302, %v3326
        %v3839 = vmul.f32 %v2303, %v3327
        %v3840 = vmul.f32 %v2304, %v3328
        %v3841 = vmul.f32 %v2305, %v3329
        %v3842 = vmul.f32 %v2306, %v3330
        %v3843 = vmul.f32 %v2307, %v3331
        %v3844 = vmul.f32 %v2308, %v3332
        %v3845 = vmul.f32 %v2309, %v3333
        %v3846 = vmul.f32 %v2310, %v3334
        %v3847 = vmul.f32 %v2311, %v3335
        %v3848 = vmul.f32 %v2312, %v3336
        %v3849 = vmul.f32 %v2313, %v3337
        %v3850 = vmul.f32 %v2314, %v3338
        %v3851 = vmul.f32 %v2315, %v3339
        %v3852 = vmul.f32 %v2316, %v3340
        %v3853 = vmul.f32 %v2317, %v3341
        %v3854 = vmul.f32 %v2318, %v3342
        %v3855 = vmul.f32 %v2319, %v3343
        %v3856 = vmul.f32 %v2320, %v3344
        %v3857 = vmul.f32 %v2321, %v3345
        %v3858 = vmul.f32 %v2322, %v3346
        %v3859 = vmul.f32 %v2323, %v3347
        %v3860 = vmul.f32 %v2324, %v3348
        %v3861 = vmul.f32 %v2325, %v3349
        %v3862 = vmul.f32 %v2326, %v3350
        %v3863 = vmul.f32 %v2327, %v3351
        %v3864 = vmul.f32 %v2328, %v3352
        %v3865 = vmul.f32 %v2329, %v3353
        %v3866 = vmul.f32 %v2330, %v3354
        %v3867 = vmul.f32 %v2331, %v3355
        %v3868 = vmul.f32 %v2332, %v3356
        %v3869 = vmul.f32 %v2333, %v3357
        %v3870 = vmul.f32 %v2334, %v3358
        %v3871 = vmul.f32 %v2335, %v3359
        %v3872 = vmul.f32 %v2336, %v3360
        %v3873 = vmul.f32 %v2337, %v3361
        %v3874 = vmul.f32 %v2338, %v3362
        %v3875 = vmul.f32 %v2339, %v3363
        %v3876 = vmul.f32 %v2340, %v3364
        %v3877 = vmul.f32 %v2341, %v3365
        %v3878 = vmul.f32 %v2342, %v3366
        %v3879 = vmul.f32 %v2343, %v3367
        %v3880 = vmul.f32 %v2344, %v3368
        %v3881 = vmul.f32 %v2345, %v3369
        %v3882 = vmul.f32 %v2346, %v3370
        %v3883 = vmul.f32 %v2347, %v3371
        %v3884 = vmul.f32 %v2348, %v3372
        %v3885 = vmul.f32 %v2349, %v3373
        %v3886 = vmul.f32 %v2350, %v3374
        %v3887 = vmul.f32 %v2351, %v3375
        %v3888 = vmul.f32 %v2352, %v3376
        %v3889 = vmul.f32 %v2353, %v3377
        %v3890 = vmul.f32 %v2354, %v3378
        %v3891 = vmul.f32 %v2355, %v3379
        %v3892 = vmul.f32 %v2356, %v3380
        %v3893 = vmul.f32 %v2357, %v3381
        %v3894 = vmul.f32 %v2358, %v3382
        %v3895 = vmul.f32 %v2359, %v3383
        %v3896 = vmul.f32 %v2360, %v3384
        %v3897 = vmul.f32 %v2361, %v3385
        %v3898 = vmul.f32 %v2362, %v3386
        %v3899 = vmul.f32 %v2363, %v3387
        %v3900 = vmul.f32 %v2364, %v3388
        %v3901 = vmul.f32 %v2365, %v3389
        %v3902 = vmul.f32 %v2366, %v3390
        %v3903 = vmul.f32 %v2367, %v3391
        %v3904 = vmul.f32 %v2368, %v3392
        %v3905 = vmul.f32 %v2369, %v3393
        %v3906 = vmul.f32 %v2370, %v3394
        %v3907 = vmul.f32 %v2371, %v3395
        %v3908 = vmul.f32 %v2372, %v3396
        %v3909 = vmul.f32 %v2373, %v3397
        %v3910 = vmul.f32 %v2374, %v3398
        %v3911 = vmul.f32 %v2375, %v3399
        %v3912 = vmul.f32 %v2376, %v3400
        %v3913 = vmul.f32 %v2377, %v3401
        %v3914 = vmul.f32 %v2378, %v3402
        %v3915 = vmul.f32 %v2379, %v3403
        %v3916 = vmul.f32 %v2380, %v3404
        %v3917 = vmul.f32 %v2381, %v3405
        %v3918 = vmul.f32 %v2382, %v3406
        %v3919 = vmul.f32 %v2383, %v3407
        %v3920 = vmul.f32 %v2384, %v3408
        %v3921 = vmul.f32 %v2385, %v3409
        %v3922 = vmul.f32 %v2386, %v3410
        %v3923 = vmul.f32 %v2387, %v3411
        %v3924 = vmul.f32 %v2388, %v3412
        %v3925 = vmul.f32 %v2389, %v3413
        %v3926 = vmul.f32 %v2390, %v3414
        %v3927 = vmul.f32 %v2391, %v3415
        %v3928 = vmul.f32 %v2392, %v3416
        %v3929 = vmul.f32 %v2393, %v3417
        %v3930 = vmul.f32 %v2394, %v3418
        %v3931 = vmul.f32 %v2395, %v3419
        %v3932 = vmul.f32 %v2396, %v3420
        %v3933 = vmul.f32 %v2397, %v3421
        %v3934 = vmul.f32 %v2398, %v3422
        %v3935 = vmul.f32 %v2399, %v3423
        %v3936 = vmul.f32 %v2400, %v3424
        %v3937 = vmul.f32 %v2401, %v3425
        %v3938 = vmul.f32 %v2402, %v3426
        %v3939 = vmul.f32 %v2403, %v3427
        %v3940 = vmul.f32 %v2404, %v3428
        %v3941 = vmul.f32 %v2405, %v3429
        %v3942 = vmul.f32 %v2406, %v3430
        %v3943 = vmul.f32 %v2407, %v3431
        %v3944 = vmul.f32 %v2408, %v3432
        %v3945 = vmul.f32 %v2409, %v3433
        %v3946 = vmul.f32 %v2410, %v3434
        %v3947 = vmul.f32 %v2411, %v3435
        %s3948 = smul.u32 %s27, 2
        %s3949 = sadd.s32 %s3948, %s28
        %s3950 = smul.u32 %s3949, 4096
        %v3951 = vlaneseq
        %v3952 = vshrl.u32 %v3951, 7
        %v3953 = vadd.s32 %v3952, 8
        %v3954 = vadd.s32 %v3952, 16
        %v3955 = vadd.s32 %v3952, 24
        %v3956 = vadd.s32 %v3952, 32
        %v3957 = vadd.s32 %v3952, 40
        %v3958 = vadd.s32 %v3952, 48
        %v3959 = vadd.s32 %v3952, 56
        %v3960 = vadd.s32 %v3952, 64
        %v3961 = vadd.s32 %v3952, 72
        %v3962 = vadd.s32 %v3952, 80
        %v3963 = vadd.s32 %v3952, 88
        %v3964 = vadd.s32 %v3952, 96
        %v3965 = vadd.s32 %v3952, 104
        %v3966 = vadd.s32 %v3952, 112
        %v3967 = vadd.s32 %v3952, 120
        %v3968 = vadd.s32 %v3952, 128
        %v3969 = vadd.s32 %v3952, 136
        %v3970 = vadd.s32 %v3952, 144
        %v3971 = vadd.s32 %v3952, 152
        %v3972 = vadd.s32 %v3952, 160
        %v3973 = vadd.s32 %v3952, 168
        %v3974 = vadd.s32 %v3952, 176
        %v3975 = vadd.s32 %v3952, 184
        %v3976 = vadd.s32 %v3952, 192
        %v3977 = vadd.s32 %v3952, 200
        %v3978 = vadd.s32 %v3952, 208
        %v3979 = vadd.s32 %v3952, 216
        %v3980 = vadd.s32 %v3952, 224
        %v3981 = vadd.s32 %v3952, 232
        %v3982 = vadd.s32 %v3952, 240
        %v3983 = vadd.s32 %v3952, 248
        %v3984 = vadd.s32 %v3952, 256
        %v3985 = vadd.s32 %v3952, 264
        %v3986 = vadd.s32 %v3952, 272
        %v3987 = vadd.s32 %v3952, 280
        %v3988 = vadd.s32 %v3952, 288
        %v3989 = vadd.s32 %v3952, 296
        %v3990 = vadd.s32 %v3952, 304
        %v3991 = vadd.s32 %v3952, 312
        %v3992 = vadd.s32 %v3952, 320
        %v3993 = vadd.s32 %v3952, 328
        %v3994 = vadd.s32 %v3952, 336
        %v3995 = vadd.s32 %v3952, 344
        %v3996 = vadd.s32 %v3952, 352
        %v3997 = vadd.s32 %v3952, 360
        %v3998 = vadd.s32 %v3952, 368
        %v3999 = vadd.s32 %v3952, 376
        %v4000 = vadd.s32 %v3952, 384
        %v4001 = vadd.s32 %v3952, 392
        %v4002 = vadd.s32 %v3952, 400
        %v4003 = vadd.s32 %v3952, 408
        %v4004 = vadd.s32 %v3952, 416
        %v4005 = vadd.s32 %v3952, 424
        %v4006 = vadd.s32 %v3952, 432
        %v4007 = vadd.s32 %v3952, 440
        %v4008 = vadd.s32 %v3952, 448
        %v4009 = vadd.s32 %v3952, 456
        %v4010 = vadd.s32 %v3952, 464
        %v4011 = vadd.s32 %v3952, 472
        %v4012 = vadd.s32 %v3952, 480
        %v4013 = vadd.s32 %v3952, 488
        %v4014 = vadd.s32 %v3952, 496
        %v4015 = vadd.s32 %v3952, 504
        %v4016 = vadd.s32 %v3952, 512
        %v4017 = vadd.s32 %v3952, 520
        %v4018 = vadd.s32 %v3952, 528
        %v4019 = vadd.s32 %v3952, 536
        %v4020 = vadd.s32 %v3952, 544
        %v4021 = vadd.s32 %v3952, 552
        %v4022 = vadd.s32 %v3952, 560
        %v4023 = vadd.s32 %v3952, 568
        %v4024 = vadd.s32 %v3952, 576
        %v4025 = vadd.s32 %v3952, 584
        %v4026 = vadd.s32 %v3952, 592
        %v4027 = vadd.s32 %v3952, 600
        %v4028 = vadd.s32 %v3952, 608
        %v4029 = vadd.s32 %v3952, 616
        %v4030 = vadd.s32 %v3952, 624
        %v4031 = vadd.s32 %v3952, 632
        %v4032 = vadd.s32 %v3952, 640
        %v4033 = vadd.s32 %v3952, 648
        %v4034 = vadd.s32 %v3952, 656
        %v4035 = vadd.s32 %v3952, 664
        %v4036 = vadd.s32 %v3952, 672
        %v4037 = vadd.s32 %v3952, 680
        %v4038 = vadd.s32 %v3952, 688
        %v4039 = vadd.s32 %v3952, 696
        %v4040 = vadd.s32 %v3952, 704
        %v4041 = vadd.s32 %v3952, 712
        %v4042 = vadd.s32 %v3952, 720
        %v4043 = vadd.s32 %v3952, 728
        %v4044 = vadd.s32 %v3952, 736
        %v4045 = vadd.s32 %v3952, 744
        %v4046 = vadd.s32 %v3952, 752
        %v4047 = vadd.s32 %v3952, 760
        %v4048 = vadd.s32 %v3952, 768
        %v4049 = vadd.s32 %v3952, 776
        %v4050 = vadd.s32 %v3952, 784
        %v4051 = vadd.s32 %v3952, 792
        %v4052 = vadd.s32 %v3952, 800
        %v4053 = vadd.s32 %v3952, 808
        %v4054 = vadd.s32 %v3952, 816
        %v4055 = vadd.s32 %v3952, 824
        %v4056 = vadd.s32 %v3952, 832
        %v4057 = vadd.s32 %v3952, 840
        %v4058 = vadd.s32 %v3952, 848
        %v4059 = vadd.s32 %v3952, 856
        %v4060 = vadd.s32 %v3952, 864
        %v4061 = vadd.s32 %v3952, 872
        %v4062 = vadd.s32 %v3952, 880
        %v4063 = vadd.s32 %v3952, 888
        %v4064 = vadd.s32 %v3952, 896
        %v4065 = vadd.s32 %v3952, 904
        %v4066 = vadd.s32 %v3952, 912
        %v4067 = vadd.s32 %v3952, 920
        %v4068 = vadd.s32 %v3952, 928
        %v4069 = vadd.s32 %v3952, 936
        %v4070 = vadd.s32 %v3952, 944
        %v4071 = vadd.s32 %v3952, 952
        %v4072 = vadd.s32 %v3952, 960
        %v4073 = vadd.s32 %v3952, 968
        %v4074 = vadd.s32 %v3952, 976
        %v4075 = vadd.s32 %v3952, 984
        %v4076 = vadd.s32 %v3952, 992
        %v4077 = vadd.s32 %v3952, 1000
        %v4078 = vadd.s32 %v3952, 1008
        %v4079 = vadd.s32 %v3952, 1016
        %v4080 = vadd.s32 %v3952, 1024
        %v4081 = vadd.s32 %v3952, 1032
        %v4082 = vadd.s32 %v3952, 1040
        %v4083 = vadd.s32 %v3952, 1048
        %v4084 = vadd.s32 %v3952, 1056
        %v4085 = vadd.s32 %v3952, 1064
        %v4086 = vadd.s32 %v3952, 1072
        %v4087 = vadd.s32 %v3952, 1080
        %v4088 = vadd.s32 %v3952, 1088
        %v4089 = vadd.s32 %v3952, 1096
        %v4090 = vadd.s32 %v3952, 1104
        %v4091 = vadd.s32 %v3952, 1112
        %v4092 = vadd.s32 %v3952, 1120
        %v4093 = vadd.s32 %v3952, 1128
        %v4094 = vadd.s32 %v3952, 1136
        %v4095 = vadd.s32 %v3952, 1144
        %v4096 = vadd.s32 %v3952, 1152
        %v4097 = vadd.s32 %v3952, 1160
        %v4098 = vadd.s32 %v3952, 1168
        %v4099 = vadd.s32 %v3952, 1176
        %v4100 = vadd.s32 %v3952, 1184
        %v4101 = vadd.s32 %v3952, 1192
        %v4102 = vadd.s32 %v3952, 1200
        %v4103 = vadd.s32 %v3952, 1208
        %v4104 = vadd.s32 %v3952, 1216
        %v4105 = vadd.s32 %v3952, 1224
        %v4106 = vadd.s32 %v3952, 1232
        %v4107 = vadd.s32 %v3952, 1240
        %v4108 = vadd.s32 %v3952, 1248
        %v4109 = vadd.s32 %v3952, 1256
        %v4110 = vadd.s32 %v3952, 1264
        %v4111 = vadd.s32 %v3952, 1272
        %v4112 = vadd.s32 %v3952, 1280
        %v4113 = vadd.s32 %v3952, 1288
        %v4114 = vadd.s32 %v3952, 1296
        %v4115 = vadd.s32 %v3952, 1304
        %v4116 = vadd.s32 %v3952, 1312
        %v4117 = vadd.s32 %v3952, 1320
        %v4118 = vadd.s32 %v3952, 1328
        %v4119 = vadd.s32 %v3952, 1336
        %v4120 = vadd.s32 %v3952, 1344
        %v4121 = vadd.s32 %v3952, 1352
        %v4122 = vadd.s32 %v3952, 1360
        %v4123 = vadd.s32 %v3952, 1368
        %v4124 = vadd.s32 %v3952, 1376
        %v4125 = vadd.s32 %v3952, 1384
        %v4126 = vadd.s32 %v3952, 1392
        %v4127 = vadd.s32 %v3952, 1400
        %v4128 = vadd.s32 %v3952, 1408
        %v4129 = vadd.s32 %v3952, 1416
        %v4130 = vadd.s32 %v3952, 1424
        %v4131 = vadd.s32 %v3952, 1432
        %v4132 = vadd.s32 %v3952, 1440
        %v4133 = vadd.s32 %v3952, 1448
        %v4134 = vadd.s32 %v3952, 1456
        %v4135 = vadd.s32 %v3952, 1464
        %v4136 = vadd.s32 %v3952, 1472
        %v4137 = vadd.s32 %v3952, 1480
        %v4138 = vadd.s32 %v3952, 1488
        %v4139 = vadd.s32 %v3952, 1496
        %v4140 = vadd.s32 %v3952, 1504
        %v4141 = vadd.s32 %v3952, 1512
        %v4142 = vadd.s32 %v3952, 1520
        %v4143 = vadd.s32 %v3952, 1528
        %v4144 = vadd.s32 %v3952, 1536
        %v4145 = vadd.s32 %v3952, 1544
        %v4146 = vadd.s32 %v3952, 1552
        %v4147 = vadd.s32 %v3952, 1560
        %v4148 = vadd.s32 %v3952, 1568
        %v4149 = vadd.s32 %v3952, 1576
        %v4150 = vadd.s32 %v3952, 1584
        %v4151 = vadd.s32 %v3952, 1592
        %v4152 = vadd.s32 %v3952, 1600
        %v4153 = vadd.s32 %v3952, 1608
        %v4154 = vadd.s32 %v3952, 1616
        %v4155 = vadd.s32 %v3952, 1624
        %v4156 = vadd.s32 %v3952, 1632
        %v4157 = vadd.s32 %v3952, 1640
        %v4158 = vadd.s32 %v3952, 1648
        %v4159 = vadd.s32 %v3952, 1656
        %v4160 = vadd.s32 %v3952, 1664
        %v4161 = vadd.s32 %v3952, 1672
        %v4162 = vadd.s32 %v3952, 1680
        %v4163 = vadd.s32 %v3952, 1688
        %v4164 = vadd.s32 %v3952, 1696
        %v4165 = vadd.s32 %v3952, 1704
        %v4166 = vadd.s32 %v3952, 1712
        %v4167 = vadd.s32 %v3952, 1720
        %v4168 = vadd.s32 %v3952, 1728
        %v4169 = vadd.s32 %v3952, 1736
        %v4170 = vadd.s32 %v3952, 1744
        %v4171 = vadd.s32 %v3952, 1752
        %v4172 = vadd.s32 %v3952, 1760
        %v4173 = vadd.s32 %v3952, 1768
        %v4174 = vadd.s32 %v3952, 1776
        %v4175 = vadd.s32 %v3952, 1784
        %v4176 = vadd.s32 %v3952, 1792
        %v4177 = vadd.s32 %v3952, 1800
        %v4178 = vadd.s32 %v3952, 1808
        %v4179 = vadd.s32 %v3952, 1816
        %v4180 = vadd.s32 %v3952, 1824
        %v4181 = vadd.s32 %v3952, 1832
        %v4182 = vadd.s32 %v3952, 1840
        %v4183 = vadd.s32 %v3952, 1848
        %v4184 = vadd.s32 %v3952, 1856
        %v4185 = vadd.s32 %v3952, 1864
        %v4186 = vadd.s32 %v3952, 1872
        %v4187 = vadd.s32 %v3952, 1880
        %v4188 = vadd.s32 %v3952, 1888
        %v4189 = vadd.s32 %v3952, 1896
        %v4190 = vadd.s32 %v3952, 1904
        %v4191 = vadd.s32 %v3952, 1912
        %v4192 = vadd.s32 %v3952, 1920
        %v4193 = vadd.s32 %v3952, 1928
        %v4194 = vadd.s32 %v3952, 1936
        %v4195 = vadd.s32 %v3952, 1944
        %v4196 = vadd.s32 %v3952, 1952
        %v4197 = vadd.s32 %v3952, 1960
        %v4198 = vadd.s32 %v3952, 1968
        %v4199 = vadd.s32 %v3952, 1976
        %v4200 = vadd.s32 %v3952, 1984
        %v4201 = vadd.s32 %v3952, 1992
        %v4202 = vadd.s32 %v3952, 2000
        %v4203 = vadd.s32 %v3952, 2008
        %v4204 = vadd.s32 %v3952, 2016
        %v4205 = vadd.s32 %v3952, 2024
        %v4206 = vadd.s32 %v3952, 2032
        %v4207 = vadd.s32 %v3952, 2040
        %v4208 = vadd.s32 %v3952, 2048
        %v4209 = vadd.s32 %v3952, 2056
        %v4210 = vadd.s32 %v3952, 2064
        %v4211 = vadd.s32 %v3952, 2072
        %v4212 = vadd.s32 %v3952, 2080
        %v4213 = vadd.s32 %v3952, 2088
        %v4214 = vadd.s32 %v3952, 2096
        %v4215 = vadd.s32 %v3952, 2104
        %v4216 = vadd.s32 %v3952, 2112
        %v4217 = vadd.s32 %v3952, 2120
        %v4218 = vadd.s32 %v3952, 2128
        %v4219 = vadd.s32 %v3952, 2136
        %v4220 = vadd.s32 %v3952, 2144
        %v4221 = vadd.s32 %v3952, 2152
        %v4222 = vadd.s32 %v3952, 2160
        %v4223 = vadd.s32 %v3952, 2168
        %v4224 = vadd.s32 %v3952, 2176
        %v4225 = vadd.s32 %v3952, 2184
        %v4226 = vadd.s32 %v3952, 2192
        %v4227 = vadd.s32 %v3952, 2200
        %v4228 = vadd.s32 %v3952, 2208
        %v4229 = vadd.s32 %v3952, 2216
        %v4230 = vadd.s32 %v3952, 2224
        %v4231 = vadd.s32 %v3952, 2232
        %v4232 = vadd.s32 %v3952, 2240
        %v4233 = vadd.s32 %v3952, 2248
        %v4234 = vadd.s32 %v3952, 2256
        %v4235 = vadd.s32 %v3952, 2264
        %v4236 = vadd.s32 %v3952, 2272
        %v4237 = vadd.s32 %v3952, 2280
        %v4238 = vadd.s32 %v3952, 2288
        %v4239 = vadd.s32 %v3952, 2296
        %v4240 = vadd.s32 %v3952, 2304
        %v4241 = vadd.s32 %v3952, 2312
        %v4242 = vadd.s32 %v3952, 2320
        %v4243 = vadd.s32 %v3952, 2328
        %v4244 = vadd.s32 %v3952, 2336
        %v4245 = vadd.s32 %v3952, 2344
        %v4246 = vadd.s32 %v3952, 2352
        %v4247 = vadd.s32 %v3952, 2360
        %v4248 = vadd.s32 %v3952, 2368
        %v4249 = vadd.s32 %v3952, 2376
        %v4250 = vadd.s32 %v3952, 2384
        %v4251 = vadd.s32 %v3952, 2392
        %v4252 = vadd.s32 %v3952, 2400
        %v4253 = vadd.s32 %v3952, 2408
        %v4254 = vadd.s32 %v3952, 2416
        %v4255 = vadd.s32 %v3952, 2424
        %v4256 = vadd.s32 %v3952, 2432
        %v4257 = vadd.s32 %v3952, 2440
        %v4258 = vadd.s32 %v3952, 2448
        %v4259 = vadd.s32 %v3952, 2456
        %v4260 = vadd.s32 %v3952, 2464
        %v4261 = vadd.s32 %v3952, 2472
        %v4262 = vadd.s32 %v3952, 2480
        %v4263 = vadd.s32 %v3952, 2488
        %v4264 = vadd.s32 %v3952, 2496
        %v4265 = vadd.s32 %v3952, 2504
        %v4266 = vadd.s32 %v3952, 2512
        %v4267 = vadd.s32 %v3952, 2520
        %v4268 = vadd.s32 %v3952, 2528
        %v4269 = vadd.s32 %v3952, 2536
        %v4270 = vadd.s32 %v3952, 2544
        %v4271 = vadd.s32 %v3952, 2552
        %v4272 = vadd.s32 %v3952, 2560
        %v4273 = vadd.s32 %v3952, 2568
        %v4274 = vadd.s32 %v3952, 2576
        %v4275 = vadd.s32 %v3952, 2584
        %v4276 = vadd.s32 %v3952, 2592
        %v4277 = vadd.s32 %v3952, 2600
        %v4278 = vadd.s32 %v3952, 2608
        %v4279 = vadd.s32 %v3952, 2616
        %v4280 = vadd.s32 %v3952, 2624
        %v4281 = vadd.s32 %v3952, 2632
        %v4282 = vadd.s32 %v3952, 2640
        %v4283 = vadd.s32 %v3952, 2648
        %v4284 = vadd.s32 %v3952, 2656
        %v4285 = vadd.s32 %v3952, 2664
        %v4286 = vadd.s32 %v3952, 2672
        %v4287 = vadd.s32 %v3952, 2680
        %v4288 = vadd.s32 %v3952, 2688
        %v4289 = vadd.s32 %v3952, 2696
        %v4290 = vadd.s32 %v3952, 2704
        %v4291 = vadd.s32 %v3952, 2712
        %v4292 = vadd.s32 %v3952, 2720
        %v4293 = vadd.s32 %v3952, 2728
        %v4294 = vadd.s32 %v3952, 2736
        %v4295 = vadd.s32 %v3952, 2744
        %v4296 = vadd.s32 %v3952, 2752
        %v4297 = vadd.s32 %v3952, 2760
        %v4298 = vadd.s32 %v3952, 2768
        %v4299 = vadd.s32 %v3952, 2776
        %v4300 = vadd.s32 %v3952, 2784
        %v4301 = vadd.s32 %v3952, 2792
        %v4302 = vadd.s32 %v3952, 2800
        %v4303 = vadd.s32 %v3952, 2808
        %v4304 = vadd.s32 %v3952, 2816
        %v4305 = vadd.s32 %v3952, 2824
        %v4306 = vadd.s32 %v3952, 2832
        %v4307 = vadd.s32 %v3952, 2840
        %v4308 = vadd.s32 %v3952, 2848
        %v4309 = vadd.s32 %v3952, 2856
        %v4310 = vadd.s32 %v3952, 2864
        %v4311 = vadd.s32 %v3952, 2872
        %v4312 = vadd.s32 %v3952, 2880
        %v4313 = vadd.s32 %v3952, 2888
        %v4314 = vadd.s32 %v3952, 2896
        %v4315 = vadd.s32 %v3952, 2904
        %v4316 = vadd.s32 %v3952, 2912
        %v4317 = vadd.s32 %v3952, 2920
        %v4318 = vadd.s32 %v3952, 2928
        %v4319 = vadd.s32 %v3952, 2936
        %v4320 = vadd.s32 %v3952, 2944
        %v4321 = vadd.s32 %v3952, 2952
        %v4322 = vadd.s32 %v3952, 2960
        %v4323 = vadd.s32 %v3952, 2968
        %v4324 = vadd.s32 %v3952, 2976
        %v4325 = vadd.s32 %v3952, 2984
        %v4326 = vadd.s32 %v3952, 2992
        %v4327 = vadd.s32 %v3952, 3000
        %v4328 = vadd.s32 %v3952, 3008
        %v4329 = vadd.s32 %v3952, 3016
        %v4330 = vadd.s32 %v3952, 3024
        %v4331 = vadd.s32 %v3952, 3032
        %v4332 = vadd.s32 %v3952, 3040
        %v4333 = vadd.s32 %v3952, 3048
        %v4334 = vadd.s32 %v3952, 3056
        %v4335 = vadd.s32 %v3952, 3064
        %v4336 = vadd.s32 %v3952, 3072
        %v4337 = vadd.s32 %v3952, 3080
        %v4338 = vadd.s32 %v3952, 3088
        %v4339 = vadd.s32 %v3952, 3096
        %v4340 = vadd.s32 %v3952, 3104
        %v4341 = vadd.s32 %v3952, 3112
        %v4342 = vadd.s32 %v3952, 3120
        %v4343 = vadd.s32 %v3952, 3128
        %v4344 = vadd.s32 %v3952, 3136
        %v4345 = vadd.s32 %v3952, 3144
        %v4346 = vadd.s32 %v3952, 3152
        %v4347 = vadd.s32 %v3952, 3160
        %v4348 = vadd.s32 %v3952, 3168
        %v4349 = vadd.s32 %v3952, 3176
        %v4350 = vadd.s32 %v3952, 3184
        %v4351 = vadd.s32 %v3952, 3192
        %v4352 = vadd.s32 %v3952, 3200
        %v4353 = vadd.s32 %v3952, 3208
        %v4354 = vadd.s32 %v3952, 3216
        %v4355 = vadd.s32 %v3952, 3224
        %v4356 = vadd.s32 %v3952, 3232
        %v4357 = vadd.s32 %v3952, 3240
        %v4358 = vadd.s32 %v3952, 3248
        %v4359 = vadd.s32 %v3952, 3256
        %v4360 = vadd.s32 %v3952, 3264
        %v4361 = vadd.s32 %v3952, 3272
        %v4362 = vadd.s32 %v3952, 3280
        %v4363 = vadd.s32 %v3952, 3288
        %v4364 = vadd.s32 %v3952, 3296
        %v4365 = vadd.s32 %v3952, 3304
        %v4366 = vadd.s32 %v3952, 3312
        %v4367 = vadd.s32 %v3952, 3320
        %v4368 = vadd.s32 %v3952, 3328
        %v4369 = vadd.s32 %v3952, 3336
        %v4370 = vadd.s32 %v3952, 3344
        %v4371 = vadd.s32 %v3952, 3352
        %v4372 = vadd.s32 %v3952, 3360
        %v4373 = vadd.s32 %v3952, 3368
        %v4374 = vadd.s32 %v3952, 3376
        %v4375 = vadd.s32 %v3952, 3384
        %v4376 = vadd.s32 %v3952, 3392
        %v4377 = vadd.s32 %v3952, 3400
        %v4378 = vadd.s32 %v3952, 3408
        %v4379 = vadd.s32 %v3952, 3416
        %v4380 = vadd.s32 %v3952, 3424
        %v4381 = vadd.s32 %v3952, 3432
        %v4382 = vadd.s32 %v3952, 3440
        %v4383 = vadd.s32 %v3952, 3448
        %v4384 = vadd.s32 %v3952, 3456
        %v4385 = vadd.s32 %v3952, 3464
        %v4386 = vadd.s32 %v3952, 3472
        %v4387 = vadd.s32 %v3952, 3480
        %v4388 = vadd.s32 %v3952, 3488
        %v4389 = vadd.s32 %v3952, 3496
        %v4390 = vadd.s32 %v3952, 3504
        %v4391 = vadd.s32 %v3952, 3512
        %v4392 = vadd.s32 %v3952, 3520
        %v4393 = vadd.s32 %v3952, 3528
        %v4394 = vadd.s32 %v3952, 3536
        %v4395 = vadd.s32 %v3952, 3544
        %v4396 = vadd.s32 %v3952, 3552
        %v4397 = vadd.s32 %v3952, 3560
        %v4398 = vadd.s32 %v3952, 3568
        %v4399 = vadd.s32 %v3952, 3576
        %v4400 = vadd.s32 %v3952, 3584
        %v4401 = vadd.s32 %v3952, 3592
        %v4402 = vadd.s32 %v3952, 3600
        %v4403 = vadd.s32 %v3952, 3608
        %v4404 = vadd.s32 %v3952, 3616
        %v4405 = vadd.s32 %v3952, 3624
        %v4406 = vadd.s32 %v3952, 3632
        %v4407 = vadd.s32 %v3952, 3640
        %v4408 = vadd.s32 %v3952, 3648
        %v4409 = vadd.s32 %v3952, 3656
        %v4410 = vadd.s32 %v3952, 3664
        %v4411 = vadd.s32 %v3952, 3672
        %v4412 = vadd.s32 %v3952, 3680
        %v4413 = vadd.s32 %v3952, 3688
        %v4414 = vadd.s32 %v3952, 3696
        %v4415 = vadd.s32 %v3952, 3704
        %v4416 = vadd.s32 %v3952, 3712
        %v4417 = vadd.s32 %v3952, 3720
        %v4418 = vadd.s32 %v3952, 3728
        %v4419 = vadd.s32 %v3952, 3736
        %v4420 = vadd.s32 %v3952, 3744
        %v4421 = vadd.s32 %v3952, 3752
        %v4422 = vadd.s32 %v3952, 3760
        %v4423 = vadd.s32 %v3952, 3768
        %v4424 = vadd.s32 %v3952, 3776
        %v4425 = vadd.s32 %v3952, 3784
        %v4426 = vadd.s32 %v3952, 3792
        %v4427 = vadd.s32 %v3952, 3800
        %v4428 = vadd.s32 %v3952, 3808
        %v4429 = vadd.s32 %v3952, 3816
        %v4430 = vadd.s32 %v3952, 3824
        %v4431 = vadd.s32 %v3952, 3832
        %v4432 = vadd.s32 %v3952, 3840
        %v4433 = vadd.s32 %v3952, 3848
        %v4434 = vadd.s32 %v3952, 3856
        %v4435 = vadd.s32 %v3952, 3864
        %v4436 = vadd.s32 %v3952, 3872
        %v4437 = vadd.s32 %v3952, 3880
        %v4438 = vadd.s32 %v3952, 3888
        %v4439 = vadd.s32 %v3952, 3896
        %v4440 = vadd.s32 %v3952, 3904
        %v4441 = vadd.s32 %v3952, 3912
        %v4442 = vadd.s32 %v3952, 3920
        %v4443 = vadd.s32 %v3952, 3928
        %v4444 = vadd.s32 %v3952, 3936
        %v4445 = vadd.s32 %v3952, 3944
        %v4446 = vadd.s32 %v3952, 3952
        %v4447 = vadd.s32 %v3952, 3960
        %v4448 = vadd.s32 %v3952, 3968
        %v4449 = vadd.s32 %v3952, 3976
        %v4450 = vadd.s32 %v3952, 3984
        %v4451 = vadd.s32 %v3952, 3992
        %v4452 = vadd.s32 %v3952, 4000
        %v4453 = vadd.s32 %v3952, 4008
        %v4454 = vadd.s32 %v3952, 4016
        %v4455 = vadd.s32 %v3952, 4024
        %v4456 = vadd.s32 %v3952, 4032
        %v4457 = vadd.s32 %v3952, 4040
        %v4458 = vadd.s32 %v3952, 4048
        %v4459 = vadd.s32 %v3952, 4056
        %v4460 = vadd.s32 %v3952, 4064
        %v4461 = vadd.s32 %v3952, 4072
        %v4462 = vadd.s32 %v3952, 4080
        %v4463 = vadd.s32 %v3952, 4088
        %v4464 = vstv %s3950
        %v4465 = vadd.s32 %v4464, %v3952
        %v4466 = vadd.s32 %v4464, %v3953
        %v4467 = vadd.s32 %v4464, %v3954
        %v4468 = vadd.s32 %v4464, %v3955
        %v4469 = vadd.s32 %v4464, %v3956
        %v4470 = vadd.s32 %v4464, %v3957
        %v4471 = vadd.s32 %v4464, %v3958
        %v4472 = vadd.s32 %v4464, %v3959
        %v4473 = vadd.s32 %v4464, %v3960
        %v4474 = vadd.s32 %v4464, %v3961
        %v4475 = vadd.s32 %v4464, %v3962
        %v4476 = vadd.s32 %v4464, %v3963
        %v4477 = vadd.s32 %v4464, %v3964
        %v4478 = vadd.s32 %v4464, %v3965
        %v4479 = vadd.s32 %v4464, %v3966
        %v4480 = vadd.s32 %v4464, %v3967
        %v4481 = vadd.s32 %v4464, %v3968
        %v4482 = vadd.s32 %v4464, %v3969
        %v4483 = vadd.s32 %v4464, %v3970
        %v4484 = vadd.s32 %v4464, %v3971
        %v4485 = vadd.s32 %v4464, %v3972
        %v4486 = vadd.s32 %v4464, %v3973
        %v4487 = vadd.s32 %v4464, %v3974
        %v4488 = vadd.s32 %v4464, %v3975
        %v4489 = vadd.s32 %v4464, %v3976
        %v4490 = vadd.s32 %v4464, %v3977
        %v4491 = vadd.s32 %v4464, %v3978
        %v4492 = vadd.s32 %v4464, %v3979
        %v4493 = vadd.s32 %v4464, %v3980
        %v4494 = vadd.s32 %v4464, %v3981
        %v4495 = vadd.s32 %v4464, %v3982
        %v4496 = vadd.s32 %v4464, %v3983
        %v4497 = vadd.s32 %v4464, %v3984
        %v4498 = vadd.s32 %v4464, %v3985
        %v4499 = vadd.s32 %v4464, %v3986
        %v4500 = vadd.s32 %v4464, %v3987
        %v4501 = vadd.s32 %v4464, %v3988
        %v4502 = vadd.s32 %v4464, %v3989
        %v4503 = vadd.s32 %v4464, %v3990
        %v4504 = vadd.s32 %v4464, %v3991
        %v4505 = vadd.s32 %v4464, %v3992
        %v4506 = vadd.s32 %v4464, %v3993
        %v4507 = vadd.s32 %v4464, %v3994
        %v4508 = vadd.s32 %v4464, %v3995
        %v4509 = vadd.s32 %v4464, %v3996
        %v4510 = vadd.s32 %v4464, %v3997
        %v4511 = vadd.s32 %v4464, %v3998
        %v4512 = vadd.s32 %v4464, %v3999
        %v4513 = vadd.s32 %v4464, %v4000
        %v4514 = vadd.s32 %v4464, %v4001
        %v4515 = vadd.s32 %v4464, %v4002
        %v4516 = vadd.s32 %v4464, %v4003
        %v4517 = vadd.s32 %v4464, %v4004
        %v4518 = vadd.s32 %v4464, %v4005
        %v4519 = vadd.s32 %v4464, %v4006
        %v4520 = vadd.s32 %v4464, %v4007
        %v4521 = vadd.s32 %v4464, %v4008
        %v4522 = vadd.s32 %v4464, %v4009
        %v4523 = vadd.s32 %v4464, %v4010
        %v4524 = vadd.s32 %v4464, %v4011
        %v4525 = vadd.s32 %v4464, %v4012
        %v4526 = vadd.s32 %v4464, %v4013
        %v4527 = vadd.s32 %v4464, %v4014
        %v4528 = vadd.s32 %v4464, %v4015
        %v4529 = vadd.s32 %v4464, %v4016
        %v4530 = vadd.s32 %v4464, %v4017
        %v4531 = vadd.s32 %v4464, %v4018
        %v4532 = vadd.s32 %v4464, %v4019
        %v4533 = vadd.s32 %v4464, %v4020
        %v4534 = vadd.s32 %v4464, %v4021
        %v4535 = vadd.s32 %v4464, %v4022
        %v4536 = vadd.s32 %v4464, %v4023
        %v4537 = vadd.s32 %v4464, %v4024
        %v4538 = vadd.s32 %v4464, %v4025
        %v4539 = vadd.s32 %v4464, %v4026
        %v4540 = vadd.s32 %v4464, %v4027
        %v4541 = vadd.s32 %v4464, %v4028
        %v4542 = vadd.s32 %v4464, %v4029
        %v4543 = vadd.s32 %v4464, %v4030
        %v4544 = vadd.s32 %v4464, %v4031
        %v4545 = vadd.s32 %v4464, %v4032
        %v4546 = vadd.s32 %v4464, %v4033
        %v4547 = vadd.s32 %v4464, %v4034
        %v4548 = vadd.s32 %v4464, %v4035
        %v4549 = vadd.s32 %v4464, %v4036
        %v4550 = vadd.s32 %v4464, %v4037
        %v4551 = vadd.s32 %v4464, %v4038
        %v4552 = vadd.s32 %v4464, %v4039
        %v4553 = vadd.s32 %v4464, %v4040
        %v4554 = vadd.s32 %v4464, %v4041
        %v4555 = vadd.s32 %v4464, %v4042
        %v4556 = vadd.s32 %v4464, %v4043
        %v4557 = vadd.s32 %v4464, %v4044
        %v4558 = vadd.s32 %v4464, %v4045
        %v4559 = vadd.s32 %v4464, %v4046
        %v4560 = vadd.s32 %v4464, %v4047
        %v4561 = vadd.s32 %v4464, %v4048
        %v4562 = vadd.s32 %v4464, %v4049
        %v4563 = vadd.s32 %v4464, %v4050
        %v4564 = vadd.s32 %v4464, %v4051
        %v4565 = vadd.s32 %v4464, %v4052
        %v4566 = vadd.s32 %v4464, %v4053
        %v4567 = vadd.s32 %v4464, %v4054
        %v4568 = vadd.s32 %v4464, %v4055
        %v4569 = vadd.s32 %v4464, %v4056
        %v4570 = vadd.s32 %v4464, %v4057
        %v4571 = vadd.s32 %v4464, %v4058
        %v4572 = vadd.s32 %v4464, %v4059
        %v4573 = vadd.s32 %v4464, %v4060
        %v4574 = vadd.s32 %v4464, %v4061
        %v4575 = vadd.s32 %v4464, %v4062
        %v4576 = vadd.s32 %v4464, %v4063
        %v4577 = vadd.s32 %v4464, %v4064
        %v4578 = vadd.s32 %v4464, %v4065
        %v4579 = vadd.s32 %v4464, %v4066
        %v4580 = vadd.s32 %v4464, %v4067
        %v4581 = vadd.s32 %v4464, %v4068
        %v4582 = vadd.s32 %v4464, %v4069
        %v4583 = vadd.s32 %v4464, %v4070
        %v4584 = vadd.s32 %v4464, %v4071
        %v4585 = vadd.s32 %v4464, %v4072
        %v4586 = vadd.s32 %v4464, %v4073
        %v4587 = vadd.s32 %v4464, %v4074
        %v4588 = vadd.s32 %v4464, %v4075
        %v4589 = vadd.s32 %v4464, %v4076
        %v4590 = vadd.s32 %v4464, %v4077
        %v4591 = vadd.s32 %v4464, %v4078
        %v4592 = vadd.s32 %v4464, %v4079
        %v4593 = vadd.s32 %v4464, %v4080
        %v4594 = vadd.s32 %v4464, %v4081
        %v4595 = vadd.s32 %v4464, %v4082
        %v4596 = vadd.s32 %v4464, %v4083
        %v4597 = vadd.s32 %v4464, %v4084
        %v4598 = vadd.s32 %v4464, %v4085
        %v4599 = vadd.s32 %v4464, %v4086
        %v4600 = vadd.s32 %v4464, %v4087
        %v4601 = vadd.s32 %v4464, %v4088
        %v4602 = vadd.s32 %v4464, %v4089
        %v4603 = vadd.s32 %v4464, %v4090
        %v4604 = vadd.s32 %v4464, %v4091
        %v4605 = vadd.s32 %v4464, %v4092
        %v4606 = vadd.s32 %v4464, %v4093
        %v4607 = vadd.s32 %v4464, %v4094
        %v4608 = vadd.s32 %v4464, %v4095
        %v4609 = vadd.s32 %v4464, %v4096
        %v4610 = vadd.s32 %v4464, %v4097
        %v4611 = vadd.s32 %v4464, %v4098
        %v4612 = vadd.s32 %v4464, %v4099
        %v4613 = vadd.s32 %v4464, %v4100
        %v4614 = vadd.s32 %v4464, %v4101
        %v4615 = vadd.s32 %v4464, %v4102
        %v4616 = vadd.s32 %v4464, %v4103
        %v4617 = vadd.s32 %v4464, %v4104
        %v4618 = vadd.s32 %v4464, %v4105
        %v4619 = vadd.s32 %v4464, %v4106
        %v4620 = vadd.s32 %v4464, %v4107
        %v4621 = vadd.s32 %v4464, %v4108
        %v4622 = vadd.s32 %v4464, %v4109
        %v4623 = vadd.s32 %v4464, %v4110
        %v4624 = vadd.s32 %v4464, %v4111
        %v4625 = vadd.s32 %v4464, %v4112
        %v4626 = vadd.s32 %v4464, %v4113
        %v4627 = vadd.s32 %v4464, %v4114
        %v4628 = vadd.s32 %v4464, %v4115
        %v4629 = vadd.s32 %v4464, %v4116
        %v4630 = vadd.s32 %v4464, %v4117
        %v4631 = vadd.s32 %v4464, %v4118
        %v4632 = vadd.s32 %v4464, %v4119
        %v4633 = vadd.s32 %v4464, %v4120
        %v4634 = vadd.s32 %v4464, %v4121
        %v4635 = vadd.s32 %v4464, %v4122
        %v4636 = vadd.s32 %v4464, %v4123
        %v4637 = vadd.s32 %v4464, %v4124
        %v4638 = vadd.s32 %v4464, %v4125
        %v4639 = vadd.s32 %v4464, %v4126
        %v4640 = vadd.s32 %v4464, %v4127
        %v4641 = vadd.s32 %v4464, %v4128
        %v4642 = vadd.s32 %v4464, %v4129
        %v4643 = vadd.s32 %v4464, %v4130
        %v4644 = vadd.s32 %v4464, %v4131
        %v4645 = vadd.s32 %v4464, %v4132
        %v4646 = vadd.s32 %v4464, %v4133
        %v4647 = vadd.s32 %v4464, %v4134
        %v4648 = vadd.s32 %v4464, %v4135
        %v4649 = vadd.s32 %v4464, %v4136
        %v4650 = vadd.s32 %v4464, %v4137
        %v4651 = vadd.s32 %v4464, %v4138
        %v4652 = vadd.s32 %v4464, %v4139
        %v4653 = vadd.s32 %v4464, %v4140
        %v4654 = vadd.s32 %v4464, %v4141
        %v4655 = vadd.s32 %v4464, %v4142
        %v4656 = vadd.s32 %v4464, %v4143
        %v4657 = vadd.s32 %v4464, %v4144
        %v4658 = vadd.s32 %v4464, %v4145
        %v4659 = vadd.s32 %v4464, %v4146
        %v4660 = vadd.s32 %v4464, %v4147
        %v4661 = vadd.s32 %v4464, %v4148
        %v4662 = vadd.s32 %v4464, %v4149
        %v4663 = vadd.s32 %v4464, %v4150
        %v4664 = vadd.s32 %v4464, %v4151
        %v4665 = vadd.s32 %v4464, %v4152
        %v4666 = vadd.s32 %v4464, %v4153
        %v4667 = vadd.s32 %v4464, %v4154
        %v4668 = vadd.s32 %v4464, %v4155
        %v4669 = vadd.s32 %v4464, %v4156
        %v4670 = vadd.s32 %v4464, %v4157
        %v4671 = vadd.s32 %v4464, %v4158
        %v4672 = vadd.s32 %v4464, %v4159
        %v4673 = vadd.s32 %v4464, %v4160
        %v4674 = vadd.s32 %v4464, %v4161
        %v4675 = vadd.s32 %v4464, %v4162
        %v4676 = vadd.s32 %v4464, %v4163
        %v4677 = vadd.s32 %v4464, %v4164
        %v4678 = vadd.s32 %v4464, %v4165
        %v4679 = vadd.s32 %v4464, %v4166
        %v4680 = vadd.s32 %v4464, %v4167
        %v4681 = vadd.s32 %v4464, %v4168
        %v4682 = vadd.s32 %v4464, %v4169
        %v4683 = vadd.s32 %v4464, %v4170
        %v4684 = vadd.s32 %v4464, %v4171
        %v4685 = vadd.s32 %v4464, %v4172
        %v4686 = vadd.s32 %v4464, %v4173
        %v4687 = vadd.s32 %v4464, %v4174
        %v4688 = vadd.s32 %v4464, %v4175
        %v4689 = vadd.s32 %v4464, %v4176
        %v4690 = vadd.s32 %v4464, %v4177
        %v4691 = vadd.s32 %v4464, %v4178
        %v4692 = vadd.s32 %v4464, %v4179
        %v4693 = vadd.s32 %v4464, %v4180
        %v4694 = vadd.s32 %v4464, %v4181
        %v4695 = vadd.s32 %v4464, %v4182
        %v4696 = vadd.s32 %v4464, %v4183
        %v4697 = vadd.s32 %v4464, %v4184
        %v4698 = vadd.s32 %v4464, %v4185
        %v4699 = vadd.s32 %v4464, %v4186
        %v4700 = vadd.s32 %v4464, %v4187
        %v4701 = vadd.s32 %v4464, %v4188
        %v4702 = vadd.s32 %v4464, %v4189
        %v4703 = vadd.s32 %v4464, %v4190
        %v4704 = vadd.s32 %v4464, %v4191
        %v4705 = vadd.s32 %v4464, %v4192
        %v4706 = vadd.s32 %v4464, %v4193
        %v4707 = vadd.s32 %v4464, %v4194
        %v4708 = vadd.s32 %v4464, %v4195
        %v4709 = vadd.s32 %v4464, %v4196
        %v4710 = vadd.s32 %v4464, %v4197
        %v4711 = vadd.s32 %v4464, %v4198
        %v4712 = vadd.s32 %v4464, %v4199
        %v4713 = vadd.s32 %v4464, %v4200
        %v4714 = vadd.s32 %v4464, %v4201
        %v4715 = vadd.s32 %v4464, %v4202
        %v4716 = vadd.s32 %v4464, %v4203
        %v4717 = vadd.s32 %v4464, %v4204
        %v4718 = vadd.s32 %v4464, %v4205
        %v4719 = vadd.s32 %v4464, %v4206
        %v4720 = vadd.s32 %v4464, %v4207
        %v4721 = vadd.s32 %v4464, %v4208
        %v4722 = vadd.s32 %v4464, %v4209
        %v4723 = vadd.s32 %v4464, %v4210
        %v4724 = vadd.s32 %v4464, %v4211
        %v4725 = vadd.s32 %v4464, %v4212
        %v4726 = vadd.s32 %v4464, %v4213
        %v4727 = vadd.s32 %v4464, %v4214
        %v4728 = vadd.s32 %v4464, %v4215
        %v4729 = vadd.s32 %v4464, %v4216
        %v4730 = vadd.s32 %v4464, %v4217
        %v4731 = vadd.s32 %v4464, %v4218
        %v4732 = vadd.s32 %v4464, %v4219
        %v4733 = vadd.s32 %v4464, %v4220
        %v4734 = vadd.s32 %v4464, %v4221
        %v4735 = vadd.s32 %v4464, %v4222
        %v4736 = vadd.s32 %v4464, %v4223
        %v4737 = vadd.s32 %v4464, %v4224
        %v4738 = vadd.s32 %v4464, %v4225
        %v4739 = vadd.s32 %v4464, %v4226
        %v4740 = vadd.s32 %v4464, %v4227
        %v4741 = vadd.s32 %v4464, %v4228
        %v4742 = vadd.s32 %v4464, %v4229
        %v4743 = vadd.s32 %v4464, %v4230
        %v4744 = vadd.s32 %v4464, %v4231
        %v4745 = vadd.s32 %v4464, %v4232
        %v4746 = vadd.s32 %v4464, %v4233
        %v4747 = vadd.s32 %v4464, %v4234
        %v4748 = vadd.s32 %v4464, %v4235
        %v4749 = vadd.s32 %v4464, %v4236
        %v4750 = vadd.s32 %v4464, %v4237
        %v4751 = vadd.s32 %v4464, %v4238
        %v4752 = vadd.s32 %v4464, %v4239
        %v4753 = vadd.s32 %v4464, %v4240
        %v4754 = vadd.s32 %v4464, %v4241
        %v4755 = vadd.s32 %v4464, %v4242
        %v4756 = vadd.s32 %v4464, %v4243
        %v4757 = vadd.s32 %v4464, %v4244
        %v4758 = vadd.s32 %v4464, %v4245
        %v4759 = vadd.s32 %v4464, %v4246
        %v4760 = vadd.s32 %v4464, %v4247
        %v4761 = vadd.s32 %v4464, %v4248
        %v4762 = vadd.s32 %v4464, %v4249
        %v4763 = vadd.s32 %v4464, %v4250
        %v4764 = vadd.s32 %v4464, %v4251
        %v4765 = vadd.s32 %v4464, %v4252
        %v4766 = vadd.s32 %v4464, %v4253
        %v4767 = vadd.s32 %v4464, %v4254
        %v4768 = vadd.s32 %v4464, %v4255
        %v4769 = vadd.s32 %v4464, %v4256
        %v4770 = vadd.s32 %v4464, %v4257
        %v4771 = vadd.s32 %v4464, %v4258
        %v4772 = vadd.s32 %v4464, %v4259
        %v4773 = vadd.s32 %v4464, %v4260
        %v4774 = vadd.s32 %v4464, %v4261
        %v4775 = vadd.s32 %v4464, %v4262
        %v4776 = vadd.s32 %v4464, %v4263
        %v4777 = vadd.s32 %v4464, %v4264
        %v4778 = vadd.s32 %v4464, %v4265
        %v4779 = vadd.s32 %v4464, %v4266
        %v4780 = vadd.s32 %v4464, %v4267
        %v4781 = vadd.s32 %v4464, %v4268
        %v4782 = vadd.s32 %v4464, %v4269
        %v4783 = vadd.s32 %v4464, %v4270
        %v4784 = vadd.s32 %v4464, %v4271
        %v4785 = vadd.s32 %v4464, %v4272
        %v4786 = vadd.s32 %v4464, %v4273
        %v4787 = vadd.s32 %v4464, %v4274
        %v4788 = vadd.s32 %v4464, %v4275
        %v4789 = vadd.s32 %v4464, %v4276
        %v4790 = vadd.s32 %v4464, %v4277
        %v4791 = vadd.s32 %v4464, %v4278
        %v4792 = vadd.s32 %v4464, %v4279
        %v4793 = vadd.s32 %v4464, %v4280
        %v4794 = vadd.s32 %v4464, %v4281
        %v4795 = vadd.s32 %v4464, %v4282
        %v4796 = vadd.s32 %v4464, %v4283
        %v4797 = vadd.s32 %v4464, %v4284
        %v4798 = vadd.s32 %v4464, %v4285
        %v4799 = vadd.s32 %v4464, %v4286
        %v4800 = vadd.s32 %v4464, %v4287
        %v4801 = vadd.s32 %v4464, %v4288
        %v4802 = vadd.s32 %v4464, %v4289
        %v4803 = vadd.s32 %v4464, %v4290
        %v4804 = vadd.s32 %v4464, %v4291
        %v4805 = vadd.s32 %v4464, %v4292
        %v4806 = vadd.s32 %v4464, %v4293
        %v4807 = vadd.s32 %v4464, %v4294
        %v4808 = vadd.s32 %v4464, %v4295
        %v4809 = vadd.s32 %v4464, %v4296
        %v4810 = vadd.s32 %v4464, %v4297
        %v4811 = vadd.s32 %v4464, %v4298
        %v4812 = vadd.s32 %v4464, %v4299
        %v4813 = vadd.s32 %v4464, %v4300
        %v4814 = vadd.s32 %v4464, %v4301
        %v4815 = vadd.s32 %v4464, %v4302
        %v4816 = vadd.s32 %v4464, %v4303
        %v4817 = vadd.s32 %v4464, %v4304
        %v4818 = vadd.s32 %v4464, %v4305
        %v4819 = vadd.s32 %v4464, %v4306
        %v4820 = vadd.s32 %v4464, %v4307
        %v4821 = vadd.s32 %v4464, %v4308
        %v4822 = vadd.s32 %v4464, %v4309
        %v4823 = vadd.s32 %v4464, %v4310
        %v4824 = vadd.s32 %v4464, %v4311
        %v4825 = vadd.s32 %v4464, %v4312
        %v4826 = vadd.s32 %v4464, %v4313
        %v4827 = vadd.s32 %v4464, %v4314
        %v4828 = vadd.s32 %v4464, %v4315
        %v4829 = vadd.s32 %v4464, %v4316
        %v4830 = vadd.s32 %v4464, %v4317
        %v4831 = vadd.s32 %v4464, %v4318
        %v4832 = vadd.s32 %v4464, %v4319
        %v4833 = vadd.s32 %v4464, %v4320
        %v4834 = vadd.s32 %v4464, %v4321
        %v4835 = vadd.s32 %v4464, %v4322
        %v4836 = vadd.s32 %v4464, %v4323
        %v4837 = vadd.s32 %v4464, %v4324
        %v4838 = vadd.s32 %v4464, %v4325
        %v4839 = vadd.s32 %v4464, %v4326
        %v4840 = vadd.s32 %v4464, %v4327
        %v4841 = vadd.s32 %v4464, %v4328
        %v4842 = vadd.s32 %v4464, %v4329
        %v4843 = vadd.s32 %v4464, %v4330
        %v4844 = vadd.s32 %v4464, %v4331
        %v4845 = vadd.s32 %v4464, %v4332
        %v4846 = vadd.s32 %v4464, %v4333
        %v4847 = vadd.s32 %v4464, %v4334
        %v4848 = vadd.s32 %v4464, %v4335
        %v4849 = vadd.s32 %v4464, %v4336
        %v4850 = vadd.s32 %v4464, %v4337
        %v4851 = vadd.s32 %v4464, %v4338
        %v4852 = vadd.s32 %v4464, %v4339
        %v4853 = vadd.s32 %v4464, %v4340
        %v4854 = vadd.s32 %v4464, %v4341
        %v4855 = vadd.s32 %v4464, %v4342
        %v4856 = vadd.s32 %v4464, %v4343
        %v4857 = vadd.s32 %v4464, %v4344
        %v4858 = vadd.s32 %v4464, %v4345
        %v4859 = vadd.s32 %v4464, %v4346
        %v4860 = vadd.s32 %v4464, %v4347
        %v4861 = vadd.s32 %v4464, %v4348
        %v4862 = vadd.s32 %v4464, %v4349
        %v4863 = vadd.s32 %v4464, %v4350
        %v4864 = vadd.s32 %v4464, %v4351
        %v4865 = vadd.s32 %v4464, %v4352
        %v4866 = vadd.s32 %v4464, %v4353
        %v4867 = vadd.s32 %v4464, %v4354
        %v4868 = vadd.s32 %v4464, %v4355
        %v4869 = vadd.s32 %v4464, %v4356
        %v4870 = vadd.s32 %v4464, %v4357
        %v4871 = vadd.s32 %v4464, %v4358
        %v4872 = vadd.s32 %v4464, %v4359
        %v4873 = vadd.s32 %v4464, %v4360
        %v4874 = vadd.s32 %v4464, %v4361
        %v4875 = vadd.s32 %v4464, %v4362
        %v4876 = vadd.s32 %v4464, %v4363
        %v4877 = vadd.s32 %v4464, %v4364
        %v4878 = vadd.s32 %v4464, %v4365
        %v4879 = vadd.s32 %v4464, %v4366
        %v4880 = vadd.s32 %v4464, %v4367
        %v4881 = vadd.s32 %v4464, %v4368
        %v4882 = vadd.s32 %v4464, %v4369
        %v4883 = vadd.s32 %v4464, %v4370
        %v4884 = vadd.s32 %v4464, %v4371
        %v4885 = vadd.s32 %v4464, %v4372
        %v4886 = vadd.s32 %v4464, %v4373
        %v4887 = vadd.s32 %v4464, %v4374
        %v4888 = vadd.s32 %v4464, %v4375
        %v4889 = vadd.s32 %v4464, %v4376
        %v4890 = vadd.s32 %v4464, %v4377
        %v4891 = vadd.s32 %v4464, %v4378
        %v4892 = vadd.s32 %v4464, %v4379
        %v4893 = vadd.s32 %v4464, %v4380
        %v4894 = vadd.s32 %v4464, %v4381
        %v4895 = vadd.s32 %v4464, %v4382
        %v4896 = vadd.s32 %v4464, %v4383
        %v4897 = vadd.s32 %v4464, %v4384
        %v4898 = vadd.s32 %v4464, %v4385
        %v4899 = vadd.s32 %v4464, %v4386
        %v4900 = vadd.s32 %v4464, %v4387
        %v4901 = vadd.s32 %v4464, %v4388
        %v4902 = vadd.s32 %v4464, %v4389
        %v4903 = vadd.s32 %v4464, %v4390
        %v4904 = vadd.s32 %v4464, %v4391
        %v4905 = vadd.s32 %v4464, %v4392
        %v4906 = vadd.s32 %v4464, %v4393
        %v4907 = vadd.s32 %v4464, %v4394
        %v4908 = vadd.s32 %v4464, %v4395
        %v4909 = vadd.s32 %v4464, %v4396
        %v4910 = vadd.s32 %v4464, %v4397
        %v4911 = vadd.s32 %v4464, %v4398
        %v4912 = vadd.s32 %v4464, %v4399
        %v4913 = vadd.s32 %v4464, %v4400
        %v4914 = vadd.s32 %v4464, %v4401
        %v4915 = vadd.s32 %v4464, %v4402
        %v4916 = vadd.s32 %v4464, %v4403
        %v4917 = vadd.s32 %v4464, %v4404
        %v4918 = vadd.s32 %v4464, %v4405
        %v4919 = vadd.s32 %v4464, %v4406
        %v4920 = vadd.s32 %v4464, %v4407
        %v4921 = vadd.s32 %v4464, %v4408
        %v4922 = vadd.s32 %v4464, %v4409
        %v4923 = vadd.s32 %v4464, %v4410
        %v4924 = vadd.s32 %v4464, %v4411
        %v4925 = vadd.s32 %v4464, %v4412
        %v4926 = vadd.s32 %v4464, %v4413
        %v4927 = vadd.s32 %v4464, %v4414
        %v4928 = vadd.s32 %v4464, %v4415
        %v4929 = vadd.s32 %v4464, %v4416
        %v4930 = vadd.s32 %v4464, %v4417
        %v4931 = vadd.s32 %v4464, %v4418
        %v4932 = vadd.s32 %v4464, %v4419
        %v4933 = vadd.s32 %v4464, %v4420
        %v4934 = vadd.s32 %v4464, %v4421
        %v4935 = vadd.s32 %v4464, %v4422
        %v4936 = vadd.s32 %v4464, %v4423
        %v4937 = vadd.s32 %v4464, %v4424
        %v4938 = vadd.s32 %v4464, %v4425
        %v4939 = vadd.s32 %v4464, %v4426
        %v4940 = vadd.s32 %v4464, %v4427
        %v4941 = vadd.s32 %v4464, %v4428
        %v4942 = vadd.s32 %v4464, %v4429
        %v4943 = vadd.s32 %v4464, %v4430
        %v4944 = vadd.s32 %v4464, %v4431
        %v4945 = vadd.s32 %v4464, %v4432
        %v4946 = vadd.s32 %v4464, %v4433
        %v4947 = vadd.s32 %v4464, %v4434
        %v4948 = vadd.s32 %v4464, %v4435
        %v4949 = vadd.s32 %v4464, %v4436
        %v4950 = vadd.s32 %v4464, %v4437
        %v4951 = vadd.s32 %v4464, %v4438
        %v4952 = vadd.s32 %v4464, %v4439
        %v4953 = vadd.s32 %v4464, %v4440
        %v4954 = vadd.s32 %v4464, %v4441
        %v4955 = vadd.s32 %v4464, %v4442
        %v4956 = vadd.s32 %v4464, %v4443
        %v4957 = vadd.s32 %v4464, %v4444
        %v4958 = vadd.s32 %v4464, %v4445
        %v4959 = vadd.s32 %v4464, %v4446
        %v4960 = vadd.s32 %v4464, %v4447
        %v4961 = vadd.s32 %v4464, %v4448
        %v4962 = vadd.s32 %v4464, %v4449
        %v4963 = vadd.s32 %v4464, %v4450
        %v4964 = vadd.s32 %v4464, %v4451
        %v4965 = vadd.s32 %v4464, %v4452
        %v4966 = vadd.s32 %v4464, %v4453
        %v4967 = vadd.s32 %v4464, %v4454
        %v4968 = vadd.s32 %v4464, %v4455
        %v4969 = vadd.s32 %v4464, %v4456
        %v4970 = vadd.s32 %v4464, %v4457
        %v4971 = vadd.s32 %v4464, %v4458
        %v4972 = vadd.s32 %v4464, %v4459
        %v4973 = vadd.s32 %v4464, %v4460
        %v4974 = vadd.s32 %v4464, %v4461
        %v4975 = vadd.s32 %v4464, %v4462
        %v4976 = vadd.s32 %v4464, %v4463
        %vm4977 = vcmp.lt.s32.totalorder %v4465, 8256
        %vm4978 = vcmp.lt.s32.totalorder %v4466, 8256
        %vm4979 = vcmp.lt.s32.totalorder %v4467, 8256
        %vm4980 = vcmp.lt.s32.totalorder %v4468, 8256
        %vm4981 = vcmp.lt.s32.totalorder %v4469, 8256
        %vm4982 = vcmp.lt.s32.totalorder %v4470, 8256
        %vm4983 = vcmp.lt.s32.totalorder %v4471, 8256
        %vm4984 = vcmp.lt.s32.totalorder %v4472, 8256
        %vm4985 = vcmp.lt.s32.totalorder %v4473, 8256
        %vm4986 = vcmp.lt.s32.totalorder %v4474, 8256
        %vm4987 = vcmp.lt.s32.totalorder %v4475, 8256
        %vm4988 = vcmp.lt.s32.totalorder %v4476, 8256
        %vm4989 = vcmp.lt.s32.totalorder %v4477, 8256
        %vm4990 = vcmp.lt.s32.totalorder %v4478, 8256
        %vm4991 = vcmp.lt.s32.totalorder %v4479, 8256
        %vm4992 = vcmp.lt.s32.totalorder %v4480, 8256
        %vm4993 = vcmp.lt.s32.totalorder %v4481, 8256
        %vm4994 = vcmp.lt.s32.totalorder %v4482, 8256
        %vm4995 = vcmp.lt.s32.totalorder %v4483, 8256
        %vm4996 = vcmp.lt.s32.totalorder %v4484, 8256
        %vm4997 = vcmp.lt.s32.totalorder %v4485, 8256
        %vm4998 = vcmp.lt.s32.totalorder %v4486, 8256
        %vm4999 = vcmp.lt.s32.totalorder %v4487, 8256
        %vm5000 = vcmp.lt.s32.totalorder %v4488, 8256
        %vm5001 = vcmp.lt.s32.totalorder %v4489, 8256
        %vm5002 = vcmp.lt.s32.totalorder %v4490, 8256
        %vm5003 = vcmp.lt.s32.totalorder %v4491, 8256
        %vm5004 = vcmp.lt.s32.totalorder %v4492, 8256
        %vm5005 = vcmp.lt.s32.totalorder %v4493, 8256
        %vm5006 = vcmp.lt.s32.totalorder %v4494, 8256
        %vm5007 = vcmp.lt.s32.totalorder %v4495, 8256
        %vm5008 = vcmp.lt.s32.totalorder %v4496, 8256
        %vm5009 = vcmp.lt.s32.totalorder %v4497, 8256
        %vm5010 = vcmp.lt.s32.totalorder %v4498, 8256
        %vm5011 = vcmp.lt.s32.totalorder %v4499, 8256
        %vm5012 = vcmp.lt.s32.totalorder %v4500, 8256
        %vm5013 = vcmp.lt.s32.totalorder %v4501, 8256
        %vm5014 = vcmp.lt.s32.totalorder %v4502, 8256
        %vm5015 = vcmp.lt.s32.totalorder %v4503, 8256
        %vm5016 = vcmp.lt.s32.totalorder %v4504, 8256
        %vm5017 = vcmp.lt.s32.totalorder %v4505, 8256
        %vm5018 = vcmp.lt.s32.totalorder %v4506, 8256
        %vm5019 = vcmp.lt.s32.totalorder %v4507, 8256
        %vm5020 = vcmp.lt.s32.totalorder %v4508, 8256
        %vm5021 = vcmp.lt.s32.totalorder %v4509, 8256
        %vm5022 = vcmp.lt.s32.totalorder %v4510, 8256
        %vm5023 = vcmp.lt.s32.totalorder %v4511, 8256
        %vm5024 = vcmp.lt.s32.totalorder %v4512, 8256
        %vm5025 = vcmp.lt.s32.totalorder %v4513, 8256
        %vm5026 = vcmp.lt.s32.totalorder %v4514, 8256
        %vm5027 = vcmp.lt.s32.totalorder %v4515, 8256
        %vm5028 = vcmp.lt.s32.totalorder %v4516, 8256
        %vm5029 = vcmp.lt.s32.totalorder %v4517, 8256
        %vm5030 = vcmp.lt.s32.totalorder %v4518, 8256
        %vm5031 = vcmp.lt.s32.totalorder %v4519, 8256
        %vm5032 = vcmp.lt.s32.totalorder %v4520, 8256
        %vm5033 = vcmp.lt.s32.totalorder %v4521, 8256
        %vm5034 = vcmp.lt.s32.totalorder %v4522, 8256
        %vm5035 = vcmp.lt.s32.totalorder %v4523, 8256
        %vm5036 = vcmp.lt.s32.totalorder %v4524, 8256
        %vm5037 = vcmp.lt.s32.totalorder %v4525, 8256
        %vm5038 = vcmp.lt.s32.totalorder %v4526, 8256
        %vm5039 = vcmp.lt.s32.totalorder %v4527, 8256
        %vm5040 = vcmp.lt.s32.totalorder %v4528, 8256
        %vm5041 = vcmp.lt.s32.totalorder %v4529, 8256
        %vm5042 = vcmp.lt.s32.totalorder %v4530, 8256
        %vm5043 = vcmp.lt.s32.totalorder %v4531, 8256
        %vm5044 = vcmp.lt.s32.totalorder %v4532, 8256
        %vm5045 = vcmp.lt.s32.totalorder %v4533, 8256
        %vm5046 = vcmp.lt.s32.totalorder %v4534, 8256
        %vm5047 = vcmp.lt.s32.totalorder %v4535, 8256
        %vm5048 = vcmp.lt.s32.totalorder %v4536, 8256
        %vm5049 = vcmp.lt.s32.totalorder %v4537, 8256
        %vm5050 = vcmp.lt.s32.totalorder %v4538, 8256
        %vm5051 = vcmp.lt.s32.totalorder %v4539, 8256
        %vm5052 = vcmp.lt.s32.totalorder %v4540, 8256
        %vm5053 = vcmp.lt.s32.totalorder %v4541, 8256
        %vm5054 = vcmp.lt.s32.totalorder %v4542, 8256
        %vm5055 = vcmp.lt.s32.totalorder %v4543, 8256
        %vm5056 = vcmp.lt.s32.totalorder %v4544, 8256
        %vm5057 = vcmp.lt.s32.totalorder %v4545, 8256
        %vm5058 = vcmp.lt.s32.totalorder %v4546, 8256
        %vm5059 = vcmp.lt.s32.totalorder %v4547, 8256
        %vm5060 = vcmp.lt.s32.totalorder %v4548, 8256
        %vm5061 = vcmp.lt.s32.totalorder %v4549, 8256
        %vm5062 = vcmp.lt.s32.totalorder %v4550, 8256
        %vm5063 = vcmp.lt.s32.totalorder %v4551, 8256
        %vm5064 = vcmp.lt.s32.totalorder %v4552, 8256
        %vm5065 = vcmp.lt.s32.totalorder %v4553, 8256
        %vm5066 = vcmp.lt.s32.totalorder %v4554, 8256
        %vm5067 = vcmp.lt.s32.totalorder %v4555, 8256
        %vm5068 = vcmp.lt.s32.totalorder %v4556, 8256
        %vm5069 = vcmp.lt.s32.totalorder %v4557, 8256
        %vm5070 = vcmp.lt.s32.totalorder %v4558, 8256
        %vm5071 = vcmp.lt.s32.totalorder %v4559, 8256
        %vm5072 = vcmp.lt.s32.totalorder %v4560, 8256
        %vm5073 = vcmp.lt.s32.totalorder %v4561, 8256
        %vm5074 = vcmp.lt.s32.totalorder %v4562, 8256
        %vm5075 = vcmp.lt.s32.totalorder %v4563, 8256
        %vm5076 = vcmp.lt.s32.totalorder %v4564, 8256
        %vm5077 = vcmp.lt.s32.totalorder %v4565, 8256
        %vm5078 = vcmp.lt.s32.totalorder %v4566, 8256
        %vm5079 = vcmp.lt.s32.totalorder %v4567, 8256
        %vm5080 = vcmp.lt.s32.totalorder %v4568, 8256
        %vm5081 = vcmp.lt.s32.totalorder %v4569, 8256
        %vm5082 = vcmp.lt.s32.totalorder %v4570, 8256
        %vm5083 = vcmp.lt.s32.totalorder %v4571, 8256
        %vm5084 = vcmp.lt.s32.totalorder %v4572, 8256
        %vm5085 = vcmp.lt.s32.totalorder %v4573, 8256
        %vm5086 = vcmp.lt.s32.totalorder %v4574, 8256
        %vm5087 = vcmp.lt.s32.totalorder %v4575, 8256
        %vm5088 = vcmp.lt.s32.totalorder %v4576, 8256
        %vm5089 = vcmp.lt.s32.totalorder %v4577, 8256
        %vm5090 = vcmp.lt.s32.totalorder %v4578, 8256
        %vm5091 = vcmp.lt.s32.totalorder %v4579, 8256
        %vm5092 = vcmp.lt.s32.totalorder %v4580, 8256
        %vm5093 = vcmp.lt.s32.totalorder %v4581, 8256
        %vm5094 = vcmp.lt.s32.totalorder %v4582, 8256
        %vm5095 = vcmp.lt.s32.totalorder %v4583, 8256
        %vm5096 = vcmp.lt.s32.totalorder %v4584, 8256
        %vm5097 = vcmp.lt.s32.totalorder %v4585, 8256
        %vm5098 = vcmp.lt.s32.totalorder %v4586, 8256
        %vm5099 = vcmp.lt.s32.totalorder %v4587, 8256
        %vm5100 = vcmp.lt.s32.totalorder %v4588, 8256
        %vm5101 = vcmp.lt.s32.totalorder %v4589, 8256
        %vm5102 = vcmp.lt.s32.totalorder %v4590, 8256
        %vm5103 = vcmp.lt.s32.totalorder %v4591, 8256
        %vm5104 = vcmp.lt.s32.totalorder %v4592, 8256
        %vm5105 = vcmp.lt.s32.totalorder %v4593, 8256
        %vm5106 = vcmp.lt.s32.totalorder %v4594, 8256
        %vm5107 = vcmp.lt.s32.totalorder %v4595, 8256
        %vm5108 = vcmp.lt.s32.totalorder %v4596, 8256
        %vm5109 = vcmp.lt.s32.totalorder %v4597, 8256
        %vm5110 = vcmp.lt.s32.totalorder %v4598, 8256
        %vm5111 = vcmp.lt.s32.totalorder %v4599, 8256
        %vm5112 = vcmp.lt.s32.totalorder %v4600, 8256
        %vm5113 = vcmp.lt.s32.totalorder %v4601, 8256
        %vm5114 = vcmp.lt.s32.totalorder %v4602, 8256
        %vm5115 = vcmp.lt.s32.totalorder %v4603, 8256
        %vm5116 = vcmp.lt.s32.totalorder %v4604, 8256
        %vm5117 = vcmp.lt.s32.totalorder %v4605, 8256
        %vm5118 = vcmp.lt.s32.totalorder %v4606, 8256
        %vm5119 = vcmp.lt.s32.totalorder %v4607, 8256
        %vm5120 = vcmp.lt.s32.totalorder %v4608, 8256
        %vm5121 = vcmp.lt.s32.totalorder %v4609, 8256
        %vm5122 = vcmp.lt.s32.totalorder %v4610, 8256
        %vm5123 = vcmp.lt.s32.totalorder %v4611, 8256
        %vm5124 = vcmp.lt.s32.totalorder %v4612, 8256
        %vm5125 = vcmp.lt.s32.totalorder %v4613, 8256
        %vm5126 = vcmp.lt.s32.totalorder %v4614, 8256
        %vm5127 = vcmp.lt.s32.totalorder %v4615, 8256
        %vm5128 = vcmp.lt.s32.totalorder %v4616, 8256
        %vm5129 = vcmp.lt.s32.totalorder %v4617, 8256
        %vm5130 = vcmp.lt.s32.totalorder %v4618, 8256
        %vm5131 = vcmp.lt.s32.totalorder %v4619, 8256
        %vm5132 = vcmp.lt.s32.totalorder %v4620, 8256
        %vm5133 = vcmp.lt.s32.totalorder %v4621, 8256
        %vm5134 = vcmp.lt.s32.totalorder %v4622, 8256
        %vm5135 = vcmp.lt.s32.totalorder %v4623, 8256
        %vm5136 = vcmp.lt.s32.totalorder %v4624, 8256
        %vm5137 = vcmp.lt.s32.totalorder %v4625, 8256
        %vm5138 = vcmp.lt.s32.totalorder %v4626, 8256
        %vm5139 = vcmp.lt.s32.totalorder %v4627, 8256
        %vm5140 = vcmp.lt.s32.totalorder %v4628, 8256
        %vm5141 = vcmp.lt.s32.totalorder %v4629, 8256
        %vm5142 = vcmp.lt.s32.totalorder %v4630, 8256
        %vm5143 = vcmp.lt.s32.totalorder %v4631, 8256
        %vm5144 = vcmp.lt.s32.totalorder %v4632, 8256
        %vm5145 = vcmp.lt.s32.totalorder %v4633, 8256
        %vm5146 = vcmp.lt.s32.totalorder %v4634, 8256
        %vm5147 = vcmp.lt.s32.totalorder %v4635, 8256
        %vm5148 = vcmp.lt.s32.totalorder %v4636, 8256
        %vm5149 = vcmp.lt.s32.totalorder %v4637, 8256
        %vm5150 = vcmp.lt.s32.totalorder %v4638, 8256
        %vm5151 = vcmp.lt.s32.totalorder %v4639, 8256
        %vm5152 = vcmp.lt.s32.totalorder %v4640, 8256
        %vm5153 = vcmp.lt.s32.totalorder %v4641, 8256
        %vm5154 = vcmp.lt.s32.totalorder %v4642, 8256
        %vm5155 = vcmp.lt.s32.totalorder %v4643, 8256
        %vm5156 = vcmp.lt.s32.totalorder %v4644, 8256
        %vm5157 = vcmp.lt.s32.totalorder %v4645, 8256
        %vm5158 = vcmp.lt.s32.totalorder %v4646, 8256
        %vm5159 = vcmp.lt.s32.totalorder %v4647, 8256
        %vm5160 = vcmp.lt.s32.totalorder %v4648, 8256
        %vm5161 = vcmp.lt.s32.totalorder %v4649, 8256
        %vm5162 = vcmp.lt.s32.totalorder %v4650, 8256
        %vm5163 = vcmp.lt.s32.totalorder %v4651, 8256
        %vm5164 = vcmp.lt.s32.totalorder %v4652, 8256
        %vm5165 = vcmp.lt.s32.totalorder %v4653, 8256
        %vm5166 = vcmp.lt.s32.totalorder %v4654, 8256
        %vm5167 = vcmp.lt.s32.totalorder %v4655, 8256
        %vm5168 = vcmp.lt.s32.totalorder %v4656, 8256
        %vm5169 = vcmp.lt.s32.totalorder %v4657, 8256
        %vm5170 = vcmp.lt.s32.totalorder %v4658, 8256
        %vm5171 = vcmp.lt.s32.totalorder %v4659, 8256
        %vm5172 = vcmp.lt.s32.totalorder %v4660, 8256
        %vm5173 = vcmp.lt.s32.totalorder %v4661, 8256
        %vm5174 = vcmp.lt.s32.totalorder %v4662, 8256
        %vm5175 = vcmp.lt.s32.totalorder %v4663, 8256
        %vm5176 = vcmp.lt.s32.totalorder %v4664, 8256
        %vm5177 = vcmp.lt.s32.totalorder %v4665, 8256
        %vm5178 = vcmp.lt.s32.totalorder %v4666, 8256
        %vm5179 = vcmp.lt.s32.totalorder %v4667, 8256
        %vm5180 = vcmp.lt.s32.totalorder %v4668, 8256
        %vm5181 = vcmp.lt.s32.totalorder %v4669, 8256
        %vm5182 = vcmp.lt.s32.totalorder %v4670, 8256
        %vm5183 = vcmp.lt.s32.totalorder %v4671, 8256
        %vm5184 = vcmp.lt.s32.totalorder %v4672, 8256
        %vm5185 = vcmp.lt.s32.totalorder %v4673, 8256
        %vm5186 = vcmp.lt.s32.totalorder %v4674, 8256
        %vm5187 = vcmp.lt.s32.totalorder %v4675, 8256
        %vm5188 = vcmp.lt.s32.totalorder %v4676, 8256
        %vm5189 = vcmp.lt.s32.totalorder %v4677, 8256
        %vm5190 = vcmp.lt.s32.totalorder %v4678, 8256
        %vm5191 = vcmp.lt.s32.totalorder %v4679, 8256
        %vm5192 = vcmp.lt.s32.totalorder %v4680, 8256
        %vm5193 = vcmp.lt.s32.totalorder %v4681, 8256
        %vm5194 = vcmp.lt.s32.totalorder %v4682, 8256
        %vm5195 = vcmp.lt.s32.totalorder %v4683, 8256
        %vm5196 = vcmp.lt.s32.totalorder %v4684, 8256
        %vm5197 = vcmp.lt.s32.totalorder %v4685, 8256
        %vm5198 = vcmp.lt.s32.totalorder %v4686, 8256
        %vm5199 = vcmp.lt.s32.totalorder %v4687, 8256
        %vm5200 = vcmp.lt.s32.totalorder %v4688, 8256
        %vm5201 = vcmp.lt.s32.totalorder %v4689, 8256
        %vm5202 = vcmp.lt.s32.totalorder %v4690, 8256
        %vm5203 = vcmp.lt.s32.totalorder %v4691, 8256
        %vm5204 = vcmp.lt.s32.totalorder %v4692, 8256
        %vm5205 = vcmp.lt.s32.totalorder %v4693, 8256
        %vm5206 = vcmp.lt.s32.totalorder %v4694, 8256
        %vm5207 = vcmp.lt.s32.totalorder %v4695, 8256
        %vm5208 = vcmp.lt.s32.totalorder %v4696, 8256
        %vm5209 = vcmp.lt.s32.totalorder %v4697, 8256
        %vm5210 = vcmp.lt.s32.totalorder %v4698, 8256
        %vm5211 = vcmp.lt.s32.totalorder %v4699, 8256
        %vm5212 = vcmp.lt.s32.totalorder %v4700, 8256
        %vm5213 = vcmp.lt.s32.totalorder %v4701, 8256
        %vm5214 = vcmp.lt.s32.totalorder %v4702, 8256
        %vm5215 = vcmp.lt.s32.totalorder %v4703, 8256
        %vm5216 = vcmp.lt.s32.totalorder %v4704, 8256
        %vm5217 = vcmp.lt.s32.totalorder %v4705, 8256
        %vm5218 = vcmp.lt.s32.totalorder %v4706, 8256
        %vm5219 = vcmp.lt.s32.totalorder %v4707, 8256
        %vm5220 = vcmp.lt.s32.totalorder %v4708, 8256
        %vm5221 = vcmp.lt.s32.totalorder %v4709, 8256
        %vm5222 = vcmp.lt.s32.totalorder %v4710, 8256
        %vm5223 = vcmp.lt.s32.totalorder %v4711, 8256
        %vm5224 = vcmp.lt.s32.totalorder %v4712, 8256
        %vm5225 = vcmp.lt.s32.totalorder %v4713, 8256
        %vm5226 = vcmp.lt.s32.totalorder %v4714, 8256
        %vm5227 = vcmp.lt.s32.totalorder %v4715, 8256
        %vm5228 = vcmp.lt.s32.totalorder %v4716, 8256
        %vm5229 = vcmp.lt.s32.totalorder %v4717, 8256
        %vm5230 = vcmp.lt.s32.totalorder %v4718, 8256
        %vm5231 = vcmp.lt.s32.totalorder %v4719, 8256
        %vm5232 = vcmp.lt.s32.totalorder %v4720, 8256
        %vm5233 = vcmp.lt.s32.totalorder %v4721, 8256
        %vm5234 = vcmp.lt.s32.totalorder %v4722, 8256
        %vm5235 = vcmp.lt.s32.totalorder %v4723, 8256
        %vm5236 = vcmp.lt.s32.totalorder %v4724, 8256
        %vm5237 = vcmp.lt.s32.totalorder %v4725, 8256
        %vm5238 = vcmp.lt.s32.totalorder %v4726, 8256
        %vm5239 = vcmp.lt.s32.totalorder %v4727, 8256
        %vm5240 = vcmp.lt.s32.totalorder %v4728, 8256
        %vm5241 = vcmp.lt.s32.totalorder %v4729, 8256
        %vm5242 = vcmp.lt.s32.totalorder %v4730, 8256
        %vm5243 = vcmp.lt.s32.totalorder %v4731, 8256
        %vm5244 = vcmp.lt.s32.totalorder %v4732, 8256
        %vm5245 = vcmp.lt.s32.totalorder %v4733, 8256
        %vm5246 = vcmp.lt.s32.totalorder %v4734, 8256
        %vm5247 = vcmp.lt.s32.totalorder %v4735, 8256
        %vm5248 = vcmp.lt.s32.totalorder %v4736, 8256
        %vm5249 = vcmp.lt.s32.totalorder %v4737, 8256
        %vm5250 = vcmp.lt.s32.totalorder %v4738, 8256
        %vm5251 = vcmp.lt.s32.totalorder %v4739, 8256
        %vm5252 = vcmp.lt.s32.totalorder %v4740, 8256
        %vm5253 = vcmp.lt.s32.totalorder %v4741, 8256
        %vm5254 = vcmp.lt.s32.totalorder %v4742, 8256
        %vm5255 = vcmp.lt.s32.totalorder %v4743, 8256
        %vm5256 = vcmp.lt.s32.totalorder %v4744, 8256
        %vm5257 = vcmp.lt.s32.totalorder %v4745, 8256
        %vm5258 = vcmp.lt.s32.totalorder %v4746, 8256
        %vm5259 = vcmp.lt.s32.totalorder %v4747, 8256
        %vm5260 = vcmp.lt.s32.totalorder %v4748, 8256
        %vm5261 = vcmp.lt.s32.totalorder %v4749, 8256
        %vm5262 = vcmp.lt.s32.totalorder %v4750, 8256
        %vm5263 = vcmp.lt.s32.totalorder %v4751, 8256
        %vm5264 = vcmp.lt.s32.totalorder %v4752, 8256
        %vm5265 = vcmp.lt.s32.totalorder %v4753, 8256
        %vm5266 = vcmp.lt.s32.totalorder %v4754, 8256
        %vm5267 = vcmp.lt.s32.totalorder %v4755, 8256
        %vm5268 = vcmp.lt.s32.totalorder %v4756, 8256
        %vm5269 = vcmp.lt.s32.totalorder %v4757, 8256
        %vm5270 = vcmp.lt.s32.totalorder %v4758, 8256
        %vm5271 = vcmp.lt.s32.totalorder %v4759, 8256
        %vm5272 = vcmp.lt.s32.totalorder %v4760, 8256
        %vm5273 = vcmp.lt.s32.totalorder %v4761, 8256
        %vm5274 = vcmp.lt.s32.totalorder %v4762, 8256
        %vm5275 = vcmp.lt.s32.totalorder %v4763, 8256
        %vm5276 = vcmp.lt.s32.totalorder %v4764, 8256
        %vm5277 = vcmp.lt.s32.totalorder %v4765, 8256
        %vm5278 = vcmp.lt.s32.totalorder %v4766, 8256
        %vm5279 = vcmp.lt.s32.totalorder %v4767, 8256
        %vm5280 = vcmp.lt.s32.totalorder %v4768, 8256
        %vm5281 = vcmp.lt.s32.totalorder %v4769, 8256
        %vm5282 = vcmp.lt.s32.totalorder %v4770, 8256
        %vm5283 = vcmp.lt.s32.totalorder %v4771, 8256
        %vm5284 = vcmp.lt.s32.totalorder %v4772, 8256
        %vm5285 = vcmp.lt.s32.totalorder %v4773, 8256
        %vm5286 = vcmp.lt.s32.totalorder %v4774, 8256
        %vm5287 = vcmp.lt.s32.totalorder %v4775, 8256
        %vm5288 = vcmp.lt.s32.totalorder %v4776, 8256
        %vm5289 = vcmp.lt.s32.totalorder %v4777, 8256
        %vm5290 = vcmp.lt.s32.totalorder %v4778, 8256
        %vm5291 = vcmp.lt.s32.totalorder %v4779, 8256
        %vm5292 = vcmp.lt.s32.totalorder %v4780, 8256
        %vm5293 = vcmp.lt.s32.totalorder %v4781, 8256
        %vm5294 = vcmp.lt.s32.totalorder %v4782, 8256
        %vm5295 = vcmp.lt.s32.totalorder %v4783, 8256
        %vm5296 = vcmp.lt.s32.totalorder %v4784, 8256
        %vm5297 = vcmp.lt.s32.totalorder %v4785, 8256
        %vm5298 = vcmp.lt.s32.totalorder %v4786, 8256
        %vm5299 = vcmp.lt.s32.totalorder %v4787, 8256
        %vm5300 = vcmp.lt.s32.totalorder %v4788, 8256
        %vm5301 = vcmp.lt.s32.totalorder %v4789, 8256
        %vm5302 = vcmp.lt.s32.totalorder %v4790, 8256
        %vm5303 = vcmp.lt.s32.totalorder %v4791, 8256
        %vm5304 = vcmp.lt.s32.totalorder %v4792, 8256
        %vm5305 = vcmp.lt.s32.totalorder %v4793, 8256
        %vm5306 = vcmp.lt.s32.totalorder %v4794, 8256
        %vm5307 = vcmp.lt.s32.totalorder %v4795, 8256
        %vm5308 = vcmp.lt.s32.totalorder %v4796, 8256
        %vm5309 = vcmp.lt.s32.totalorder %v4797, 8256
        %vm5310 = vcmp.lt.s32.totalorder %v4798, 8256
        %vm5311 = vcmp.lt.s32.totalorder %v4799, 8256
        %vm5312 = vcmp.lt.s32.totalorder %v4800, 8256
        %vm5313 = vcmp.lt.s32.totalorder %v4801, 8256
        %vm5314 = vcmp.lt.s32.totalorder %v4802, 8256
        %vm5315 = vcmp.lt.s32.totalorder %v4803, 8256
        %vm5316 = vcmp.lt.s32.totalorder %v4804, 8256
        %vm5317 = vcmp.lt.s32.totalorder %v4805, 8256
        %vm5318 = vcmp.lt.s32.totalorder %v4806, 8256
        %vm5319 = vcmp.lt.s32.totalorder %v4807, 8256
        %vm5320 = vcmp.lt.s32.totalorder %v4808, 8256
        %vm5321 = vcmp.lt.s32.totalorder %v4809, 8256
        %vm5322 = vcmp.lt.s32.totalorder %v4810, 8256
        %vm5323 = vcmp.lt.s32.totalorder %v4811, 8256
        %vm5324 = vcmp.lt.s32.totalorder %v4812, 8256
        %vm5325 = vcmp.lt.s32.totalorder %v4813, 8256
        %vm5326 = vcmp.lt.s32.totalorder %v4814, 8256
        %vm5327 = vcmp.lt.s32.totalorder %v4815, 8256
        %vm5328 = vcmp.lt.s32.totalorder %v4816, 8256
        %vm5329 = vcmp.lt.s32.totalorder %v4817, 8256
        %vm5330 = vcmp.lt.s32.totalorder %v4818, 8256
        %vm5331 = vcmp.lt.s32.totalorder %v4819, 8256
        %vm5332 = vcmp.lt.s32.totalorder %v4820, 8256
        %vm5333 = vcmp.lt.s32.totalorder %v4821, 8256
        %vm5334 = vcmp.lt.s32.totalorder %v4822, 8256
        %vm5335 = vcmp.lt.s32.totalorder %v4823, 8256
        %vm5336 = vcmp.lt.s32.totalorder %v4824, 8256
        %vm5337 = vcmp.lt.s32.totalorder %v4825, 8256
        %vm5338 = vcmp.lt.s32.totalorder %v4826, 8256
        %vm5339 = vcmp.lt.s32.totalorder %v4827, 8256
        %vm5340 = vcmp.lt.s32.totalorder %v4828, 8256
        %vm5341 = vcmp.lt.s32.totalorder %v4829, 8256
        %vm5342 = vcmp.lt.s32.totalorder %v4830, 8256
        %vm5343 = vcmp.lt.s32.totalorder %v4831, 8256
        %vm5344 = vcmp.lt.s32.totalorder %v4832, 8256
        %vm5345 = vcmp.lt.s32.totalorder %v4833, 8256
        %vm5346 = vcmp.lt.s32.totalorder %v4834, 8256
        %vm5347 = vcmp.lt.s32.totalorder %v4835, 8256
        %vm5348 = vcmp.lt.s32.totalorder %v4836, 8256
        %vm5349 = vcmp.lt.s32.totalorder %v4837, 8256
        %vm5350 = vcmp.lt.s32.totalorder %v4838, 8256
        %vm5351 = vcmp.lt.s32.totalorder %v4839, 8256
        %vm5352 = vcmp.lt.s32.totalorder %v4840, 8256
        %vm5353 = vcmp.lt.s32.totalorder %v4841, 8256
        %vm5354 = vcmp.lt.s32.totalorder %v4842, 8256
        %vm5355 = vcmp.lt.s32.totalorder %v4843, 8256
        %vm5356 = vcmp.lt.s32.totalorder %v4844, 8256
        %vm5357 = vcmp.lt.s32.totalorder %v4845, 8256
        %vm5358 = vcmp.lt.s32.totalorder %v4846, 8256
        %vm5359 = vcmp.lt.s32.totalorder %v4847, 8256
        %vm5360 = vcmp.lt.s32.totalorder %v4848, 8256
        %vm5361 = vcmp.lt.s32.totalorder %v4849, 8256
        %vm5362 = vcmp.lt.s32.totalorder %v4850, 8256
        %vm5363 = vcmp.lt.s32.totalorder %v4851, 8256
        %vm5364 = vcmp.lt.s32.totalorder %v4852, 8256
        %vm5365 = vcmp.lt.s32.totalorder %v4853, 8256
        %vm5366 = vcmp.lt.s32.totalorder %v4854, 8256
        %vm5367 = vcmp.lt.s32.totalorder %v4855, 8256
        %vm5368 = vcmp.lt.s32.totalorder %v4856, 8256
        %vm5369 = vcmp.lt.s32.totalorder %v4857, 8256
        %vm5370 = vcmp.lt.s32.totalorder %v4858, 8256
        %vm5371 = vcmp.lt.s32.totalorder %v4859, 8256
        %vm5372 = vcmp.lt.s32.totalorder %v4860, 8256
        %vm5373 = vcmp.lt.s32.totalorder %v4861, 8256
        %vm5374 = vcmp.lt.s32.totalorder %v4862, 8256
        %vm5375 = vcmp.lt.s32.totalorder %v4863, 8256
        %vm5376 = vcmp.lt.s32.totalorder %v4864, 8256
        %vm5377 = vcmp.lt.s32.totalorder %v4865, 8256
        %vm5378 = vcmp.lt.s32.totalorder %v4866, 8256
        %vm5379 = vcmp.lt.s32.totalorder %v4867, 8256
        %vm5380 = vcmp.lt.s32.totalorder %v4868, 8256
        %vm5381 = vcmp.lt.s32.totalorder %v4869, 8256
        %vm5382 = vcmp.lt.s32.totalorder %v4870, 8256
        %vm5383 = vcmp.lt.s32.totalorder %v4871, 8256
        %vm5384 = vcmp.lt.s32.totalorder %v4872, 8256
        %vm5385 = vcmp.lt.s32.totalorder %v4873, 8256
        %vm5386 = vcmp.lt.s32.totalorder %v4874, 8256
        %vm5387 = vcmp.lt.s32.totalorder %v4875, 8256
        %vm5388 = vcmp.lt.s32.totalorder %v4876, 8256
        %vm5389 = vcmp.lt.s32.totalorder %v4877, 8256
        %vm5390 = vcmp.lt.s32.totalorder %v4878, 8256
        %vm5391 = vcmp.lt.s32.totalorder %v4879, 8256
        %vm5392 = vcmp.lt.s32.totalorder %v4880, 8256
        %vm5393 = vcmp.lt.s32.totalorder %v4881, 8256
        %vm5394 = vcmp.lt.s32.totalorder %v4882, 8256
        %vm5395 = vcmp.lt.s32.totalorder %v4883, 8256
        %vm5396 = vcmp.lt.s32.totalorder %v4884, 8256
        %vm5397 = vcmp.lt.s32.totalorder %v4885, 8256
        %vm5398 = vcmp.lt.s32.totalorder %v4886, 8256
        %vm5399 = vcmp.lt.s32.totalorder %v4887, 8256
        %vm5400 = vcmp.lt.s32.totalorder %v4888, 8256
        %vm5401 = vcmp.lt.s32.totalorder %v4889, 8256
        %vm5402 = vcmp.lt.s32.totalorder %v4890, 8256
        %vm5403 = vcmp.lt.s32.totalorder %v4891, 8256
        %vm5404 = vcmp.lt.s32.totalorder %v4892, 8256
        %vm5405 = vcmp.lt.s32.totalorder %v4893, 8256
        %vm5406 = vcmp.lt.s32.totalorder %v4894, 8256
        %vm5407 = vcmp.lt.s32.totalorder %v4895, 8256
        %vm5408 = vcmp.lt.s32.totalorder %v4896, 8256
        %vm5409 = vcmp.lt.s32.totalorder %v4897, 8256
        %vm5410 = vcmp.lt.s32.totalorder %v4898, 8256
        %vm5411 = vcmp.lt.s32.totalorder %v4899, 8256
        %vm5412 = vcmp.lt.s32.totalorder %v4900, 8256
        %vm5413 = vcmp.lt.s32.totalorder %v4901, 8256
        %vm5414 = vcmp.lt.s32.totalorder %v4902, 8256
        %vm5415 = vcmp.lt.s32.totalorder %v4903, 8256
        %vm5416 = vcmp.lt.s32.totalorder %v4904, 8256
        %vm5417 = vcmp.lt.s32.totalorder %v4905, 8256
        %vm5418 = vcmp.lt.s32.totalorder %v4906, 8256
        %vm5419 = vcmp.lt.s32.totalorder %v4907, 8256
        %vm5420 = vcmp.lt.s32.totalorder %v4908, 8256
        %vm5421 = vcmp.lt.s32.totalorder %v4909, 8256
        %vm5422 = vcmp.lt.s32.totalorder %v4910, 8256
        %vm5423 = vcmp.lt.s32.totalorder %v4911, 8256
        %vm5424 = vcmp.lt.s32.totalorder %v4912, 8256
        %vm5425 = vcmp.lt.s32.totalorder %v4913, 8256
        %vm5426 = vcmp.lt.s32.totalorder %v4914, 8256
        %vm5427 = vcmp.lt.s32.totalorder %v4915, 8256
        %vm5428 = vcmp.lt.s32.totalorder %v4916, 8256
        %vm5429 = vcmp.lt.s32.totalorder %v4917, 8256
        %vm5430 = vcmp.lt.s32.totalorder %v4918, 8256
        %vm5431 = vcmp.lt.s32.totalorder %v4919, 8256
        %vm5432 = vcmp.lt.s32.totalorder %v4920, 8256
        %vm5433 = vcmp.lt.s32.totalorder %v4921, 8256
        %vm5434 = vcmp.lt.s32.totalorder %v4922, 8256
        %vm5435 = vcmp.lt.s32.totalorder %v4923, 8256
        %vm5436 = vcmp.lt.s32.totalorder %v4924, 8256
        %vm5437 = vcmp.lt.s32.totalorder %v4925, 8256
        %vm5438 = vcmp.lt.s32.totalorder %v4926, 8256
        %vm5439 = vcmp.lt.s32.totalorder %v4927, 8256
        %vm5440 = vcmp.lt.s32.totalorder %v4928, 8256
        %vm5441 = vcmp.lt.s32.totalorder %v4929, 8256
        %vm5442 = vcmp.lt.s32.totalorder %v4930, 8256
        %vm5443 = vcmp.lt.s32.totalorder %v4931, 8256
        %vm5444 = vcmp.lt.s32.totalorder %v4932, 8256
        %vm5445 = vcmp.lt.s32.totalorder %v4933, 8256
        %vm5446 = vcmp.lt.s32.totalorder %v4934, 8256
        %vm5447 = vcmp.lt.s32.totalorder %v4935, 8256
        %vm5448 = vcmp.lt.s32.totalorder %v4936, 8256
        %vm5449 = vcmp.lt.s32.totalorder %v4937, 8256
        %vm5450 = vcmp.lt.s32.totalorder %v4938, 8256
        %vm5451 = vcmp.lt.s32.totalorder %v4939, 8256
        %vm5452 = vcmp.lt.s32.totalorder %v4940, 8256
        %vm5453 = vcmp.lt.s32.totalorder %v4941, 8256
        %vm5454 = vcmp.lt.s32.totalorder %v4942, 8256
        %vm5455 = vcmp.lt.s32.totalorder %v4943, 8256
        %vm5456 = vcmp.lt.s32.totalorder %v4944, 8256
        %vm5457 = vcmp.lt.s32.totalorder %v4945, 8256
        %vm5458 = vcmp.lt.s32.totalorder %v4946, 8256
        %vm5459 = vcmp.lt.s32.totalorder %v4947, 8256
        %vm5460 = vcmp.lt.s32.totalorder %v4948, 8256
        %vm5461 = vcmp.lt.s32.totalorder %v4949, 8256
        %vm5462 = vcmp.lt.s32.totalorder %v4950, 8256
        %vm5463 = vcmp.lt.s32.totalorder %v4951, 8256
        %vm5464 = vcmp.lt.s32.totalorder %v4952, 8256
        %vm5465 = vcmp.lt.s32.totalorder %v4953, 8256
        %vm5466 = vcmp.lt.s32.totalorder %v4954, 8256
        %vm5467 = vcmp.lt.s32.totalorder %v4955, 8256
        %vm5468 = vcmp.lt.s32.totalorder %v4956, 8256
        %vm5469 = vcmp.lt.s32.totalorder %v4957, 8256
        %vm5470 = vcmp.lt.s32.totalorder %v4958, 8256
        %vm5471 = vcmp.lt.s32.totalorder %v4959, 8256
        %vm5472 = vcmp.lt.s32.totalorder %v4960, 8256
        %vm5473 = vcmp.lt.s32.totalorder %v4961, 8256
        %vm5474 = vcmp.lt.s32.totalorder %v4962, 8256
        %vm5475 = vcmp.lt.s32.totalorder %v4963, 8256
        %vm5476 = vcmp.lt.s32.totalorder %v4964, 8256
        %vm5477 = vcmp.lt.s32.totalorder %v4965, 8256
        %vm5478 = vcmp.lt.s32.totalorder %v4966, 8256
        %vm5479 = vcmp.lt.s32.totalorder %v4967, 8256
        %vm5480 = vcmp.lt.s32.totalorder %v4968, 8256
        %vm5481 = vcmp.lt.s32.totalorder %v4969, 8256
        %vm5482 = vcmp.lt.s32.totalorder %v4970, 8256
        %vm5483 = vcmp.lt.s32.totalorder %v4971, 8256
        %vm5484 = vcmp.lt.s32.totalorder %v4972, 8256
        %vm5485 = vcmp.lt.s32.totalorder %v4973, 8256
        %vm5486 = vcmp.lt.s32.totalorder %v4974, 8256
        %vm5487 = vcmp.lt.s32.totalorder %v4975, 8256
        %vm5488 = vcmp.lt.s32.totalorder %v4976, 8256
        %v5489 = vsel %vm4977, %v3436, 0.0
        %v5490 = vsel %vm4978, %v3437, 0.0
        %v5491 = vsel %vm4979, %v3438, 0.0
        %v5492 = vsel %vm4980, %v3439, 0.0
        %v5493 = vsel %vm4981, %v3440, 0.0
        %v5494 = vsel %vm4982, %v3441, 0.0
        %v5495 = vsel %vm4983, %v3442, 0.0
        %v5496 = vsel %vm4984, %v3443, 0.0
        %v5497 = vsel %vm4985, %v3444, 0.0
        %v5498 = vsel %vm4986, %v3445, 0.0
        %v5499 = vsel %vm4987, %v3446, 0.0
        %v5500 = vsel %vm4988, %v3447, 0.0
        %v5501 = vsel %vm4989, %v3448, 0.0
        %v5502 = vsel %vm4990, %v3449, 0.0
        %v5503 = vsel %vm4991, %v3450, 0.0
        %v5504 = vsel %vm4992, %v3451, 0.0
        %v5505 = vsel %vm4993, %v3452, 0.0
        %v5506 = vsel %vm4994, %v3453, 0.0
        %v5507 = vsel %vm4995, %v3454, 0.0
        %v5508 = vsel %vm4996, %v3455, 0.0
        %v5509 = vsel %vm4997, %v3456, 0.0
        %v5510 = vsel %vm4998, %v3457, 0.0
        %v5511 = vsel %vm4999, %v3458, 0.0
        %v5512 = vsel %vm5000, %v3459, 0.0
        %v5513 = vsel %vm5001, %v3460, 0.0
        %v5514 = vsel %vm5002, %v3461, 0.0
        %v5515 = vsel %vm5003, %v3462, 0.0
        %v5516 = vsel %vm5004, %v3463, 0.0
        %v5517 = vsel %vm5005, %v3464, 0.0
        %v5518 = vsel %vm5006, %v3465, 0.0
        %v5519 = vsel %vm5007, %v3466, 0.0
        %v5520 = vsel %vm5008, %v3467, 0.0
        %v5521 = vsel %vm5009, %v3468, 0.0
        %v5522 = vsel %vm5010, %v3469, 0.0
        %v5523 = vsel %vm5011, %v3470, 0.0
        %v5524 = vsel %vm5012, %v3471, 0.0
        %v5525 = vsel %vm5013, %v3472, 0.0
        %v5526 = vsel %vm5014, %v3473, 0.0
        %v5527 = vsel %vm5015, %v3474, 0.0
        %v5528 = vsel %vm5016, %v3475, 0.0
        %v5529 = vsel %vm5017, %v3476, 0.0
        %v5530 = vsel %vm5018, %v3477, 0.0
        %v5531 = vsel %vm5019, %v3478, 0.0
        %v5532 = vsel %vm5020, %v3479, 0.0
        %v5533 = vsel %vm5021, %v3480, 0.0
        %v5534 = vsel %vm5022, %v3481, 0.0
        %v5535 = vsel %vm5023, %v3482, 0.0
        %v5536 = vsel %vm5024, %v3483, 0.0
        %v5537 = vsel %vm5025, %v3484, 0.0
        %v5538 = vsel %vm5026, %v3485, 0.0
        %v5539 = vsel %vm5027, %v3486, 0.0
        %v5540 = vsel %vm5028, %v3487, 0.0
        %v5541 = vsel %vm5029, %v3488, 0.0
        %v5542 = vsel %vm5030, %v3489, 0.0
        %v5543 = vsel %vm5031, %v3490, 0.0
        %v5544 = vsel %vm5032, %v3491, 0.0
        %v5545 = vsel %vm5033, %v3492, 0.0
        %v5546 = vsel %vm5034, %v3493, 0.0
        %v5547 = vsel %vm5035, %v3494, 0.0
        %v5548 = vsel %vm5036, %v3495, 0.0
        %v5549 = vsel %vm5037, %v3496, 0.0
        %v5550 = vsel %vm5038, %v3497, 0.0
        %v5551 = vsel %vm5039, %v3498, 0.0
        %v5552 = vsel %vm5040, %v3499, 0.0
        %v5553 = vsel %vm5041, %v3500, 0.0
        %v5554 = vsel %vm5042, %v3501, 0.0
        %v5555 = vsel %vm5043, %v3502, 0.0
        %v5556 = vsel %vm5044, %v3503, 0.0
        %v5557 = vsel %vm5045, %v3504, 0.0
        %v5558 = vsel %vm5046, %v3505, 0.0
        %v5559 = vsel %vm5047, %v3506, 0.0
        %v5560 = vsel %vm5048, %v3507, 0.0
        %v5561 = vsel %vm5049, %v3508, 0.0
        %v5562 = vsel %vm5050, %v3509, 0.0
        %v5563 = vsel %vm5051, %v3510, 0.0
        %v5564 = vsel %vm5052, %v3511, 0.0
        %v5565 = vsel %vm5053, %v3512, 0.0
        %v5566 = vsel %vm5054, %v3513, 0.0
        %v5567 = vsel %vm5055, %v3514, 0.0
        %v5568 = vsel %vm5056, %v3515, 0.0
        %v5569 = vsel %vm5057, %v3516, 0.0
        %v5570 = vsel %vm5058, %v3517, 0.0
        %v5571 = vsel %vm5059, %v3518, 0.0
        %v5572 = vsel %vm5060, %v3519, 0.0
        %v5573 = vsel %vm5061, %v3520, 0.0
        %v5574 = vsel %vm5062, %v3521, 0.0
        %v5575 = vsel %vm5063, %v3522, 0.0
        %v5576 = vsel %vm5064, %v3523, 0.0
        %v5577 = vsel %vm5065, %v3524, 0.0
        %v5578 = vsel %vm5066, %v3525, 0.0
        %v5579 = vsel %vm5067, %v3526, 0.0
        %v5580 = vsel %vm5068, %v3527, 0.0
        %v5581 = vsel %vm5069, %v3528, 0.0
        %v5582 = vsel %vm5070, %v3529, 0.0
        %v5583 = vsel %vm5071, %v3530, 0.0
        %v5584 = vsel %vm5072, %v3531, 0.0
        %v5585 = vsel %vm5073, %v3532, 0.0
        %v5586 = vsel %vm5074, %v3533, 0.0
        %v5587 = vsel %vm5075, %v3534, 0.0
        %v5588 = vsel %vm5076, %v3535, 0.0
        %v5589 = vsel %vm5077, %v3536, 0.0
        %v5590 = vsel %vm5078, %v3537, 0.0
        %v5591 = vsel %vm5079, %v3538, 0.0
        %v5592 = vsel %vm5080, %v3539, 0.0
        %v5593 = vsel %vm5081, %v3540, 0.0
        %v5594 = vsel %vm5082, %v3541, 0.0
        %v5595 = vsel %vm5083, %v3542, 0.0
        %v5596 = vsel %vm5084, %v3543, 0.0
        %v5597 = vsel %vm5085, %v3544, 0.0
        %v5598 = vsel %vm5086, %v3545, 0.0
        %v5599 = vsel %vm5087, %v3546, 0.0
        %v5600 = vsel %vm5088, %v3547, 0.0
        %v5601 = vsel %vm5089, %v3548, 0.0
        %v5602 = vsel %vm5090, %v3549, 0.0
        %v5603 = vsel %vm5091, %v3550, 0.0
        %v5604 = vsel %vm5092, %v3551, 0.0
        %v5605 = vsel %vm5093, %v3552, 0.0
        %v5606 = vsel %vm5094, %v3553, 0.0
        %v5607 = vsel %vm5095, %v3554, 0.0
        %v5608 = vsel %vm5096, %v3555, 0.0
        %v5609 = vsel %vm5097, %v3556, 0.0
        %v5610 = vsel %vm5098, %v3557, 0.0
        %v5611 = vsel %vm5099, %v3558, 0.0
        %v5612 = vsel %vm5100, %v3559, 0.0
        %v5613 = vsel %vm5101, %v3560, 0.0
        %v5614 = vsel %vm5102, %v3561, 0.0
        %v5615 = vsel %vm5103, %v3562, 0.0
        %v5616 = vsel %vm5104, %v3563, 0.0
        %v5617 = vsel %vm5105, %v3564, 0.0
        %v5618 = vsel %vm5106, %v3565, 0.0
        %v5619 = vsel %vm5107, %v3566, 0.0
        %v5620 = vsel %vm5108, %v3567, 0.0
        %v5621 = vsel %vm5109, %v3568, 0.0
        %v5622 = vsel %vm5110, %v3569, 0.0
        %v5623 = vsel %vm5111, %v3570, 0.0
        %v5624 = vsel %vm5112, %v3571, 0.0
        %v5625 = vsel %vm5113, %v3572, 0.0
        %v5626 = vsel %vm5114, %v3573, 0.0
        %v5627 = vsel %vm5115, %v3574, 0.0
        %v5628 = vsel %vm5116, %v3575, 0.0
        %v5629 = vsel %vm5117, %v3576, 0.0
        %v5630 = vsel %vm5118, %v3577, 0.0
        %v5631 = vsel %vm5119, %v3578, 0.0
        %v5632 = vsel %vm5120, %v3579, 0.0
        %v5633 = vsel %vm5121, %v3580, 0.0
        %v5634 = vsel %vm5122, %v3581, 0.0
        %v5635 = vsel %vm5123, %v3582, 0.0
        %v5636 = vsel %vm5124, %v3583, 0.0
        %v5637 = vsel %vm5125, %v3584, 0.0
        %v5638 = vsel %vm5126, %v3585, 0.0
        %v5639 = vsel %vm5127, %v3586, 0.0
        %v5640 = vsel %vm5128, %v3587, 0.0
        %v5641 = vsel %vm5129, %v3588, 0.0
        %v5642 = vsel %vm5130, %v3589, 0.0
        %v5643 = vsel %vm5131, %v3590, 0.0
        %v5644 = vsel %vm5132, %v3591, 0.0
        %v5645 = vsel %vm5133, %v3592, 0.0
        %v5646 = vsel %vm5134, %v3593, 0.0
        %v5647 = vsel %vm5135, %v3594, 0.0
        %v5648 = vsel %vm5136, %v3595, 0.0
        %v5649 = vsel %vm5137, %v3596, 0.0
        %v5650 = vsel %vm5138, %v3597, 0.0
        %v5651 = vsel %vm5139, %v3598, 0.0
        %v5652 = vsel %vm5140, %v3599, 0.0
        %v5653 = vsel %vm5141, %v3600, 0.0
        %v5654 = vsel %vm5142, %v3601, 0.0
        %v5655 = vsel %vm5143, %v3602, 0.0
        %v5656 = vsel %vm5144, %v3603, 0.0
        %v5657 = vsel %vm5145, %v3604, 0.0
        %v5658 = vsel %vm5146, %v3605, 0.0
        %v5659 = vsel %vm5147, %v3606, 0.0
        %v5660 = vsel %vm5148, %v3607, 0.0
        %v5661 = vsel %vm5149, %v3608, 0.0
        %v5662 = vsel %vm5150, %v3609, 0.0
        %v5663 = vsel %vm5151, %v3610, 0.0
        %v5664 = vsel %vm5152, %v3611, 0.0
        %v5665 = vsel %vm5153, %v3612, 0.0
        %v5666 = vsel %vm5154, %v3613, 0.0
        %v5667 = vsel %vm5155, %v3614, 0.0
        %v5668 = vsel %vm5156, %v3615, 0.0
        %v5669 = vsel %vm5157, %v3616, 0.0
        %v5670 = vsel %vm5158, %v3617, 0.0
        %v5671 = vsel %vm5159, %v3618, 0.0
        %v5672 = vsel %vm5160, %v3619, 0.0
        %v5673 = vsel %vm5161, %v3620, 0.0
        %v5674 = vsel %vm5162, %v3621, 0.0
        %v5675 = vsel %vm5163, %v3622, 0.0
        %v5676 = vsel %vm5164, %v3623, 0.0
        %v5677 = vsel %vm5165, %v3624, 0.0
        %v5678 = vsel %vm5166, %v3625, 0.0
        %v5679 = vsel %vm5167, %v3626, 0.0
        %v5680 = vsel %vm5168, %v3627, 0.0
        %v5681 = vsel %vm5169, %v3628, 0.0
        %v5682 = vsel %vm5170, %v3629, 0.0
        %v5683 = vsel %vm5171, %v3630, 0.0
        %v5684 = vsel %vm5172, %v3631, 0.0
        %v5685 = vsel %vm5173, %v3632, 0.0
        %v5686 = vsel %vm5174, %v3633, 0.0
        %v5687 = vsel %vm5175, %v3634, 0.0
        %v5688 = vsel %vm5176, %v3635, 0.0
        %v5689 = vsel %vm5177, %v3636, 0.0
        %v5690 = vsel %vm5178, %v3637, 0.0
        %v5691 = vsel %vm5179, %v3638, 0.0
        %v5692 = vsel %vm5180, %v3639, 0.0
        %v5693 = vsel %vm5181, %v3640, 0.0
        %v5694 = vsel %vm5182, %v3641, 0.0
        %v5695 = vsel %vm5183, %v3642, 0.0
        %v5696 = vsel %vm5184, %v3643, 0.0
        %v5697 = vsel %vm5185, %v3644, 0.0
        %v5698 = vsel %vm5186, %v3645, 0.0
        %v5699 = vsel %vm5187, %v3646, 0.0
        %v5700 = vsel %vm5188, %v3647, 0.0
        %v5701 = vsel %vm5189, %v3648, 0.0
        %v5702 = vsel %vm5190, %v3649, 0.0
        %v5703 = vsel %vm5191, %v3650, 0.0
        %v5704 = vsel %vm5192, %v3651, 0.0
        %v5705 = vsel %vm5193, %v3652, 0.0
        %v5706 = vsel %vm5194, %v3653, 0.0
        %v5707 = vsel %vm5195, %v3654, 0.0
        %v5708 = vsel %vm5196, %v3655, 0.0
        %v5709 = vsel %vm5197, %v3656, 0.0
        %v5710 = vsel %vm5198, %v3657, 0.0
        %v5711 = vsel %vm5199, %v3658, 0.0
        %v5712 = vsel %vm5200, %v3659, 0.0
        %v5713 = vsel %vm5201, %v3660, 0.0
        %v5714 = vsel %vm5202, %v3661, 0.0
        %v5715 = vsel %vm5203, %v3662, 0.0
        %v5716 = vsel %vm5204, %v3663, 0.0
        %v5717 = vsel %vm5205, %v3664, 0.0
        %v5718 = vsel %vm5206, %v3665, 0.0
        %v5719 = vsel %vm5207, %v3666, 0.0
        %v5720 = vsel %vm5208, %v3667, 0.0
        %v5721 = vsel %vm5209, %v3668, 0.0
        %v5722 = vsel %vm5210, %v3669, 0.0
        %v5723 = vsel %vm5211, %v3670, 0.0
        %v5724 = vsel %vm5212, %v3671, 0.0
        %v5725 = vsel %vm5213, %v3672, 0.0
        %v5726 = vsel %vm5214, %v3673, 0.0
        %v5727 = vsel %vm5215, %v3674, 0.0
        %v5728 = vsel %vm5216, %v3675, 0.0
        %v5729 = vsel %vm5217, %v3676, 0.0
        %v5730 = vsel %vm5218, %v3677, 0.0
        %v5731 = vsel %vm5219, %v3678, 0.0
        %v5732 = vsel %vm5220, %v3679, 0.0
        %v5733 = vsel %vm5221, %v3680, 0.0
        %v5734 = vsel %vm5222, %v3681, 0.0
        %v5735 = vsel %vm5223, %v3682, 0.0
        %v5736 = vsel %vm5224, %v3683, 0.0
        %v5737 = vsel %vm5225, %v3684, 0.0
        %v5738 = vsel %vm5226, %v3685, 0.0
        %v5739 = vsel %vm5227, %v3686, 0.0
        %v5740 = vsel %vm5228, %v3687, 0.0
        %v5741 = vsel %vm5229, %v3688, 0.0
        %v5742 = vsel %vm5230, %v3689, 0.0
        %v5743 = vsel %vm5231, %v3690, 0.0
        %v5744 = vsel %vm5232, %v3691, 0.0
        %v5745 = vsel %vm5233, %v3692, 0.0
        %v5746 = vsel %vm5234, %v3693, 0.0
        %v5747 = vsel %vm5235, %v3694, 0.0
        %v5748 = vsel %vm5236, %v3695, 0.0
        %v5749 = vsel %vm5237, %v3696, 0.0
        %v5750 = vsel %vm5238, %v3697, 0.0
        %v5751 = vsel %vm5239, %v3698, 0.0
        %v5752 = vsel %vm5240, %v3699, 0.0
        %v5753 = vsel %vm5241, %v3700, 0.0
        %v5754 = vsel %vm5242, %v3701, 0.0
        %v5755 = vsel %vm5243, %v3702, 0.0
        %v5756 = vsel %vm5244, %v3703, 0.0
        %v5757 = vsel %vm5245, %v3704, 0.0
        %v5758 = vsel %vm5246, %v3705, 0.0
        %v5759 = vsel %vm5247, %v3706, 0.0
        %v5760 = vsel %vm5248, %v3707, 0.0
        %v5761 = vsel %vm5249, %v3708, 0.0
        %v5762 = vsel %vm5250, %v3709, 0.0
        %v5763 = vsel %vm5251, %v3710, 0.0
        %v5764 = vsel %vm5252, %v3711, 0.0
        %v5765 = vsel %vm5253, %v3712, 0.0
        %v5766 = vsel %vm5254, %v3713, 0.0
        %v5767 = vsel %vm5255, %v3714, 0.0
        %v5768 = vsel %vm5256, %v3715, 0.0
        %v5769 = vsel %vm5257, %v3716, 0.0
        %v5770 = vsel %vm5258, %v3717, 0.0
        %v5771 = vsel %vm5259, %v3718, 0.0
        %v5772 = vsel %vm5260, %v3719, 0.0
        %v5773 = vsel %vm5261, %v3720, 0.0
        %v5774 = vsel %vm5262, %v3721, 0.0
        %v5775 = vsel %vm5263, %v3722, 0.0
        %v5776 = vsel %vm5264, %v3723, 0.0
        %v5777 = vsel %vm5265, %v3724, 0.0
        %v5778 = vsel %vm5266, %v3725, 0.0
        %v5779 = vsel %vm5267, %v3726, 0.0
        %v5780 = vsel %vm5268, %v3727, 0.0
        %v5781 = vsel %vm5269, %v3728, 0.0
        %v5782 = vsel %vm5270, %v3729, 0.0
        %v5783 = vsel %vm5271, %v3730, 0.0
        %v5784 = vsel %vm5272, %v3731, 0.0
        %v5785 = vsel %vm5273, %v3732, 0.0
        %v5786 = vsel %vm5274, %v3733, 0.0
        %v5787 = vsel %vm5275, %v3734, 0.0
        %v5788 = vsel %vm5276, %v3735, 0.0
        %v5789 = vsel %vm5277, %v3736, 0.0
        %v5790 = vsel %vm5278, %v3737, 0.0
        %v5791 = vsel %vm5279, %v3738, 0.0
        %v5792 = vsel %vm5280, %v3739, 0.0
        %v5793 = vsel %vm5281, %v3740, 0.0
        %v5794 = vsel %vm5282, %v3741, 0.0
        %v5795 = vsel %vm5283, %v3742, 0.0
        %v5796 = vsel %vm5284, %v3743, 0.0
        %v5797 = vsel %vm5285, %v3744, 0.0
        %v5798 = vsel %vm5286, %v3745, 0.0
        %v5799 = vsel %vm5287, %v3746, 0.0
        %v5800 = vsel %vm5288, %v3747, 0.0
        %v5801 = vsel %vm5289, %v3748, 0.0
        %v5802 = vsel %vm5290, %v3749, 0.0
        %v5803 = vsel %vm5291, %v3750, 0.0
        %v5804 = vsel %vm5292, %v3751, 0.0
        %v5805 = vsel %vm5293, %v3752, 0.0
        %v5806 = vsel %vm5294, %v3753, 0.0
        %v5807 = vsel %vm5295, %v3754, 0.0
        %v5808 = vsel %vm5296, %v3755, 0.0
        %v5809 = vsel %vm5297, %v3756, 0.0
        %v5810 = vsel %vm5298, %v3757, 0.0
        %v5811 = vsel %vm5299, %v3758, 0.0
        %v5812 = vsel %vm5300, %v3759, 0.0
        %v5813 = vsel %vm5301, %v3760, 0.0
        %v5814 = vsel %vm5302, %v3761, 0.0
        %v5815 = vsel %vm5303, %v3762, 0.0
        %v5816 = vsel %vm5304, %v3763, 0.0
        %v5817 = vsel %vm5305, %v3764, 0.0
        %v5818 = vsel %vm5306, %v3765, 0.0
        %v5819 = vsel %vm5307, %v3766, 0.0
        %v5820 = vsel %vm5308, %v3767, 0.0
        %v5821 = vsel %vm5309, %v3768, 0.0
        %v5822 = vsel %vm5310, %v3769, 0.0
        %v5823 = vsel %vm5311, %v3770, 0.0
        %v5824 = vsel %vm5312, %v3771, 0.0
        %v5825 = vsel %vm5313, %v3772, 0.0
        %v5826 = vsel %vm5314, %v3773, 0.0
        %v5827 = vsel %vm5315, %v3774, 0.0
        %v5828 = vsel %vm5316, %v3775, 0.0
        %v5829 = vsel %vm5317, %v3776, 0.0
        %v5830 = vsel %vm5318, %v3777, 0.0
        %v5831 = vsel %vm5319, %v3778, 0.0
        %v5832 = vsel %vm5320, %v3779, 0.0
        %v5833 = vsel %vm5321, %v3780, 0.0
        %v5834 = vsel %vm5322, %v3781, 0.0
        %v5835 = vsel %vm5323, %v3782, 0.0
        %v5836 = vsel %vm5324, %v3783, 0.0
        %v5837 = vsel %vm5325, %v3784, 0.0
        %v5838 = vsel %vm5326, %v3785, 0.0
        %v5839 = vsel %vm5327, %v3786, 0.0
        %v5840 = vsel %vm5328, %v3787, 0.0
        %v5841 = vsel %vm5329, %v3788, 0.0
        %v5842 = vsel %vm5330, %v3789, 0.0
        %v5843 = vsel %vm5331, %v3790, 0.0
        %v5844 = vsel %vm5332, %v3791, 0.0
        %v5845 = vsel %vm5333, %v3792, 0.0
        %v5846 = vsel %vm5334, %v3793, 0.0
        %v5847 = vsel %vm5335, %v3794, 0.0
        %v5848 = vsel %vm5336, %v3795, 0.0
        %v5849 = vsel %vm5337, %v3796, 0.0
        %v5850 = vsel %vm5338, %v3797, 0.0
        %v5851 = vsel %vm5339, %v3798, 0.0
        %v5852 = vsel %vm5340, %v3799, 0.0
        %v5853 = vsel %vm5341, %v3800, 0.0
        %v5854 = vsel %vm5342, %v3801, 0.0
        %v5855 = vsel %vm5343, %v3802, 0.0
        %v5856 = vsel %vm5344, %v3803, 0.0
        %v5857 = vsel %vm5345, %v3804, 0.0
        %v5858 = vsel %vm5346, %v3805, 0.0
        %v5859 = vsel %vm5347, %v3806, 0.0
        %v5860 = vsel %vm5348, %v3807, 0.0
        %v5861 = vsel %vm5349, %v3808, 0.0
        %v5862 = vsel %vm5350, %v3809, 0.0
        %v5863 = vsel %vm5351, %v3810, 0.0
        %v5864 = vsel %vm5352, %v3811, 0.0
        %v5865 = vsel %vm5353, %v3812, 0.0
        %v5866 = vsel %vm5354, %v3813, 0.0
        %v5867 = vsel %vm5355, %v3814, 0.0
        %v5868 = vsel %vm5356, %v3815, 0.0
        %v5869 = vsel %vm5357, %v3816, 0.0
        %v5870 = vsel %vm5358, %v3817, 0.0
        %v5871 = vsel %vm5359, %v3818, 0.0
        %v5872 = vsel %vm5360, %v3819, 0.0
        %v5873 = vsel %vm5361, %v3820, 0.0
        %v5874 = vsel %vm5362, %v3821, 0.0
        %v5875 = vsel %vm5363, %v3822, 0.0
        %v5876 = vsel %vm5364, %v3823, 0.0
        %v5877 = vsel %vm5365, %v3824, 0.0
        %v5878 = vsel %vm5366, %v3825, 0.0
        %v5879 = vsel %vm5367, %v3826, 0.0
        %v5880 = vsel %vm5368, %v3827, 0.0
        %v5881 = vsel %vm5369, %v3828, 0.0
        %v5882 = vsel %vm5370, %v3829, 0.0
        %v5883 = vsel %vm5371, %v3830, 0.0
        %v5884 = vsel %vm5372, %v3831, 0.0
        %v5885 = vsel %vm5373, %v3832, 0.0
        %v5886 = vsel %vm5374, %v3833, 0.0
        %v5887 = vsel %vm5375, %v3834, 0.0
        %v5888 = vsel %vm5376, %v3835, 0.0
        %v5889 = vsel %vm5377, %v3836, 0.0
        %v5890 = vsel %vm5378, %v3837, 0.0
        %v5891 = vsel %vm5379, %v3838, 0.0
        %v5892 = vsel %vm5380, %v3839, 0.0
        %v5893 = vsel %vm5381, %v3840, 0.0
        %v5894 = vsel %vm5382, %v3841, 0.0
        %v5895 = vsel %vm5383, %v3842, 0.0
        %v5896 = vsel %vm5384, %v3843, 0.0
        %v5897 = vsel %vm5385, %v3844, 0.0
        %v5898 = vsel %vm5386, %v3845, 0.0
        %v5899 = vsel %vm5387, %v3846, 0.0
        %v5900 = vsel %vm5388, %v3847, 0.0
        %v5901 = vsel %vm5389, %v3848, 0.0
        %v5902 = vsel %vm5390, %v3849, 0.0
        %v5903 = vsel %vm5391, %v3850, 0.0
        %v5904 = vsel %vm5392, %v3851, 0.0
        %v5905 = vsel %vm5393, %v3852, 0.0
        %v5906 = vsel %vm5394, %v3853, 0.0
        %v5907 = vsel %vm5395, %v3854, 0.0
        %v5908 = vsel %vm5396, %v3855, 0.0
        %v5909 = vsel %vm5397, %v3856, 0.0
        %v5910 = vsel %vm5398, %v3857, 0.0
        %v5911 = vsel %vm5399, %v3858, 0.0
        %v5912 = vsel %vm5400, %v3859, 0.0
        %v5913 = vsel %vm5401, %v3860, 0.0
        %v5914 = vsel %vm5402, %v3861, 0.0
        %v5915 = vsel %vm5403, %v3862, 0.0
        %v5916 = vsel %vm5404, %v3863, 0.0
        %v5917 = vsel %vm5405, %v3864, 0.0
        %v5918 = vsel %vm5406, %v3865, 0.0
        %v5919 = vsel %vm5407, %v3866, 0.0
        %v5920 = vsel %vm5408, %v3867, 0.0
        %v5921 = vsel %vm5409, %v3868, 0.0
        %v5922 = vsel %vm5410, %v3869, 0.0
        %v5923 = vsel %vm5411, %v3870, 0.0
        %v5924 = vsel %vm5412, %v3871, 0.0
        %v5925 = vsel %vm5413, %v3872, 0.0
        %v5926 = vsel %vm5414, %v3873, 0.0
        %v5927 = vsel %vm5415, %v3874, 0.0
        %v5928 = vsel %vm5416, %v3875, 0.0
        %v5929 = vsel %vm5417, %v3876, 0.0
        %v5930 = vsel %vm5418, %v3877, 0.0
        %v5931 = vsel %vm5419, %v3878, 0.0
        %v5932 = vsel %vm5420, %v3879, 0.0
        %v5933 = vsel %vm5421, %v3880, 0.0
        %v5934 = vsel %vm5422, %v3881, 0.0
        %v5935 = vsel %vm5423, %v3882, 0.0
        %v5936 = vsel %vm5424, %v3883, 0.0
        %v5937 = vsel %vm5425, %v3884, 0.0
        %v5938 = vsel %vm5426, %v3885, 0.0
        %v5939 = vsel %vm5427, %v3886, 0.0
        %v5940 = vsel %vm5428, %v3887, 0.0
        %v5941 = vsel %vm5429, %v3888, 0.0
        %v5942 = vsel %vm5430, %v3889, 0.0
        %v5943 = vsel %vm5431, %v3890, 0.0
        %v5944 = vsel %vm5432, %v3891, 0.0
        %v5945 = vsel %vm5433, %v3892, 0.0
        %v5946 = vsel %vm5434, %v3893, 0.0
        %v5947 = vsel %vm5435, %v3894, 0.0
        %v5948 = vsel %vm5436, %v3895, 0.0
        %v5949 = vsel %vm5437, %v3896, 0.0
        %v5950 = vsel %vm5438, %v3897, 0.0
        %v5951 = vsel %vm5439, %v3898, 0.0
        %v5952 = vsel %vm5440, %v3899, 0.0
        %v5953 = vsel %vm5441, %v3900, 0.0
        %v5954 = vsel %vm5442, %v3901, 0.0
        %v5955 = vsel %vm5443, %v3902, 0.0
        %v5956 = vsel %vm5444, %v3903, 0.0
        %v5957 = vsel %vm5445, %v3904, 0.0
        %v5958 = vsel %vm5446, %v3905, 0.0
        %v5959 = vsel %vm5447, %v3906, 0.0
        %v5960 = vsel %vm5448, %v3907, 0.0
        %v5961 = vsel %vm5449, %v3908, 0.0
        %v5962 = vsel %vm5450, %v3909, 0.0
        %v5963 = vsel %vm5451, %v3910, 0.0
        %v5964 = vsel %vm5452, %v3911, 0.0
        %v5965 = vsel %vm5453, %v3912, 0.0
        %v5966 = vsel %vm5454, %v3913, 0.0
        %v5967 = vsel %vm5455, %v3914, 0.0
        %v5968 = vsel %vm5456, %v3915, 0.0
        %v5969 = vsel %vm5457, %v3916, 0.0
        %v5970 = vsel %vm5458, %v3917, 0.0
        %v5971 = vsel %vm5459, %v3918, 0.0
        %v5972 = vsel %vm5460, %v3919, 0.0
        %v5973 = vsel %vm5461, %v3920, 0.0
        %v5974 = vsel %vm5462, %v3921, 0.0
        %v5975 = vsel %vm5463, %v3922, 0.0
        %v5976 = vsel %vm5464, %v3923, 0.0
        %v5977 = vsel %vm5465, %v3924, 0.0
        %v5978 = vsel %vm5466, %v3925, 0.0
        %v5979 = vsel %vm5467, %v3926, 0.0
        %v5980 = vsel %vm5468, %v3927, 0.0
        %v5981 = vsel %vm5469, %v3928, 0.0
        %v5982 = vsel %vm5470, %v3929, 0.0
        %v5983 = vsel %vm5471, %v3930, 0.0
        %v5984 = vsel %vm5472, %v3931, 0.0
        %v5985 = vsel %vm5473, %v3932, 0.0
        %v5986 = vsel %vm5474, %v3933, 0.0
        %v5987 = vsel %vm5475, %v3934, 0.0
        %v5988 = vsel %vm5476, %v3935, 0.0
        %v5989 = vsel %vm5477, %v3936, 0.0
        %v5990 = vsel %vm5478, %v3937, 0.0
        %v5991 = vsel %vm5479, %v3938, 0.0
        %v5992 = vsel %vm5480, %v3939, 0.0
        %v5993 = vsel %vm5481, %v3940, 0.0
        %v5994 = vsel %vm5482, %v3941, 0.0
        %v5995 = vsel %vm5483, %v3942, 0.0
        %v5996 = vsel %vm5484, %v3943, 0.0
        %v5997 = vsel %vm5485, %v3944, 0.0
        %v5998 = vsel %vm5486, %v3945, 0.0
        %v5999 = vsel %vm5487, %v3946, 0.0
        %v6000 = vsel %vm5488, %v3947, 0.0
        %v6001 = vld [vmem:[%s331] sm:$0xff]
        %v6002 = vadd.f32 %v5489, %v5493
        %v6003 = vadd.f32 %v6002, %v5497
        %v6004 = vadd.f32 %v6003, %v5501
        %v6005 = vadd.f32 %v6004, %v5505
        %v6006 = vadd.f32 %v6005, %v5509
        %v6007 = vadd.f32 %v6006, %v5513
        %v6008 = vadd.f32 %v6007, %v5517
        %v6009 = vadd.f32 %v6008, %v5521
        %v6010 = vadd.f32 %v6009, %v5525
        %v6011 = vadd.f32 %v6010, %v5529
        %v6012 = vadd.f32 %v6011, %v5533
        %v6013 = vadd.f32 %v6012, %v5537
        %v6014 = vadd.f32 %v6013, %v5541
        %v6015 = vadd.f32 %v6014, %v5545
        %v6016 = vadd.f32 %v6015, %v5549
        %v6017 = vadd.f32 %v6016, %v5553
        %v6018 = vadd.f32 %v6017, %v5557
        %v6019 = vadd.f32 %v6018, %v5561
        %v6020 = vadd.f32 %v6019, %v5565
        %v6021 = vadd.f32 %v6020, %v5569
        %v6022 = vadd.f32 %v6021, %v5573
        %v6023 = vadd.f32 %v6022, %v5577
        %v6024 = vadd.f32 %v6023, %v5581
        %v6025 = vadd.f32 %v6024, %v5585
        %v6026 = vadd.f32 %v6025, %v5589
        %v6027 = vadd.f32 %v6026, %v5593
        %v6028 = vadd.f32 %v6027, %v5597
        %v6029 = vadd.f32 %v6028, %v5601
        %v6030 = vadd.f32 %v6029, %v5605
        %v6031 = vadd.f32 %v6030, %v5609
        %v6032 = vadd.f32 %v6031, %v5613
        %v6033 = vadd.f32 %v6032, %v5617
        %v6034 = vadd.f32 %v6033, %v5621
        %v6035 = vadd.f32 %v6034, %v5625
        %v6036 = vadd.f32 %v6035, %v5629
        %v6037 = vadd.f32 %v6036, %v5633
        %v6038 = vadd.f32 %v6037, %v5637
        %v6039 = vadd.f32 %v6038, %v5641
        %v6040 = vadd.f32 %v6039, %v5645
        %v6041 = vadd.f32 %v6040, %v5649
        %v6042 = vadd.f32 %v6041, %v5653
        %v6043 = vadd.f32 %v6042, %v5657
        %v6044 = vadd.f32 %v6043, %v5661
        %v6045 = vadd.f32 %v6044, %v5665
        %v6046 = vadd.f32 %v6045, %v5669
        %v6047 = vadd.f32 %v6046, %v5673
        %v6048 = vadd.f32 %v6047, %v5677
        %v6049 = vadd.f32 %v6048, %v5681
        %v6050 = vadd.f32 %v6049, %v5685
        %v6051 = vadd.f32 %v6050, %v5689
        %v6052 = vadd.f32 %v6051, %v5693
        %v6053 = vadd.f32 %v6052, %v5697
        %v6054 = vadd.f32 %v6053, %v5701
        %v6055 = vadd.f32 %v6054, %v5705
        %v6056 = vadd.f32 %v6055, %v5709
        %v6057 = vadd.f32 %v6056, %v5713
        %v6058 = vadd.f32 %v6057, %v5717
        %v6059 = vadd.f32 %v6058, %v5721
        %v6060 = vadd.f32 %v6059, %v5725
        %v6061 = vadd.f32 %v6060, %v5729
        %v6062 = vadd.f32 %v6061, %v5733
        %v6063 = vadd.f32 %v6062, %v5737
        %v6064 = vadd.f32 %v6063, %v5741
        %v6065 = vadd.f32 %v6064, %v5745
        %v6066 = vadd.f32 %v6065, %v5749
        %v6067 = vadd.f32 %v6066, %v5753
        %v6068 = vadd.f32 %v6067, %v5757
        %v6069 = vadd.f32 %v6068, %v5761
        %v6070 = vadd.f32 %v6069, %v5765
        %v6071 = vadd.f32 %v6070, %v5769
        %v6072 = vadd.f32 %v6071, %v5773
        %v6073 = vadd.f32 %v6072, %v5777
        %v6074 = vadd.f32 %v6073, %v5781
        %v6075 = vadd.f32 %v6074, %v5785
        %v6076 = vadd.f32 %v6075, %v5789
        %v6077 = vadd.f32 %v6076, %v5793
        %v6078 = vadd.f32 %v6077, %v5797
        %v6079 = vadd.f32 %v6078, %v5801
        %v6080 = vadd.f32 %v6079, %v5805
        %v6081 = vadd.f32 %v6080, %v5809
        %v6082 = vadd.f32 %v6081, %v5813
        %v6083 = vadd.f32 %v6082, %v5817
        %v6084 = vadd.f32 %v6083, %v5821
        %v6085 = vadd.f32 %v6084, %v5825
        %v6086 = vadd.f32 %v6085, %v5829
        %v6087 = vadd.f32 %v6086, %v5833
        %v6088 = vadd.f32 %v6087, %v5837
        %v6089 = vadd.f32 %v6088, %v5841
        %v6090 = vadd.f32 %v6089, %v5845
        %v6091 = vadd.f32 %v6090, %v5849
        %v6092 = vadd.f32 %v6091, %v5853
        %v6093 = vadd.f32 %v6092, %v5857
        %v6094 = vadd.f32 %v6093, %v5861
        %v6095 = vadd.f32 %v6094, %v5865
        %v6096 = vadd.f32 %v6095, %v5869
        %v6097 = vadd.f32 %v6096, %v5873
        %v6098 = vadd.f32 %v6097, %v5877
        %v6099 = vadd.f32 %v6098, %v5881
        %v6100 = vadd.f32 %v6099, %v5885
        %v6101 = vadd.f32 %v6100, %v5889
        %v6102 = vadd.f32 %v6101, %v5893
        %v6103 = vadd.f32 %v6102, %v5897
        %v6104 = vadd.f32 %v6103, %v5901
        %v6105 = vadd.f32 %v6104, %v5905
        %v6106 = vadd.f32 %v6105, %v5909
        %v6107 = vadd.f32 %v6106, %v5913
        %v6108 = vadd.f32 %v6107, %v5917
        %v6109 = vadd.f32 %v6108, %v5921
        %v6110 = vadd.f32 %v6109, %v5925
        %v6111 = vadd.f32 %v6110, %v5929
        %v6112 = vadd.f32 %v6111, %v5933
        %v6113 = vadd.f32 %v6112, %v5937
        %v6114 = vadd.f32 %v6113, %v5941
        %v6115 = vadd.f32 %v6114, %v5945
        %v6116 = vadd.f32 %v6115, %v5949
        %v6117 = vadd.f32 %v6116, %v5953
        %v6118 = vadd.f32 %v6117, %v5957
        %v6119 = vadd.f32 %v6118, %v5961
        %v6120 = vadd.f32 %v6119, %v5965
        %v6121 = vadd.f32 %v6120, %v5969
        %v6122 = vadd.f32 %v6121, %v5973
        %v6123 = vadd.f32 %v6122, %v5977
        %v6124 = vadd.f32 %v6123, %v5981
        %v6125 = vadd.f32 %v6124, %v5985
        %v6126 = vadd.f32 %v6125, %v5989
        %v6127 = vadd.f32 %v6126, %v5993
        %v6128 = vadd.f32 %v6127, %v5997
        %v6129 = vadd.f32 %v5490, %v5494
        %v6130 = vadd.f32 %v6129, %v5498
        %v6131 = vadd.f32 %v6130, %v5502
        %v6132 = vadd.f32 %v6131, %v5506
        %v6133 = vadd.f32 %v6132, %v5510
        %v6134 = vadd.f32 %v6133, %v5514
        %v6135 = vadd.f32 %v6134, %v5518
        %v6136 = vadd.f32 %v6135, %v5522
        %v6137 = vadd.f32 %v6136, %v5526
        %v6138 = vadd.f32 %v6137, %v5530
        %v6139 = vadd.f32 %v6138, %v5534
        %v6140 = vadd.f32 %v6139, %v5538
        %v6141 = vadd.f32 %v6140, %v5542
        %v6142 = vadd.f32 %v6141, %v5546
        %v6143 = vadd.f32 %v6142, %v5550
        %v6144 = vadd.f32 %v6143, %v5554
        %v6145 = vadd.f32 %v6144, %v5558
        %v6146 = vadd.f32 %v6145, %v5562
        %v6147 = vadd.f32 %v6146, %v5566
        %v6148 = vadd.f32 %v6147, %v5570
        %v6149 = vadd.f32 %v6148, %v5574
        %v6150 = vadd.f32 %v6149, %v5578
        %v6151 = vadd.f32 %v6150, %v5582
        %v6152 = vadd.f32 %v6151, %v5586
        %v6153 = vadd.f32 %v6152, %v5590
        %v6154 = vadd.f32 %v6153, %v5594
        %v6155 = vadd.f32 %v6154, %v5598
        %v6156 = vadd.f32 %v6155, %v5602
        %v6157 = vadd.f32 %v6156, %v5606
        %v6158 = vadd.f32 %v6157, %v5610
        %v6159 = vadd.f32 %v6158, %v5614
        %v6160 = vadd.f32 %v6159, %v5618
        %v6161 = vadd.f32 %v6160, %v5622
        %v6162 = vadd.f32 %v6161, %v5626
        %v6163 = vadd.f32 %v6162, %v5630
        %v6164 = vadd.f32 %v6163, %v5634
        %v6165 = vadd.f32 %v6164, %v5638
        %v6166 = vadd.f32 %v6165, %v5642
        %v6167 = vadd.f32 %v6166, %v5646
        %v6168 = vadd.f32 %v6167, %v5650
        %v6169 = vadd.f32 %v6168, %v5654
        %v6170 = vadd.f32 %v6169, %v5658
        %v6171 = vadd.f32 %v6170, %v5662
        %v6172 = vadd.f32 %v6171, %v5666
        %v6173 = vadd.f32 %v6172, %v5670
        %v6174 = vadd.f32 %v6173, %v5674
        %v6175 = vadd.f32 %v6174, %v5678
        %v6176 = vadd.f32 %v6175, %v5682
        %v6177 = vadd.f32 %v6176, %v5686
        %v6178 = vadd.f32 %v6177, %v5690
        %v6179 = vadd.f32 %v6178, %v5694
        %v6180 = vadd.f32 %v6179, %v5698
        %v6181 = vadd.f32 %v6180, %v5702
        %v6182 = vadd.f32 %v6181, %v5706
        %v6183 = vadd.f32 %v6182, %v5710
        %v6184 = vadd.f32 %v6183, %v5714
        %v6185 = vadd.f32 %v6184, %v5718
        %v6186 = vadd.f32 %v6185, %v5722
        %v6187 = vadd.f32 %v6186, %v5726
        %v6188 = vadd.f32 %v6187, %v5730
        %v6189 = vadd.f32 %v6188, %v5734
        %v6190 = vadd.f32 %v6189, %v5738
        %v6191 = vadd.f32 %v6190, %v5742
        %v6192 = vadd.f32 %v6191, %v5746
        %v6193 = vadd.f32 %v6192, %v5750
        %v6194 = vadd.f32 %v6193, %v5754
        %v6195 = vadd.f32 %v6194, %v5758
        %v6196 = vadd.f32 %v6195, %v5762
        %v6197 = vadd.f32 %v6196, %v5766
        %v6198 = vadd.f32 %v6197, %v5770
        %v6199 = vadd.f32 %v6198, %v5774
        %v6200 = vadd.f32 %v6199, %v5778
        %v6201 = vadd.f32 %v6200, %v5782
        %v6202 = vadd.f32 %v6201, %v5786
        %v6203 = vadd.f32 %v6202, %v5790
        %v6204 = vadd.f32 %v6203, %v5794
        %v6205 = vadd.f32 %v6204, %v5798
        %v6206 = vadd.f32 %v6205, %v5802
        %v6207 = vadd.f32 %v6206, %v5806
        %v6208 = vadd.f32 %v6207, %v5810
        %v6209 = vadd.f32 %v6208, %v5814
        %v6210 = vadd.f32 %v6209, %v5818
        %v6211 = vadd.f32 %v6210, %v5822
        %v6212 = vadd.f32 %v6211, %v5826
        %v6213 = vadd.f32 %v6212, %v5830
        %v6214 = vadd.f32 %v6213, %v5834
        %v6215 = vadd.f32 %v6214, %v5838
        %v6216 = vadd.f32 %v6215, %v5842
        %v6217 = vadd.f32 %v6216, %v5846
        %v6218 = vadd.f32 %v6217, %v5850
        %v6219 = vadd.f32 %v6218, %v5854
        %v6220 = vadd.f32 %v6219, %v5858
        %v6221 = vadd.f32 %v6220, %v5862
        %v6222 = vadd.f32 %v6221, %v5866
        %v6223 = vadd.f32 %v6222, %v5870
        %v6224 = vadd.f32 %v6223, %v5874
        %v6225 = vadd.f32 %v6224, %v5878
        %v6226 = vadd.f32 %v6225, %v5882
        %v6227 = vadd.f32 %v6226, %v5886
        %v6228 = vadd.f32 %v6227, %v5890
        %v6229 = vadd.f32 %v6228, %v5894
        %v6230 = vadd.f32 %v6229, %v5898
        %v6231 = vadd.f32 %v6230, %v5902
        %v6232 = vadd.f32 %v6231, %v5906
        %v6233 = vadd.f32 %v6232, %v5910
        %v6234 = vadd.f32 %v6233, %v5914
        %v6235 = vadd.f32 %v6234, %v5918
        %v6236 = vadd.f32 %v6235, %v5922
        %v6237 = vadd.f32 %v6236, %v5926
        %v6238 = vadd.f32 %v6237, %v5930
        %v6239 = vadd.f32 %v6238, %v5934
        %v6240 = vadd.f32 %v6239, %v5938
        %v6241 = vadd.f32 %v6240, %v5942
        %v6242 = vadd.f32 %v6241, %v5946
        %v6243 = vadd.f32 %v6242, %v5950
        %v6244 = vadd.f32 %v6243, %v5954
        %v6245 = vadd.f32 %v6244, %v5958
        %v6246 = vadd.f32 %v6245, %v5962
        %v6247 = vadd.f32 %v6246, %v5966
        %v6248 = vadd.f32 %v6247, %v5970
        %v6249 = vadd.f32 %v6248, %v5974
        %v6250 = vadd.f32 %v6249, %v5978
        %v6251 = vadd.f32 %v6250, %v5982
        %v6252 = vadd.f32 %v6251, %v5986
        %v6253 = vadd.f32 %v6252, %v5990
        %v6254 = vadd.f32 %v6253, %v5994
        %v6255 = vadd.f32 %v6254, %v5998
        %v6256 = vadd.f32 %v5491, %v5495
        %v6257 = vadd.f32 %v6256, %v5499
        %v6258 = vadd.f32 %v6257, %v5503
        %v6259 = vadd.f32 %v6258, %v5507
        %v6260 = vadd.f32 %v6259, %v5511
        %v6261 = vadd.f32 %v6260, %v5515
        %v6262 = vadd.f32 %v6261, %v5519
        %v6263 = vadd.f32 %v6262, %v5523
        %v6264 = vadd.f32 %v6263, %v5527
        %v6265 = vadd.f32 %v6264, %v5531
        %v6266 = vadd.f32 %v6265, %v5535
        %v6267 = vadd.f32 %v6266, %v5539
        %v6268 = vadd.f32 %v6267, %v5543
        %v6269 = vadd.f32 %v6268, %v5547
        %v6270 = vadd.f32 %v6269, %v5551
        %v6271 = vadd.f32 %v6270, %v5555
        %v6272 = vadd.f32 %v6271, %v5559
        %v6273 = vadd.f32 %v6272, %v5563
        %v6274 = vadd.f32 %v6273, %v5567
        %v6275 = vadd.f32 %v6274, %v5571
        %v6276 = vadd.f32 %v6275, %v5575
        %v6277 = vadd.f32 %v6276, %v5579
        %v6278 = vadd.f32 %v6277, %v5583
        %v6279 = vadd.f32 %v6278, %v5587
        %v6280 = vadd.f32 %v6279, %v5591
        %v6281 = vadd.f32 %v6280, %v5595
        %v6282 = vadd.f32 %v6281, %v5599
        %v6283 = vadd.f32 %v6282, %v5603
        %v6284 = vadd.f32 %v6283, %v5607
        %v6285 = vadd.f32 %v6284, %v5611
        %v6286 = vadd.f32 %v6285, %v5615
        %v6287 = vadd.f32 %v6286, %v5619
        %v6288 = vadd.f32 %v6287, %v5623
        %v6289 = vadd.f32 %v6288, %v5627
        %v6290 = vadd.f32 %v6289, %v5631
        %v6291 = vadd.f32 %v6290, %v5635
        %v6292 = vadd.f32 %v6291, %v5639
        %v6293 = vadd.f32 %v6292, %v5643
        %v6294 = vadd.f32 %v6293, %v5647
        %v6295 = vadd.f32 %v6294, %v5651
        %v6296 = vadd.f32 %v6295, %v5655
        %v6297 = vadd.f32 %v6296, %v5659
        %v6298 = vadd.f32 %v6297, %v5663
        %v6299 = vadd.f32 %v6298, %v5667
        %v6300 = vadd.f32 %v6299, %v5671
        %v6301 = vadd.f32 %v6300, %v5675
        %v6302 = vadd.f32 %v6301, %v5679
        %v6303 = vadd.f32 %v6302, %v5683
        %v6304 = vadd.f32 %v6303, %v5687
        %v6305 = vadd.f32 %v6304, %v5691
        %v6306 = vadd.f32 %v6305, %v5695
        %v6307 = vadd.f32 %v6306, %v5699
        %v6308 = vadd.f32 %v6307, %v5703
        %v6309 = vadd.f32 %v6308, %v5707
        %v6310 = vadd.f32 %v6309, %v5711
        %v6311 = vadd.f32 %v6310, %v5715
        %v6312 = vadd.f32 %v6311, %v5719
        %v6313 = vadd.f32 %v6312, %v5723
        %v6314 = vadd.f32 %v6313, %v5727
        %v6315 = vadd.f32 %v6314, %v5731
        %v6316 = vadd.f32 %v6315, %v5735
        %v6317 = vadd.f32 %v6316, %v5739
        %v6318 = vadd.f32 %v6317, %v5743
        %v6319 = vadd.f32 %v6318, %v5747
        %v6320 = vadd.f32 %v6319, %v5751
        %v6321 = vadd.f32 %v6320, %v5755
        %v6322 = vadd.f32 %v6321, %v5759
        %v6323 = vadd.f32 %v6322, %v5763
        %v6324 = vadd.f32 %v6323, %v5767
        %v6325 = vadd.f32 %v6324, %v5771
        %v6326 = vadd.f32 %v6325, %v5775
        %v6327 = vadd.f32 %v6326, %v5779
        %v6328 = vadd.f32 %v6327, %v5783
        %v6329 = vadd.f32 %v6328, %v5787
        %v6330 = vadd.f32 %v6329, %v5791
        %v6331 = vadd.f32 %v6330, %v5795
        %v6332 = vadd.f32 %v6331, %v5799
        %v6333 = vadd.f32 %v6332, %v5803
        %v6334 = vadd.f32 %v6333, %v5807
        %v6335 = vadd.f32 %v6334, %v5811
        %v6336 = vadd.f32 %v6335, %v5815
        %v6337 = vadd.f32 %v6336, %v5819
        %v6338 = vadd.f32 %v6337, %v5823
        %v6339 = vadd.f32 %v6338, %v5827
        %v6340 = vadd.f32 %v6339, %v5831
        %v6341 = vadd.f32 %v6340, %v5835
        %v6342 = vadd.f32 %v6341, %v5839
        %v6343 = vadd.f32 %v6342, %v5843
        %v6344 = vadd.f32 %v6343, %v5847
        %v6345 = vadd.f32 %v6344, %v5851
        %v6346 = vadd.f32 %v6345, %v5855
        %v6347 = vadd.f32 %v6346, %v5859
        %v6348 = vadd.f32 %v6347, %v5863
        %v6349 = vadd.f32 %v6348, %v5867
        %v6350 = vadd.f32 %v6349, %v5871
        %v6351 = vadd.f32 %v6350, %v5875
        %v6352 = vadd.f32 %v6351, %v5879
        %v6353 = vadd.f32 %v6352, %v5883
        %v6354 = vadd.f32 %v6353, %v5887
        %v6355 = vadd.f32 %v6354, %v5891
        %v6356 = vadd.f32 %v6355, %v5895
        %v6357 = vadd.f32 %v6356, %v5899
        %v6358 = vadd.f32 %v6357, %v5903
        %v6359 = vadd.f32 %v6358, %v5907
        %v6360 = vadd.f32 %v6359, %v5911
        %v6361 = vadd.f32 %v6360, %v5915
        %v6362 = vadd.f32 %v6361, %v5919
        %v6363 = vadd.f32 %v6362, %v5923
        %v6364 = vadd.f32 %v6363, %v5927
        %v6365 = vadd.f32 %v6364, %v5931
        %v6366 = vadd.f32 %v6365, %v5935
        %v6367 = vadd.f32 %v6366, %v5939
        %v6368 = vadd.f32 %v6367, %v5943
        %v6369 = vadd.f32 %v6368, %v5947
        %v6370 = vadd.f32 %v6369, %v5951
        %v6371 = vadd.f32 %v6370, %v5955
        %v6372 = vadd.f32 %v6371, %v5959
        %v6373 = vadd.f32 %v6372, %v5963
        %v6374 = vadd.f32 %v6373, %v5967
        %v6375 = vadd.f32 %v6374, %v5971
        %v6376 = vadd.f32 %v6375, %v5975
        %v6377 = vadd.f32 %v6376, %v5979
        %v6378 = vadd.f32 %v6377, %v5983
        %v6379 = vadd.f32 %v6378, %v5987
        %v6380 = vadd.f32 %v6379, %v5991
        %v6381 = vadd.f32 %v6380, %v5995
        %v6382 = vadd.f32 %v6381, %v5999
        %v6383 = vadd.f32 %v5492, %v5496
        %v6384 = vadd.f32 %v6383, %v5500
        %v6385 = vadd.f32 %v6384, %v5504
        %v6386 = vadd.f32 %v6385, %v5508
        %v6387 = vadd.f32 %v6386, %v5512
        %v6388 = vadd.f32 %v6387, %v5516
        %v6389 = vadd.f32 %v6388, %v5520
        %v6390 = vadd.f32 %v6389, %v5524
        %v6391 = vadd.f32 %v6390, %v5528
        %v6392 = vadd.f32 %v6391, %v5532
        %v6393 = vadd.f32 %v6392, %v5536
        %v6394 = vadd.f32 %v6393, %v5540
        %v6395 = vadd.f32 %v6394, %v5544
        %v6396 = vadd.f32 %v6395, %v5548
        %v6397 = vadd.f32 %v6396, %v5552
        %v6398 = vadd.f32 %v6397, %v5556
        %v6399 = vadd.f32 %v6398, %v5560
        %v6400 = vadd.f32 %v6399, %v5564
        %v6401 = vadd.f32 %v6400, %v5568
        %v6402 = vadd.f32 %v6401, %v5572
        %v6403 = vadd.f32 %v6402, %v5576
        %v6404 = vadd.f32 %v6403, %v5580
        %v6405 = vadd.f32 %v6404, %v5584
        %v6406 = vadd.f32 %v6405, %v5588
        %v6407 = vadd.f32 %v6406, %v5592
        %v6408 = vadd.f32 %v6407, %v5596
        %v6409 = vadd.f32 %v6408, %v5600
        %v6410 = vadd.f32 %v6409, %v5604
        %v6411 = vadd.f32 %v6410, %v5608
        %v6412 = vadd.f32 %v6411, %v5612
        %v6413 = vadd.f32 %v6412, %v5616
        %v6414 = vadd.f32 %v6413, %v5620
        %v6415 = vadd.f32 %v6414, %v5624
        %v6416 = vadd.f32 %v6415, %v5628
        %v6417 = vadd.f32 %v6416, %v5632
        %v6418 = vadd.f32 %v6417, %v5636
        %v6419 = vadd.f32 %v6418, %v5640
        %v6420 = vadd.f32 %v6419, %v5644
        %v6421 = vadd.f32 %v6420, %v5648
        %v6422 = vadd.f32 %v6421, %v5652
        %v6423 = vadd.f32 %v6422, %v5656
        %v6424 = vadd.f32 %v6423, %v5660
        %v6425 = vadd.f32 %v6424, %v5664
        %v6426 = vadd.f32 %v6425, %v5668
        %v6427 = vadd.f32 %v6426, %v5672
        %v6428 = vadd.f32 %v6427, %v5676
        %v6429 = vadd.f32 %v6428, %v5680
        %v6430 = vadd.f32 %v6429, %v5684
        %v6431 = vadd.f32 %v6430, %v5688
        %v6432 = vadd.f32 %v6431, %v5692
        %v6433 = vadd.f32 %v6432, %v5696
        %v6434 = vadd.f32 %v6433, %v5700
        %v6435 = vadd.f32 %v6434, %v5704
        %v6436 = vadd.f32 %v6435, %v5708
        %v6437 = vadd.f32 %v6436, %v5712
        %v6438 = vadd.f32 %v6437, %v5716
        %v6439 = vadd.f32 %v6438, %v5720
        %v6440 = vadd.f32 %v6439, %v5724
        %v6441 = vadd.f32 %v6440, %v5728
        %v6442 = vadd.f32 %v6441, %v5732
        %v6443 = vadd.f32 %v6442, %v5736
        %v6444 = vadd.f32 %v6443, %v5740
        %v6445 = vadd.f32 %v6444, %v5744
        %v6446 = vadd.f32 %v6445, %v5748
        %v6447 = vadd.f32 %v6446, %v5752
        %v6448 = vadd.f32 %v6447, %v5756
        %v6449 = vadd.f32 %v6448, %v5760
        %v6450 = vadd.f32 %v6449, %v5764
        %v6451 = vadd.f32 %v6450, %v5768
        %v6452 = vadd.f32 %v6451, %v5772
        %v6453 = vadd.f32 %v6452, %v5776
        %v6454 = vadd.f32 %v6453, %v5780
        %v6455 = vadd.f32 %v6454, %v5784
        %v6456 = vadd.f32 %v6455, %v5788
        %v6457 = vadd.f32 %v6456, %v5792
        %v6458 = vadd.f32 %v6457, %v5796
        %v6459 = vadd.f32 %v6458, %v5800
        %v6460 = vadd.f32 %v6459, %v5804
        %v6461 = vadd.f32 %v6460, %v5808
        %v6462 = vadd.f32 %v6461, %v5812
        %v6463 = vadd.f32 %v6462, %v5816
        %v6464 = vadd.f32 %v6463, %v5820
        %v6465 = vadd.f32 %v6464, %v5824
        %v6466 = vadd.f32 %v6465, %v5828
        %v6467 = vadd.f32 %v6466, %v5832
        %v6468 = vadd.f32 %v6467, %v5836
        %v6469 = vadd.f32 %v6468, %v5840
        %v6470 = vadd.f32 %v6469, %v5844
        %v6471 = vadd.f32 %v6470, %v5848
        %v6472 = vadd.f32 %v6471, %v5852
        %v6473 = vadd.f32 %v6472, %v5856
        %v6474 = vadd.f32 %v6473, %v5860
        %v6475 = vadd.f32 %v6474, %v5864
        %v6476 = vadd.f32 %v6475, %v5868
        %v6477 = vadd.f32 %v6476, %v5872
        %v6478 = vadd.f32 %v6477, %v5876
        %v6479 = vadd.f32 %v6478, %v5880
        %v6480 = vadd.f32 %v6479, %v5884
        %v6481 = vadd.f32 %v6480, %v5888
        %v6482 = vadd.f32 %v6481, %v5892
        %v6483 = vadd.f32 %v6482, %v5896
        %v6484 = vadd.f32 %v6483, %v5900
        %v6485 = vadd.f32 %v6484, %v5904
        %v6486 = vadd.f32 %v6485, %v5908
        %v6487 = vadd.f32 %v6486, %v5912
        %v6488 = vadd.f32 %v6487, %v5916
        %v6489 = vadd.f32 %v6488, %v5920
        %v6490 = vadd.f32 %v6489, %v5924
        %v6491 = vadd.f32 %v6490, %v5928
        %v6492 = vadd.f32 %v6491, %v5932
        %v6493 = vadd.f32 %v6492, %v5936
        %v6494 = vadd.f32 %v6493, %v5940
        %v6495 = vadd.f32 %v6494, %v5944
        %v6496 = vadd.f32 %v6495, %v5948
        %v6497 = vadd.f32 %v6496, %v5952
        %v6498 = vadd.f32 %v6497, %v5956
        %v6499 = vadd.f32 %v6498, %v5960
        %v6500 = vadd.f32 %v6499, %v5964
        %v6501 = vadd.f32 %v6500, %v5968
        %v6502 = vadd.f32 %v6501, %v5972
        %v6503 = vadd.f32 %v6502, %v5976
        %v6504 = vadd.f32 %v6503, %v5980
        %v6505 = vadd.f32 %v6504, %v5984
        %v6506 = vadd.f32 %v6505, %v5988
        %v6507 = vadd.f32 %v6506, %v5992
        %v6508 = vadd.f32 %v6507, %v5996
        %v6509 = vadd.f32 %v6508, %v6000
        %v6510 = vadd.f32 %v6128, %v6255
        %v6511 = vadd.f32 %v6382, %v6509
        %v6512 = vadd.f32 %v6510, %v6511
        %v6513 = vadd.f32 %v6001, %v6512
        %6514 = vst [vmem:[%s331] sm:$0xff] %v6513
        %s6515 = sand.u32 %s145, 1
        %s6516 = scalar_lea.sflag [#allocation4], %s6515
        %s6517 = sand.u32 %s145, 1
        %s6518 = smul.addr %s6517, 8
        %s6519 = scalar_lea.vmem [#allocation8], %s6518
        // Predicated region
        $region49: #{tpu_custom_call.1} parent=31 // pred_check
          %p6520 = pneg %p155
        $region50: #{tpu_custom_call.1} parent=31 // pred_check_branch
          %6522 = sbr.rel (%p6520) target = $region52
        $region51: #{tpu_custom_call.1} parent=31 // pred_region
          %s6524 = ssub.s32 128, 128
          %6525 = vsyncadd %s6516, %s6524
          %s6526 = smul.addr %s27, 128
          %s6527 = scalar_lea.hbm %s3, %s6526
          %s6529 = sshll.u32 %s6519, 4
          %s6530 = int_to_ptr.vmem [resolvable:$true] %s6529
          %6532 = dma.vmem_to_hbm [thread:$0]  %s6530, 128, %s6527, %s6516
        $region52: #{tpu_custom_call.1} parent=31 // pred_fallthru
          _
      $region32: #{tpu_custom_call.1} parent=5 // pred_fallthru
        _
      %p6533 = scmp.le.s32.totalorder 2, %s18
      // Predicated region
      $region53: #{tpu_custom_call.1} parent=5 // pred_check
        %p6534 = pneg %p6533
      $region54: #{tpu_custom_call.1} parent=5 // pred_check_branch
        %6536 = sbr.rel (%p6534) target = $region56
      $region55: #{tpu_custom_call.1} parent=5 // pred_region
        %s6537 = ssub.s32 %s18, 2
        // Predicated region
        $region57: #{tpu_custom_call.1} parent=55 // pred_check
          %p6538 = pneg %p161
        $region58: #{tpu_custom_call.1} parent=55 // pred_check_branch
          %6540 = sbr.rel (%p6538) target = $region60
        $region59: #{tpu_custom_call.1} parent=55 // pred_region
          %s6541 = sand.u32 %s146, 1
          %s6542 = scalar_lea.sflag [#allocation4], %s6541
          %s6543 = sand.u32 %s146, 1
          %s6544 = smul.addr %s6543, 8
          %s6545 = scalar_lea.vmem [#allocation8], %s6544
          %6546 = dma.done %s6542, 128
        $region60: #{tpu_custom_call.1} parent=55 // pred_fallthru
          _
      $region56: #{tpu_custom_call.1} parent=5 // pred_fallthru
        _
    $region6: #{tpu_custom_call.1} parent=1 // loop_footer
      %s22 = sadd.s32 1, %s18
    $region7: #{tpu_custom_call.1} parent=1 // loop_footer_branch
      %17 = sbr.rel target = $region3
    $region8: #{tpu_custom_call.1} parent=1 // loop_exit
      _
    %6547 = vsyncpa [#allocation3], 1
    %s6548 = scalar_lea.sflag [#allocation3], 1
    %6549 = vsyncpa %s6548, 1
    %6550 = vsyncpa [#allocation6], 1
    %s6551 = scalar_lea.sflag [#allocation6], 1
    %6552 = vsyncpa %s6551, 1
    %6553 = vsyncpa [#allocation4], 1
    %s6554 = scalar_lea.sflag [#allocation4], 1
    %6555 = vsyncpa %s6554, 1

</llo_original>
